<compile_context>
chip_gen: v6e
topology: v6e:2x2x1
jax: 0.10.0
libtpu: 0.0.40
codegen_flags: <defaults>
</compile_context>

<pallas_src>
import jax
import jax.numpy as jnp
from jax.experimental import pallas as pl
from jax.experimental.pallas import tpu as pltpu


def _round_up(a: int, b: int) -> int:
    return (a + b - 1) // b * b


# ---------------------------------------------------------------------------
# Fused kernel: 1x1 conv (+folded BN, ReLU) -> fc1 (+bias, ReLU) -> fc2 (+bias)
# ---------------------------------------------------------------------------
def _inception_aux_kernel(xp_ref, wc_ref, cshift_ref, w1_ref, b1_ref,
                          w2_ref, b2_ref, o_ref, a_ref, acc_ref):
    # xp_ref:     (T*TB, Cin_pad)   bf16  pooled input for this batch tile, row = tap*TB + b
    # wc_ref:     (Cin_pad, 128)    bf16  1x1 conv weight with BN scale folded in
    # cshift_ref: (1, 128)          f32   folded BN shift
    # w1_ref:     (T*128, 1024)     bf16  fc1 weight, rows in (tap, conv_ch) order
    # b1_ref:     (1, 1024)         f32
    # w2_ref:     (1024, C_pad)     bf16  fc2 weight (classes padded to lane multiple)
    # b2_ref:     (1, C_pad)        f32
    # o_ref:      (TB, C_pad)       f32   logits
    # a_ref:      (T*TB, 128)       bf16  VMEM scratch: conv activations (lane-dense store)
    # acc_ref:    (TB, 1024)        f32   VMEM scratch: fc1 accumulator
    tb = o_ref.shape[0]
    cout = wc_ref.shape[1]
    num_taps = a_ref.shape[0] // tb

    # Stage A: all 16 pooled taps of the batch tile in ONE MXU matmul
    # (conv weight block pushed once), + folded-BN shift + ReLU in f32.
    conv = jnp.dot(xp_ref[...], wc_ref[...], preferred_element_type=jnp.float32)
    conv = jnp.maximum(conv + cshift_ref[...], 0.0)
    a_ref[...] = conv.astype(a_ref.dtype)          # full-lane, full-sublane bf16 store

    # Stage B: fc1 accumulated over the tap axis -- no (TB, 2048) transposed slab is ever
    # materialized; each partial is an aligned (TB,128) row-slice of the Stage-A result.
    acc_ref[...] = jnp.zeros_like(acc_ref)
    for p in range(num_taps):
        acc_ref[...] += jnp.dot(a_ref[p * tb:(p + 1) * tb, :],
                                w1_ref[p * cout:(p + 1) * cout, :],
                                preferred_element_type=jnp.float32)
    h1 = jnp.maximum(acc_ref[...] + b1_ref[...], 0.0)

    # TODO(synk): F.dropout(p=0.7) is eval-only identity here; training-mode dropout would
    # need pltpu.prng_seed / prng_random_bits wiring.

    # Stage C: fc2 + bias -- single lane-dense f32 store of the logits.
    logits = jnp.dot(h1.astype(jnp.bfloat16), w2_ref[...],
                     preferred_element_type=jnp.float32)
    o_ref[...] = logits + b2_ref[...]


# ---------------------------------------------------------------------------
# Plain-JAX glue
# ---------------------------------------------------------------------------
def _adaptive_avg_pool_taps(x_nchw, oh=4, ow=4):
    """PyTorch-style adaptive_avg_pool2d to (oh, ow), returned tap-major (oh*ow, N, C)."""
    n, c, h, w = x_nchw.shape
    if h % oh == 0 and w % ow == 0:
        # Single fused two-axis reduction over the NCHW map.
        pooled = x_nchw.reshape(n, c, oh, h // oh, ow, w // ow).mean(axis=(3, 5))  # (N,C,4,4)
        return pooled.reshape(n, c, oh * ow).transpose(2, 0, 1)                    # (16,N,C)
    # Fallback: PyTorch adaptive bins for non-divisible spatial sizes.
    taps = []
    for i in range(oh):
        hs = (i * h) // oh
        he = -((-(i + 1) * h) // oh)              # ceil((i+1)*h/oh)
        for j in range(ow):
            ws = (j * w) // ow
            we = -((-(j + 1) * w) // ow)
            taps.append(jnp.mean(x_nchw[:, :, hs:he, ws:we], axis=(2, 3)))  # (N, C)
    return jnp.stack(taps, axis=0)                # (oh*ow, N, C)


@jax.jit
def inception_aux_forward(x, conv_w, bn_gamma, bn_beta, bn_mean, bn_var,
                          fc1_w, fc1_b, fc2_w, fc2_b):
    """Eval-mode forward of InceptionAux. x: (N, Cin, H, W) NCHW (PyTorch layout)."""
    eps = 1e-3                                    # BatchNorm2d(eps=0.001)
    n, cin = x.shape[0], x.shape[1]
    cout = conv_w.shape[0]                        # 128
    hidden = fc1_w.shape[0]                       # 1024
    num_classes = fc2_w.shape[0]
    num_taps = 16                                 # adaptive_avg_pool2d -> 4*4
    assert fc1_w.shape[1] == cout * num_taps, "fc1 expects 2048 = 128*4*4 inputs"
    assert fc2_w.shape[1] == hidden

    # ---- glue: pool, BN fold, weight permute/pad, bf16 casts ----
    taps = _adaptive_avg_pool_taps(x.astype(jnp.float32))            # (16, N, Cin)

    cin_pad = _round_up(cin, 128)                 # lane-aligned contraction dim
    c_pad = _round_up(num_classes, 128)           # lane-dense logits store
    # Batch tile: multiple of 16 (bf16 sublane packing, unmasked stores), capped at 128 so
    # large batches get multiple grid steps (amortized-but-bounded fc1 weight re-push, and
    # >=2 steps feed both v7x TensorCores through dimension_semantics=("parallel",)).
    tb = min(_round_up(n, 16), 128)
    n_pad = _round_up(n, tb)
    num_tiles = n_pad // tb

    # Lay out pooled input as (batch_tile, tap, local_batch, Cin) flattened to 2-D so the
    # kernel's xp block is a contiguous (16*tb, Cin_pad) slab -> single Stage-A matmul.
    xp = jnp.pad(taps, ((0, 0), (0, n_pad - n), (0, cin_pad - cin)))  # (16, n_pad, cin_pad)
    xp = xp.reshape(num_taps, num_tiles, tb, cin_pad).transpose(1, 0, 2, 3)
    xp = xp.reshape(num_tiles * num_taps * tb, cin_pad).astype(jnp.bfloat16)

    scale = bn_gamma / jnp.sqrt(bn_var + eps)                         # (128,)
    wc = conv_w.reshape(cout, cin).T * scale[None, :]                 # fold BN scale
    wc = jnp.pad(wc, ((0, cin_pad - cin), (0, 0))).astype(jnp.bfloat16)
    cshift = (bn_beta - bn_mean * scale).reshape(1, cout).astype(jnp.float32)

    # torch flattens the conv output in NCHW order (col = c*16 + tap); the kernel keeps
    # activations channel-minor per tap (fc1 K-row = tap*128 + c), so permute fc1 once here.
    w1 = fc1_w.reshape(hidden, cout, num_taps).transpose(2, 1, 0)     # (tap, c, hidden)
    w1 = w1.reshape(cout * num_taps, hidden).astype(jnp.bfloat16)
    b1 = fc1_b.reshape(1, hidden).astype(jnp.float32)

    w2 = jnp.pad(fc2_w.T, ((0, 0), (0, c_pad - num_classes))).astype(jnp.bfloat16)
    b2 = jnp.pad(fc2_b, (0, c_pad - num_classes)).reshape(1, c_pad).astype(jnp.float32)

    # Advisory cost so XLA can schedule this call (and its weight DMA) early.
    flops = 2 * n_pad * (num_taps * cin_pad * cout
                         + num_taps * cout * hidden
                         + hidden * c_pad)
    bytes_accessed = (xp.size * 2 + wc.size * 2 + w1.size * 2 + w2.size * 2
                      + (cshift.size + b1.size + b2.size) * 4 + n_pad * c_pad * 4)

    out = pl.pallas_call(
        _inception_aux_kernel,
        out_shape=jax.ShapeDtypeStruct((n_pad, c_pad), jnp.float32),
        grid_spec=pltpu.PrefetchScalarGridSpec(
            num_scalar_prefetch=0,
            grid=(num_tiles,),                    # parallel over batch tiles
            in_specs=[
                pl.BlockSpec((num_taps * tb, cin_pad), lambda i: (i, 0)),
                pl.BlockSpec((cin_pad, cout), lambda i: (0, 0)),        # weights: constant
                pl.BlockSpec((1, cout), lambda i: (0, 0)),              # index_maps ->
                pl.BlockSpec((cout * num_taps, hidden), lambda i: (0, 0)),  # VMEM-resident
                pl.BlockSpec((1, hidden), lambda i: (0, 0)),
                pl.BlockSpec((hidden, c_pad), lambda i: (0, 0)),
                pl.BlockSpec((1, c_pad), lambda i: (0, 0)),
            ],
            out_specs=pl.BlockSpec((tb, c_pad), lambda i: (i, 0)),
            scratch_shapes=[
                pltpu.VMEM((num_taps * tb, cout), jnp.bfloat16),  # conv activations
                pltpu.VMEM((tb, hidden), jnp.float32),            # fc1 accumulator
            ],
        ),
        compiler_params=pltpu.CompilerParams(
            dimension_semantics=("parallel",),
            # ~11-16 MiB working set (bf16 weights double-buffered + tiles + scratch) --
            # well under 64 MiB (v7x) / 128 MiB (v5e, v6e) VMEM.
            vmem_limit_bytes=32 * 1024 * 1024,
        ),
        cost_estimate=pl.CostEstimate(flops=int(flops), transcendentals=0,
                                      bytes_accessed=int(bytes_accessed)),
    )(xp, wc, cshift, w1, b1, w2, b2)

    return out[:n, :num_classes]


# ---------------------------------------------------------------------------
# Pure-JAX reference (f32, PyTorch semantics, eval mode)
# ---------------------------------------------------------------------------
def _reference(x, conv_w, bn_gamma, bn_beta, bn_mean, bn_var,
               fc1_w, fc1_b, fc2_w, fc2_b):
    eps = 1e-3
    n, c, h, w = x.shape
    cout = conv_w.shape[0]
    rows = []
    for i in range(4):
        hs, he = (i * h) // 4, -((-(i + 1) * h) // 4)
        cols = []
        for j in range(4):
            ws, we = (j * w) // 4, -((-(j + 1) * w) // 4)
            cols.append(jnp.mean(x[:, :, hs:he, ws:we], axis=(2, 3)))
        rows.append(jnp.stack(cols, axis=-1))
    pooled = jnp.stack(rows, axis=-2)                                  # (N, C, 4, 4)
    y = jnp.einsum('nchw,oc->nohw', pooled, conv_w.reshape(cout, c))   # 1x1 conv
    scale = bn_gamma / jnp.sqrt(bn_var + eps)
    shift = bn_beta - bn_mean * scale
    y = jnp.maximum(y * scale[None, :, None, None] + shift[None, :, None, None], 0.0)
    flat = y.reshape(n, -1)                                            # NCHW flatten
    h1 = jnp.maximum(flat @ fc1_w.T + fc1_b, 0.0)
    return h1 @ fc2_w.T + fc2_b                                        # eval: dropout = id


if __name__ == "__main__":
    key = jax.random.PRNGKey(0)
    k = jax.random.split(key, 6)

    # InceptionAux(in_channels=16, num_classes=10), feature map (2, 16, 16, 16).
    N, Cin, H, W = 2, 16, 16, 16
    Cout, NumClasses = 128, 10

    x = jax.random.normal(k[0], (N, Cin, H, W), dtype=jnp.float32)
    conv_w = 0.1 * jax.random.normal(k[1], (Cout, Cin, 1, 1), dtype=jnp.float32)
    bn_gamma = 1.0 + 0.002 * jnp.arange(Cout, dtype=jnp.float32)
    bn_beta = 0.003 * jnp.arange(Cout, dtype=jnp.float32)
    bn_mean = 0.002 * jnp.arange(Cout, dtype=jnp.float32)
    bn_var = 1.0 + 0.01 * jnp.arange(Cout, dtype=jnp.float32)
    fc1_w = 0.02 * jax.random.normal(k[2], (1024, 2048), dtype=jnp.float32)
    fc1_b = 0.01 * jax.random.normal(k[3], (1024,), dtype=jnp.float32)
    fc2_w = 0.03 * jax.random.normal(k[4], (NumClasses, 1024), dtype=jnp.float32)
    fc2_b = 0.01 * jax.random.normal(k[5], (NumClasses,), dtype=jnp.float32)

    out = inception_aux_forward(x, conv_w, bn_gamma, bn_beta, bn_mean, bn_var,
                                fc1_w, fc1_b, fc2_w, fc2_b)
    out = jax.block_until_ready(out)

    ref = _reference(x, conv_w, bn_gamma, bn_beta, bn_mean, bn_var,
                     fc1_w, fc1_b, fc2_w, fc2_b)
    assert out.shape == (N, NumClasses)
    max_err = float(jnp.max(jnp.abs(out - ref)))
    assert jnp.allclose(out, ref, atol=2e-2, rtol=2e-2), (
        f"mismatch vs reference (max abs err {max_err})")
    print("KERNEL_OK")
</pallas_src>

<mosaic_0001>
module attributes {stable_mosaic.version = 11 : i64} {
  func.func @_inception_aux_kernel(%arg0: i32, %arg1: memref<256x128xbf16, #tpu.memory_space<vmem>>, %arg2: memref<128x128xbf16, #tpu.memory_space<vmem>>, %arg3: memref<1x128xf32, #tpu.memory_space<vmem>>, %arg4: memref<2048x1024xbf16, #tpu.memory_space<vmem>>, %arg5: memref<1x1024xf32, #tpu.memory_space<vmem>>, %arg6: memref<1024x128xbf16, #tpu.memory_space<vmem>>, %arg7: memref<1x128xf32, #tpu.memory_space<vmem>>, %arg8: memref<16x128xf32, #tpu.memory_space<vmem>>, %arg9: memref<256x128xbf16, #tpu.memory_space<vmem>>, %arg10: memref<16x1024xf32, #tpu.memory_space<vmem>>) attributes {dimension_semantics = [#tpu.dimension_semantics<parallel>], iteration_bounds = array<i64: 1>, scalar_prefetch = 0 : i64, scratch_operands = 2 : i64, tpu.core_type = #tpu.core_type<tc>, window_params = [{transform_indices = @transform_0, window_bounds = array<i64: 256, 128>}, {pipeline_mode = #tpu.pipeline_mode<synchronous>, transform_indices = @transform_1, window_bounds = array<i64: 128, 128>}, {pipeline_mode = #tpu.pipeline_mode<synchronous>, transform_indices = @transform_2, window_bounds = array<i64: 1, 128>}, {pipeline_mode = #tpu.pipeline_mode<synchronous>, transform_indices = @transform_3, window_bounds = array<i64: 2048, 1024>}, {pipeline_mode = #tpu.pipeline_mode<synchronous>, transform_indices = @transform_4, window_bounds = array<i64: 1, 1024>}, {pipeline_mode = #tpu.pipeline_mode<synchronous>, transform_indices = @transform_5, window_bounds = array<i64: 1024, 128>}, {pipeline_mode = #tpu.pipeline_mode<synchronous>, transform_indices = @transform_6, window_bounds = array<i64: 1, 128>}, {transform_indices = @transform_7, window_bounds = array<i64: 16, 128>}]} {
    %c0 = arith.constant 0 : index
    %c0_0 = arith.constant 0 : index
    %0 = vector.load %arg1[%c0, %c0_0] : memref<256x128xbf16, #tpu.memory_space<vmem>>, vector<256x128xbf16>
    %c0_1 = arith.constant 0 : index
    %c0_2 = arith.constant 0 : index
    %1 = vector.load %arg2[%c0_1, %c0_2] : memref<128x128xbf16, #tpu.memory_space<vmem>>, vector<128x128xbf16>
    %cst = arith.constant dense<0.000000e+00> : vector<256x128xf32>
    %2 = tpu.matmul %0, %1, %cst {dimension_numbers = #tpu.dot_dimension_numbers<[1], [0], [0], [1], [0, 0, 1, 1], [], []>} : vector<256x128xbf16>, vector<128x128xbf16>, vector<256x128xf32> -> vector<256x128xf32>
    %c0_3 = arith.constant 0 : index
    %c0_4 = arith.constant 0 : index
    %3 = vector.load %arg3[%c0_3, %c0_4] : memref<1x128xf32, #tpu.memory_space<vmem>>, vector<1x128xf32>
    %4 = vector.broadcast %3 : vector<1x128xf32> to vector<256x128xf32>
    %5 = arith.addf %2, %4 : vector<256x128xf32>
    %cst_5 = arith.constant 0.000000e+00 : f32
    %6 = vector.broadcast %cst_5 : f32 to vector<256x128xf32>
    %7 = arith.maximumf %5, %6 : vector<256x128xf32>
    %8 = arith.truncf %7 : vector<256x128xf32> to vector<256x128xbf16>
    %c0_6 = arith.constant 0 : index
    %c0_7 = arith.constant 0 : index
    %9 = vector.load %arg9[%c0_6, %c0_7] : memref<256x128xbf16, #tpu.memory_space<vmem>>, vector<256x128xbf16>
    tpu.vector_store %arg9[%c0_6, %c0_7], %8 {strides = array<i32>} : memref<256x128xbf16, #tpu.memory_space<vmem>>, vector<256x128xbf16>,
    %cst_8 = arith.constant 0.000000e+00 : f32
    %10 = vector.broadcast %cst_8 : f32 to vector<16x1024xf32>
    %c0_9 = arith.constant 0 : index
    %c0_10 = arith.constant 0 : index
    %11 = vector.load %arg10[%c0_9, %c0_10] : memref<16x1024xf32, #tpu.memory_space<vmem>>, vector<16x1024xf32>
    tpu.vector_store %arg10[%c0_9, %c0_10], %10 {strides = array<i32>} : memref<16x1024xf32, #tpu.memory_space<vmem>>, vector<16x1024xf32>,
    %c0_11 = arith.constant 0 : index
    %c0_12 = arith.constant 0 : index
    %12 = vector.load %arg10[%c0_11, %c0_12] : memref<16x1024xf32, #tpu.memory_space<vmem>>, vector<16x1024xf32>
    %c0_13 = arith.constant 0 : index
    %c0_14 = arith.constant 0 : index
    %13 = vector.load %arg9[%c0_13, %c0_14] : memref<256x128xbf16, #tpu.memory_space<vmem>>, vector<16x128xbf16>
    %c0_15 = arith.constant 0 : index
    %c0_16 = arith.constant 0 : index
    %14 = vector.load %arg4[%c0_15, %c0_16] : memref<2048x1024xbf16, #tpu.memory_space<vmem>>, vector<128x1024xbf16>
    %cst_17 = arith.constant dense<0.000000e+00> : vector<16x1024xf32>
    %15 = tpu.matmul %13, %14, %cst_17 {dimension_numbers = #tpu.dot_dimension_numbers<[1], [0], [0], [1], [0, 0, 1, 1], [], []>} : vector<16x128xbf16>, vector<128x1024xbf16>, vector<16x1024xf32> -> vector<16x1024xf32>
    %16 = arith.addf %12, %15 : vector<16x1024xf32>
    %c0_18 = arith.constant 0 : index
    %c0_19 = arith.constant 0 : index
    %17 = vector.load %arg10[%c0_18, %c0_19] : memref<16x1024xf32, #tpu.memory_space<vmem>>, vector<16x1024xf32>
    tpu.vector_store %arg10[%c0_18, %c0_19], %16 {strides = array<i32>} : memref<16x1024xf32, #tpu.memory_space<vmem>>, vector<16x1024xf32>,
    %c0_20 = arith.constant 0 : index
    %c0_21 = arith.constant 0 : index
    %18 = vector.load %arg10[%c0_20, %c0_21] : memref<16x1024xf32, #tpu.memory_space<vmem>>, vector<16x1024xf32>
    %c16 = arith.constant 16 : index
    %c0_22 = arith.constant 0 : index
    %19 = vector.load %arg9[%c16, %c0_22] : memref<256x128xbf16, #tpu.memory_space<vmem>>, vector<16x128xbf16>
    %c128 = arith.constant 128 : index
    %c0_23 = arith.constant 0 : index
    %20 = vector.load %arg4[%c128, %c0_23] : memref<2048x1024xbf16, #tpu.memory_space<vmem>>, vector<128x1024xbf16>
    %cst_24 = arith.constant dense<0.000000e+00> : vector<16x1024xf32>
    %21 = tpu.matmul %19, %20, %cst_24 {dimension_numbers = #tpu.dot_dimension_numbers<[1], [0], [0], [1], [0, 0, 1, 1], [], []>} : vector<16x128xbf16>, vector<128x1024xbf16>, vector<16x1024xf32> -> vector<16x1024xf32>
    %22 = arith.addf %18, %21 : vector<16x1024xf32>
    %c0_25 = arith.constant 0 : index
    %c0_26 = arith.constant 0 : index
    %23 = vector.load %arg10[%c0_25, %c0_26] : memref<16x1024xf32, #tpu.memory_space<vmem>>, vector<16x1024xf32>
    tpu.vector_store %arg10[%c0_25, %c0_26], %22 {strides = array<i32>} : memref<16x1024xf32, #tpu.memory_space<vmem>>, vector<16x1024xf32>,
    %c0_27 = arith.constant 0 : index
    %c0_28 = arith.constant 0 : index
    %24 = vector.load %arg10[%c0_27, %c0_28] : memref<16x1024xf32, #tpu.memory_space<vmem>>, vector<16x1024xf32>
    %c32 = arith.constant 32 : index
    %c0_29 = arith.constant 0 : index
    %25 = vector.load %arg9[%c32, %c0_29] : memref<256x128xbf16, #tpu.memory_space<vmem>>, vector<16x128xbf16>
    %c256 = arith.constant 256 : index
    %c0_30 = arith.constant 0 : index
    %26 = vector.load %arg4[%c256, %c0_30] : memref<2048x1024xbf16, #tpu.memory_space<vmem>>, vector<128x1024xbf16>
    %cst_31 = arith.constant dense<0.000000e+00> : vector<16x1024xf32>
    %27 = tpu.matmul %25, %26, %cst_31 {dimension_numbers = #tpu.dot_dimension_numbers<[1], [0], [0], [1], [0, 0, 1, 1], [], []>} : vector<16x128xbf16>, vector<128x1024xbf16>, vector<16x1024xf32> -> vector<16x1024xf32>
    %28 = arith.addf %24, %27 : vector<16x1024xf32>
    %c0_32 = arith.constant 0 : index
    %c0_33 = arith.constant 0 : index
    %29 = vector.load %arg10[%c0_32, %c0_33] : memref<16x1024xf32, #tpu.memory_space<vmem>>, vector<16x1024xf32>
    tpu.vector_store %arg10[%c0_32, %c0_33], %28 {strides = array<i32>} : memref<16x1024xf32, #tpu.memory_space<vmem>>, vector<16x1024xf32>,
    %c0_34 = arith.constant 0 : index
    %c0_35 = arith.constant 0 : index
    %30 = vector.load %arg10[%c0_34, %c0_35] : memref<16x1024xf32, #tpu.memory_space<vmem>>, vector<16x1024xf32>
    %c48 = arith.constant 48 : index
    %c0_36 = arith.constant 0 : index
    %31 = vector.load %arg9[%c48, %c0_36] : memref<256x128xbf16, #tpu.memory_space<vmem>>, vector<16x128xbf16>
    %c384 = arith.constant 384 : index
    %c0_37 = arith.constant 0 : index
    %32 = vector.load %arg4[%c384, %c0_37] : memref<2048x1024xbf16, #tpu.memory_space<vmem>>, vector<128x1024xbf16>
    %cst_38 = arith.constant dense<0.000000e+00> : vector<16x1024xf32>
    %33 = tpu.matmul %31, %32, %cst_38 {dimension_numbers = #tpu.dot_dimension_numbers<[1], [0], [0], [1], [0, 0, 1, 1], [], []>} : vector<16x128xbf16>, vector<128x1024xbf16>, vector<16x1024xf32> -> vector<16x1024xf32>
    %34 = arith.addf %30, %33 : vector<16x1024xf32>
    %c0_39 = arith.constant 0 : index
    %c0_40 = arith.constant 0 : index
    %35 = vector.load %arg10[%c0_39, %c0_40] : memref<16x1024xf32, #tpu.memory_space<vmem>>, vector<16x1024xf32>
    tpu.vector_store %arg10[%c0_39, %c0_40], %34 {strides = array<i32>} : memref<16x1024xf32, #tpu.memory_space<vmem>>, vector<16x1024xf32>,
    %c0_41 = arith.constant 0 : index
    %c0_42 = arith.constant 0 : index
    %36 = vector.load %arg10[%c0_41, %c0_42] : memref<16x1024xf32, #tpu.memory_space<vmem>>, vector<16x1024xf32>
    %c64 = arith.constant 64 : index
    %c0_43 = arith.constant 0 : index
    %37 = vector.load %arg9[%c64, %c0_43] : memref<256x128xbf16, #tpu.memory_space<vmem>>, vector<16x128xbf16>
    %c512 = arith.constant 512 : index
    %c0_44 = arith.constant 0 : index
    %38 = vector.load %arg4[%c512, %c0_44] : memref<2048x1024xbf16, #tpu.memory_space<vmem>>, vector<128x1024xbf16>
    %cst_45 = arith.constant dense<0.000000e+00> : vector<16x1024xf32>
    %39 = tpu.matmul %37, %38, %cst_45 {dimension_numbers = #tpu.dot_dimension_numbers<[1], [0], [0], [1], [0, 0, 1, 1], [], []>} : vector<16x128xbf16>, vector<128x1024xbf16>, vector<16x1024xf32> -> vector<16x1024xf32>
    %40 = arith.addf %36, %39 : vector<16x1024xf32>
    %c0_46 = arith.constant 0 : index
    %c0_47 = arith.constant 0 : index
    %41 = vector.load %arg10[%c0_46, %c0_47] : memref<16x1024xf32, #tpu.memory_space<vmem>>, vector<16x1024xf32>
    tpu.vector_store %arg10[%c0_46, %c0_47], %40 {strides = array<i32>} : memref<16x1024xf32, #tpu.memory_space<vmem>>, vector<16x1024xf32>,
    %c0_48 = arith.constant 0 : index
    %c0_49 = arith.constant 0 : index
    %42 = vector.load %arg10[%c0_48, %c0_49] : memref<16x1024xf32, #tpu.memory_space<vmem>>, vector<16x1024xf32>
    %c80 = arith.constant 80 : index
    %c0_50 = arith.constant 0 : index
    %43 = vector.load %arg9[%c80, %c0_50] : memref<256x128xbf16, #tpu.memory_space<vmem>>, vector<16x128xbf16>
    %c640 = arith.constant 640 : index
    %c0_51 = arith.constant 0 : index
    %44 = vector.load %arg4[%c640, %c0_51] : memref<2048x1024xbf16, #tpu.memory_space<vmem>>, vector<128x1024xbf16>
    %cst_52 = arith.constant dense<0.000000e+00> : vector<16x1024xf32>
    %45 = tpu.matmul %43, %44, %cst_52 {dimension_numbers = #tpu.dot_dimension_numbers<[1], [0], [0], [1], [0, 0, 1, 1], [], []>} : vector<16x128xbf16>, vector<128x1024xbf16>, vector<16x1024xf32> -> vector<16x1024xf32>
    %46 = arith.addf %42, %45 : vector<16x1024xf32>
    %c0_53 = arith.constant 0 : index
    %c0_54 = arith.constant 0 : index
    %47 = vector.load %arg10[%c0_53, %c0_54] : memref<16x1024xf32, #tpu.memory_space<vmem>>, vector<16x1024xf32>
    tpu.vector_store %arg10[%c0_53, %c0_54], %46 {strides = array<i32>} : memref<16x1024xf32, #tpu.memory_space<vmem>>, vector<16x1024xf32>,
    %c0_55 = arith.constant 0 : index
    %c0_56 = arith.constant 0 : index
    %48 = vector.load %arg10[%c0_55, %c0_56] : memref<16x1024xf32, #tpu.memory_space<vmem>>, vector<16x1024xf32>
    %c96 = arith.constant 96 : index
    %c0_57 = arith.constant 0 : index
    %49 = vector.load %arg9[%c96, %c0_57] : memref<256x128xbf16, #tpu.memory_space<vmem>>, vector<16x128xbf16>
    %c768 = arith.constant 768 : index
    %c0_58 = arith.constant 0 : index
    %50 = vector.load %arg4[%c768, %c0_58] : memref<2048x1024xbf16, #tpu.memory_space<vmem>>, vector<128x1024xbf16>
    %cst_59 = arith.constant dense<0.000000e+00> : vector<16x1024xf32>
    %51 = tpu.matmul %49, %50, %cst_59 {dimension_numbers = #tpu.dot_dimension_numbers<[1], [0], [0], [1], [0, 0, 1, 1], [], []>} : vector<16x128xbf16>, vector<128x1024xbf16>, vector<16x1024xf32> -> vector<16x1024xf32>
    %52 = arith.addf %48, %51 : vector<16x1024xf32>
    %c0_60 = arith.constant 0 : index
    %c0_61 = arith.constant 0 : index
    %53 = vector.load %arg10[%c0_60, %c0_61] : memref<16x1024xf32, #tpu.memory_space<vmem>>, vector<16x1024xf32>
    tpu.vector_store %arg10[%c0_60, %c0_61], %52 {strides = array<i32>} : memref<16x1024xf32, #tpu.memory_space<vmem>>, vector<16x1024xf32>,
    %c0_62 = arith.constant 0 : index
    %c0_63 = arith.constant 0 : index
    %54 = vector.load %arg10[%c0_62, %c0_63] : memref<16x1024xf32, #tpu.memory_space<vmem>>, vector<16x1024xf32>
    %c112 = arith.constant 112 : index
    %c0_64 = arith.constant 0 : index
    %55 = vector.load %arg9[%c112, %c0_64] : memref<256x128xbf16, #tpu.memory_space<vmem>>, vector<16x128xbf16>
    %c896 = arith.constant 896 : index
    %c0_65 = arith.constant 0 : index
    %56 = vector.load %arg4[%c896, %c0_65] : memref<2048x1024xbf16, #tpu.memory_space<vmem>>, vector<128x1024xbf16>
    %cst_66 = arith.constant dense<0.000000e+00> : vector<16x1024xf32>
    %57 = tpu.matmul %55, %56, %cst_66 {dimension_numbers = #tpu.dot_dimension_numbers<[1], [0], [0], [1], [0, 0, 1, 1], [], []>} : vector<16x128xbf16>, vector<128x1024xbf16>, vector<16x1024xf32> -> vector<16x1024xf32>
    %58 = arith.addf %54, %57 : vector<16x1024xf32>
    %c0_67 = arith.constant 0 : index
    %c0_68 = arith.constant 0 : index
    %59 = vector.load %arg10[%c0_67, %c0_68] : memref<16x1024xf32, #tpu.memory_space<vmem>>, vector<16x1024xf32>
    tpu.vector_store %arg10[%c0_67, %c0_68], %58 {strides = array<i32>} : memref<16x1024xf32, #tpu.memory_space<vmem>>, vector<16x1024xf32>,
    %c0_69 = arith.constant 0 : index
    %c0_70 = arith.constant 0 : index
    %60 = vector.load %arg10[%c0_69, %c0_70] : memref<16x1024xf32, #tpu.memory_space<vmem>>, vector<16x1024xf32>
    %c128_71 = arith.constant 128 : index
    %c0_72 = arith.constant 0 : index
    %61 = vector.load %arg9[%c128_71, %c0_72] : memref<256x128xbf16, #tpu.memory_space<vmem>>, vector<16x128xbf16>
    %c1024 = arith.constant 1024 : index
    %c0_73 = arith.constant 0 : index
    %62 = vector.load %arg4[%c1024, %c0_73] : memref<2048x1024xbf16, #tpu.memory_space<vmem>>, vector<128x1024xbf16>
    %cst_74 = arith.constant dense<0.000000e+00> : vector<16x1024xf32>
    %63 = tpu.matmul %61, %62, %cst_74 {dimension_numbers = #tpu.dot_dimension_numbers<[1], [0], [0], [1], [0, 0, 1, 1], [], []>} : vector<16x128xbf16>, vector<128x1024xbf16>, vector<16x1024xf32> -> vector<16x1024xf32>
    %64 = arith.addf %60, %63 : vector<16x1024xf32>
    %c0_75 = arith.constant 0 : index
    %c0_76 = arith.constant 0 : index
    %65 = vector.load %arg10[%c0_75, %c0_76] : memref<16x1024xf32, #tpu.memory_space<vmem>>, vector<16x1024xf32>
    tpu.vector_store %arg10[%c0_75, %c0_76], %64 {strides = array<i32>} : memref<16x1024xf32, #tpu.memory_space<vmem>>, vector<16x1024xf32>,
    %c0_77 = arith.constant 0 : index
    %c0_78 = arith.constant 0 : index
    %66 = vector.load %arg10[%c0_77, %c0_78] : memref<16x1024xf32, #tpu.memory_space<vmem>>, vector<16x1024xf32>
    %c144 = arith.constant 144 : index
    %c0_79 = arith.constant 0 : index
    %67 = vector.load %arg9[%c144, %c0_79] : memref<256x128xbf16, #tpu.memory_space<vmem>>, vector<16x128xbf16>
    %c1152 = arith.constant 1152 : index
    %c0_80 = arith.constant 0 : index
    %68 = vector.load %arg4[%c1152, %c0_80] : memref<2048x1024xbf16, #tpu.memory_space<vmem>>, vector<128x1024xbf16>
    %cst_81 = arith.constant dense<0.000000e+00> : vector<16x1024xf32>
    %69 = tpu.matmul %67, %68, %cst_81 {dimension_numbers = #tpu.dot_dimension_numbers<[1], [0], [0], [1], [0, 0, 1, 1], [], []>} : vector<16x128xbf16>, vector<128x1024xbf16>, vector<16x1024xf32> -> vector<16x1024xf32>
    %70 = arith.addf %66, %69 : vector<16x1024xf32>
    %c0_82 = arith.constant 0 : index
    %c0_83 = arith.constant 0 : index
    %71 = vector.load %arg10[%c0_82, %c0_83] : memref<16x1024xf32, #tpu.memory_space<vmem>>, vector<16x1024xf32>
    tpu.vector_store %arg10[%c0_82, %c0_83], %70 {strides = array<i32>} : memref<16x1024xf32, #tpu.memory_space<vmem>>, vector<16x1024xf32>,
    %c0_84 = arith.constant 0 : index
    %c0_85 = arith.constant 0 : index
    %72 = vector.load %arg10[%c0_84, %c0_85] : memref<16x1024xf32, #tpu.memory_space<vmem>>, vector<16x1024xf32>
    %c160 = arith.constant 160 : index
    %c0_86 = arith.constant 0 : index
    %73 = vector.load %arg9[%c160, %c0_86] : memref<256x128xbf16, #tpu.memory_space<vmem>>, vector<16x128xbf16>
    %c1280 = arith.constant 1280 : index
    %c0_87 = arith.constant 0 : index
    %74 = vector.load %arg4[%c1280, %c0_87] : memref<2048x1024xbf16, #tpu.memory_space<vmem>>, vector<128x1024xbf16>
    %cst_88 = arith.constant dense<0.000000e+00> : vector<16x1024xf32>
    %75 = tpu.matmul %73, %74, %cst_88 {dimension_numbers = #tpu.dot_dimension_numbers<[1], [0], [0], [1], [0, 0, 1, 1], [], []>} : vector<16x128xbf16>, vector<128x1024xbf16>, vector<16x1024xf32> -> vector<16x1024xf32>
    %76 = arith.addf %72, %75 : vector<16x1024xf32>
    %c0_89 = arith.constant 0 : index
    %c0_90 = arith.constant 0 : index
    %77 = vector.load %arg10[%c0_89, %c0_90] : memref<16x1024xf32, #tpu.memory_space<vmem>>, vector<16x1024xf32>
    tpu.vector_store %arg10[%c0_89, %c0_90], %76 {strides = array<i32>} : memref<16x1024xf32, #tpu.memory_space<vmem>>, vector<16x1024xf32>,
    %c0_91 = arith.constant 0 : index
    %c0_92 = arith.constant 0 : index
    %78 = vector.load %arg10[%c0_91, %c0_92] : memref<16x1024xf32, #tpu.memory_space<vmem>>, vector<16x1024xf32>
    %c176 = arith.constant 176 : index
    %c0_93 = arith.constant 0 : index
    %79 = vector.load %arg9[%c176, %c0_93] : memref<256x128xbf16, #tpu.memory_space<vmem>>, vector<16x128xbf16>
    %c1408 = arith.constant 1408 : index
    %c0_94 = arith.constant 0 : index
    %80 = vector.load %arg4[%c1408, %c0_94] : memref<2048x1024xbf16, #tpu.memory_space<vmem>>, vector<128x1024xbf16>
    %cst_95 = arith.constant dense<0.000000e+00> : vector<16x1024xf32>
    %81 = tpu.matmul %79, %80, %cst_95 {dimension_numbers = #tpu.dot_dimension_numbers<[1], [0], [0], [1], [0, 0, 1, 1], [], []>} : vector<16x128xbf16>, vector<128x1024xbf16>, vector<16x1024xf32> -> vector<16x1024xf32>
    %82 = arith.addf %78, %81 : vector<16x1024xf32>
    %c0_96 = arith.constant 0 : index
    %c0_97 = arith.constant 0 : index
    %83 = vector.load %arg10[%c0_96, %c0_97] : memref<16x1024xf32, #tpu.memory_space<vmem>>, vector<16x1024xf32>
    tpu.vector_store %arg10[%c0_96, %c0_97], %82 {strides = array<i32>} : memref<16x1024xf32, #tpu.memory_space<vmem>>, vector<16x1024xf32>,
    %c0_98 = arith.constant 0 : index
    %c0_99 = arith.constant 0 : index
    %84 = vector.load %arg10[%c0_98, %c0_99] : memref<16x1024xf32, #tpu.memory_space<vmem>>, vector<16x1024xf32>
    %c192 = arith.constant 192 : index
    %c0_100 = arith.constant 0 : index
    %85 = vector.load %arg9[%c192, %c0_100] : memref<256x128xbf16, #tpu.memory_space<vmem>>, vector<16x128xbf16>
    %c1536 = arith.constant 1536 : index
    %c0_101 = arith.constant 0 : index
    %86 = vector.load %arg4[%c1536, %c0_101] : memref<2048x1024xbf16, #tpu.memory_space<vmem>>, vector<128x1024xbf16>
    %cst_102 = arith.constant dense<0.000000e+00> : vector<16x1024xf32>
    %87 = tpu.matmul %85, %86, %cst_102 {dimension_numbers = #tpu.dot_dimension_numbers<[1], [0], [0], [1], [0, 0, 1, 1], [], []>} : vector<16x128xbf16>, vector<128x1024xbf16>, vector<16x1024xf32> -> vector<16x1024xf32>
    %88 = arith.addf %84, %87 : vector<16x1024xf32>
    %c0_103 = arith.constant 0 : index
    %c0_104 = arith.constant 0 : index
    %89 = vector.load %arg10[%c0_103, %c0_104] : memref<16x1024xf32, #tpu.memory_space<vmem>>, vector<16x1024xf32>
    tpu.vector_store %arg10[%c0_103, %c0_104], %88 {strides = array<i32>} : memref<16x1024xf32, #tpu.memory_space<vmem>>, vector<16x1024xf32>,
    %c0_105 = arith.constant 0 : index
    %c0_106 = arith.constant 0 : index
    %90 = vector.load %arg10[%c0_105, %c0_106] : memref<16x1024xf32, #tpu.memory_space<vmem>>, vector<16x1024xf32>
    %c208 = arith.constant 208 : index
    %c0_107 = arith.constant 0 : index
    %91 = vector.load %arg9[%c208, %c0_107] : memref<256x128xbf16, #tpu.memory_space<vmem>>, vector<16x128xbf16>
    %c1664 = arith.constant 1664 : index
    %c0_108 = arith.constant 0 : index
    %92 = vector.load %arg4[%c1664, %c0_108] : memref<2048x1024xbf16, #tpu.memory_space<vmem>>, vector<128x1024xbf16>
    %cst_109 = arith.constant dense<0.000000e+00> : vector<16x1024xf32>
    %93 = tpu.matmul %91, %92, %cst_109 {dimension_numbers = #tpu.dot_dimension_numbers<[1], [0], [0], [1], [0, 0, 1, 1], [], []>} : vector<16x128xbf16>, vector<128x1024xbf16>, vector<16x1024xf32> -> vector<16x1024xf32>
    %94 = arith.addf %90, %93 : vector<16x1024xf32>
    %c0_110 = arith.constant 0 : index
    %c0_111 = arith.constant 0 : index
    %95 = vector.load %arg10[%c0_110, %c0_111] : memref<16x1024xf32, #tpu.memory_space<vmem>>, vector<16x1024xf32>
    tpu.vector_store %arg10[%c0_110, %c0_111], %94 {strides = array<i32>} : memref<16x1024xf32, #tpu.memory_space<vmem>>, vector<16x1024xf32>,
    %c0_112 = arith.constant 0 : index
    %c0_113 = arith.constant 0 : index
    %96 = vector.load %arg10[%c0_112, %c0_113] : memref<16x1024xf32, #tpu.memory_space<vmem>>, vector<16x1024xf32>
    %c224 = arith.constant 224 : index
    %c0_114 = arith.constant 0 : index
    %97 = vector.load %arg9[%c224, %c0_114] : memref<256x128xbf16, #tpu.memory_space<vmem>>, vector<16x128xbf16>
    %c1792 = arith.constant 1792 : index
    %c0_115 = arith.constant 0 : index
    %98 = vector.load %arg4[%c1792, %c0_115] : memref<2048x1024xbf16, #tpu.memory_space<vmem>>, vector<128x1024xbf16>
    %cst_116 = arith.constant dense<0.000000e+00> : vector<16x1024xf32>
    %99 = tpu.matmul %97, %98, %cst_116 {dimension_numbers = #tpu.dot_dimension_numbers<[1], [0], [0], [1], [0, 0, 1, 1], [], []>} : vector<16x128xbf16>, vector<128x1024xbf16>, vector<16x1024xf32> -> vector<16x1024xf32>
    %100 = arith.addf %96, %99 : vector<16x1024xf32>
    %c0_117 = arith.constant 0 : index
    %c0_118 = arith.constant 0 : index
    %101 = vector.load %arg10[%c0_117, %c0_118] : memref<16x1024xf32, #tpu.memory_space<vmem>>, vector<16x1024xf32>
    tpu.vector_store %arg10[%c0_117, %c0_118], %100 {strides = array<i32>} : memref<16x1024xf32, #tpu.memory_space<vmem>>, vector<16x1024xf32>,
    %c0_119 = arith.constant 0 : index
    %c0_120 = arith.constant 0 : index
    %102 = vector.load %arg10[%c0_119, %c0_120] : memref<16x1024xf32, #tpu.memory_space<vmem>>, vector<16x1024xf32>
    %c240 = arith.constant 240 : index
    %c0_121 = arith.constant 0 : index
    %103 = vector.load %arg9[%c240, %c0_121] : memref<256x128xbf16, #tpu.memory_space<vmem>>, vector<16x128xbf16>
    %c1920 = arith.constant 1920 : index
    %c0_122 = arith.constant 0 : index
    %104 = vector.load %arg4[%c1920, %c0_122] : memref<2048x1024xbf16, #tpu.memory_space<vmem>>, vector<128x1024xbf16>
    %cst_123 = arith.constant dense<0.000000e+00> : vector<16x1024xf32>
    %105 = tpu.matmul %103, %104, %cst_123 {dimension_numbers = #tpu.dot_dimension_numbers<[1], [0], [0], [1], [0, 0, 1, 1], [], []>} : vector<16x128xbf16>, vector<128x1024xbf16>, vector<16x1024xf32> -> vector<16x1024xf32>
    %106 = arith.addf %102, %105 : vector<16x1024xf32>
    %c0_124 = arith.constant 0 : index
    %c0_125 = arith.constant 0 : index
    %107 = vector.load %arg10[%c0_124, %c0_125] : memref<16x1024xf32, #tpu.memory_space<vmem>>, vector<16x1024xf32>
    tpu.vector_store %arg10[%c0_124, %c0_125], %106 {strides = array<i32>} : memref<16x1024xf32, #tpu.memory_space<vmem>>, vector<16x1024xf32>,
    %c0_126 = arith.constant 0 : index
    %c0_127 = arith.constant 0 : index
    %108 = vector.load %arg10[%c0_126, %c0_127] : memref<16x1024xf32, #tpu.memory_space<vmem>>, vector<16x1024xf32>
    %c0_128 = arith.constant 0 : index
    %c0_129 = arith.constant 0 : index
    %109 = vector.load %arg5[%c0_128, %c0_129] : memref<1x1024xf32, #tpu.memory_space<vmem>>, vector<1x1024xf32>
    %110 = vector.broadcast %109 : vector<1x1024xf32> to vector<16x1024xf32>
    %111 = arith.addf %108, %110 : vector<16x1024xf32>
    %cst_130 = arith.constant 0.000000e+00 : f32
    %112 = vector.broadcast %cst_130 : f32 to vector<16x1024xf32>
    %113 = arith.maximumf %111, %112 : vector<16x1024xf32>
    %114 = arith.truncf %113 : vector<16x1024xf32> to vector<16x1024xbf16>
    %c0_131 = arith.constant 0 : index
    %c0_132 = arith.constant 0 : index
    %115 = vector.load %arg6[%c0_131, %c0_132] : memref<1024x128xbf16, #tpu.memory_space<vmem>>, vector<1024x128xbf16>
    %cst_133 = arith.constant dense<0.000000e+00> : vector<16x128xf32>
    %116 = tpu.matmul %114, %115, %cst_133 {dimension_numbers = #tpu.dot_dimension_numbers<[1], [0], [0], [1], [0, 0, 1, 1], [], []>} : vector<16x1024xbf16>, vector<1024x128xbf16>, vector<16x128xf32> -> vector<16x128xf32>
    %c0_134 = arith.constant 0 : index
    %c0_135 = arith.constant 0 : index
    %117 = vector.load %arg7[%c0_134, %c0_135] : memref<1x128xf32, #tpu.memory_space<vmem>>, vector<1x128xf32>
    %118 = vector.broadcast %117 : vector<1x128xf32> to vector<16x128xf32>
    %119 = arith.addf %116, %118 : vector<16x128xf32>
    %c0_136 = arith.constant 0 : index
    %c0_137 = arith.constant 0 : index
    %120 = vector.load %arg8[%c0_136, %c0_137] : memref<16x128xf32, #tpu.memory_space<vmem>>, vector<16x128xf32>
    tpu.vector_store %arg8[%c0_136, %c0_137], %119 {strides = array<i32>} : memref<16x128xf32, #tpu.memory_space<vmem>>, vector<16x128xf32>,
    return
  }
  func.func @transform_0(%arg0: i32) -> (i32, i32) {
    %c0_i32 = arith.constant 0 : i32
    %c0_i32_0 = arith.constant 0 : i32
    return %arg0, %c0_i32 : i32, i32
  }
  func.func @transform_1(%arg0: i32) -> (i32, i32) {
    %c0_i32 = arith.constant 0 : i32
    %c0_i32_0 = arith.constant 0 : i32
    %c0_i32_1 = arith.constant 0 : i32
    return %c0_i32, %c0_i32_0 : i32, i32
  }
  func.func @transform_2(%arg0: i32) -> (i32, i32) {
    %c0_i32 = arith.constant 0 : i32
    %c0_i32_0 = arith.constant 0 : i32
    %c0_i32_1 = arith.constant 0 : i32
    return %c0_i32, %c0_i32_0 : i32, i32
  }
  func.func @transform_3(%arg0: i32) -> (i32, i32) {
    %c0_i32 = arith.constant 0 : i32
    %c0_i32_0 = arith.constant 0 : i32
    %c0_i32_1 = arith.constant 0 : i32
    return %c0_i32, %c0_i32_0 : i32, i32
  }
  func.func @transform_4(%arg0: i32) -> (i32, i32) {
    %c0_i32 = arith.constant 0 : i32
    %c0_i32_0 = arith.constant 0 : i32
    %c0_i32_1 = arith.constant 0 : i32
    return %c0_i32, %c0_i32_0 : i32, i32
  }
  func.func @transform_5(%arg0: i32) -> (i32, i32) {
    %c0_i32 = arith.constant 0 : i32
    %c0_i32_0 = arith.constant 0 : i32
    %c0_i32_1 = arith.constant 0 : i32
    return %c0_i32, %c0_i32_0 : i32, i32
  }
  func.func @transform_6(%arg0: i32) -> (i32, i32) {
    %c0_i32 = arith.constant 0 : i32
    %c0_i32_0 = arith.constant 0 : i32
    %c0_i32_1 = arith.constant 0 : i32
    return %c0_i32, %c0_i32_0 : i32, i32
  }
  func.func @transform_7(%arg0: i32) -> (i32, i32) {
    %c0_i32 = arith.constant 0 : i32
    %c0_i32_0 = arith.constant 0 : i32
    return %arg0, %c0_i32 : i32, i32
  }
}

</mosaic_0001>

<llo_original>
// kernel: inception_aux_forward.1
$region0: #{inception_aux_forward.1}
  #allocation0 [shape = 'u32[]', space=smem, size = 0x4, offset = 0x4, fixed_abs, tag = 'smem constant byte address 0x4 - core index']
  #allocation1 [shape = 'u32[144,128]{1,0:T(1,128)}', space=vmem, size = 0x12000, scoped, tag = 'internal scratch']
  #allocation2 [shape = 'bf16[256,128]{1,0:T(8,128)(2,1)}', space=vmem, size = 0x10000, scoped, tag = 'scratch operand']
  #allocation3 [shape = 'f32[16,1024]{1,0:T(8,128)}', space=vmem, size = 0x10000, scoped, tag = 'scratch operand']
  %s0 = inlined_call_operand.vmem [shape: bf16[256,128], index: 0, kind: input, shape index: {}]
  %s1 = inlined_call_operand.vmem [shape: bf16[128,128], index: 1, kind: input, shape index: {}]
  %s2 = inlined_call_operand.vmem [shape: f32[1,128], index: 2, kind: input, shape index: {}]
  %s3 = inlined_call_operand.vmem [shape: bf16[2048,1024], index: 3, kind: input, shape index: {}]
  %s4 = inlined_call_operand.vmem [shape: f32[1,1024], index: 4, kind: input, shape index: {}]
  %s5 = inlined_call_operand.vmem [shape: bf16[1024,128], index: 5, kind: input, shape index: {}]
  %s6 = inlined_call_operand.vmem [shape: f32[1,128], index: 6, kind: input, shape index: {}]
  %s7 = inlined_call_operand.vmem [shape: f32[16,128], index: 7, kind: output, shape index: {}]
  %s8 = sld [smem:[#allocation0]]
  $region38: #{inception_aux_forward.1} parent=0
    _
  %s10 = ssub.s32 1, %s8
  %s11 = scalar_select 0, %s10, %s8
  // Predicated region
  $region2: #{inception_aux_forward.1} parent=0 // pred_check
    _
  $region3: #{inception_aux_forward.1} parent=0 // pred_check_branch
    %13 = sbr.rel (0) target = $region5
  $region4: #{inception_aux_forward.1} parent=0 // pred_region
    _
  $region5: #{inception_aux_forward.1} parent=0 // pred_fallthru
    _
  // Predicated region
  $region6: #{inception_aux_forward.1} parent=0 // pred_check
    _
  $region7: #{inception_aux_forward.1} parent=0 // pred_check_branch
    %15 = sbr.rel (0) target = $region9
  $region8: #{inception_aux_forward.1} parent=0 // pred_region
    _
  $region9: #{inception_aux_forward.1} parent=0 // pred_fallthru
    _
  // Predicated region
  $region10: #{inception_aux_forward.1} parent=0 // pred_check
    _
  $region11: #{inception_aux_forward.1} parent=0 // pred_check_branch
    %17 = sbr.rel (0) target = $region13
  $region12: #{inception_aux_forward.1} parent=0 // pred_region
    _
  $region13: #{inception_aux_forward.1} parent=0 // pred_fallthru
    _
  // Predicated region
  $region14: #{inception_aux_forward.1} parent=0 // pred_check
    _
  $region15: #{inception_aux_forward.1} parent=0 // pred_check_branch
    %19 = sbr.rel (0) target = $region17
  $region16: #{inception_aux_forward.1} parent=0 // pred_region
    _
  $region17: #{inception_aux_forward.1} parent=0 // pred_fallthru
    _
  // Predicated region
  $region18: #{inception_aux_forward.1} parent=0 // pred_check
    _
  $region19: #{inception_aux_forward.1} parent=0 // pred_check_branch
    %21 = sbr.rel (0) target = $region21
  $region20: #{inception_aux_forward.1} parent=0 // pred_region
    _
  $region21: #{inception_aux_forward.1} parent=0 // pred_fallthru
    _
  // Predicated region
  $region22: #{inception_aux_forward.1} parent=0 // pred_check
    _
  $region23: #{inception_aux_forward.1} parent=0 // pred_check_branch
    %23 = sbr.rel (0) target = $region25
  $region24: #{inception_aux_forward.1} parent=0 // pred_region
    _
  $region25: #{inception_aux_forward.1} parent=0 // pred_fallthru
    _
  // Predicated region
  $region26: #{inception_aux_forward.1} parent=0 // pred_check
    _
  $region27: #{inception_aux_forward.1} parent=0 // pred_check_branch
    %25 = sbr.rel (0) target = $region29
  $region28: #{inception_aux_forward.1} parent=0 // pred_region
    _
  $region29: #{inception_aux_forward.1} parent=0 // pred_fallthru
    _
  %v27 = vld [vmem:[%s0] sm:$0xf]
  %v28 = vld [vmem:[%s0 + $0x4] sm:$0xf]
  %v29 = vld [vmem:[%s0 + $0x8] sm:$0xf]
  %v30 = vld [vmem:[%s0 + $0xc] sm:$0xf]
  %v31 = vld [vmem:[%s0 + $0x10] sm:$0xf]
  %v32 = vld [vmem:[%s0 + $0x14] sm:$0xf]
  %v33 = vld [vmem:[%s0 + $0x18] sm:$0xf]
  %v34 = vld [vmem:[%s0 + $0x1c] sm:$0xf]
  %v35 = vld [vmem:[%s0 + $0x20] sm:$0xf]
  %v36 = vld [vmem:[%s0 + $0x24] sm:$0xf]
  %v37 = vld [vmem:[%s0 + $0x28] sm:$0xf]
  %v38 = vld [vmem:[%s0 + $0x2c] sm:$0xf]
  %v39 = vld [vmem:[%s0 + $0x30] sm:$0xf]
  %v40 = vld [vmem:[%s0 + $0x34] sm:$0xf]
  %v41 = vld [vmem:[%s0 + $0x38] sm:$0xf]
  %v42 = vld [vmem:[%s0 + $0x3c] sm:$0xf]
  %v43 = vld [vmem:[%s0 + $0x40] sm:$0xf]
  %v44 = vld [vmem:[%s0 + $0x44] sm:$0xf]
  %v45 = vld [vmem:[%s0 + $0x48] sm:$0xf]
  %v46 = vld [vmem:[%s0 + $0x4c] sm:$0xf]
  %v47 = vld [vmem:[%s0 + $0x50] sm:$0xf]
  %v48 = vld [vmem:[%s0 + $0x54] sm:$0xf]
  %v49 = vld [vmem:[%s0 + $0x58] sm:$0xf]
  %v50 = vld [vmem:[%s0 + $0x5c] sm:$0xf]
  %v51 = vld [vmem:[%s0 + $0x60] sm:$0xf]
  %v52 = vld [vmem:[%s0 + $0x64] sm:$0xf]
  %v53 = vld [vmem:[%s0 + $0x68] sm:$0xf]
  %v54 = vld [vmem:[%s0 + $0x6c] sm:$0xf]
  %v55 = vld [vmem:[%s0 + $0x70] sm:$0xf]
  %v56 = vld [vmem:[%s0 + $0x74] sm:$0xf]
  %v57 = vld [vmem:[%s0 + $0x78] sm:$0xf]
  %v58 = vld [vmem:[%s0 + $0x7c] sm:$0xf]
  %v59 = vld [vmem:[%s1] sm:$0xf]
  %v60 = vld [vmem:[%s1 + $0x4] sm:$0xf]
  %v61 = vld [vmem:[%s1 + $0x8] sm:$0xf]
  %v62 = vld [vmem:[%s1 + $0xc] sm:$0xf]
  %v63 = vld [vmem:[%s1 + $0x10] sm:$0xf]
  %v64 = vld [vmem:[%s1 + $0x14] sm:$0xf]
  %v65 = vld [vmem:[%s1 + $0x18] sm:$0xf]
  %v66 = vld [vmem:[%s1 + $0x1c] sm:$0xf]
  %v67 = vld [vmem:[%s1 + $0x20] sm:$0xf]
  %v68 = vld [vmem:[%s1 + $0x24] sm:$0xf]
  %v69 = vld [vmem:[%s1 + $0x28] sm:$0xf]
  %v70 = vld [vmem:[%s1 + $0x2c] sm:$0xf]
  %v71 = vld [vmem:[%s1 + $0x30] sm:$0xf]
  %v72 = vld [vmem:[%s1 + $0x34] sm:$0xf]
  %v73 = vld [vmem:[%s1 + $0x38] sm:$0xf]
  %v74 = vld [vmem:[%s1 + $0x3c] sm:$0xf]
  %v75 = vld [vmem:[%s2] sm:$0x1]
  %v77 = vlaneseq
  %v78 = vshrl.u32 %v77, 7
  %v79 = vsub.s32 0, %v78
  %v80 = vrot.slane %v75, %v79
  %v114 = vunpack.c.l.b16 %v27
  %v115 = vunpack.c.l.b16 %v28
  %v116 = vunpack.c.l.b16 %v29
  %v117 = vunpack.c.l.b16 %v30
  %v118 = vunpack.c.l.b16 %v31
  %v119 = vunpack.c.l.b16 %v32
  %v120 = vunpack.c.l.b16 %v33
  %v121 = vunpack.c.l.b16 %v34
  %v122 = vunpack.c.l.b16 %v35
  %v123 = vunpack.c.l.b16 %v36
  %v124 = vunpack.c.l.b16 %v37
  %v125 = vunpack.c.l.b16 %v38
  %v126 = vunpack.c.l.b16 %v39
  %v127 = vunpack.c.l.b16 %v40
  %v128 = vunpack.c.l.b16 %v41
  %v129 = vunpack.c.l.b16 %v42
  %v130 = vunpack.c.l.b16 %v43
  %v131 = vunpack.c.l.b16 %v44
  %v132 = vunpack.c.l.b16 %v45
  %v133 = vunpack.c.l.b16 %v46
  %v134 = vunpack.c.l.b16 %v47
  %v135 = vunpack.c.l.b16 %v48
  %v136 = vunpack.c.l.b16 %v49
  %v137 = vunpack.c.l.b16 %v50
  %v138 = vunpack.c.l.b16 %v51
  %v139 = vunpack.c.l.b16 %v52
  %v140 = vunpack.c.l.b16 %v53
  %v141 = vunpack.c.l.b16 %v54
  %v142 = vunpack.c.l.b16 %v55
  %v143 = vunpack.c.l.b16 %v56
  %v144 = vunpack.c.l.b16 %v57
  %v145 = vunpack.c.l.b16 %v58
  %v146 = vpack.c.b16 %v115, %v114
  %v147 = vpack.c.b16 %v117, %v116
  %v148 = vpack.c.b16 %v119, %v118
  %v149 = vpack.c.b16 %v121, %v120
  %v150 = vpack.c.b16 %v123, %v122
  %v151 = vpack.c.b16 %v125, %v124
  %v152 = vpack.c.b16 %v127, %v126
  %v153 = vpack.c.b16 %v129, %v128
  %v154 = vpack.c.b16 %v131, %v130
  %v155 = vpack.c.b16 %v133, %v132
  %v156 = vpack.c.b16 %v135, %v134
  %v157 = vpack.c.b16 %v137, %v136
  %v158 = vpack.c.b16 %v139, %v138
  %v159 = vpack.c.b16 %v141, %v140
  %v160 = vpack.c.b16 %v143, %v142
  %v161 = vpack.c.b16 %v145, %v144
  %v194 = vunpack.c.l.b16 %v59
  %v195 = vunpack.c.l.b16 %v60
  %v196 = vunpack.c.l.b16 %v61
  %v197 = vunpack.c.l.b16 %v62
  %v198 = vunpack.c.l.b16 %v63
  %v199 = vunpack.c.l.b16 %v64
  %v200 = vunpack.c.l.b16 %v65
  %v201 = vunpack.c.l.b16 %v66
  %v202 = vunpack.c.l.b16 %v67
  %v203 = vunpack.c.l.b16 %v68
  %v204 = vunpack.c.l.b16 %v69
  %v205 = vunpack.c.l.b16 %v70
  %v206 = vunpack.c.l.b16 %v71
  %v207 = vunpack.c.l.b16 %v72
  %v208 = vunpack.c.l.b16 %v73
  %v209 = vunpack.c.l.b16 %v74
  %v210 = vpack.c.b16 %v195, %v194
  %v211 = vpack.c.b16 %v197, %v196
  %v212 = vpack.c.b16 %v199, %v198
  %v213 = vpack.c.b16 %v201, %v200
  %v214 = vpack.c.b16 %v203, %v202
  %v215 = vpack.c.b16 %v205, %v204
  %v216 = vpack.c.b16 %v207, %v206
  %v217 = vpack.c.b16 %v209, %v208
  %226 = vmatprep.subr.bf16.mxu0 0
  %227 = vmatpush1.bf16.msra.mxu0 %v217
  %228 = vmatprep.subr.bf16.mxu0 0
  %229 = vmatpush1.bf16.msra.mxu0 %v216
  %230 = vmatprep.subr.bf16.mxu0 0
  %231 = vmatpush1.bf16.msra.mxu0 %v215
  %232 = vmatprep.subr.bf16.mxu0 0
  %233 = vmatpush1.bf16.msra.mxu0 %v214
  %234 = vmatprep.subr.bf16.mxu0 0
  %235 = vmatpush1.bf16.msra.mxu0 %v213
  %236 = vmatprep.subr.bf16.mxu0 0
  %237 = vmatpush1.bf16.msra.mxu0 %v212
  %238 = vmatprep.subr.bf16.mxu0 0
  %239 = vmatpush1.bf16.msra.mxu0 %v211
  %240 = vmatprep.subr.bf16.mxu0 0
  %241 = vmatpush1.bf16.msra.mxu0 %v210
  %242 = vmatprep.subr.bf16.mxu0 0
  %243 = vmatpush2.bf16.msra.mxu0 0
  %244 = vmatprep.subr.bf16.mxu0 0
  %245 = vmatpush2.bf16.msra.mxu0 0
  %246 = vmatprep.subr.bf16.mxu0 0
  %247 = vmatpush2.bf16.msra.mxu0 0
  %248 = vmatprep.subr.bf16.mxu0 0
  %249 = vmatpush2.bf16.msra.mxu0 0
  %250 = vmatprep.subr.bf16.mxu0 0
  %251 = vmatpush2.bf16.msra.mxu0 0
  %252 = vmatprep.subr.bf16.mxu0 0
  %253 = vmatpush2.bf16.msra.mxu0 0
  %254 = vmatprep.subr.bf16.mxu0 0
  %255 = vmatpush2.bf16.msra.mxu0 0
  %256 = vmatprep.subr.bf16.mxu0 0
  %257 = vmatpush2.bf16.msra.mxu0 0
  %258 = vmatprep.mubr.bf16.mxu0 0
  %259 = vmatmul.mubr.bf16.gmra.mxu0 %v146
  %v260 = vpop.f32.mrf.mxu0
  %v261 = vadd.f32 %v80, %v260
  %v262 = vpop.f32.mrf.mxu0
  %v263 = vpop.f32.mrf.mxu0
  %v264 = vadd.f32 %v80, %v263
  %v265 = vpop.f32.mrf.mxu0
  %266 = vmatprep.mubr.bf16.mxu0 0
  %267 = vmatmul.mubr.bf16.gmra.mxu0 %v147
  %v268 = vpop.f32.mrf.mxu0
  %v269 = vadd.f32 %v80, %v268
  %v270 = vpop.f32.mrf.mxu0
  %v271 = vpop.f32.mrf.mxu0
  %v272 = vadd.f32 %v80, %v271
  %v273 = vpop.f32.mrf.mxu0
  %274 = vmatprep.mubr.bf16.mxu0 0
  %275 = vmatmul.mubr.bf16.gmra.mxu0 %v148
  %v276 = vpop.f32.mrf.mxu0
  %v277 = vadd.f32 %v80, %v276
  %v278 = vpop.f32.mrf.mxu0
  %v279 = vpop.f32.mrf.mxu0
  %v280 = vadd.f32 %v80, %v279
  %v281 = vpop.f32.mrf.mxu0
  %282 = vmatprep.mubr.bf16.mxu0 0
  %283 = vmatmul.mubr.bf16.gmra.mxu0 %v149
  %v284 = vpop.f32.mrf.mxu0
  %v285 = vadd.f32 %v80, %v284
  %v286 = vpop.f32.mrf.mxu0
  %v287 = vpop.f32.mrf.mxu0
  %v288 = vadd.f32 %v80, %v287
  %v289 = vpop.f32.mrf.mxu0
  %290 = vmatprep.mubr.bf16.mxu0 0
  %291 = vmatmul.mubr.bf16.gmra.mxu0 %v150
  %v292 = vpop.f32.mrf.mxu0
  %v293 = vadd.f32 %v80, %v292
  %v294 = vpop.f32.mrf.mxu0
  %v295 = vpop.f32.mrf.mxu0
  %v296 = vadd.f32 %v80, %v295
  %v297 = vpop.f32.mrf.mxu0
  %298 = vmatprep.mubr.bf16.mxu0 0
  %299 = vmatmul.mubr.bf16.gmra.mxu0 %v151
  %v300 = vpop.f32.mrf.mxu0
  %v301 = vadd.f32 %v80, %v300
  %v302 = vpop.f32.mrf.mxu0
  %v303 = vpop.f32.mrf.mxu0
  %v304 = vadd.f32 %v80, %v303
  %v305 = vpop.f32.mrf.mxu0
  %306 = vmatprep.mubr.bf16.mxu0 0
  %307 = vmatmul.mubr.bf16.gmra.mxu0 %v152
  %v308 = vpop.f32.mrf.mxu0
  %v309 = vadd.f32 %v80, %v308
  %v310 = vpop.f32.mrf.mxu0
  %v311 = vpop.f32.mrf.mxu0
  %v312 = vadd.f32 %v80, %v311
  %v313 = vpop.f32.mrf.mxu0
  %314 = vmatprep.mubr.bf16.mxu0 0
  %315 = vmatmul.mubr.bf16.gmra.mxu0 %v153
  %v316 = vpop.f32.mrf.mxu0
  %v317 = vadd.f32 %v80, %v316
  %v318 = vpop.f32.mrf.mxu0
  %v319 = vpop.f32.mrf.mxu0
  %v320 = vadd.f32 %v80, %v319
  %v321 = vpop.f32.mrf.mxu0
  %322 = vmatprep.mubr.bf16.mxu0 0
  %323 = vmatmul.mubr.bf16.gmra.mxu0 %v154
  %v324 = vpop.f32.mrf.mxu0
  %v325 = vadd.f32 %v80, %v324
  %v326 = vpop.f32.mrf.mxu0
  %v327 = vpop.f32.mrf.mxu0
  %v328 = vadd.f32 %v80, %v327
  %v329 = vpop.f32.mrf.mxu0
  %330 = vmatprep.mubr.bf16.mxu0 0
  %331 = vmatmul.mubr.bf16.gmra.mxu0 %v155
  %v332 = vpop.f32.mrf.mxu0
  %v333 = vadd.f32 %v80, %v332
  %v334 = vpop.f32.mrf.mxu0
  %v335 = vpop.f32.mrf.mxu0
  %v336 = vadd.f32 %v80, %v335
  %v337 = vpop.f32.mrf.mxu0
  %338 = vmatprep.mubr.bf16.mxu0 0
  %339 = vmatmul.mubr.bf16.gmra.mxu0 %v156
  %v340 = vpop.f32.mrf.mxu0
  %v341 = vadd.f32 %v80, %v340
  %v342 = vpop.f32.mrf.mxu0
  %v343 = vpop.f32.mrf.mxu0
  %v344 = vadd.f32 %v80, %v343
  %v345 = vpop.f32.mrf.mxu0
  %346 = vmatprep.mubr.bf16.mxu0 0
  %347 = vmatmul.mubr.bf16.gmra.mxu0 %v157
  %v348 = vpop.f32.mrf.mxu0
  %v349 = vadd.f32 %v80, %v348
  %v350 = vpop.f32.mrf.mxu0
  %v351 = vpop.f32.mrf.mxu0
  %v352 = vadd.f32 %v80, %v351
  %v353 = vpop.f32.mrf.mxu0
  %354 = vmatprep.mubr.bf16.mxu0 0
  %355 = vmatmul.mubr.bf16.gmra.mxu0 %v158
  %v356 = vpop.f32.mrf.mxu0
  %v357 = vadd.f32 %v80, %v356
  %v358 = vpop.f32.mrf.mxu0
  %v359 = vpop.f32.mrf.mxu0
  %v360 = vadd.f32 %v80, %v359
  %v361 = vpop.f32.mrf.mxu0
  %362 = vmatprep.mubr.bf16.mxu0 0
  %363 = vmatmul.mubr.bf16.gmra.mxu0 %v159
  %v364 = vpop.f32.mrf.mxu0
  %v365 = vadd.f32 %v80, %v364
  %v366 = vpop.f32.mrf.mxu0
  %v367 = vpop.f32.mrf.mxu0
  %v368 = vadd.f32 %v80, %v367
  %v369 = vpop.f32.mrf.mxu0
  %370 = vmatprep.mubr.bf16.mxu0 0
  %371 = vmatmul.mubr.bf16.gmra.mxu0 %v160
  %v372 = vpop.f32.mrf.mxu0
  %v373 = vadd.f32 %v80, %v372
  %v374 = vpop.f32.mrf.mxu0
  %v375 = vpop.f32.mrf.mxu0
  %v376 = vadd.f32 %v80, %v375
  %v377 = vpop.f32.mrf.mxu0
  %378 = vmatprep.mubr.bf16.mxu0 0
  %379 = vmatmul.mubr.bf16.gmra.mxu0 %v161
  %v380 = vpop.f32.mrf.mxu0
  %v381 = vadd.f32 %v80, %v380
  %v382 = vpop.f32.mrf.mxu0
  %v383 = vpop.f32.mrf.mxu0
  %v384 = vadd.f32 %v80, %v383
  %v385 = vpop.f32.mrf.mxu0
  %386 = vdwg.mxu0
  %v387 = vmax.f32 %v261, 0.0
  %v388 = vmax.f32 %v264, 0.0
  %v389 = vmax.f32 %v269, 0.0
  %v390 = vmax.f32 %v272, 0.0
  %v391 = vmax.f32 %v277, 0.0
  %v392 = vmax.f32 %v280, 0.0
  %v393 = vmax.f32 %v285, 0.0
  %v394 = vmax.f32 %v288, 0.0
  %v395 = vmax.f32 %v293, 0.0
  %v396 = vmax.f32 %v296, 0.0
  %v397 = vmax.f32 %v301, 0.0
  %v398 = vmax.f32 %v304, 0.0
  %v399 = vmax.f32 %v309, 0.0
  %v400 = vmax.f32 %v312, 0.0
  %v401 = vmax.f32 %v317, 0.0
  %v402 = vmax.f32 %v320, 0.0
  %v403 = vmax.f32 %v325, 0.0
  %v404 = vmax.f32 %v328, 0.0
  %v405 = vmax.f32 %v333, 0.0
  %v406 = vmax.f32 %v336, 0.0
  %v407 = vmax.f32 %v341, 0.0
  %v408 = vmax.f32 %v344, 0.0
  %v409 = vmax.f32 %v349, 0.0
  %v410 = vmax.f32 %v352, 0.0
  %v411 = vmax.f32 %v357, 0.0
  %v412 = vmax.f32 %v360, 0.0
  %v413 = vmax.f32 %v365, 0.0
  %v414 = vmax.f32 %v368, 0.0
  %v415 = vmax.f32 %v373, 0.0
  %v416 = vmax.f32 %v376, 0.0
  %v417 = vmax.f32 %v381, 0.0
  %v418 = vmax.f32 %v384, 0.0
  %v419 = vpack.c.bf16 %v388, %v387
  %v420 = vpack.c.bf16 %v390, %v389
  %v421 = vpack.c.bf16 %v392, %v391
  %v422 = vpack.c.bf16 %v394, %v393
  %v423 = vpack.c.bf16 %v396, %v395
  %v424 = vpack.c.bf16 %v398, %v397
  %v425 = vpack.c.bf16 %v400, %v399
  %v426 = vpack.c.bf16 %v402, %v401
  %v427 = vpack.c.bf16 %v404, %v403
  %v428 = vpack.c.bf16 %v406, %v405
  %v429 = vpack.c.bf16 %v408, %v407
  %v430 = vpack.c.bf16 %v410, %v409
  %v431 = vpack.c.bf16 %v412, %v411
  %v432 = vpack.c.bf16 %v414, %v413
  %v433 = vpack.c.bf16 %v416, %v415
  %v434 = vpack.c.bf16 %v418, %v417
  %v451 = vunpack.c.l.b16 %v419
  %v452 = vunpack.c.h.b16 %v419
  %v453 = vunpack.c.l.b16 %v420
  %v454 = vunpack.c.h.b16 %v420
  %v455 = vunpack.c.l.b16 %v421
  %v456 = vunpack.c.h.b16 %v421
  %v457 = vunpack.c.l.b16 %v422
  %v458 = vunpack.c.h.b16 %v422
  %v459 = vunpack.c.l.b16 %v423
  %v460 = vunpack.c.h.b16 %v423
  %v461 = vunpack.c.l.b16 %v424
  %v462 = vunpack.c.h.b16 %v424
  %v463 = vunpack.c.l.b16 %v425
  %v464 = vunpack.c.h.b16 %v425
  %v465 = vunpack.c.l.b16 %v426
  %v466 = vunpack.c.h.b16 %v426
  %v467 = vunpack.c.l.b16 %v427
  %v468 = vunpack.c.h.b16 %v427
  %v469 = vunpack.c.l.b16 %v428
  %v470 = vunpack.c.h.b16 %v428
  %v471 = vunpack.c.l.b16 %v429
  %v472 = vunpack.c.h.b16 %v429
  %v473 = vunpack.c.l.b16 %v430
  %v474 = vunpack.c.h.b16 %v430
  %v475 = vunpack.c.l.b16 %v431
  %v476 = vunpack.c.h.b16 %v431
  %v477 = vunpack.c.l.b16 %v432
  %v478 = vunpack.c.h.b16 %v432
  %v479 = vunpack.c.l.b16 %v433
  %v480 = vunpack.c.h.b16 %v433
  %v481 = vunpack.c.l.b16 %v434
  %v482 = vunpack.c.h.b16 %v434
  %v483 = vpack.c.b16 %v451, %v451
  %v484 = vpack.c.b16 %v452, %v452
  %v485 = vpack.c.b16 %v453, %v453
  %v486 = vpack.c.b16 %v454, %v454
  %v487 = vpack.c.b16 %v455, %v455
  %v488 = vpack.c.b16 %v456, %v456
  %v489 = vpack.c.b16 %v457, %v457
  %v490 = vpack.c.b16 %v458, %v458
  %v491 = vpack.c.b16 %v459, %v459
  %v492 = vpack.c.b16 %v460, %v460
  %v493 = vpack.c.b16 %v461, %v461
  %v494 = vpack.c.b16 %v462, %v462
  %v495 = vpack.c.b16 %v463, %v463
  %v496 = vpack.c.b16 %v464, %v464
  %v497 = vpack.c.b16 %v465, %v465
  %v498 = vpack.c.b16 %v466, %v466
  %v499 = vpack.c.b16 %v467, %v467
  %v500 = vpack.c.b16 %v468, %v468
  %v501 = vpack.c.b16 %v469, %v469
  %v502 = vpack.c.b16 %v470, %v470
  %v503 = vpack.c.b16 %v471, %v471
  %v504 = vpack.c.b16 %v472, %v472
  %v505 = vpack.c.b16 %v473, %v473
  %v506 = vpack.c.b16 %v474, %v474
  %v507 = vpack.c.b16 %v475, %v475
  %v508 = vpack.c.b16 %v476, %v476
  %v509 = vpack.c.b16 %v477, %v477
  %v510 = vpack.c.b16 %v478, %v478
  %v511 = vpack.c.b16 %v479, %v479
  %v512 = vpack.c.b16 %v480, %v480
  %v513 = vpack.c.b16 %v481, %v481
  %v514 = vpack.c.b16 %v482, %v482
  %547 = vst [vmem:[#allocation2] sm:$0xf] %v483
  %548 = vst [vmem:[#allocation2 + $0x4] sm:$0xf] %v484
  %549 = vst [vmem:[#allocation2 + $0x8] sm:$0xf] %v485
  %550 = vst [vmem:[#allocation2 + $0xc] sm:$0xf] %v486
  %551 = vst [vmem:[#allocation2 + $0x10] sm:$0xf] %v487
  %552 = vst [vmem:[#allocation2 + $0x14] sm:$0xf] %v488
  %553 = vst [vmem:[#allocation2 + $0x18] sm:$0xf] %v489
  %554 = vst [vmem:[#allocation2 + $0x1c] sm:$0xf] %v490
  %555 = vst [vmem:[#allocation2 + $0x20] sm:$0xf] %v491
  %556 = vst [vmem:[#allocation2 + $0x24] sm:$0xf] %v492
  %557 = vst [vmem:[#allocation2 + $0x28] sm:$0xf] %v493
  %558 = vst [vmem:[#allocation2 + $0x2c] sm:$0xf] %v494
  %559 = vst [vmem:[#allocation2 + $0x30] sm:$0xf] %v495
  %560 = vst [vmem:[#allocation2 + $0x34] sm:$0xf] %v496
  %561 = vst [vmem:[#allocation2 + $0x38] sm:$0xf] %v497
  %562 = vst [vmem:[#allocation2 + $0x3c] sm:$0xf] %v498
  %563 = vst [vmem:[#allocation2 + $0x40] sm:$0xf] %v499
  %564 = vst [vmem:[#allocation2 + $0x44] sm:$0xf] %v500
  %565 = vst [vmem:[#allocation2 + $0x48] sm:$0xf] %v501
  %566 = vst [vmem:[#allocation2 + $0x4c] sm:$0xf] %v502
  %567 = vst [vmem:[#allocation2 + $0x50] sm:$0xf] %v503
  %568 = vst [vmem:[#allocation2 + $0x54] sm:$0xf] %v504
  %569 = vst [vmem:[#allocation2 + $0x58] sm:$0xf] %v505
  %570 = vst [vmem:[#allocation2 + $0x5c] sm:$0xf] %v506
  %571 = vst [vmem:[#allocation2 + $0x60] sm:$0xf] %v507
  %572 = vst [vmem:[#allocation2 + $0x64] sm:$0xf] %v508
  %573 = vst [vmem:[#allocation2 + $0x68] sm:$0xf] %v509
  %574 = vst [vmem:[#allocation2 + $0x6c] sm:$0xf] %v510
  %575 = vst [vmem:[#allocation2 + $0x70] sm:$0xf] %v511
  %576 = vst [vmem:[#allocation2 + $0x74] sm:$0xf] %v512
  %577 = vst [vmem:[#allocation2 + $0x78] sm:$0xf] %v513
  %578 = vst [vmem:[#allocation2 + $0x7c] sm:$0xf] %v514
  %579 = vst [vmem:[#allocation3] sm:$0xff] 0.0
  %580 = vst [vmem:[#allocation3 + $0x8] sm:$0xff] 0.0
  %581 = vst [vmem:[#allocation3 + $0x10] sm:$0xff] 0.0
  %582 = vst [vmem:[#allocation3 + $0x18] sm:$0xff] 0.0
  %583 = vst [vmem:[#allocation3 + $0x20] sm:$0xff] 0.0
  %584 = vst [vmem:[#allocation3 + $0x28] sm:$0xff] 0.0
  %585 = vst [vmem:[#allocation3 + $0x30] sm:$0xff] 0.0
  %586 = vst [vmem:[#allocation3 + $0x38] sm:$0xff] 0.0
  %587 = vst [vmem:[#allocation3 + $0x40] sm:$0xff] 0.0
  %588 = vst [vmem:[#allocation3 + $0x48] sm:$0xff] 0.0
  %589 = vst [vmem:[#allocation3 + $0x50] sm:$0xff] 0.0
  %590 = vst [vmem:[#allocation3 + $0x58] sm:$0xff] 0.0
  %591 = vst [vmem:[#allocation3 + $0x60] sm:$0xff] 0.0
  %592 = vst [vmem:[#allocation3 + $0x68] sm:$0xff] 0.0
  %593 = vst [vmem:[#allocation3 + $0x70] sm:$0xff] 0.0
  %594 = vst [vmem:[#allocation3 + $0x78] sm:$0xff] 0.0
  %v595 = vld [vmem:[#allocation3] sm:$0xff]
  %v596 = vld [vmem:[#allocation3 + $0x8] sm:$0xff]
  %v597 = vld [vmem:[#allocation3 + $0x10] sm:$0xff]
  %v598 = vld [vmem:[#allocation3 + $0x18] sm:$0xff]
  %v599 = vld [vmem:[#allocation3 + $0x20] sm:$0xff]
  %v600 = vld [vmem:[#allocation3 + $0x28] sm:$0xff]
  %v601 = vld [vmem:[#allocation3 + $0x30] sm:$0xff]
  %v602 = vld [vmem:[#allocation3 + $0x38] sm:$0xff]
  %v603 = vld [vmem:[#allocation3 + $0x40] sm:$0xff]
  %v604 = vld [vmem:[#allocation3 + $0x48] sm:$0xff]
  %v605 = vld [vmem:[#allocation3 + $0x50] sm:$0xff]
  %v606 = vld [vmem:[#allocation3 + $0x58] sm:$0xff]
  %v607 = vld [vmem:[#allocation3 + $0x60] sm:$0xff]
  %v608 = vld [vmem:[#allocation3 + $0x68] sm:$0xff]
  %v609 = vld [vmem:[#allocation3 + $0x70] sm:$0xff]
  %v610 = vld [vmem:[#allocation3 + $0x78] sm:$0xff]
  %v611 = vld [vmem:[#allocation2] sm:$0xf]
  %v612 = vld [vmem:[#allocation2 + $0x4] sm:$0xf]
  %v613 = vld [vmem:[%s3] sm:$0xff]
  %v614 = vld [vmem:[%s3 + $0x8] sm:$0xff]
  %v615 = vld [vmem:[%s3 + $0x10] sm:$0xff]
  %v616 = vld [vmem:[%s3 + $0x18] sm:$0xff]
  %v617 = vld [vmem:[%s3 + $0x20] sm:$0xff]
  %v618 = vld [vmem:[%s3 + $0x28] sm:$0xff]
  %v619 = vld [vmem:[%s3 + $0x30] sm:$0xff]
  %v620 = vld [vmem:[%s3 + $0x38] sm:$0xff]
  %v621 = vld [vmem:[%s3 + $0x40] sm:$0xff]
  %v622 = vld [vmem:[%s3 + $0x48] sm:$0xff]
  %v623 = vld [vmem:[%s3 + $0x50] sm:$0xff]
  %v624 = vld [vmem:[%s3 + $0x58] sm:$0xff]
  %v625 = vld [vmem:[%s3 + $0x60] sm:$0xff]
  %v626 = vld [vmem:[%s3 + $0x68] sm:$0xff]
  %v627 = vld [vmem:[%s3 + $0x70] sm:$0xff]
  %v628 = vld [vmem:[%s3 + $0x78] sm:$0xff]
  %v629 = vld [vmem:[%s3 + $0x80] sm:$0xff]
  %v630 = vld [vmem:[%s3 + $0x88] sm:$0xff]
  %v631 = vld [vmem:[%s3 + $0x90] sm:$0xff]
  %v632 = vld [vmem:[%s3 + $0x98] sm:$0xff]
  %v633 = vld [vmem:[%s3 + $0xa0] sm:$0xff]
  %v634 = vld [vmem:[%s3 + $0xa8] sm:$0xff]
  %v635 = vld [vmem:[%s3 + $0xb0] sm:$0xff]
  %v636 = vld [vmem:[%s3 + $0xb8] sm:$0xff]
  %v637 = vld [vmem:[%s3 + $0xc0] sm:$0xff]
  %v638 = vld [vmem:[%s3 + $0xc8] sm:$0xff]
  %v639 = vld [vmem:[%s3 + $0xd0] sm:$0xff]
  %v640 = vld [vmem:[%s3 + $0xd8] sm:$0xff]
  %v641 = vld [vmem:[%s3 + $0xe0] sm:$0xff]
  %v642 = vld [vmem:[%s3 + $0xe8] sm:$0xff]
  %v643 = vld [vmem:[%s3 + $0xf0] sm:$0xff]
  %v644 = vld [vmem:[%s3 + $0xf8] sm:$0xff]
  %v645 = vld [vmem:[%s3 + $0x100] sm:$0xff]
  %v646 = vld [vmem:[%s3 + $0x108] sm:$0xff]
  %v647 = vld [vmem:[%s3 + $0x110] sm:$0xff]
  %v648 = vld [vmem:[%s3 + $0x118] sm:$0xff]
  %v649 = vld [vmem:[%s3 + $0x120] sm:$0xff]
  %v650 = vld [vmem:[%s3 + $0x128] sm:$0xff]
  %v651 = vld [vmem:[%s3 + $0x130] sm:$0xff]
  %v652 = vld [vmem:[%s3 + $0x138] sm:$0xff]
  %v653 = vld [vmem:[%s3 + $0x140] sm:$0xff]
  %v654 = vld [vmem:[%s3 + $0x148] sm:$0xff]
  %v655 = vld [vmem:[%s3 + $0x150] sm:$0xff]
  %v656 = vld [vmem:[%s3 + $0x158] sm:$0xff]
  %v657 = vld [vmem:[%s3 + $0x160] sm:$0xff]
  %v658 = vld [vmem:[%s3 + $0x168] sm:$0xff]
  %v659 = vld [vmem:[%s3 + $0x170] sm:$0xff]
  %v660 = vld [vmem:[%s3 + $0x178] sm:$0xff]
  %v661 = vld [vmem:[%s3 + $0x180] sm:$0xff]
  %v662 = vld [vmem:[%s3 + $0x188] sm:$0xff]
  %v663 = vld [vmem:[%s3 + $0x190] sm:$0xff]
  %v664 = vld [vmem:[%s3 + $0x198] sm:$0xff]
  %v665 = vld [vmem:[%s3 + $0x1a0] sm:$0xff]
  %v666 = vld [vmem:[%s3 + $0x1a8] sm:$0xff]
  %v667 = vld [vmem:[%s3 + $0x1b0] sm:$0xff]
  %v668 = vld [vmem:[%s3 + $0x1b8] sm:$0xff]
  %v669 = vld [vmem:[%s3 + $0x1c0] sm:$0xff]
  %v670 = vld [vmem:[%s3 + $0x1c8] sm:$0xff]
  %v671 = vld [vmem:[%s3 + $0x1d0] sm:$0xff]
  %v672 = vld [vmem:[%s3 + $0x1d8] sm:$0xff]
  %v673 = vld [vmem:[%s3 + $0x1e0] sm:$0xff]
  %v674 = vld [vmem:[%s3 + $0x1e8] sm:$0xff]
  %v675 = vld [vmem:[%s3 + $0x1f0] sm:$0xff]
  %v676 = vld [vmem:[%s3 + $0x1f8] sm:$0xff]
  %v679 = vunpack.c.l.b16 %v611
  %v680 = vunpack.c.l.b16 %v612
  %v681 = vpack.c.b16 %v680, %v679
  %v747 = vunpack.c.l.b16 %v613
  %v748 = vunpack.c.h.b16 %v613
  %v749 = vunpack.c.l.b16 %v614
  %v750 = vunpack.c.h.b16 %v614
  %v751 = vunpack.c.l.b16 %v615
  %v752 = vunpack.c.h.b16 %v615
  %v753 = vunpack.c.l.b16 %v616
  %v754 = vunpack.c.h.b16 %v616
  %v755 = vunpack.c.l.b16 %v617
  %v756 = vunpack.c.h.b16 %v617
  %v757 = vunpack.c.l.b16 %v618
  %v758 = vunpack.c.h.b16 %v618
  %v759 = vunpack.c.l.b16 %v619
  %v760 = vunpack.c.h.b16 %v619
  %v761 = vunpack.c.l.b16 %v620
  %v762 = vunpack.c.h.b16 %v620
  %v763 = vunpack.c.l.b16 %v621
  %v764 = vunpack.c.h.b16 %v621
  %v765 = vunpack.c.l.b16 %v622
  %v766 = vunpack.c.h.b16 %v622
  %v767 = vunpack.c.l.b16 %v623
  %v768 = vunpack.c.h.b16 %v623
  %v769 = vunpack.c.l.b16 %v624
  %v770 = vunpack.c.h.b16 %v624
  %v771 = vunpack.c.l.b16 %v625
  %v772 = vunpack.c.h.b16 %v625
  %v773 = vunpack.c.l.b16 %v626
  %v774 = vunpack.c.h.b16 %v626
  %v775 = vunpack.c.l.b16 %v627
  %v776 = vunpack.c.h.b16 %v627
  %v777 = vunpack.c.l.b16 %v628
  %v778 = vunpack.c.h.b16 %v628
  %v779 = vunpack.c.l.b16 %v629
  %v780 = vunpack.c.h.b16 %v629
  %v781 = vunpack.c.l.b16 %v630
  %v782 = vunpack.c.h.b16 %v630
  %v783 = vunpack.c.l.b16 %v631
  %v784 = vunpack.c.h.b16 %v631
  %v785 = vunpack.c.l.b16 %v632
  %v786 = vunpack.c.h.b16 %v632
  %v787 = vunpack.c.l.b16 %v633
  %v788 = vunpack.c.h.b16 %v633
  %v789 = vunpack.c.l.b16 %v634
  %v790 = vunpack.c.h.b16 %v634
  %v791 = vunpack.c.l.b16 %v635
  %v792 = vunpack.c.h.b16 %v635
  %v793 = vunpack.c.l.b16 %v636
  %v794 = vunpack.c.h.b16 %v636
  %v795 = vunpack.c.l.b16 %v637
  %v796 = vunpack.c.h.b16 %v637
  %v797 = vunpack.c.l.b16 %v638
  %v798 = vunpack.c.h.b16 %v638
  %v799 = vunpack.c.l.b16 %v639
  %v800 = vunpack.c.h.b16 %v639
  %v801 = vunpack.c.l.b16 %v640
  %v802 = vunpack.c.h.b16 %v640
  %v803 = vunpack.c.l.b16 %v641
  %v804 = vunpack.c.h.b16 %v641
  %v805 = vunpack.c.l.b16 %v642
  %v806 = vunpack.c.h.b16 %v642
  %v807 = vunpack.c.l.b16 %v643
  %v808 = vunpack.c.h.b16 %v643
  %v809 = vunpack.c.l.b16 %v644
  %v810 = vunpack.c.h.b16 %v644
  %v811 = vunpack.c.l.b16 %v645
  %v812 = vunpack.c.h.b16 %v645
  %v813 = vunpack.c.l.b16 %v646
  %v814 = vunpack.c.h.b16 %v646
  %v815 = vunpack.c.l.b16 %v647
  %v816 = vunpack.c.h.b16 %v647
  %v817 = vunpack.c.l.b16 %v648
  %v818 = vunpack.c.h.b16 %v648
  %v819 = vunpack.c.l.b16 %v649
  %v820 = vunpack.c.h.b16 %v649
  %v821 = vunpack.c.l.b16 %v650
  %v822 = vunpack.c.h.b16 %v650
  %v823 = vunpack.c.l.b16 %v651
  %v824 = vunpack.c.h.b16 %v651
  %v825 = vunpack.c.l.b16 %v652
  %v826 = vunpack.c.h.b16 %v652
  %v827 = vunpack.c.l.b16 %v653
  %v828 = vunpack.c.h.b16 %v653
  %v829 = vunpack.c.l.b16 %v654
  %v830 = vunpack.c.h.b16 %v654
  %v831 = vunpack.c.l.b16 %v655
  %v832 = vunpack.c.h.b16 %v655
  %v833 = vunpack.c.l.b16 %v656
  %v834 = vunpack.c.h.b16 %v656
  %v835 = vunpack.c.l.b16 %v657
  %v836 = vunpack.c.h.b16 %v657
  %v837 = vunpack.c.l.b16 %v658
  %v838 = vunpack.c.h.b16 %v658
  %v839 = vunpack.c.l.b16 %v659
  %v840 = vunpack.c.h.b16 %v659
  %v841 = vunpack.c.l.b16 %v660
  %v842 = vunpack.c.h.b16 %v660
  %v843 = vunpack.c.l.b16 %v661
  %v844 = vunpack.c.h.b16 %v661
  %v845 = vunpack.c.l.b16 %v662
  %v846 = vunpack.c.h.b16 %v662
  %v847 = vunpack.c.l.b16 %v663
  %v848 = vunpack.c.h.b16 %v663
  %v849 = vunpack.c.l.b16 %v664
  %v850 = vunpack.c.h.b16 %v664
  %v851 = vunpack.c.l.b16 %v665
  %v852 = vunpack.c.h.b16 %v665
  %v853 = vunpack.c.l.b16 %v666
  %v854 = vunpack.c.h.b16 %v666
  %v855 = vunpack.c.l.b16 %v667
  %v856 = vunpack.c.h.b16 %v667
  %v857 = vunpack.c.l.b16 %v668
  %v858 = vunpack.c.h.b16 %v668
  %v859 = vunpack.c.l.b16 %v669
  %v860 = vunpack.c.h.b16 %v669
  %v861 = vunpack.c.l.b16 %v670
  %v862 = vunpack.c.h.b16 %v670
  %v863 = vunpack.c.l.b16 %v671
  %v864 = vunpack.c.h.b16 %v671
  %v865 = vunpack.c.l.b16 %v672
  %v866 = vunpack.c.h.b16 %v672
  %v867 = vunpack.c.l.b16 %v673
  %v868 = vunpack.c.h.b16 %v673
  %v869 = vunpack.c.l.b16 %v674
  %v870 = vunpack.c.h.b16 %v674
  %v871 = vunpack.c.l.b16 %v675
  %v872 = vunpack.c.h.b16 %v675
  %v873 = vunpack.c.l.b16 %v676
  %v874 = vunpack.c.h.b16 %v676
  %v875 = vpack.c.b16 %v755, %v747
  %v876 = vpack.c.b16 %v756, %v748
  %v877 = vpack.c.b16 %v757, %v749
  %v878 = vpack.c.b16 %v758, %v750
  %v879 = vpack.c.b16 %v759, %v751
  %v880 = vpack.c.b16 %v760, %v752
  %v881 = vpack.c.b16 %v761, %v753
  %v882 = vpack.c.b16 %v762, %v754
  %v883 = vpack.c.b16 %v771, %v763
  %v884 = vpack.c.b16 %v772, %v764
  %v885 = vpack.c.b16 %v773, %v765
  %v886 = vpack.c.b16 %v774, %v766
  %v887 = vpack.c.b16 %v775, %v767
  %v888 = vpack.c.b16 %v776, %v768
  %v889 = vpack.c.b16 %v777, %v769
  %v890 = vpack.c.b16 %v778, %v770
  %v891 = vpack.c.b16 %v787, %v779
  %v892 = vpack.c.b16 %v788, %v780
  %v893 = vpack.c.b16 %v789, %v781
  %v894 = vpack.c.b16 %v790, %v782
  %v895 = vpack.c.b16 %v791, %v783
  %v896 = vpack.c.b16 %v792, %v784
  %v897 = vpack.c.b16 %v793, %v785
  %v898 = vpack.c.b16 %v794, %v786
  %v899 = vpack.c.b16 %v803, %v795
  %v900 = vpack.c.b16 %v804, %v796
  %v901 = vpack.c.b16 %v805, %v797
  %v902 = vpack.c.b16 %v806, %v798
  %v903 = vpack.c.b16 %v807, %v799
  %v904 = vpack.c.b16 %v808, %v800
  %v905 = vpack.c.b16 %v809, %v801
  %v906 = vpack.c.b16 %v810, %v802
  %v907 = vpack.c.b16 %v819, %v811
  %v908 = vpack.c.b16 %v820, %v812
  %v909 = vpack.c.b16 %v821, %v813
  %v910 = vpack.c.b16 %v822, %v814
  %v911 = vpack.c.b16 %v823, %v815
  %v912 = vpack.c.b16 %v824, %v816
  %v913 = vpack.c.b16 %v825, %v817
  %v914 = vpack.c.b16 %v826, %v818
  %v915 = vpack.c.b16 %v835, %v827
  %v916 = vpack.c.b16 %v836, %v828
  %v917 = vpack.c.b16 %v837, %v829
  %v918 = vpack.c.b16 %v838, %v830
  %v919 = vpack.c.b16 %v839, %v831
  %v920 = vpack.c.b16 %v840, %v832
  %v921 = vpack.c.b16 %v841, %v833
  %v922 = vpack.c.b16 %v842, %v834
  %v923 = vpack.c.b16 %v851, %v843
  %v924 = vpack.c.b16 %v852, %v844
  %v925 = vpack.c.b16 %v853, %v845
  %v926 = vpack.c.b16 %v854, %v846
  %v927 = vpack.c.b16 %v855, %v847
  %v928 = vpack.c.b16 %v856, %v848
  %v929 = vpack.c.b16 %v857, %v849
  %v930 = vpack.c.b16 %v858, %v850
  %v931 = vpack.c.b16 %v867, %v859
  %v932 = vpack.c.b16 %v868, %v860
  %v933 = vpack.c.b16 %v869, %v861
  %v934 = vpack.c.b16 %v870, %v862
  %v935 = vpack.c.b16 %v871, %v863
  %v936 = vpack.c.b16 %v872, %v864
  %v937 = vpack.c.b16 %v873, %v865
  %v938 = vpack.c.b16 %v874, %v866
  %1003 = vmatprep.subr.bf16.mxu0 %v932
  %1004 = vmatpush1.bf16.msra.mxu0 %v931
  %1005 = vmatprep.subr.bf16.mxu0 %v924
  %1006 = vmatpush1.bf16.msra.mxu0 %v923
  %1007 = vmatprep.subr.bf16.mxu0 %v916
  %1008 = vmatpush1.bf16.msra.mxu0 %v915
  %1009 = vmatprep.subr.bf16.mxu0 %v908
  %1010 = vmatpush1.bf16.msra.mxu0 %v907
  %1011 = vmatprep.subr.bf16.mxu0 %v900
  %1012 = vmatpush1.bf16.msra.mxu0 %v899
  %1013 = vmatprep.subr.bf16.mxu0 %v892
  %1014 = vmatpush1.bf16.msra.mxu0 %v891
  %1015 = vmatprep.subr.bf16.mxu0 %v884
  %1016 = vmatpush1.bf16.msra.mxu0 %v883
  %1017 = vmatprep.subr.bf16.mxu0 %v876
  %1018 = vmatpush1.bf16.msra.mxu0 %v875
  %1019 = vmatprep.subr.bf16.mxu0 0
  %1020 = vmatpush2.bf16.msra.mxu0 0
  %1021 = vmatprep.subr.bf16.mxu0 0
  %1022 = vmatpush2.bf16.msra.mxu0 0
  %1023 = vmatprep.subr.bf16.mxu0 0
  %1024 = vmatpush2.bf16.msra.mxu0 0
  %1025 = vmatprep.subr.bf16.mxu0 0
  %1026 = vmatpush2.bf16.msra.mxu0 0
  %1027 = vmatprep.subr.bf16.mxu0 0
  %1028 = vmatpush2.bf16.msra.mxu0 0
  %1029 = vmatprep.subr.bf16.mxu0 0
  %1030 = vmatpush2.bf16.msra.mxu0 0
  %1031 = vmatprep.subr.bf16.mxu0 0
  %1032 = vmatpush2.bf16.msra.mxu0 0
  %1033 = vmatprep.subr.bf16.mxu0 0
  %1034 = vmatpush2.bf16.msra.mxu0 0
  %1035 = vmatprep.mubr.bf16.mxu0 0
  %1036 = vmatmul.mubr.bf16.gmra.mxu0 %v681
  %v1037 = vpop.f32.mrf.mxu0
  %v1038 = vadd.f32 0.0, %v1037
  %v1039 = vpop.f32.mrf.mxu0
  %v1040 = vadd.f32 0.0, %v1039
  %v1041 = vpop.f32.mrf.mxu0
  %v1042 = vadd.f32 0.0, %v1041
  %v1043 = vpop.f32.mrf.mxu0
  %v1044 = vadd.f32 0.0, %v1043
  %1045 = vdwg.mxu0
  %1046 = vmatprep.subr.bf16.mxu0 %v934
  %1047 = vmatpush1.bf16.msra.mxu0 %v933
  %1048 = vmatprep.subr.bf16.mxu0 %v926
  %1049 = vmatpush1.bf16.msra.mxu0 %v925
  %1050 = vmatprep.subr.bf16.mxu0 %v918
  %1051 = vmatpush1.bf16.msra.mxu0 %v917
  %1052 = vmatprep.subr.bf16.mxu0 %v910
  %1053 = vmatpush1.bf16.msra.mxu0 %v909
  %1054 = vmatprep.subr.bf16.mxu0 %v902
  %1055 = vmatpush1.bf16.msra.mxu0 %v901
  %1056 = vmatprep.subr.bf16.mxu0 %v894
  %1057 = vmatpush1.bf16.msra.mxu0 %v893
  %1058 = vmatprep.subr.bf16.mxu0 %v886
  %1059 = vmatpush1.bf16.msra.mxu0 %v885
  %1060 = vmatprep.subr.bf16.mxu0 %v878
  %1061 = vmatpush1.bf16.msra.mxu0 %v877
  %1062 = vmatprep.subr.bf16.mxu0 0
  %1063 = vmatpush2.bf16.msra.mxu0 0
  %1064 = vmatprep.subr.bf16.mxu0 0
  %1065 = vmatpush2.bf16.msra.mxu0 0
  %1066 = vmatprep.subr.bf16.mxu0 0
  %1067 = vmatpush2.bf16.msra.mxu0 0
  %1068 = vmatprep.subr.bf16.mxu0 0
  %1069 = vmatpush2.bf16.msra.mxu0 0
  %1070 = vmatprep.subr.bf16.mxu0 0
  %1071 = vmatpush2.bf16.msra.mxu0 0
  %1072 = vmatprep.subr.bf16.mxu0 0
  %1073 = vmatpush2.bf16.msra.mxu0 0
  %1074 = vmatprep.subr.bf16.mxu0 0
  %1075 = vmatpush2.bf16.msra.mxu0 0
  %1076 = vmatprep.subr.bf16.mxu0 0
  %1077 = vmatpush2.bf16.msra.mxu0 0
  %1078 = vmatprep.mubr.bf16.mxu0 0
  %1079 = vmatmul.mubr.bf16.gmra.mxu0 %v681
  %v1080 = vpop.f32.mrf.mxu0
  %v1081 = vadd.f32 0.0, %v1080
  %v1082 = vpop.f32.mrf.mxu0
  %v1083 = vadd.f32 0.0, %v1082
  %v1084 = vpop.f32.mrf.mxu0
  %v1085 = vadd.f32 0.0, %v1084
  %v1086 = vpop.f32.mrf.mxu0
  %v1087 = vadd.f32 0.0, %v1086
  %1088 = vdwg.mxu0
  %1089 = vmatprep.subr.bf16.mxu0 %v936
  %1090 = vmatpush1.bf16.msra.mxu0 %v935
  %1091 = vmatprep.subr.bf16.mxu0 %v928
  %1092 = vmatpush1.bf16.msra.mxu0 %v927
  %1093 = vmatprep.subr.bf16.mxu0 %v920
  %1094 = vmatpush1.bf16.msra.mxu0 %v919
  %1095 = vmatprep.subr.bf16.mxu0 %v912
  %1096 = vmatpush1.bf16.msra.mxu0 %v911
  %1097 = vmatprep.subr.bf16.mxu0 %v904
  %1098 = vmatpush1.bf16.msra.mxu0 %v903
  %1099 = vmatprep.subr.bf16.mxu0 %v896
  %1100 = vmatpush1.bf16.msra.mxu0 %v895
  %1101 = vmatprep.subr.bf16.mxu0 %v888
  %1102 = vmatpush1.bf16.msra.mxu0 %v887
  %1103 = vmatprep.subr.bf16.mxu0 %v880
  %1104 = vmatpush1.bf16.msra.mxu0 %v879
  %1105 = vmatprep.subr.bf16.mxu0 0
  %1106 = vmatpush2.bf16.msra.mxu0 0
  %1107 = vmatprep.subr.bf16.mxu0 0
  %1108 = vmatpush2.bf16.msra.mxu0 0
  %1109 = vmatprep.subr.bf16.mxu0 0
  %1110 = vmatpush2.bf16.msra.mxu0 0
  %1111 = vmatprep.subr.bf16.mxu0 0
  %1112 = vmatpush2.bf16.msra.mxu0 0
  %1113 = vmatprep.subr.bf16.mxu0 0
  %1114 = vmatpush2.bf16.msra.mxu0 0
  %1115 = vmatprep.subr.bf16.mxu0 0
  %1116 = vmatpush2.bf16.msra.mxu0 0
  %1117 = vmatprep.subr.bf16.mxu0 0
  %1118 = vmatpush2.bf16.msra.mxu0 0
  %1119 = vmatprep.subr.bf16.mxu0 0
  %1120 = vmatpush2.bf16.msra.mxu0 0
  %1121 = vmatprep.mubr.bf16.mxu0 0
  %1122 = vmatmul.mubr.bf16.gmra.mxu0 %v681
  %v1123 = vpop.f32.mrf.mxu0
  %v1124 = vadd.f32 0.0, %v1123
  %v1125 = vpop.f32.mrf.mxu0
  %v1126 = vadd.f32 0.0, %v1125
  %v1127 = vpop.f32.mrf.mxu0
  %v1128 = vadd.f32 0.0, %v1127
  %v1129 = vpop.f32.mrf.mxu0
  %v1130 = vadd.f32 0.0, %v1129
  %1131 = vdwg.mxu0
  %1132 = vmatprep.subr.bf16.mxu0 %v938
  %1133 = vmatpush1.bf16.msra.mxu0 %v937
  %1134 = vmatprep.subr.bf16.mxu0 %v930
  %1135 = vmatpush1.bf16.msra.mxu0 %v929
  %1136 = vmatprep.subr.bf16.mxu0 %v922
  %1137 = vmatpush1.bf16.msra.mxu0 %v921
  %1138 = vmatprep.subr.bf16.mxu0 %v914
  %1139 = vmatpush1.bf16.msra.mxu0 %v913
  %1140 = vmatprep.subr.bf16.mxu0 %v906
  %1141 = vmatpush1.bf16.msra.mxu0 %v905
  %1142 = vmatprep.subr.bf16.mxu0 %v898
  %1143 = vmatpush1.bf16.msra.mxu0 %v897
  %1144 = vmatprep.subr.bf16.mxu0 %v890
  %1145 = vmatpush1.bf16.msra.mxu0 %v889
  %1146 = vmatprep.subr.bf16.mxu0 %v882
  %1147 = vmatpush1.bf16.msra.mxu0 %v881
  %1148 = vmatprep.subr.bf16.mxu0 0
  %1149 = vmatpush2.bf16.msra.mxu0 0
  %1150 = vmatprep.subr.bf16.mxu0 0
  %1151 = vmatpush2.bf16.msra.mxu0 0
  %1152 = vmatprep.subr.bf16.mxu0 0
  %1153 = vmatpush2.bf16.msra.mxu0 0
  %1154 = vmatprep.subr.bf16.mxu0 0
  %1155 = vmatpush2.bf16.msra.mxu0 0
  %1156 = vmatprep.subr.bf16.mxu0 0
  %1157 = vmatpush2.bf16.msra.mxu0 0
  %1158 = vmatprep.subr.bf16.mxu0 0
  %1159 = vmatpush2.bf16.msra.mxu0 0
  %1160 = vmatprep.subr.bf16.mxu0 0
  %1161 = vmatpush2.bf16.msra.mxu0 0
  %1162 = vmatprep.subr.bf16.mxu0 0
  %1163 = vmatpush2.bf16.msra.mxu0 0
  %1164 = vmatprep.mubr.bf16.mxu0 0
  %1165 = vmatmul.mubr.bf16.gmra.mxu0 %v681
  %v1166 = vpop.f32.mrf.mxu0
  %v1167 = vadd.f32 0.0, %v1166
  %v1168 = vpop.f32.mrf.mxu0
  %v1169 = vadd.f32 0.0, %v1168
  %v1170 = vpop.f32.mrf.mxu0
  %v1171 = vadd.f32 0.0, %v1170
  %v1172 = vpop.f32.mrf.mxu0
  %v1173 = vadd.f32 0.0, %v1172
  %1174 = vdwg.mxu0
  %v1175 = vadd.f32 %v595, %v1038
  %v1176 = vadd.f32 %v596, %v1040
  %v1177 = vadd.f32 %v597, %v1081
  %v1178 = vadd.f32 %v598, %v1083
  %v1179 = vadd.f32 %v599, %v1124
  %v1180 = vadd.f32 %v600, %v1126
  %v1181 = vadd.f32 %v601, %v1167
  %v1182 = vadd.f32 %v602, %v1169
  %v1183 = vadd.f32 %v603, %v1042
  %v1184 = vadd.f32 %v604, %v1044
  %v1185 = vadd.f32 %v605, %v1085
  %v1186 = vadd.f32 %v606, %v1087
  %v1187 = vadd.f32 %v607, %v1128
  %v1188 = vadd.f32 %v608, %v1130
  %v1189 = vadd.f32 %v609, %v1171
  %v1190 = vadd.f32 %v610, %v1173
  %1191 = vst [vmem:[#allocation3] sm:$0xff] %v1175
  %1192 = vst [vmem:[#allocation3 + $0x8] sm:$0xff] %v1176
  %1193 = vst [vmem:[#allocation3 + $0x10] sm:$0xff] %v1177
  %1194 = vst [vmem:[#allocation3 + $0x18] sm:$0xff] %v1178
  %1195 = vst [vmem:[#allocation3 + $0x20] sm:$0xff] %v1179
  %1196 = vst [vmem:[#allocation3 + $0x28] sm:$0xff] %v1180
  %1197 = vst [vmem:[#allocation3 + $0x30] sm:$0xff] %v1181
  %1198 = vst [vmem:[#allocation3 + $0x38] sm:$0xff] %v1182
  %1199 = vst [vmem:[#allocation3 + $0x40] sm:$0xff] %v1183
  %1200 = vst [vmem:[#allocation3 + $0x48] sm:$0xff] %v1184
  %1201 = vst [vmem:[#allocation3 + $0x50] sm:$0xff] %v1185
  %1202 = vst [vmem:[#allocation3 + $0x58] sm:$0xff] %v1186
  %1203 = vst [vmem:[#allocation3 + $0x60] sm:$0xff] %v1187
  %1204 = vst [vmem:[#allocation3 + $0x68] sm:$0xff] %v1188
  %1205 = vst [vmem:[#allocation3 + $0x70] sm:$0xff] %v1189
  %1206 = vst [vmem:[#allocation3 + $0x78] sm:$0xff] %v1190
  %v1207 = vld [vmem:[#allocation3] sm:$0xff]
  %v1208 = vld [vmem:[#allocation3 + $0x8] sm:$0xff]
  %v1209 = vld [vmem:[#allocation3 + $0x10] sm:$0xff]
  %v1210 = vld [vmem:[#allocation3 + $0x18] sm:$0xff]
  %v1211 = vld [vmem:[#allocation3 + $0x20] sm:$0xff]
  %v1212 = vld [vmem:[#allocation3 + $0x28] sm:$0xff]
  %v1213 = vld [vmem:[#allocation3 + $0x30] sm:$0xff]
  %v1214 = vld [vmem:[#allocation3 + $0x38] sm:$0xff]
  %v1215 = vld [vmem:[#allocation3 + $0x40] sm:$0xff]
  %v1216 = vld [vmem:[#allocation3 + $0x48] sm:$0xff]
  %v1217 = vld [vmem:[#allocation3 + $0x50] sm:$0xff]
  %v1218 = vld [vmem:[#allocation3 + $0x58] sm:$0xff]
  %v1219 = vld [vmem:[#allocation3 + $0x60] sm:$0xff]
  %v1220 = vld [vmem:[#allocation3 + $0x68] sm:$0xff]
  %v1221 = vld [vmem:[#allocation3 + $0x70] sm:$0xff]
  %v1222 = vld [vmem:[#allocation3 + $0x78] sm:$0xff]
  %v1223 = vld [vmem:[#allocation2 + $0x8] sm:$0xf]
  %v1224 = vld [vmem:[#allocation2 + $0xc] sm:$0xf]
  %v1225 = vld [vmem:[%s3 + $0x200] sm:$0xff]
  %v1226 = vld [vmem:[%s3 + $0x208] sm:$0xff]
  %v1227 = vld [vmem:[%s3 + $0x210] sm:$0xff]
  %v1228 = vld [vmem:[%s3 + $0x218] sm:$0xff]
  %v1229 = vld [vmem:[%s3 + $0x220] sm:$0xff]
  %v1230 = vld [vmem:[%s3 + $0x228] sm:$0xff]
  %v1231 = vld [vmem:[%s3 + $0x230] sm:$0xff]
  %v1232 = vld [vmem:[%s3 + $0x238] sm:$0xff]
  %v1233 = vld [vmem:[%s3 + $0x240] sm:$0xff]
  %v1234 = vld [vmem:[%s3 + $0x248] sm:$0xff]
  %v1235 = vld [vmem:[%s3 + $0x250] sm:$0xff]
  %v1236 = vld [vmem:[%s3 + $0x258] sm:$0xff]
  %v1237 = vld [vmem:[%s3 + $0x260] sm:$0xff]
  %v1238 = vld [vmem:[%s3 + $0x268] sm:$0xff]
  %v1239 = vld [vmem:[%s3 + $0x270] sm:$0xff]
  %v1240 = vld [vmem:[%s3 + $0x278] sm:$0xff]
  %v1241 = vld [vmem:[%s3 + $0x280] sm:$0xff]
  %v1242 = vld [vmem:[%s3 + $0x288] sm:$0xff]
  %v1243 = vld [vmem:[%s3 + $0x290] sm:$0xff]
  %v1244 = vld [vmem:[%s3 + $0x298] sm:$0xff]
  %v1245 = vld [vmem:[%s3 + $0x2a0] sm:$0xff]
  %v1246 = vld [vmem:[%s3 + $0x2a8] sm:$0xff]
  %v1247 = vld [vmem:[%s3 + $0x2b0] sm:$0xff]
  %v1248 = vld [vmem:[%s3 + $0x2b8] sm:$0xff]
  %v1249 = vld [vmem:[%s3 + $0x2c0] sm:$0xff]
  %v1250 = vld [vmem:[%s3 + $0x2c8] sm:$0xff]
  %v1251 = vld [vmem:[%s3 + $0x2d0] sm:$0xff]
  %v1252 = vld [vmem:[%s3 + $0x2d8] sm:$0xff]
  %v1253 = vld [vmem:[%s3 + $0x2e0] sm:$0xff]
  %v1254 = vld [vmem:[%s3 + $0x2e8] sm:$0xff]
  %v1255 = vld [vmem:[%s3 + $0x2f0] sm:$0xff]
  %v1256 = vld [vmem:[%s3 + $0x2f8] sm:$0xff]
  %v1257 = vld [vmem:[%s3 + $0x300] sm:$0xff]
  %v1258 = vld [vmem:[%s3 + $0x308] sm:$0xff]
  %v1259 = vld [vmem:[%s3 + $0x310] sm:$0xff]
  %v1260 = vld [vmem:[%s3 + $0x318] sm:$0xff]
  %v1261 = vld [vmem:[%s3 + $0x320] sm:$0xff]
  %v1262 = vld [vmem:[%s3 + $0x328] sm:$0xff]
  %v1263 = vld [vmem:[%s3 + $0x330] sm:$0xff]
  %v1264 = vld [vmem:[%s3 + $0x338] sm:$0xff]
  %v1265 = vld [vmem:[%s3 + $0x340] sm:$0xff]
  %v1266 = vld [vmem:[%s3 + $0x348] sm:$0xff]
  %v1267 = vld [vmem:[%s3 + $0x350] sm:$0xff]
  %v1268 = vld [vmem:[%s3 + $0x358] sm:$0xff]
  %v1269 = vld [vmem:[%s3 + $0x360] sm:$0xff]
  %v1270 = vld [vmem:[%s3 + $0x368] sm:$0xff]
  %v1271 = vld [vmem:[%s3 + $0x370] sm:$0xff]
  %v1272 = vld [vmem:[%s3 + $0x378] sm:$0xff]
  %v1273 = vld [vmem:[%s3 + $0x380] sm:$0xff]
  %v1274 = vld [vmem:[%s3 + $0x388] sm:$0xff]
  %v1275 = vld [vmem:[%s3 + $0x390] sm:$0xff]
  %v1276 = vld [vmem:[%s3 + $0x398] sm:$0xff]
  %v1277 = vld [vmem:[%s3 + $0x3a0] sm:$0xff]
  %v1278 = vld [vmem:[%s3 + $0x3a8] sm:$0xff]
  %v1279 = vld [vmem:[%s3 + $0x3b0] sm:$0xff]
  %v1280 = vld [vmem:[%s3 + $0x3b8] sm:$0xff]
  %v1281 = vld [vmem:[%s3 + $0x3c0] sm:$0xff]
  %v1282 = vld [vmem:[%s3 + $0x3c8] sm:$0xff]
  %v1283 = vld [vmem:[%s3 + $0x3d0] sm:$0xff]
  %v1284 = vld [vmem:[%s3 + $0x3d8] sm:$0xff]
  %v1285 = vld [vmem:[%s3 + $0x3e0] sm:$0xff]
  %v1286 = vld [vmem:[%s3 + $0x3e8] sm:$0xff]
  %v1287 = vld [vmem:[%s3 + $0x3f0] sm:$0xff]
  %v1288 = vld [vmem:[%s3 + $0x3f8] sm:$0xff]
  %v1291 = vunpack.c.l.b16 %v1223
  %v1292 = vunpack.c.l.b16 %v1224
  %v1293 = vpack.c.b16 %v1292, %v1291
  %v1359 = vunpack.c.l.b16 %v1225
  %v1360 = vunpack.c.h.b16 %v1225
  %v1361 = vunpack.c.l.b16 %v1226
  %v1362 = vunpack.c.h.b16 %v1226
  %v1363 = vunpack.c.l.b16 %v1227
  %v1364 = vunpack.c.h.b16 %v1227
  %v1365 = vunpack.c.l.b16 %v1228
  %v1366 = vunpack.c.h.b16 %v1228
  %v1367 = vunpack.c.l.b16 %v1229
  %v1368 = vunpack.c.h.b16 %v1229
  %v1369 = vunpack.c.l.b16 %v1230
  %v1370 = vunpack.c.h.b16 %v1230
  %v1371 = vunpack.c.l.b16 %v1231
  %v1372 = vunpack.c.h.b16 %v1231
  %v1373 = vunpack.c.l.b16 %v1232
  %v1374 = vunpack.c.h.b16 %v1232
  %v1375 = vunpack.c.l.b16 %v1233
  %v1376 = vunpack.c.h.b16 %v1233
  %v1377 = vunpack.c.l.b16 %v1234
  %v1378 = vunpack.c.h.b16 %v1234
  %v1379 = vunpack.c.l.b16 %v1235
  %v1380 = vunpack.c.h.b16 %v1235
  %v1381 = vunpack.c.l.b16 %v1236
  %v1382 = vunpack.c.h.b16 %v1236
  %v1383 = vunpack.c.l.b16 %v1237
  %v1384 = vunpack.c.h.b16 %v1237
  %v1385 = vunpack.c.l.b16 %v1238
  %v1386 = vunpack.c.h.b16 %v1238
  %v1387 = vunpack.c.l.b16 %v1239
  %v1388 = vunpack.c.h.b16 %v1239
  %v1389 = vunpack.c.l.b16 %v1240
  %v1390 = vunpack.c.h.b16 %v1240
  %v1391 = vunpack.c.l.b16 %v1241
  %v1392 = vunpack.c.h.b16 %v1241
  %v1393 = vunpack.c.l.b16 %v1242
  %v1394 = vunpack.c.h.b16 %v1242
  %v1395 = vunpack.c.l.b16 %v1243
  %v1396 = vunpack.c.h.b16 %v1243
  %v1397 = vunpack.c.l.b16 %v1244
  %v1398 = vunpack.c.h.b16 %v1244
  %v1399 = vunpack.c.l.b16 %v1245
  %v1400 = vunpack.c.h.b16 %v1245
  %v1401 = vunpack.c.l.b16 %v1246
  %v1402 = vunpack.c.h.b16 %v1246
  %v1403 = vunpack.c.l.b16 %v1247
  %v1404 = vunpack.c.h.b16 %v1247
  %v1405 = vunpack.c.l.b16 %v1248
  %v1406 = vunpack.c.h.b16 %v1248
  %v1407 = vunpack.c.l.b16 %v1249
  %v1408 = vunpack.c.h.b16 %v1249
  %v1409 = vunpack.c.l.b16 %v1250
  %v1410 = vunpack.c.h.b16 %v1250
  %v1411 = vunpack.c.l.b16 %v1251
  %v1412 = vunpack.c.h.b16 %v1251
  %v1413 = vunpack.c.l.b16 %v1252
  %v1414 = vunpack.c.h.b16 %v1252
  %v1415 = vunpack.c.l.b16 %v1253
  %v1416 = vunpack.c.h.b16 %v1253
  %v1417 = vunpack.c.l.b16 %v1254
  %v1418 = vunpack.c.h.b16 %v1254
  %v1419 = vunpack.c.l.b16 %v1255
  %v1420 = vunpack.c.h.b16 %v1255
  %v1421 = vunpack.c.l.b16 %v1256
  %v1422 = vunpack.c.h.b16 %v1256
  %v1423 = vunpack.c.l.b16 %v1257
  %v1424 = vunpack.c.h.b16 %v1257
  %v1425 = vunpack.c.l.b16 %v1258
  %v1426 = vunpack.c.h.b16 %v1258
  %v1427 = vunpack.c.l.b16 %v1259
  %v1428 = vunpack.c.h.b16 %v1259
  %v1429 = vunpack.c.l.b16 %v1260
  %v1430 = vunpack.c.h.b16 %v1260
  %v1431 = vunpack.c.l.b16 %v1261
  %v1432 = vunpack.c.h.b16 %v1261
  %v1433 = vunpack.c.l.b16 %v1262
  %v1434 = vunpack.c.h.b16 %v1262
  %v1435 = vunpack.c.l.b16 %v1263
  %v1436 = vunpack.c.h.b16 %v1263
  %v1437 = vunpack.c.l.b16 %v1264
  %v1438 = vunpack.c.h.b16 %v1264
  %v1439 = vunpack.c.l.b16 %v1265
  %v1440 = vunpack.c.h.b16 %v1265
  %v1441 = vunpack.c.l.b16 %v1266
  %v1442 = vunpack.c.h.b16 %v1266
  %v1443 = vunpack.c.l.b16 %v1267
  %v1444 = vunpack.c.h.b16 %v1267
  %v1445 = vunpack.c.l.b16 %v1268
  %v1446 = vunpack.c.h.b16 %v1268
  %v1447 = vunpack.c.l.b16 %v1269
  %v1448 = vunpack.c.h.b16 %v1269
  %v1449 = vunpack.c.l.b16 %v1270
  %v1450 = vunpack.c.h.b16 %v1270
  %v1451 = vunpack.c.l.b16 %v1271
  %v1452 = vunpack.c.h.b16 %v1271
  %v1453 = vunpack.c.l.b16 %v1272
  %v1454 = vunpack.c.h.b16 %v1272
  %v1455 = vunpack.c.l.b16 %v1273
  %v1456 = vunpack.c.h.b16 %v1273
  %v1457 = vunpack.c.l.b16 %v1274
  %v1458 = vunpack.c.h.b16 %v1274
  %v1459 = vunpack.c.l.b16 %v1275
  %v1460 = vunpack.c.h.b16 %v1275
  %v1461 = vunpack.c.l.b16 %v1276
  %v1462 = vunpack.c.h.b16 %v1276
  %v1463 = vunpack.c.l.b16 %v1277
  %v1464 = vunpack.c.h.b16 %v1277
  %v1465 = vunpack.c.l.b16 %v1278
  %v1466 = vunpack.c.h.b16 %v1278
  %v1467 = vunpack.c.l.b16 %v1279
  %v1468 = vunpack.c.h.b16 %v1279
  %v1469 = vunpack.c.l.b16 %v1280
  %v1470 = vunpack.c.h.b16 %v1280
  %v1471 = vunpack.c.l.b16 %v1281
  %v1472 = vunpack.c.h.b16 %v1281
  %v1473 = vunpack.c.l.b16 %v1282
  %v1474 = vunpack.c.h.b16 %v1282
  %v1475 = vunpack.c.l.b16 %v1283
  %v1476 = vunpack.c.h.b16 %v1283
  %v1477 = vunpack.c.l.b16 %v1284
  %v1478 = vunpack.c.h.b16 %v1284
  %v1479 = vunpack.c.l.b16 %v1285
  %v1480 = vunpack.c.h.b16 %v1285
  %v1481 = vunpack.c.l.b16 %v1286
  %v1482 = vunpack.c.h.b16 %v1286
  %v1483 = vunpack.c.l.b16 %v1287
  %v1484 = vunpack.c.h.b16 %v1287
  %v1485 = vunpack.c.l.b16 %v1288
  %v1486 = vunpack.c.h.b16 %v1288
  %v1487 = vpack.c.b16 %v1367, %v1359
  %v1488 = vpack.c.b16 %v1368, %v1360
  %v1489 = vpack.c.b16 %v1369, %v1361
  %v1490 = vpack.c.b16 %v1370, %v1362
  %v1491 = vpack.c.b16 %v1371, %v1363
  %v1492 = vpack.c.b16 %v1372, %v1364
  %v1493 = vpack.c.b16 %v1373, %v1365
  %v1494 = vpack.c.b16 %v1374, %v1366
  %v1495 = vpack.c.b16 %v1383, %v1375
  %v1496 = vpack.c.b16 %v1384, %v1376
  %v1497 = vpack.c.b16 %v1385, %v1377
  %v1498 = vpack.c.b16 %v1386, %v1378
  %v1499 = vpack.c.b16 %v1387, %v1379
  %v1500 = vpack.c.b16 %v1388, %v1380
  %v1501 = vpack.c.b16 %v1389, %v1381
  %v1502 = vpack.c.b16 %v1390, %v1382
  %v1503 = vpack.c.b16 %v1399, %v1391
  %v1504 = vpack.c.b16 %v1400, %v1392
  %v1505 = vpack.c.b16 %v1401, %v1393
  %v1506 = vpack.c.b16 %v1402, %v1394
  %v1507 = vpack.c.b16 %v1403, %v1395
  %v1508 = vpack.c.b16 %v1404, %v1396
  %v1509 = vpack.c.b16 %v1405, %v1397
  %v1510 = vpack.c.b16 %v1406, %v1398
  %v1511 = vpack.c.b16 %v1415, %v1407
  %v1512 = vpack.c.b16 %v1416, %v1408
  %v1513 = vpack.c.b16 %v1417, %v1409
  %v1514 = vpack.c.b16 %v1418, %v1410
  %v1515 = vpack.c.b16 %v1419, %v1411
  %v1516 = vpack.c.b16 %v1420, %v1412
  %v1517 = vpack.c.b16 %v1421, %v1413
  %v1518 = vpack.c.b16 %v1422, %v1414
  %v1519 = vpack.c.b16 %v1431, %v1423
  %v1520 = vpack.c.b16 %v1432, %v1424
  %v1521 = vpack.c.b16 %v1433, %v1425
  %v1522 = vpack.c.b16 %v1434, %v1426
  %v1523 = vpack.c.b16 %v1435, %v1427
  %v1524 = vpack.c.b16 %v1436, %v1428
  %v1525 = vpack.c.b16 %v1437, %v1429
  %v1526 = vpack.c.b16 %v1438, %v1430
  %v1527 = vpack.c.b16 %v1447, %v1439
  %v1528 = vpack.c.b16 %v1448, %v1440
  %v1529 = vpack.c.b16 %v1449, %v1441
  %v1530 = vpack.c.b16 %v1450, %v1442
  %v1531 = vpack.c.b16 %v1451, %v1443
  %v1532 = vpack.c.b16 %v1452, %v1444
  %v1533 = vpack.c.b16 %v1453, %v1445
  %v1534 = vpack.c.b16 %v1454, %v1446
  %v1535 = vpack.c.b16 %v1463, %v1455
  %v1536 = vpack.c.b16 %v1464, %v1456
  %v1537 = vpack.c.b16 %v1465, %v1457
  %v1538 = vpack.c.b16 %v1466, %v1458
  %v1539 = vpack.c.b16 %v1467, %v1459
  %v1540 = vpack.c.b16 %v1468, %v1460
  %v1541 = vpack.c.b16 %v1469, %v1461
  %v1542 = vpack.c.b16 %v1470, %v1462
  %v1543 = vpack.c.b16 %v1479, %v1471
  %v1544 = vpack.c.b16 %v1480, %v1472
  %v1545 = vpack.c.b16 %v1481, %v1473
  %v1546 = vpack.c.b16 %v1482, %v1474
  %v1547 = vpack.c.b16 %v1483, %v1475
  %v1548 = vpack.c.b16 %v1484, %v1476
  %v1549 = vpack.c.b16 %v1485, %v1477
  %v1550 = vpack.c.b16 %v1486, %v1478
  %1615 = vmatprep.subr.bf16.mxu0 %v1544
  %1616 = vmatpush1.bf16.msra.mxu0 %v1543
  %1617 = vmatprep.subr.bf16.mxu0 %v1536
  %1618 = vmatpush1.bf16.msra.mxu0 %v1535
  %1619 = vmatprep.subr.bf16.mxu0 %v1528
  %1620 = vmatpush1.bf16.msra.mxu0 %v1527
  %1621 = vmatprep.subr.bf16.mxu0 %v1520
  %1622 = vmatpush1.bf16.msra.mxu0 %v1519
  %1623 = vmatprep.subr.bf16.mxu0 %v1512
  %1624 = vmatpush1.bf16.msra.mxu0 %v1511
  %1625 = vmatprep.subr.bf16.mxu0 %v1504
  %1626 = vmatpush1.bf16.msra.mxu0 %v1503
  %1627 = vmatprep.subr.bf16.mxu0 %v1496
  %1628 = vmatpush1.bf16.msra.mxu0 %v1495
  %1629 = vmatprep.subr.bf16.mxu0 %v1488
  %1630 = vmatpush1.bf16.msra.mxu0 %v1487
  %1631 = vmatprep.subr.bf16.mxu0 0
  %1632 = vmatpush2.bf16.msra.mxu0 0
  %1633 = vmatprep.subr.bf16.mxu0 0
  %1634 = vmatpush2.bf16.msra.mxu0 0
  %1635 = vmatprep.subr.bf16.mxu0 0
  %1636 = vmatpush2.bf16.msra.mxu0 0
  %1637 = vmatprep.subr.bf16.mxu0 0
  %1638 = vmatpush2.bf16.msra.mxu0 0
  %1639 = vmatprep.subr.bf16.mxu0 0
  %1640 = vmatpush2.bf16.msra.mxu0 0
  %1641 = vmatprep.subr.bf16.mxu0 0
  %1642 = vmatpush2.bf16.msra.mxu0 0
  %1643 = vmatprep.subr.bf16.mxu0 0
  %1644 = vmatpush2.bf16.msra.mxu0 0
  %1645 = vmatprep.subr.bf16.mxu0 0
  %1646 = vmatpush2.bf16.msra.mxu0 0
  %1647 = vmatprep.mubr.bf16.mxu0 0
  %1648 = vmatmul.mubr.bf16.gmra.mxu0 %v1293
  %v1649 = vpop.f32.mrf.mxu0
  %v1650 = vadd.f32 0.0, %v1649
  %v1651 = vpop.f32.mrf.mxu0
  %v1652 = vadd.f32 0.0, %v1651
  %v1653 = vpop.f32.mrf.mxu0
  %v1654 = vadd.f32 0.0, %v1653
  %v1655 = vpop.f32.mrf.mxu0
  %v1656 = vadd.f32 0.0, %v1655
  %1657 = vdwg.mxu0
  %1658 = vmatprep.subr.bf16.mxu0 %v1546
  %1659 = vmatpush1.bf16.msra.mxu0 %v1545
  %1660 = vmatprep.subr.bf16.mxu0 %v1538
  %1661 = vmatpush1.bf16.msra.mxu0 %v1537
  %1662 = vmatprep.subr.bf16.mxu0 %v1530
  %1663 = vmatpush1.bf16.msra.mxu0 %v1529
  %1664 = vmatprep.subr.bf16.mxu0 %v1522
  %1665 = vmatpush1.bf16.msra.mxu0 %v1521
  %1666 = vmatprep.subr.bf16.mxu0 %v1514
  %1667 = vmatpush1.bf16.msra.mxu0 %v1513
  %1668 = vmatprep.subr.bf16.mxu0 %v1506
  %1669 = vmatpush1.bf16.msra.mxu0 %v1505
  %1670 = vmatprep.subr.bf16.mxu0 %v1498
  %1671 = vmatpush1.bf16.msra.mxu0 %v1497
  %1672 = vmatprep.subr.bf16.mxu0 %v1490
  %1673 = vmatpush1.bf16.msra.mxu0 %v1489
  %1674 = vmatprep.subr.bf16.mxu0 0
  %1675 = vmatpush2.bf16.msra.mxu0 0
  %1676 = vmatprep.subr.bf16.mxu0 0
  %1677 = vmatpush2.bf16.msra.mxu0 0
  %1678 = vmatprep.subr.bf16.mxu0 0
  %1679 = vmatpush2.bf16.msra.mxu0 0
  %1680 = vmatprep.subr.bf16.mxu0 0
  %1681 = vmatpush2.bf16.msra.mxu0 0
  %1682 = vmatprep.subr.bf16.mxu0 0
  %1683 = vmatpush2.bf16.msra.mxu0 0
  %1684 = vmatprep.subr.bf16.mxu0 0
  %1685 = vmatpush2.bf16.msra.mxu0 0
  %1686 = vmatprep.subr.bf16.mxu0 0
  %1687 = vmatpush2.bf16.msra.mxu0 0
  %1688 = vmatprep.subr.bf16.mxu0 0
  %1689 = vmatpush2.bf16.msra.mxu0 0
  %1690 = vmatprep.mubr.bf16.mxu0 0
  %1691 = vmatmul.mubr.bf16.gmra.mxu0 %v1293
  %v1692 = vpop.f32.mrf.mxu0
  %v1693 = vadd.f32 0.0, %v1692
  %v1694 = vpop.f32.mrf.mxu0
  %v1695 = vadd.f32 0.0, %v1694
  %v1696 = vpop.f32.mrf.mxu0
  %v1697 = vadd.f32 0.0, %v1696
  %v1698 = vpop.f32.mrf.mxu0
  %v1699 = vadd.f32 0.0, %v1698
  %1700 = vdwg.mxu0
  %1701 = vmatprep.subr.bf16.mxu0 %v1548
  %1702 = vmatpush1.bf16.msra.mxu0 %v1547
  %1703 = vmatprep.subr.bf16.mxu0 %v1540
  %1704 = vmatpush1.bf16.msra.mxu0 %v1539
  %1705 = vmatprep.subr.bf16.mxu0 %v1532
  %1706 = vmatpush1.bf16.msra.mxu0 %v1531
  %1707 = vmatprep.subr.bf16.mxu0 %v1524
  %1708 = vmatpush1.bf16.msra.mxu0 %v1523
  %1709 = vmatprep.subr.bf16.mxu0 %v1516
  %1710 = vmatpush1.bf16.msra.mxu0 %v1515
  %1711 = vmatprep.subr.bf16.mxu0 %v1508
  %1712 = vmatpush1.bf16.msra.mxu0 %v1507
  %1713 = vmatprep.subr.bf16.mxu0 %v1500
  %1714 = vmatpush1.bf16.msra.mxu0 %v1499
  %1715 = vmatprep.subr.bf16.mxu0 %v1492
  %1716 = vmatpush1.bf16.msra.mxu0 %v1491
  %1717 = vmatprep.subr.bf16.mxu0 0
  %1718 = vmatpush2.bf16.msra.mxu0 0
  %1719 = vmatprep.subr.bf16.mxu0 0
  %1720 = vmatpush2.bf16.msra.mxu0 0
  %1721 = vmatprep.subr.bf16.mxu0 0
  %1722 = vmatpush2.bf16.msra.mxu0 0
  %1723 = vmatprep.subr.bf16.mxu0 0
  %1724 = vmatpush2.bf16.msra.mxu0 0
  %1725 = vmatprep.subr.bf16.mxu0 0
  %1726 = vmatpush2.bf16.msra.mxu0 0
  %1727 = vmatprep.subr.bf16.mxu0 0
  %1728 = vmatpush2.bf16.msra.mxu0 0
  %1729 = vmatprep.subr.bf16.mxu0 0
  %1730 = vmatpush2.bf16.msra.mxu0 0
  %1731 = vmatprep.subr.bf16.mxu0 0
  %1732 = vmatpush2.bf16.msra.mxu0 0
  %1733 = vmatprep.mubr.bf16.mxu0 0
  %1734 = vmatmul.mubr.bf16.gmra.mxu0 %v1293
  %v1735 = vpop.f32.mrf.mxu0
  %v1736 = vadd.f32 0.0, %v1735
  %v1737 = vpop.f32.mrf.mxu0
  %v1738 = vadd.f32 0.0, %v1737
  %v1739 = vpop.f32.mrf.mxu0
  %v1740 = vadd.f32 0.0, %v1739
  %v1741 = vpop.f32.mrf.mxu0
  %v1742 = vadd.f32 0.0, %v1741
  %1743 = vdwg.mxu0
  %1744 = vmatprep.subr.bf16.mxu0 %v1550
  %1745 = vmatpush1.bf16.msra.mxu0 %v1549
  %1746 = vmatprep.subr.bf16.mxu0 %v1542
  %1747 = vmatpush1.bf16.msra.mxu0 %v1541
  %1748 = vmatprep.subr.bf16.mxu0 %v1534
  %1749 = vmatpush1.bf16.msra.mxu0 %v1533
  %1750 = vmatprep.subr.bf16.mxu0 %v1526
  %1751 = vmatpush1.bf16.msra.mxu0 %v1525
  %1752 = vmatprep.subr.bf16.mxu0 %v1518
  %1753 = vmatpush1.bf16.msra.mxu0 %v1517
  %1754 = vmatprep.subr.bf16.mxu0 %v1510
  %1755 = vmatpush1.bf16.msra.mxu0 %v1509
  %1756 = vmatprep.subr.bf16.mxu0 %v1502
  %1757 = vmatpush1.bf16.msra.mxu0 %v1501
  %1758 = vmatprep.subr.bf16.mxu0 %v1494
  %1759 = vmatpush1.bf16.msra.mxu0 %v1493
  %1760 = vmatprep.subr.bf16.mxu0 0
  %1761 = vmatpush2.bf16.msra.mxu0 0
  %1762 = vmatprep.subr.bf16.mxu0 0
  %1763 = vmatpush2.bf16.msra.mxu0 0
  %1764 = vmatprep.subr.bf16.mxu0 0
  %1765 = vmatpush2.bf16.msra.mxu0 0
  %1766 = vmatprep.subr.bf16.mxu0 0
  %1767 = vmatpush2.bf16.msra.mxu0 0
  %1768 = vmatprep.subr.bf16.mxu0 0
  %1769 = vmatpush2.bf16.msra.mxu0 0
  %1770 = vmatprep.subr.bf16.mxu0 0
  %1771 = vmatpush2.bf16.msra.mxu0 0
  %1772 = vmatprep.subr.bf16.mxu0 0
  %1773 = vmatpush2.bf16.msra.mxu0 0
  %1774 = vmatprep.subr.bf16.mxu0 0
  %1775 = vmatpush2.bf16.msra.mxu0 0
  %1776 = vmatprep.mubr.bf16.mxu0 0
  %1777 = vmatmul.mubr.bf16.gmra.mxu0 %v1293
  %v1778 = vpop.f32.mrf.mxu0
  %v1779 = vadd.f32 0.0, %v1778
  %v1780 = vpop.f32.mrf.mxu0
  %v1781 = vadd.f32 0.0, %v1780
  %v1782 = vpop.f32.mrf.mxu0
  %v1783 = vadd.f32 0.0, %v1782
  %v1784 = vpop.f32.mrf.mxu0
  %v1785 = vadd.f32 0.0, %v1784
  %1786 = vdwg.mxu0
  %v1787 = vadd.f32 %v1207, %v1650
  %v1788 = vadd.f32 %v1208, %v1652
  %v1789 = vadd.f32 %v1209, %v1693
  %v1790 = vadd.f32 %v1210, %v1695
  %v1791 = vadd.f32 %v1211, %v1736
  %v1792 = vadd.f32 %v1212, %v1738
  %v1793 = vadd.f32 %v1213, %v1779
  %v1794 = vadd.f32 %v1214, %v1781
  %v1795 = vadd.f32 %v1215, %v1654
  %v1796 = vadd.f32 %v1216, %v1656
  %v1797 = vadd.f32 %v1217, %v1697
  %v1798 = vadd.f32 %v1218, %v1699
  %v1799 = vadd.f32 %v1219, %v1740
  %v1800 = vadd.f32 %v1220, %v1742
  %v1801 = vadd.f32 %v1221, %v1783
  %v1802 = vadd.f32 %v1222, %v1785
  %1803 = vst [vmem:[#allocation3] sm:$0xff] %v1787
  %1804 = vst [vmem:[#allocation3 + $0x8] sm:$0xff] %v1788
  %1805 = vst [vmem:[#allocation3 + $0x10] sm:$0xff] %v1789
  %1806 = vst [vmem:[#allocation3 + $0x18] sm:$0xff] %v1790
  %1807 = vst [vmem:[#allocation3 + $0x20] sm:$0xff] %v1791
  %1808 = vst [vmem:[#allocation3 + $0x28] sm:$0xff] %v1792
  %1809 = vst [vmem:[#allocation3 + $0x30] sm:$0xff] %v1793
  %1810 = vst [vmem:[#allocation3 + $0x38] sm:$0xff] %v1794
  %1811 = vst [vmem:[#allocation3 + $0x40] sm:$0xff] %v1795
  %1812 = vst [vmem:[#allocation3 + $0x48] sm:$0xff] %v1796
  %1813 = vst [vmem:[#allocation3 + $0x50] sm:$0xff] %v1797
  %1814 = vst [vmem:[#allocation3 + $0x58] sm:$0xff] %v1798
  %1815 = vst [vmem:[#allocation3 + $0x60] sm:$0xff] %v1799
  %1816 = vst [vmem:[#allocation3 + $0x68] sm:$0xff] %v1800
  %1817 = vst [vmem:[#allocation3 + $0x70] sm:$0xff] %v1801
  %1818 = vst [vmem:[#allocation3 + $0x78] sm:$0xff] %v1802
  %v1819 = vld [vmem:[#allocation3] sm:$0xff]
  %v1820 = vld [vmem:[#allocation3 + $0x8] sm:$0xff]
  %v1821 = vld [vmem:[#allocation3 + $0x10] sm:$0xff]
  %v1822 = vld [vmem:[#allocation3 + $0x18] sm:$0xff]
  %v1823 = vld [vmem:[#allocation3 + $0x20] sm:$0xff]
  %v1824 = vld [vmem:[#allocation3 + $0x28] sm:$0xff]
  %v1825 = vld [vmem:[#allocation3 + $0x30] sm:$0xff]
  %v1826 = vld [vmem:[#allocation3 + $0x38] sm:$0xff]
  %v1827 = vld [vmem:[#allocation3 + $0x40] sm:$0xff]
  %v1828 = vld [vmem:[#allocation3 + $0x48] sm:$0xff]
  %v1829 = vld [vmem:[#allocation3 + $0x50] sm:$0xff]
  %v1830 = vld [vmem:[#allocation3 + $0x58] sm:$0xff]
  %v1831 = vld [vmem:[#allocation3 + $0x60] sm:$0xff]
  %v1832 = vld [vmem:[#allocation3 + $0x68] sm:$0xff]
  %v1833 = vld [vmem:[#allocation3 + $0x70] sm:$0xff]
  %v1834 = vld [vmem:[#allocation3 + $0x78] sm:$0xff]
  %v1835 = vld [vmem:[#allocation2 + $0x10] sm:$0xf]
  %v1836 = vld [vmem:[#allocation2 + $0x14] sm:$0xf]
  %v1837 = vld [vmem:[%s3 + $0x400] sm:$0xff]
  %v1838 = vld [vmem:[%s3 + $0x408] sm:$0xff]
  %v1839 = vld [vmem:[%s3 + $0x410] sm:$0xff]
  %v1840 = vld [vmem:[%s3 + $0x418] sm:$0xff]
  %v1841 = vld [vmem:[%s3 + $0x420] sm:$0xff]
  %v1842 = vld [vmem:[%s3 + $0x428] sm:$0xff]
  %v1843 = vld [vmem:[%s3 + $0x430] sm:$0xff]
  %v1844 = vld [vmem:[%s3 + $0x438] sm:$0xff]
  %v1845 = vld [vmem:[%s3 + $0x440] sm:$0xff]
  %v1846 = vld [vmem:[%s3 + $0x448] sm:$0xff]
  %v1847 = vld [vmem:[%s3 + $0x450] sm:$0xff]
  %v1848 = vld [vmem:[%s3 + $0x458] sm:$0xff]
  %v1849 = vld [vmem:[%s3 + $0x460] sm:$0xff]
  %v1850 = vld [vmem:[%s3 + $0x468] sm:$0xff]
  %v1851 = vld [vmem:[%s3 + $0x470] sm:$0xff]
  %v1852 = vld [vmem:[%s3 + $0x478] sm:$0xff]
  %v1853 = vld [vmem:[%s3 + $0x480] sm:$0xff]
  %v1854 = vld [vmem:[%s3 + $0x488] sm:$0xff]
  %v1855 = vld [vmem:[%s3 + $0x490] sm:$0xff]
  %v1856 = vld [vmem:[%s3 + $0x498] sm:$0xff]
  %v1857 = vld [vmem:[%s3 + $0x4a0] sm:$0xff]
  %v1858 = vld [vmem:[%s3 + $0x4a8] sm:$0xff]
  %v1859 = vld [vmem:[%s3 + $0x4b0] sm:$0xff]
  %v1860 = vld [vmem:[%s3 + $0x4b8] sm:$0xff]
  %v1861 = vld [vmem:[%s3 + $0x4c0] sm:$0xff]
  %v1862 = vld [vmem:[%s3 + $0x4c8] sm:$0xff]
  %v1863 = vld [vmem:[%s3 + $0x4d0] sm:$0xff]
  %v1864 = vld [vmem:[%s3 + $0x4d8] sm:$0xff]
  %v1865 = vld [vmem:[%s3 + $0x4e0] sm:$0xff]
  %v1866 = vld [vmem:[%s3 + $0x4e8] sm:$0xff]
  %v1867 = vld [vmem:[%s3 + $0x4f0] sm:$0xff]
  %v1868 = vld [vmem:[%s3 + $0x4f8] sm:$0xff]
  %v1869 = vld [vmem:[%s3 + $0x500] sm:$0xff]
  %v1870 = vld [vmem:[%s3 + $0x508] sm:$0xff]
  %v1871 = vld [vmem:[%s3 + $0x510] sm:$0xff]
  %v1872 = vld [vmem:[%s3 + $0x518] sm:$0xff]
  %v1873 = vld [vmem:[%s3 + $0x520] sm:$0xff]
  %v1874 = vld [vmem:[%s3 + $0x528] sm:$0xff]
  %v1875 = vld [vmem:[%s3 + $0x530] sm:$0xff]
  %v1876 = vld [vmem:[%s3 + $0x538] sm:$0xff]
  %v1877 = vld [vmem:[%s3 + $0x540] sm:$0xff]
  %v1878 = vld [vmem:[%s3 + $0x548] sm:$0xff]
  %v1879 = vld [vmem:[%s3 + $0x550] sm:$0xff]
  %v1880 = vld [vmem:[%s3 + $0x558] sm:$0xff]
  %v1881 = vld [vmem:[%s3 + $0x560] sm:$0xff]
  %v1882 = vld [vmem:[%s3 + $0x568] sm:$0xff]
  %v1883 = vld [vmem:[%s3 + $0x570] sm:$0xff]
  %v1884 = vld [vmem:[%s3 + $0x578] sm:$0xff]
  %v1885 = vld [vmem:[%s3 + $0x580] sm:$0xff]
  %v1886 = vld [vmem:[%s3 + $0x588] sm:$0xff]
  %v1887 = vld [vmem:[%s3 + $0x590] sm:$0xff]
  %v1888 = vld [vmem:[%s3 + $0x598] sm:$0xff]
  %v1889 = vld [vmem:[%s3 + $0x5a0] sm:$0xff]
  %v1890 = vld [vmem:[%s3 + $0x5a8] sm:$0xff]
  %v1891 = vld [vmem:[%s3 + $0x5b0] sm:$0xff]
  %v1892 = vld [vmem:[%s3 + $0x5b8] sm:$0xff]
  %v1893 = vld [vmem:[%s3 + $0x5c0] sm:$0xff]
  %v1894 = vld [vmem:[%s3 + $0x5c8] sm:$0xff]
  %v1895 = vld [vmem:[%s3 + $0x5d0] sm:$0xff]
  %v1896 = vld [vmem:[%s3 + $0x5d8] sm:$0xff]
  %v1897 = vld [vmem:[%s3 + $0x5e0] sm:$0xff]
  %v1898 = vld [vmem:[%s3 + $0x5e8] sm:$0xff]
  %v1899 = vld [vmem:[%s3 + $0x5f0] sm:$0xff]
  %v1900 = vld [vmem:[%s3 + $0x5f8] sm:$0xff]
  %v1903 = vunpack.c.l.b16 %v1835
  %v1904 = vunpack.c.l.b16 %v1836
  %v1905 = vpack.c.b16 %v1904, %v1903
  %v1971 = vunpack.c.l.b16 %v1837
  %v1972 = vunpack.c.h.b16 %v1837
  %v1973 = vunpack.c.l.b16 %v1838
  %v1974 = vunpack.c.h.b16 %v1838
  %v1975 = vunpack.c.l.b16 %v1839
  %v1976 = vunpack.c.h.b16 %v1839
  %v1977 = vunpack.c.l.b16 %v1840
  %v1978 = vunpack.c.h.b16 %v1840
  %v1979 = vunpack.c.l.b16 %v1841
  %v1980 = vunpack.c.h.b16 %v1841
  %v1981 = vunpack.c.l.b16 %v1842
  %v1982 = vunpack.c.h.b16 %v1842
  %v1983 = vunpack.c.l.b16 %v1843
  %v1984 = vunpack.c.h.b16 %v1843
  %v1985 = vunpack.c.l.b16 %v1844
  %v1986 = vunpack.c.h.b16 %v1844
  %v1987 = vunpack.c.l.b16 %v1845
  %v1988 = vunpack.c.h.b16 %v1845
  %v1989 = vunpack.c.l.b16 %v1846
  %v1990 = vunpack.c.h.b16 %v1846
  %v1991 = vunpack.c.l.b16 %v1847
  %v1992 = vunpack.c.h.b16 %v1847
  %v1993 = vunpack.c.l.b16 %v1848
  %v1994 = vunpack.c.h.b16 %v1848
  %v1995 = vunpack.c.l.b16 %v1849
  %v1996 = vunpack.c.h.b16 %v1849
  %v1997 = vunpack.c.l.b16 %v1850
  %v1998 = vunpack.c.h.b16 %v1850
  %v1999 = vunpack.c.l.b16 %v1851
  %v2000 = vunpack.c.h.b16 %v1851
  %v2001 = vunpack.c.l.b16 %v1852
  %v2002 = vunpack.c.h.b16 %v1852
  %v2003 = vunpack.c.l.b16 %v1853
  %v2004 = vunpack.c.h.b16 %v1853
  %v2005 = vunpack.c.l.b16 %v1854
  %v2006 = vunpack.c.h.b16 %v1854
  %v2007 = vunpack.c.l.b16 %v1855
  %v2008 = vunpack.c.h.b16 %v1855
  %v2009 = vunpack.c.l.b16 %v1856
  %v2010 = vunpack.c.h.b16 %v1856
  %v2011 = vunpack.c.l.b16 %v1857
  %v2012 = vunpack.c.h.b16 %v1857
  %v2013 = vunpack.c.l.b16 %v1858
  %v2014 = vunpack.c.h.b16 %v1858
  %v2015 = vunpack.c.l.b16 %v1859
  %v2016 = vunpack.c.h.b16 %v1859
  %v2017 = vunpack.c.l.b16 %v1860
  %v2018 = vunpack.c.h.b16 %v1860
  %v2019 = vunpack.c.l.b16 %v1861
  %v2020 = vunpack.c.h.b16 %v1861
  %v2021 = vunpack.c.l.b16 %v1862
  %v2022 = vunpack.c.h.b16 %v1862
  %v2023 = vunpack.c.l.b16 %v1863
  %v2024 = vunpack.c.h.b16 %v1863
  %v2025 = vunpack.c.l.b16 %v1864
  %v2026 = vunpack.c.h.b16 %v1864
  %v2027 = vunpack.c.l.b16 %v1865
  %v2028 = vunpack.c.h.b16 %v1865
  %v2029 = vunpack.c.l.b16 %v1866
  %v2030 = vunpack.c.h.b16 %v1866
  %v2031 = vunpack.c.l.b16 %v1867
  %v2032 = vunpack.c.h.b16 %v1867
  %v2033 = vunpack.c.l.b16 %v1868
  %v2034 = vunpack.c.h.b16 %v1868
  %v2035 = vunpack.c.l.b16 %v1869
  %v2036 = vunpack.c.h.b16 %v1869
  %v2037 = vunpack.c.l.b16 %v1870
  %v2038 = vunpack.c.h.b16 %v1870
  %v2039 = vunpack.c.l.b16 %v1871
  %v2040 = vunpack.c.h.b16 %v1871
  %v2041 = vunpack.c.l.b16 %v1872
  %v2042 = vunpack.c.h.b16 %v1872
  %v2043 = vunpack.c.l.b16 %v1873
  %v2044 = vunpack.c.h.b16 %v1873
  %v2045 = vunpack.c.l.b16 %v1874
  %v2046 = vunpack.c.h.b16 %v1874
  %v2047 = vunpack.c.l.b16 %v1875
  %v2048 = vunpack.c.h.b16 %v1875
  %v2049 = vunpack.c.l.b16 %v1876
  %v2050 = vunpack.c.h.b16 %v1876
  %v2051 = vunpack.c.l.b16 %v1877
  %v2052 = vunpack.c.h.b16 %v1877
  %v2053 = vunpack.c.l.b16 %v1878
  %v2054 = vunpack.c.h.b16 %v1878
  %v2055 = vunpack.c.l.b16 %v1879
  %v2056 = vunpack.c.h.b16 %v1879
  %v2057 = vunpack.c.l.b16 %v1880
  %v2058 = vunpack.c.h.b16 %v1880
  %v2059 = vunpack.c.l.b16 %v1881
  %v2060 = vunpack.c.h.b16 %v1881
  %v2061 = vunpack.c.l.b16 %v1882
  %v2062 = vunpack.c.h.b16 %v1882
  %v2063 = vunpack.c.l.b16 %v1883
  %v2064 = vunpack.c.h.b16 %v1883
  %v2065 = vunpack.c.l.b16 %v1884
  %v2066 = vunpack.c.h.b16 %v1884
  %v2067 = vunpack.c.l.b16 %v1885
  %v2068 = vunpack.c.h.b16 %v1885
  %v2069 = vunpack.c.l.b16 %v1886
  %v2070 = vunpack.c.h.b16 %v1886
  %v2071 = vunpack.c.l.b16 %v1887
  %v2072 = vunpack.c.h.b16 %v1887
  %v2073 = vunpack.c.l.b16 %v1888
  %v2074 = vunpack.c.h.b16 %v1888
  %v2075 = vunpack.c.l.b16 %v1889
  %v2076 = vunpack.c.h.b16 %v1889
  %v2077 = vunpack.c.l.b16 %v1890
  %v2078 = vunpack.c.h.b16 %v1890
  %v2079 = vunpack.c.l.b16 %v1891
  %v2080 = vunpack.c.h.b16 %v1891
  %v2081 = vunpack.c.l.b16 %v1892
  %v2082 = vunpack.c.h.b16 %v1892
  %v2083 = vunpack.c.l.b16 %v1893
  %v2084 = vunpack.c.h.b16 %v1893
  %v2085 = vunpack.c.l.b16 %v1894
  %v2086 = vunpack.c.h.b16 %v1894
  %v2087 = vunpack.c.l.b16 %v1895
  %v2088 = vunpack.c.h.b16 %v1895
  %v2089 = vunpack.c.l.b16 %v1896
  %v2090 = vunpack.c.h.b16 %v1896
  %v2091 = vunpack.c.l.b16 %v1897
  %v2092 = vunpack.c.h.b16 %v1897
  %v2093 = vunpack.c.l.b16 %v1898
  %v2094 = vunpack.c.h.b16 %v1898
  %v2095 = vunpack.c.l.b16 %v1899
  %v2096 = vunpack.c.h.b16 %v1899
  %v2097 = vunpack.c.l.b16 %v1900
  %v2098 = vunpack.c.h.b16 %v1900
  %v2099 = vpack.c.b16 %v1979, %v1971
  %v2100 = vpack.c.b16 %v1980, %v1972
  %v2101 = vpack.c.b16 %v1981, %v1973
  %v2102 = vpack.c.b16 %v1982, %v1974
  %v2103 = vpack.c.b16 %v1983, %v1975
  %v2104 = vpack.c.b16 %v1984, %v1976
  %v2105 = vpack.c.b16 %v1985, %v1977
  %v2106 = vpack.c.b16 %v1986, %v1978
  %v2107 = vpack.c.b16 %v1995, %v1987
  %v2108 = vpack.c.b16 %v1996, %v1988
  %v2109 = vpack.c.b16 %v1997, %v1989
  %v2110 = vpack.c.b16 %v1998, %v1990
  %v2111 = vpack.c.b16 %v1999, %v1991
  %v2112 = vpack.c.b16 %v2000, %v1992
  %v2113 = vpack.c.b16 %v2001, %v1993
  %v2114 = vpack.c.b16 %v2002, %v1994
  %v2115 = vpack.c.b16 %v2011, %v2003
  %v2116 = vpack.c.b16 %v2012, %v2004
  %v2117 = vpack.c.b16 %v2013, %v2005
  %v2118 = vpack.c.b16 %v2014, %v2006
  %v2119 = vpack.c.b16 %v2015, %v2007
  %v2120 = vpack.c.b16 %v2016, %v2008
  %v2121 = vpack.c.b16 %v2017, %v2009
  %v2122 = vpack.c.b16 %v2018, %v2010
  %v2123 = vpack.c.b16 %v2027, %v2019
  %v2124 = vpack.c.b16 %v2028, %v2020
  %v2125 = vpack.c.b16 %v2029, %v2021
  %v2126 = vpack.c.b16 %v2030, %v2022
  %v2127 = vpack.c.b16 %v2031, %v2023
  %v2128 = vpack.c.b16 %v2032, %v2024
  %v2129 = vpack.c.b16 %v2033, %v2025
  %v2130 = vpack.c.b16 %v2034, %v2026
  %v2131 = vpack.c.b16 %v2043, %v2035
  %v2132 = vpack.c.b16 %v2044, %v2036
  %v2133 = vpack.c.b16 %v2045, %v2037
  %v2134 = vpack.c.b16 %v2046, %v2038
  %v2135 = vpack.c.b16 %v2047, %v2039
  %v2136 = vpack.c.b16 %v2048, %v2040
  %v2137 = vpack.c.b16 %v2049, %v2041
  %v2138 = vpack.c.b16 %v2050, %v2042
  %v2139 = vpack.c.b16 %v2059, %v2051
  %v2140 = vpack.c.b16 %v2060, %v2052
  %v2141 = vpack.c.b16 %v2061, %v2053
  %v2142 = vpack.c.b16 %v2062, %v2054
  %v2143 = vpack.c.b16 %v2063, %v2055
  %v2144 = vpack.c.b16 %v2064, %v2056
  %v2145 = vpack.c.b16 %v2065, %v2057
  %v2146 = vpack.c.b16 %v2066, %v2058
  %v2147 = vpack.c.b16 %v2075, %v2067
  %v2148 = vpack.c.b16 %v2076, %v2068
  %v2149 = vpack.c.b16 %v2077, %v2069
  %v2150 = vpack.c.b16 %v2078, %v2070
  %v2151 = vpack.c.b16 %v2079, %v2071
  %v2152 = vpack.c.b16 %v2080, %v2072
  %v2153 = vpack.c.b16 %v2081, %v2073
  %v2154 = vpack.c.b16 %v2082, %v2074
  %v2155 = vpack.c.b16 %v2091, %v2083
  %v2156 = vpack.c.b16 %v2092, %v2084
  %v2157 = vpack.c.b16 %v2093, %v2085
  %v2158 = vpack.c.b16 %v2094, %v2086
  %v2159 = vpack.c.b16 %v2095, %v2087
  %v2160 = vpack.c.b16 %v2096, %v2088
  %v2161 = vpack.c.b16 %v2097, %v2089
  %v2162 = vpack.c.b16 %v2098, %v2090
  %2227 = vmatprep.subr.bf16.mxu0 %v2156
  %2228 = vmatpush1.bf16.msra.mxu0 %v2155
  %2229 = vmatprep.subr.bf16.mxu0 %v2148
  %2230 = vmatpush1.bf16.msra.mxu0 %v2147
  %2231 = vmatprep.subr.bf16.mxu0 %v2140
  %2232 = vmatpush1.bf16.msra.mxu0 %v2139
  %2233 = vmatprep.subr.bf16.mxu0 %v2132
  %2234 = vmatpush1.bf16.msra.mxu0 %v2131
  %2235 = vmatprep.subr.bf16.mxu0 %v2124
  %2236 = vmatpush1.bf16.msra.mxu0 %v2123
  %2237 = vmatprep.subr.bf16.mxu0 %v2116
  %2238 = vmatpush1.bf16.msra.mxu0 %v2115
  %2239 = vmatprep.subr.bf16.mxu0 %v2108
  %2240 = vmatpush1.bf16.msra.mxu0 %v2107
  %2241 = vmatprep.subr.bf16.mxu0 %v2100
  %2242 = vmatpush1.bf16.msra.mxu0 %v2099
  %2243 = vmatprep.subr.bf16.mxu0 0
  %2244 = vmatpush2.bf16.msra.mxu0 0
  %2245 = vmatprep.subr.bf16.mxu0 0
  %2246 = vmatpush2.bf16.msra.mxu0 0
  %2247 = vmatprep.subr.bf16.mxu0 0
  %2248 = vmatpush2.bf16.msra.mxu0 0
  %2249 = vmatprep.subr.bf16.mxu0 0
  %2250 = vmatpush2.bf16.msra.mxu0 0
  %2251 = vmatprep.subr.bf16.mxu0 0
  %2252 = vmatpush2.bf16.msra.mxu0 0
  %2253 = vmatprep.subr.bf16.mxu0 0
  %2254 = vmatpush2.bf16.msra.mxu0 0
  %2255 = vmatprep.subr.bf16.mxu0 0
  %2256 = vmatpush2.bf16.msra.mxu0 0
  %2257 = vmatprep.subr.bf16.mxu0 0
  %2258 = vmatpush2.bf16.msra.mxu0 0
  %2259 = vmatprep.mubr.bf16.mxu0 0
  %2260 = vmatmul.mubr.bf16.gmra.mxu0 %v1905
  %v2261 = vpop.f32.mrf.mxu0
  %v2262 = vadd.f32 0.0, %v2261
  %v2263 = vpop.f32.mrf.mxu0
  %v2264 = vadd.f32 0.0, %v2263
  %v2265 = vpop.f32.mrf.mxu0
  %v2266 = vadd.f32 0.0, %v2265
  %v2267 = vpop.f32.mrf.mxu0
  %v2268 = vadd.f32 0.0, %v2267
  %2269 = vdwg.mxu0
  %2270 = vmatprep.subr.bf16.mxu0 %v2158
  %2271 = vmatpush1.bf16.msra.mxu0 %v2157
  %2272 = vmatprep.subr.bf16.mxu0 %v2150
  %2273 = vmatpush1.bf16.msra.mxu0 %v2149
  %2274 = vmatprep.subr.bf16.mxu0 %v2142
  %2275 = vmatpush1.bf16.msra.mxu0 %v2141
  %2276 = vmatprep.subr.bf16.mxu0 %v2134
  %2277 = vmatpush1.bf16.msra.mxu0 %v2133
  %2278 = vmatprep.subr.bf16.mxu0 %v2126
  %2279 = vmatpush1.bf16.msra.mxu0 %v2125
  %2280 = vmatprep.subr.bf16.mxu0 %v2118
  %2281 = vmatpush1.bf16.msra.mxu0 %v2117
  %2282 = vmatprep.subr.bf16.mxu0 %v2110
  %2283 = vmatpush1.bf16.msra.mxu0 %v2109
  %2284 = vmatprep.subr.bf16.mxu0 %v2102
  %2285 = vmatpush1.bf16.msra.mxu0 %v2101
  %2286 = vmatprep.subr.bf16.mxu0 0
  %2287 = vmatpush2.bf16.msra.mxu0 0
  %2288 = vmatprep.subr.bf16.mxu0 0
  %2289 = vmatpush2.bf16.msra.mxu0 0
  %2290 = vmatprep.subr.bf16.mxu0 0
  %2291 = vmatpush2.bf16.msra.mxu0 0
  %2292 = vmatprep.subr.bf16.mxu0 0
  %2293 = vmatpush2.bf16.msra.mxu0 0
  %2294 = vmatprep.subr.bf16.mxu0 0
  %2295 = vmatpush2.bf16.msra.mxu0 0
  %2296 = vmatprep.subr.bf16.mxu0 0
  %2297 = vmatpush2.bf16.msra.mxu0 0
  %2298 = vmatprep.subr.bf16.mxu0 0
  %2299 = vmatpush2.bf16.msra.mxu0 0
  %2300 = vmatprep.subr.bf16.mxu0 0
  %2301 = vmatpush2.bf16.msra.mxu0 0
  %2302 = vmatprep.mubr.bf16.mxu0 0
  %2303 = vmatmul.mubr.bf16.gmra.mxu0 %v1905
  %v2304 = vpop.f32.mrf.mxu0
  %v2305 = vadd.f32 0.0, %v2304
  %v2306 = vpop.f32.mrf.mxu0
  %v2307 = vadd.f32 0.0, %v2306
  %v2308 = vpop.f32.mrf.mxu0
  %v2309 = vadd.f32 0.0, %v2308
  %v2310 = vpop.f32.mrf.mxu0
  %v2311 = vadd.f32 0.0, %v2310
  %2312 = vdwg.mxu0
  %2313 = vmatprep.subr.bf16.mxu0 %v2160
  %2314 = vmatpush1.bf16.msra.mxu0 %v2159
  %2315 = vmatprep.subr.bf16.mxu0 %v2152
  %2316 = vmatpush1.bf16.msra.mxu0 %v2151
  %2317 = vmatprep.subr.bf16.mxu0 %v2144
  %2318 = vmatpush1.bf16.msra.mxu0 %v2143
  %2319 = vmatprep.subr.bf16.mxu0 %v2136
  %2320 = vmatpush1.bf16.msra.mxu0 %v2135
  %2321 = vmatprep.subr.bf16.mxu0 %v2128
  %2322 = vmatpush1.bf16.msra.mxu0 %v2127
  %2323 = vmatprep.subr.bf16.mxu0 %v2120
  %2324 = vmatpush1.bf16.msra.mxu0 %v2119
  %2325 = vmatprep.subr.bf16.mxu0 %v2112
  %2326 = vmatpush1.bf16.msra.mxu0 %v2111
  %2327 = vmatprep.subr.bf16.mxu0 %v2104
  %2328 = vmatpush1.bf16.msra.mxu0 %v2103
  %2329 = vmatprep.subr.bf16.mxu0 0
  %2330 = vmatpush2.bf16.msra.mxu0 0
  %2331 = vmatprep.subr.bf16.mxu0 0
  %2332 = vmatpush2.bf16.msra.mxu0 0
  %2333 = vmatprep.subr.bf16.mxu0 0
  %2334 = vmatpush2.bf16.msra.mxu0 0
  %2335 = vmatprep.subr.bf16.mxu0 0
  %2336 = vmatpush2.bf16.msra.mxu0 0
  %2337 = vmatprep.subr.bf16.mxu0 0
  %2338 = vmatpush2.bf16.msra.mxu0 0
  %2339 = vmatprep.subr.bf16.mxu0 0
  %2340 = vmatpush2.bf16.msra.mxu0 0
  %2341 = vmatprep.subr.bf16.mxu0 0
  %2342 = vmatpush2.bf16.msra.mxu0 0
  %2343 = vmatprep.subr.bf16.mxu0 0
  %2344 = vmatpush2.bf16.msra.mxu0 0
  %2345 = vmatprep.mubr.bf16.mxu0 0
  %2346 = vmatmul.mubr.bf16.gmra.mxu0 %v1905
  %v2347 = vpop.f32.mrf.mxu0
  %v2348 = vadd.f32 0.0, %v2347
  %v2349 = vpop.f32.mrf.mxu0
  %v2350 = vadd.f32 0.0, %v2349
  %v2351 = vpop.f32.mrf.mxu0
  %v2352 = vadd.f32 0.0, %v2351
  %v2353 = vpop.f32.mrf.mxu0
  %v2354 = vadd.f32 0.0, %v2353
  %2355 = vdwg.mxu0
  %2356 = vmatprep.subr.bf16.mxu0 %v2162
  %2357 = vmatpush1.bf16.msra.mxu0 %v2161
  %2358 = vmatprep.subr.bf16.mxu0 %v2154
  %2359 = vmatpush1.bf16.msra.mxu0 %v2153
  %2360 = vmatprep.subr.bf16.mxu0 %v2146
  %2361 = vmatpush1.bf16.msra.mxu0 %v2145
  %2362 = vmatprep.subr.bf16.mxu0 %v2138
  %2363 = vmatpush1.bf16.msra.mxu0 %v2137
  %2364 = vmatprep.subr.bf16.mxu0 %v2130
  %2365 = vmatpush1.bf16.msra.mxu0 %v2129
  %2366 = vmatprep.subr.bf16.mxu0 %v2122
  %2367 = vmatpush1.bf16.msra.mxu0 %v2121
  %2368 = vmatprep.subr.bf16.mxu0 %v2114
  %2369 = vmatpush1.bf16.msra.mxu0 %v2113
  %2370 = vmatprep.subr.bf16.mxu0 %v2106
  %2371 = vmatpush1.bf16.msra.mxu0 %v2105
  %2372 = vmatprep.subr.bf16.mxu0 0
  %2373 = vmatpush2.bf16.msra.mxu0 0
  %2374 = vmatprep.subr.bf16.mxu0 0
  %2375 = vmatpush2.bf16.msra.mxu0 0
  %2376 = vmatprep.subr.bf16.mxu0 0
  %2377 = vmatpush2.bf16.msra.mxu0 0
  %2378 = vmatprep.subr.bf16.mxu0 0
  %2379 = vmatpush2.bf16.msra.mxu0 0
  %2380 = vmatprep.subr.bf16.mxu0 0
  %2381 = vmatpush2.bf16.msra.mxu0 0
  %2382 = vmatprep.subr.bf16.mxu0 0
  %2383 = vmatpush2.bf16.msra.mxu0 0
  %2384 = vmatprep.subr.bf16.mxu0 0
  %2385 = vmatpush2.bf16.msra.mxu0 0
  %2386 = vmatprep.subr.bf16.mxu0 0
  %2387 = vmatpush2.bf16.msra.mxu0 0
  %2388 = vmatprep.mubr.bf16.mxu0 0
  %2389 = vmatmul.mubr.bf16.gmra.mxu0 %v1905
  %v2390 = vpop.f32.mrf.mxu0
  %v2391 = vadd.f32 0.0, %v2390
  %v2392 = vpop.f32.mrf.mxu0
  %v2393 = vadd.f32 0.0, %v2392
  %v2394 = vpop.f32.mrf.mxu0
  %v2395 = vadd.f32 0.0, %v2394
  %v2396 = vpop.f32.mrf.mxu0
  %v2397 = vadd.f32 0.0, %v2396
  %2398 = vdwg.mxu0
  %v2399 = vadd.f32 %v1819, %v2262
  %v2400 = vadd.f32 %v1820, %v2264
  %v2401 = vadd.f32 %v1821, %v2305
  %v2402 = vadd.f32 %v1822, %v2307
  %v2403 = vadd.f32 %v1823, %v2348
  %v2404 = vadd.f32 %v1824, %v2350
  %v2405 = vadd.f32 %v1825, %v2391
  %v2406 = vadd.f32 %v1826, %v2393
  %v2407 = vadd.f32 %v1827, %v2266
  %v2408 = vadd.f32 %v1828, %v2268
  %v2409 = vadd.f32 %v1829, %v2309
  %v2410 = vadd.f32 %v1830, %v2311
  %v2411 = vadd.f32 %v1831, %v2352
  %v2412 = vadd.f32 %v1832, %v2354
  %v2413 = vadd.f32 %v1833, %v2395
  %v2414 = vadd.f32 %v1834, %v2397
  %2415 = vst [vmem:[#allocation3] sm:$0xff] %v2399
  %2416 = vst [vmem:[#allocation3 + $0x8] sm:$0xff] %v2400
  %2417 = vst [vmem:[#allocation3 + $0x10] sm:$0xff] %v2401
  %2418 = vst [vmem:[#allocation3 + $0x18] sm:$0xff] %v2402
  %2419 = vst [vmem:[#allocation3 + $0x20] sm:$0xff] %v2403
  %2420 = vst [vmem:[#allocation3 + $0x28] sm:$0xff] %v2404
  %2421 = vst [vmem:[#allocation3 + $0x30] sm:$0xff] %v2405
  %2422 = vst [vmem:[#allocation3 + $0x38] sm:$0xff] %v2406
  %2423 = vst [vmem:[#allocation3 + $0x40] sm:$0xff] %v2407
  %2424 = vst [vmem:[#allocation3 + $0x48] sm:$0xff] %v2408
  %2425 = vst [vmem:[#allocation3 + $0x50] sm:$0xff] %v2409
  %2426 = vst [vmem:[#allocation3 + $0x58] sm:$0xff] %v2410
  %2427 = vst [vmem:[#allocation3 + $0x60] sm:$0xff] %v2411
  %2428 = vst [vmem:[#allocation3 + $0x68] sm:$0xff] %v2412
  %2429 = vst [vmem:[#allocation3 + $0x70] sm:$0xff] %v2413
  %2430 = vst [vmem:[#allocation3 + $0x78] sm:$0xff] %v2414
  %v2431 = vld [vmem:[#allocation3] sm:$0xff]
  %v2432 = vld [vmem:[#allocation3 + $0x8] sm:$0xff]
  %v2433 = vld [vmem:[#allocation3 + $0x10] sm:$0xff]
  %v2434 = vld [vmem:[#allocation3 + $0x18] sm:$0xff]
  %v2435 = vld [vmem:[#allocation3 + $0x20] sm:$0xff]
  %v2436 = vld [vmem:[#allocation3 + $0x28] sm:$0xff]
  %v2437 = vld [vmem:[#allocation3 + $0x30] sm:$0xff]
  %v2438 = vld [vmem:[#allocation3 + $0x38] sm:$0xff]
  %v2439 = vld [vmem:[#allocation3 + $0x40] sm:$0xff]
  %v2440 = vld [vmem:[#allocation3 + $0x48] sm:$0xff]
  %v2441 = vld [vmem:[#allocation3 + $0x50] sm:$0xff]
  %v2442 = vld [vmem:[#allocation3 + $0x58] sm:$0xff]
  %v2443 = vld [vmem:[#allocation3 + $0x60] sm:$0xff]
  %v2444 = vld [vmem:[#allocation3 + $0x68] sm:$0xff]
  %v2445 = vld [vmem:[#allocation3 + $0x70] sm:$0xff]
  %v2446 = vld [vmem:[#allocation3 + $0x78] sm:$0xff]
  %v2447 = vld [vmem:[#allocation2 + $0x18] sm:$0xf]
  %v2448 = vld [vmem:[#allocation2 + $0x1c] sm:$0xf]
  %v2449 = vld [vmem:[%s3 + $0x600] sm:$0xff]
  %v2450 = vld [vmem:[%s3 + $0x608] sm:$0xff]
  %v2451 = vld [vmem:[%s3 + $0x610] sm:$0xff]
  %v2452 = vld [vmem:[%s3 + $0x618] sm:$0xff]
  %v2453 = vld [vmem:[%s3 + $0x620] sm:$0xff]
  %v2454 = vld [vmem:[%s3 + $0x628] sm:$0xff]
  %v2455 = vld [vmem:[%s3 + $0x630] sm:$0xff]
  %v2456 = vld [vmem:[%s3 + $0x638] sm:$0xff]
  %v2457 = vld [vmem:[%s3 + $0x640] sm:$0xff]
  %v2458 = vld [vmem:[%s3 + $0x648] sm:$0xff]
  %v2459 = vld [vmem:[%s3 + $0x650] sm:$0xff]
  %v2460 = vld [vmem:[%s3 + $0x658] sm:$0xff]
  %v2461 = vld [vmem:[%s3 + $0x660] sm:$0xff]
  %v2462 = vld [vmem:[%s3 + $0x668] sm:$0xff]
  %v2463 = vld [vmem:[%s3 + $0x670] sm:$0xff]
  %v2464 = vld [vmem:[%s3 + $0x678] sm:$0xff]
  %v2465 = vld [vmem:[%s3 + $0x680] sm:$0xff]
  %v2466 = vld [vmem:[%s3 + $0x688] sm:$0xff]
  %v2467 = vld [vmem:[%s3 + $0x690] sm:$0xff]
  %v2468 = vld [vmem:[%s3 + $0x698] sm:$0xff]
  %v2469 = vld [vmem:[%s3 + $0x6a0] sm:$0xff]
  %v2470 = vld [vmem:[%s3 + $0x6a8] sm:$0xff]
  %v2471 = vld [vmem:[%s3 + $0x6b0] sm:$0xff]
  %v2472 = vld [vmem:[%s3 + $0x6b8] sm:$0xff]
  %v2473 = vld [vmem:[%s3 + $0x6c0] sm:$0xff]
  %v2474 = vld [vmem:[%s3 + $0x6c8] sm:$0xff]
  %v2475 = vld [vmem:[%s3 + $0x6d0] sm:$0xff]
  %v2476 = vld [vmem:[%s3 + $0x6d8] sm:$0xff]
  %v2477 = vld [vmem:[%s3 + $0x6e0] sm:$0xff]
  %v2478 = vld [vmem:[%s3 + $0x6e8] sm:$0xff]
  %v2479 = vld [vmem:[%s3 + $0x6f0] sm:$0xff]
  %v2480 = vld [vmem:[%s3 + $0x6f8] sm:$0xff]
  %v2481 = vld [vmem:[%s3 + $0x700] sm:$0xff]
  %v2482 = vld [vmem:[%s3 + $0x708] sm:$0xff]
  %v2483 = vld [vmem:[%s3 + $0x710] sm:$0xff]
  %v2484 = vld [vmem:[%s3 + $0x718] sm:$0xff]
  %v2485 = vld [vmem:[%s3 + $0x720] sm:$0xff]
  %v2486 = vld [vmem:[%s3 + $0x728] sm:$0xff]
  %v2487 = vld [vmem:[%s3 + $0x730] sm:$0xff]
  %v2488 = vld [vmem:[%s3 + $0x738] sm:$0xff]
  %v2489 = vld [vmem:[%s3 + $0x740] sm:$0xff]
  %v2490 = vld [vmem:[%s3 + $0x748] sm:$0xff]
  %v2491 = vld [vmem:[%s3 + $0x750] sm:$0xff]
  %v2492 = vld [vmem:[%s3 + $0x758] sm:$0xff]
  %v2493 = vld [vmem:[%s3 + $0x760] sm:$0xff]
  %v2494 = vld [vmem:[%s3 + $0x768] sm:$0xff]
  %v2495 = vld [vmem:[%s3 + $0x770] sm:$0xff]
  %v2496 = vld [vmem:[%s3 + $0x778] sm:$0xff]
  %v2497 = vld [vmem:[%s3 + $0x780] sm:$0xff]
  %v2498 = vld [vmem:[%s3 + $0x788] sm:$0xff]
  %v2499 = vld [vmem:[%s3 + $0x790] sm:$0xff]
  %v2500 = vld [vmem:[%s3 + $0x798] sm:$0xff]
  %v2501 = vld [vmem:[%s3 + $0x7a0] sm:$0xff]
  %v2502 = vld [vmem:[%s3 + $0x7a8] sm:$0xff]
  %v2503 = vld [vmem:[%s3 + $0x7b0] sm:$0xff]
  %v2504 = vld [vmem:[%s3 + $0x7b8] sm:$0xff]
  %v2505 = vld [vmem:[%s3 + $0x7c0] sm:$0xff]
  %v2506 = vld [vmem:[%s3 + $0x7c8] sm:$0xff]
  %v2507 = vld [vmem:[%s3 + $0x7d0] sm:$0xff]
  %v2508 = vld [vmem:[%s3 + $0x7d8] sm:$0xff]
  %v2509 = vld [vmem:[%s3 + $0x7e0] sm:$0xff]
  %v2510 = vld [vmem:[%s3 + $0x7e8] sm:$0xff]
  %v2511 = vld [vmem:[%s3 + $0x7f0] sm:$0xff]
  %v2512 = vld [vmem:[%s3 + $0x7f8] sm:$0xff]
  %v2515 = vunpack.c.l.b16 %v2447
  %v2516 = vunpack.c.l.b16 %v2448
  %v2517 = vpack.c.b16 %v2516, %v2515
  %v2583 = vunpack.c.l.b16 %v2449
  %v2584 = vunpack.c.h.b16 %v2449
  %v2585 = vunpack.c.l.b16 %v2450
  %v2586 = vunpack.c.h.b16 %v2450
  %v2587 = vunpack.c.l.b16 %v2451
  %v2588 = vunpack.c.h.b16 %v2451
  %v2589 = vunpack.c.l.b16 %v2452
  %v2590 = vunpack.c.h.b16 %v2452
  %v2591 = vunpack.c.l.b16 %v2453
  %v2592 = vunpack.c.h.b16 %v2453
  %v2593 = vunpack.c.l.b16 %v2454
  %v2594 = vunpack.c.h.b16 %v2454
  %v2595 = vunpack.c.l.b16 %v2455
  %v2596 = vunpack.c.h.b16 %v2455
  %v2597 = vunpack.c.l.b16 %v2456
  %v2598 = vunpack.c.h.b16 %v2456
  %v2599 = vunpack.c.l.b16 %v2457
  %v2600 = vunpack.c.h.b16 %v2457
  %v2601 = vunpack.c.l.b16 %v2458
  %v2602 = vunpack.c.h.b16 %v2458
  %v2603 = vunpack.c.l.b16 %v2459
  %v2604 = vunpack.c.h.b16 %v2459
  %v2605 = vunpack.c.l.b16 %v2460
  %v2606 = vunpack.c.h.b16 %v2460
  %v2607 = vunpack.c.l.b16 %v2461
  %v2608 = vunpack.c.h.b16 %v2461
  %v2609 = vunpack.c.l.b16 %v2462
  %v2610 = vunpack.c.h.b16 %v2462
  %v2611 = vunpack.c.l.b16 %v2463
  %v2612 = vunpack.c.h.b16 %v2463
  %v2613 = vunpack.c.l.b16 %v2464
  %v2614 = vunpack.c.h.b16 %v2464
  %v2615 = vunpack.c.l.b16 %v2465
  %v2616 = vunpack.c.h.b16 %v2465
  %v2617 = vunpack.c.l.b16 %v2466
  %v2618 = vunpack.c.h.b16 %v2466
  %v2619 = vunpack.c.l.b16 %v2467
  %v2620 = vunpack.c.h.b16 %v2467
  %v2621 = vunpack.c.l.b16 %v2468
  %v2622 = vunpack.c.h.b16 %v2468
  %v2623 = vunpack.c.l.b16 %v2469
  %v2624 = vunpack.c.h.b16 %v2469
  %v2625 = vunpack.c.l.b16 %v2470
  %v2626 = vunpack.c.h.b16 %v2470
  %v2627 = vunpack.c.l.b16 %v2471
  %v2628 = vunpack.c.h.b16 %v2471
  %v2629 = vunpack.c.l.b16 %v2472
  %v2630 = vunpack.c.h.b16 %v2472
  %v2631 = vunpack.c.l.b16 %v2473
  %v2632 = vunpack.c.h.b16 %v2473
  %v2633 = vunpack.c.l.b16 %v2474
  %v2634 = vunpack.c.h.b16 %v2474
  %v2635 = vunpack.c.l.b16 %v2475
  %v2636 = vunpack.c.h.b16 %v2475
  %v2637 = vunpack.c.l.b16 %v2476
  %v2638 = vunpack.c.h.b16 %v2476
  %v2639 = vunpack.c.l.b16 %v2477
  %v2640 = vunpack.c.h.b16 %v2477
  %v2641 = vunpack.c.l.b16 %v2478
  %v2642 = vunpack.c.h.b16 %v2478
  %v2643 = vunpack.c.l.b16 %v2479
  %v2644 = vunpack.c.h.b16 %v2479
  %v2645 = vunpack.c.l.b16 %v2480
  %v2646 = vunpack.c.h.b16 %v2480
  %v2647 = vunpack.c.l.b16 %v2481
  %v2648 = vunpack.c.h.b16 %v2481
  %v2649 = vunpack.c.l.b16 %v2482
  %v2650 = vunpack.c.h.b16 %v2482
  %v2651 = vunpack.c.l.b16 %v2483
  %v2652 = vunpack.c.h.b16 %v2483
  %v2653 = vunpack.c.l.b16 %v2484
  %v2654 = vunpack.c.h.b16 %v2484
  %v2655 = vunpack.c.l.b16 %v2485
  %v2656 = vunpack.c.h.b16 %v2485
  %v2657 = vunpack.c.l.b16 %v2486
  %v2658 = vunpack.c.h.b16 %v2486
  %v2659 = vunpack.c.l.b16 %v2487
  %v2660 = vunpack.c.h.b16 %v2487
  %v2661 = vunpack.c.l.b16 %v2488
  %v2662 = vunpack.c.h.b16 %v2488
  %v2663 = vunpack.c.l.b16 %v2489
  %v2664 = vunpack.c.h.b16 %v2489
  %v2665 = vunpack.c.l.b16 %v2490
  %v2666 = vunpack.c.h.b16 %v2490
  %v2667 = vunpack.c.l.b16 %v2491
  %v2668 = vunpack.c.h.b16 %v2491
  %v2669 = vunpack.c.l.b16 %v2492
  %v2670 = vunpack.c.h.b16 %v2492
  %v2671 = vunpack.c.l.b16 %v2493
  %v2672 = vunpack.c.h.b16 %v2493
  %v2673 = vunpack.c.l.b16 %v2494
  %v2674 = vunpack.c.h.b16 %v2494
  %v2675 = vunpack.c.l.b16 %v2495
  %v2676 = vunpack.c.h.b16 %v2495
  %v2677 = vunpack.c.l.b16 %v2496
  %v2678 = vunpack.c.h.b16 %v2496
  %v2679 = vunpack.c.l.b16 %v2497
  %v2680 = vunpack.c.h.b16 %v2497
  %v2681 = vunpack.c.l.b16 %v2498
  %v2682 = vunpack.c.h.b16 %v2498
  %v2683 = vunpack.c.l.b16 %v2499
  %v2684 = vunpack.c.h.b16 %v2499
  %v2685 = vunpack.c.l.b16 %v2500
  %v2686 = vunpack.c.h.b16 %v2500
  %v2687 = vunpack.c.l.b16 %v2501
  %v2688 = vunpack.c.h.b16 %v2501
  %v2689 = vunpack.c.l.b16 %v2502
  %v2690 = vunpack.c.h.b16 %v2502
  %v2691 = vunpack.c.l.b16 %v2503
  %v2692 = vunpack.c.h.b16 %v2503
  %v2693 = vunpack.c.l.b16 %v2504
  %v2694 = vunpack.c.h.b16 %v2504
  %v2695 = vunpack.c.l.b16 %v2505
  %v2696 = vunpack.c.h.b16 %v2505
  %v2697 = vunpack.c.l.b16 %v2506
  %v2698 = vunpack.c.h.b16 %v2506
  %v2699 = vunpack.c.l.b16 %v2507
  %v2700 = vunpack.c.h.b16 %v2507
  %v2701 = vunpack.c.l.b16 %v2508
  %v2702 = vunpack.c.h.b16 %v2508
  %v2703 = vunpack.c.l.b16 %v2509
  %v2704 = vunpack.c.h.b16 %v2509
  %v2705 = vunpack.c.l.b16 %v2510
  %v2706 = vunpack.c.h.b16 %v2510
  %v2707 = vunpack.c.l.b16 %v2511
  %v2708 = vunpack.c.h.b16 %v2511
  %v2709 = vunpack.c.l.b16 %v2512
  %v2710 = vunpack.c.h.b16 %v2512
  %v2711 = vpack.c.b16 %v2591, %v2583
  %v2712 = vpack.c.b16 %v2592, %v2584
  %v2713 = vpack.c.b16 %v2593, %v2585
  %v2714 = vpack.c.b16 %v2594, %v2586
  %v2715 = vpack.c.b16 %v2595, %v2587
  %v2716 = vpack.c.b16 %v2596, %v2588
  %v2717 = vpack.c.b16 %v2597, %v2589
  %v2718 = vpack.c.b16 %v2598, %v2590
  %v2719 = vpack.c.b16 %v2607, %v2599
  %v2720 = vpack.c.b16 %v2608, %v2600
  %v2721 = vpack.c.b16 %v2609, %v2601
  %v2722 = vpack.c.b16 %v2610, %v2602
  %v2723 = vpack.c.b16 %v2611, %v2603
  %v2724 = vpack.c.b16 %v2612, %v2604
  %v2725 = vpack.c.b16 %v2613, %v2605
  %v2726 = vpack.c.b16 %v2614, %v2606
  %v2727 = vpack.c.b16 %v2623, %v2615
  %v2728 = vpack.c.b16 %v2624, %v2616
  %v2729 = vpack.c.b16 %v2625, %v2617
  %v2730 = vpack.c.b16 %v2626, %v2618
  %v2731 = vpack.c.b16 %v2627, %v2619
  %v2732 = vpack.c.b16 %v2628, %v2620
  %v2733 = vpack.c.b16 %v2629, %v2621
  %v2734 = vpack.c.b16 %v2630, %v2622
  %v2735 = vpack.c.b16 %v2639, %v2631
  %v2736 = vpack.c.b16 %v2640, %v2632
  %v2737 = vpack.c.b16 %v2641, %v2633
  %v2738 = vpack.c.b16 %v2642, %v2634
  %v2739 = vpack.c.b16 %v2643, %v2635
  %v2740 = vpack.c.b16 %v2644, %v2636
  %v2741 = vpack.c.b16 %v2645, %v2637
  %v2742 = vpack.c.b16 %v2646, %v2638
  %v2743 = vpack.c.b16 %v2655, %v2647
  %v2744 = vpack.c.b16 %v2656, %v2648
  %v2745 = vpack.c.b16 %v2657, %v2649
  %v2746 = vpack.c.b16 %v2658, %v2650
  %v2747 = vpack.c.b16 %v2659, %v2651
  %v2748 = vpack.c.b16 %v2660, %v2652
  %v2749 = vpack.c.b16 %v2661, %v2653
  %v2750 = vpack.c.b16 %v2662, %v2654
  %v2751 = vpack.c.b16 %v2671, %v2663
  %v2752 = vpack.c.b16 %v2672, %v2664
  %v2753 = vpack.c.b16 %v2673, %v2665
  %v2754 = vpack.c.b16 %v2674, %v2666
  %v2755 = vpack.c.b16 %v2675, %v2667
  %v2756 = vpack.c.b16 %v2676, %v2668
  %v2757 = vpack.c.b16 %v2677, %v2669
  %v2758 = vpack.c.b16 %v2678, %v2670
  %v2759 = vpack.c.b16 %v2687, %v2679
  %v2760 = vpack.c.b16 %v2688, %v2680
  %v2761 = vpack.c.b16 %v2689, %v2681
  %v2762 = vpack.c.b16 %v2690, %v2682
  %v2763 = vpack.c.b16 %v2691, %v2683
  %v2764 = vpack.c.b16 %v2692, %v2684
  %v2765 = vpack.c.b16 %v2693, %v2685
  %v2766 = vpack.c.b16 %v2694, %v2686
  %v2767 = vpack.c.b16 %v2703, %v2695
  %v2768 = vpack.c.b16 %v2704, %v2696
  %v2769 = vpack.c.b16 %v2705, %v2697
  %v2770 = vpack.c.b16 %v2706, %v2698
  %v2771 = vpack.c.b16 %v2707, %v2699
  %v2772 = vpack.c.b16 %v2708, %v2700
  %v2773 = vpack.c.b16 %v2709, %v2701
  %v2774 = vpack.c.b16 %v2710, %v2702
  %2839 = vmatprep.subr.bf16.mxu0 %v2768
  %2840 = vmatpush1.bf16.msra.mxu0 %v2767
  %2841 = vmatprep.subr.bf16.mxu0 %v2760
  %2842 = vmatpush1.bf16.msra.mxu0 %v2759
  %2843 = vmatprep.subr.bf16.mxu0 %v2752
  %2844 = vmatpush1.bf16.msra.mxu0 %v2751
  %2845 = vmatprep.subr.bf16.mxu0 %v2744
  %2846 = vmatpush1.bf16.msra.mxu0 %v2743
  %2847 = vmatprep.subr.bf16.mxu0 %v2736
  %2848 = vmatpush1.bf16.msra.mxu0 %v2735
  %2849 = vmatprep.subr.bf16.mxu0 %v2728
  %2850 = vmatpush1.bf16.msra.mxu0 %v2727
  %2851 = vmatprep.subr.bf16.mxu0 %v2720
  %2852 = vmatpush1.bf16.msra.mxu0 %v2719
  %2853 = vmatprep.subr.bf16.mxu0 %v2712
  %2854 = vmatpush1.bf16.msra.mxu0 %v2711
  %2855 = vmatprep.subr.bf16.mxu0 0
  %2856 = vmatpush2.bf16.msra.mxu0 0
  %2857 = vmatprep.subr.bf16.mxu0 0
  %2858 = vmatpush2.bf16.msra.mxu0 0
  %2859 = vmatprep.subr.bf16.mxu0 0
  %2860 = vmatpush2.bf16.msra.mxu0 0
  %2861 = vmatprep.subr.bf16.mxu0 0
  %2862 = vmatpush2.bf16.msra.mxu0 0
  %2863 = vmatprep.subr.bf16.mxu0 0
  %2864 = vmatpush2.bf16.msra.mxu0 0
  %2865 = vmatprep.subr.bf16.mxu0 0
  %2866 = vmatpush2.bf16.msra.mxu0 0
  %2867 = vmatprep.subr.bf16.mxu0 0
  %2868 = vmatpush2.bf16.msra.mxu0 0
  %2869 = vmatprep.subr.bf16.mxu0 0
  %2870 = vmatpush2.bf16.msra.mxu0 0
  %2871 = vmatprep.mubr.bf16.mxu0 0
  %2872 = vmatmul.mubr.bf16.gmra.mxu0 %v2517
  %v2873 = vpop.f32.mrf.mxu0
  %v2874 = vadd.f32 0.0, %v2873
  %v2875 = vpop.f32.mrf.mxu0
  %v2876 = vadd.f32 0.0, %v2875
  %v2877 = vpop.f32.mrf.mxu0
  %v2878 = vadd.f32 0.0, %v2877
  %v2879 = vpop.f32.mrf.mxu0
  %v2880 = vadd.f32 0.0, %v2879
  %2881 = vdwg.mxu0
  %2882 = vmatprep.subr.bf16.mxu0 %v2770
  %2883 = vmatpush1.bf16.msra.mxu0 %v2769
  %2884 = vmatprep.subr.bf16.mxu0 %v2762
  %2885 = vmatpush1.bf16.msra.mxu0 %v2761
  %2886 = vmatprep.subr.bf16.mxu0 %v2754
  %2887 = vmatpush1.bf16.msra.mxu0 %v2753
  %2888 = vmatprep.subr.bf16.mxu0 %v2746
  %2889 = vmatpush1.bf16.msra.mxu0 %v2745
  %2890 = vmatprep.subr.bf16.mxu0 %v2738
  %2891 = vmatpush1.bf16.msra.mxu0 %v2737
  %2892 = vmatprep.subr.bf16.mxu0 %v2730
  %2893 = vmatpush1.bf16.msra.mxu0 %v2729
  %2894 = vmatprep.subr.bf16.mxu0 %v2722
  %2895 = vmatpush1.bf16.msra.mxu0 %v2721
  %2896 = vmatprep.subr.bf16.mxu0 %v2714
  %2897 = vmatpush1.bf16.msra.mxu0 %v2713
  %2898 = vmatprep.subr.bf16.mxu0 0
  %2899 = vmatpush2.bf16.msra.mxu0 0
  %2900 = vmatprep.subr.bf16.mxu0 0
  %2901 = vmatpush2.bf16.msra.mxu0 0
  %2902 = vmatprep.subr.bf16.mxu0 0
  %2903 = vmatpush2.bf16.msra.mxu0 0
  %2904 = vmatprep.subr.bf16.mxu0 0
  %2905 = vmatpush2.bf16.msra.mxu0 0
  %2906 = vmatprep.subr.bf16.mxu0 0
  %2907 = vmatpush2.bf16.msra.mxu0 0
  %2908 = vmatprep.subr.bf16.mxu0 0
  %2909 = vmatpush2.bf16.msra.mxu0 0
  %2910 = vmatprep.subr.bf16.mxu0 0
  %2911 = vmatpush2.bf16.msra.mxu0 0
  %2912 = vmatprep.subr.bf16.mxu0 0
  %2913 = vmatpush2.bf16.msra.mxu0 0
  %2914 = vmatprep.mubr.bf16.mxu0 0
  %2915 = vmatmul.mubr.bf16.gmra.mxu0 %v2517
  %v2916 = vpop.f32.mrf.mxu0
  %v2917 = vadd.f32 0.0, %v2916
  %v2918 = vpop.f32.mrf.mxu0
  %v2919 = vadd.f32 0.0, %v2918
  %v2920 = vpop.f32.mrf.mxu0
  %v2921 = vadd.f32 0.0, %v2920
  %v2922 = vpop.f32.mrf.mxu0
  %v2923 = vadd.f32 0.0, %v2922
  %2924 = vdwg.mxu0
  %2925 = vmatprep.subr.bf16.mxu0 %v2772
  %2926 = vmatpush1.bf16.msra.mxu0 %v2771
  %2927 = vmatprep.subr.bf16.mxu0 %v2764
  %2928 = vmatpush1.bf16.msra.mxu0 %v2763
  %2929 = vmatprep.subr.bf16.mxu0 %v2756
  %2930 = vmatpush1.bf16.msra.mxu0 %v2755
  %2931 = vmatprep.subr.bf16.mxu0 %v2748
  %2932 = vmatpush1.bf16.msra.mxu0 %v2747
  %2933 = vmatprep.subr.bf16.mxu0 %v2740
  %2934 = vmatpush1.bf16.msra.mxu0 %v2739
  %2935 = vmatprep.subr.bf16.mxu0 %v2732
  %2936 = vmatpush1.bf16.msra.mxu0 %v2731
  %2937 = vmatprep.subr.bf16.mxu0 %v2724
  %2938 = vmatpush1.bf16.msra.mxu0 %v2723
  %2939 = vmatprep.subr.bf16.mxu0 %v2716
  %2940 = vmatpush1.bf16.msra.mxu0 %v2715
  %2941 = vmatprep.subr.bf16.mxu0 0
  %2942 = vmatpush2.bf16.msra.mxu0 0
  %2943 = vmatprep.subr.bf16.mxu0 0
  %2944 = vmatpush2.bf16.msra.mxu0 0
  %2945 = vmatprep.subr.bf16.mxu0 0
  %2946 = vmatpush2.bf16.msra.mxu0 0
  %2947 = vmatprep.subr.bf16.mxu0 0
  %2948 = vmatpush2.bf16.msra.mxu0 0
  %2949 = vmatprep.subr.bf16.mxu0 0
  %2950 = vmatpush2.bf16.msra.mxu0 0
  %2951 = vmatprep.subr.bf16.mxu0 0
  %2952 = vmatpush2.bf16.msra.mxu0 0
  %2953 = vmatprep.subr.bf16.mxu0 0
  %2954 = vmatpush2.bf16.msra.mxu0 0
  %2955 = vmatprep.subr.bf16.mxu0 0
  %2956 = vmatpush2.bf16.msra.mxu0 0
  %2957 = vmatprep.mubr.bf16.mxu0 0
  %2958 = vmatmul.mubr.bf16.gmra.mxu0 %v2517
  %v2959 = vpop.f32.mrf.mxu0
  %v2960 = vadd.f32 0.0, %v2959
  %v2961 = vpop.f32.mrf.mxu0
  %v2962 = vadd.f32 0.0, %v2961
  %v2963 = vpop.f32.mrf.mxu0
  %v2964 = vadd.f32 0.0, %v2963
  %v2965 = vpop.f32.mrf.mxu0
  %v2966 = vadd.f32 0.0, %v2965
  %2967 = vdwg.mxu0
  %2968 = vmatprep.subr.bf16.mxu0 %v2774
  %2969 = vmatpush1.bf16.msra.mxu0 %v2773
  %2970 = vmatprep.subr.bf16.mxu0 %v2766
  %2971 = vmatpush1.bf16.msra.mxu0 %v2765
  %2972 = vmatprep.subr.bf16.mxu0 %v2758
  %2973 = vmatpush1.bf16.msra.mxu0 %v2757
  %2974 = vmatprep.subr.bf16.mxu0 %v2750
  %2975 = vmatpush1.bf16.msra.mxu0 %v2749
  %2976 = vmatprep.subr.bf16.mxu0 %v2742
  %2977 = vmatpush1.bf16.msra.mxu0 %v2741
  %2978 = vmatprep.subr.bf16.mxu0 %v2734
  %2979 = vmatpush1.bf16.msra.mxu0 %v2733
  %2980 = vmatprep.subr.bf16.mxu0 %v2726
  %2981 = vmatpush1.bf16.msra.mxu0 %v2725
  %2982 = vmatprep.subr.bf16.mxu0 %v2718
  %2983 = vmatpush1.bf16.msra.mxu0 %v2717
  %2984 = vmatprep.subr.bf16.mxu0 0
  %2985 = vmatpush2.bf16.msra.mxu0 0
  %2986 = vmatprep.subr.bf16.mxu0 0
  %2987 = vmatpush2.bf16.msra.mxu0 0
  %2988 = vmatprep.subr.bf16.mxu0 0
  %2989 = vmatpush2.bf16.msra.mxu0 0
  %2990 = vmatprep.subr.bf16.mxu0 0
  %2991 = vmatpush2.bf16.msra.mxu0 0
  %2992 = vmatprep.subr.bf16.mxu0 0
  %2993 = vmatpush2.bf16.msra.mxu0 0
  %2994 = vmatprep.subr.bf16.mxu0 0
  %2995 = vmatpush2.bf16.msra.mxu0 0
  %2996 = vmatprep.subr.bf16.mxu0 0
  %2997 = vmatpush2.bf16.msra.mxu0 0
  %2998 = vmatprep.subr.bf16.mxu0 0
  %2999 = vmatpush2.bf16.msra.mxu0 0
  %3000 = vmatprep.mubr.bf16.mxu0 0
  %3001 = vmatmul.mubr.bf16.gmra.mxu0 %v2517
  %v3002 = vpop.f32.mrf.mxu0
  %v3003 = vadd.f32 0.0, %v3002
  %v3004 = vpop.f32.mrf.mxu0
  %v3005 = vadd.f32 0.0, %v3004
  %v3006 = vpop.f32.mrf.mxu0
  %v3007 = vadd.f32 0.0, %v3006
  %v3008 = vpop.f32.mrf.mxu0
  %v3009 = vadd.f32 0.0, %v3008
  %3010 = vdwg.mxu0
  %v3011 = vadd.f32 %v2431, %v2874
  %v3012 = vadd.f32 %v2432, %v2876
  %v3013 = vadd.f32 %v2433, %v2917
  %v3014 = vadd.f32 %v2434, %v2919
  %v3015 = vadd.f32 %v2435, %v2960
  %v3016 = vadd.f32 %v2436, %v2962
  %v3017 = vadd.f32 %v2437, %v3003
  %v3018 = vadd.f32 %v2438, %v3005
  %v3019 = vadd.f32 %v2439, %v2878
  %v3020 = vadd.f32 %v2440, %v2880
  %v3021 = vadd.f32 %v2441, %v2921
  %v3022 = vadd.f32 %v2442, %v2923
  %v3023 = vadd.f32 %v2443, %v2964
  %v3024 = vadd.f32 %v2444, %v2966
  %v3025 = vadd.f32 %v2445, %v3007
  %v3026 = vadd.f32 %v2446, %v3009
  %3027 = vst [vmem:[#allocation3] sm:$0xff] %v3011
  %3028 = vst [vmem:[#allocation3 + $0x8] sm:$0xff] %v3012
  %3029 = vst [vmem:[#allocation3 + $0x10] sm:$0xff] %v3013
  %3030 = vst [vmem:[#allocation3 + $0x18] sm:$0xff] %v3014
  %3031 = vst [vmem:[#allocation3 + $0x20] sm:$0xff] %v3015
  %3032 = vst [vmem:[#allocation3 + $0x28] sm:$0xff] %v3016
  %3033 = vst [vmem:[#allocation3 + $0x30] sm:$0xff] %v3017
  %3034 = vst [vmem:[#allocation3 + $0x38] sm:$0xff] %v3018
  %3035 = vst [vmem:[#allocation3 + $0x40] sm:$0xff] %v3019
  %3036 = vst [vmem:[#allocation3 + $0x48] sm:$0xff] %v3020
  %3037 = vst [vmem:[#allocation3 + $0x50] sm:$0xff] %v3021
  %3038 = vst [vmem:[#allocation3 + $0x58] sm:$0xff] %v3022
  %3039 = vst [vmem:[#allocation3 + $0x60] sm:$0xff] %v3023
  %3040 = vst [vmem:[#allocation3 + $0x68] sm:$0xff] %v3024
  %3041 = vst [vmem:[#allocation3 + $0x70] sm:$0xff] %v3025
  %3042 = vst [vmem:[#allocation3 + $0x78] sm:$0xff] %v3026
  %v3043 = vld [vmem:[#allocation3] sm:$0xff]
  %v3044 = vld [vmem:[#allocation3 + $0x8] sm:$0xff]
  %v3045 = vld [vmem:[#allocation3 + $0x10] sm:$0xff]
  %v3046 = vld [vmem:[#allocation3 + $0x18] sm:$0xff]
  %v3047 = vld [vmem:[#allocation3 + $0x20] sm:$0xff]
  %v3048 = vld [vmem:[#allocation3 + $0x28] sm:$0xff]
  %v3049 = vld [vmem:[#allocation3 + $0x30] sm:$0xff]
  %v3050 = vld [vmem:[#allocation3 + $0x38] sm:$0xff]
  %v3051 = vld [vmem:[#allocation3 + $0x40] sm:$0xff]
  %v3052 = vld [vmem:[#allocation3 + $0x48] sm:$0xff]
  %v3053 = vld [vmem:[#allocation3 + $0x50] sm:$0xff]
  %v3054 = vld [vmem:[#allocation3 + $0x58] sm:$0xff]
  %v3055 = vld [vmem:[#allocation3 + $0x60] sm:$0xff]
  %v3056 = vld [vmem:[#allocation3 + $0x68] sm:$0xff]
  %v3057 = vld [vmem:[#allocation3 + $0x70] sm:$0xff]
  %v3058 = vld [vmem:[#allocation3 + $0x78] sm:$0xff]
  %v3059 = vld [vmem:[#allocation2 + $0x20] sm:$0xf]
  %v3060 = vld [vmem:[#allocation2 + $0x24] sm:$0xf]
  %v3061 = vld [vmem:[%s3 + $0x800] sm:$0xff]
  %v3062 = vld [vmem:[%s3 + $0x808] sm:$0xff]
  %v3063 = vld [vmem:[%s3 + $0x810] sm:$0xff]
  %v3064 = vld [vmem:[%s3 + $0x818] sm:$0xff]
  %v3065 = vld [vmem:[%s3 + $0x820] sm:$0xff]
  %v3066 = vld [vmem:[%s3 + $0x828] sm:$0xff]
  %v3067 = vld [vmem:[%s3 + $0x830] sm:$0xff]
  %v3068 = vld [vmem:[%s3 + $0x838] sm:$0xff]
  %v3069 = vld [vmem:[%s3 + $0x840] sm:$0xff]
  %v3070 = vld [vmem:[%s3 + $0x848] sm:$0xff]
  %v3071 = vld [vmem:[%s3 + $0x850] sm:$0xff]
  %v3072 = vld [vmem:[%s3 + $0x858] sm:$0xff]
  %v3073 = vld [vmem:[%s3 + $0x860] sm:$0xff]
  %v3074 = vld [vmem:[%s3 + $0x868] sm:$0xff]
  %v3075 = vld [vmem:[%s3 + $0x870] sm:$0xff]
  %v3076 = vld [vmem:[%s3 + $0x878] sm:$0xff]
  %v3077 = vld [vmem:[%s3 + $0x880] sm:$0xff]
  %v3078 = vld [vmem:[%s3 + $0x888] sm:$0xff]
  %v3079 = vld [vmem:[%s3 + $0x890] sm:$0xff]
  %v3080 = vld [vmem:[%s3 + $0x898] sm:$0xff]
  %v3081 = vld [vmem:[%s3 + $0x8a0] sm:$0xff]
  %v3082 = vld [vmem:[%s3 + $0x8a8] sm:$0xff]
  %v3083 = vld [vmem:[%s3 + $0x8b0] sm:$0xff]
  %v3084 = vld [vmem:[%s3 + $0x8b8] sm:$0xff]
  %v3085 = vld [vmem:[%s3 + $0x8c0] sm:$0xff]
  %v3086 = vld [vmem:[%s3 + $0x8c8] sm:$0xff]
  %v3087 = vld [vmem:[%s3 + $0x8d0] sm:$0xff]
  %v3088 = vld [vmem:[%s3 + $0x8d8] sm:$0xff]
  %v3089 = vld [vmem:[%s3 + $0x8e0] sm:$0xff]
  %v3090 = vld [vmem:[%s3 + $0x8e8] sm:$0xff]
  %v3091 = vld [vmem:[%s3 + $0x8f0] sm:$0xff]
  %v3092 = vld [vmem:[%s3 + $0x8f8] sm:$0xff]
  %v3093 = vld [vmem:[%s3 + $0x900] sm:$0xff]
  %v3094 = vld [vmem:[%s3 + $0x908] sm:$0xff]
  %v3095 = vld [vmem:[%s3 + $0x910] sm:$0xff]
  %v3096 = vld [vmem:[%s3 + $0x918] sm:$0xff]
  %v3097 = vld [vmem:[%s3 + $0x920] sm:$0xff]
  %v3098 = vld [vmem:[%s3 + $0x928] sm:$0xff]
  %v3099 = vld [vmem:[%s3 + $0x930] sm:$0xff]
  %v3100 = vld [vmem:[%s3 + $0x938] sm:$0xff]
  %v3101 = vld [vmem:[%s3 + $0x940] sm:$0xff]
  %v3102 = vld [vmem:[%s3 + $0x948] sm:$0xff]
  %v3103 = vld [vmem:[%s3 + $0x950] sm:$0xff]
  %v3104 = vld [vmem:[%s3 + $0x958] sm:$0xff]
  %v3105 = vld [vmem:[%s3 + $0x960] sm:$0xff]
  %v3106 = vld [vmem:[%s3 + $0x968] sm:$0xff]
  %v3107 = vld [vmem:[%s3 + $0x970] sm:$0xff]
  %v3108 = vld [vmem:[%s3 + $0x978] sm:$0xff]
  %v3109 = vld [vmem:[%s3 + $0x980] sm:$0xff]
  %v3110 = vld [vmem:[%s3 + $0x988] sm:$0xff]
  %v3111 = vld [vmem:[%s3 + $0x990] sm:$0xff]
  %v3112 = vld [vmem:[%s3 + $0x998] sm:$0xff]
  %v3113 = vld [vmem:[%s3 + $0x9a0] sm:$0xff]
  %v3114 = vld [vmem:[%s3 + $0x9a8] sm:$0xff]
  %v3115 = vld [vmem:[%s3 + $0x9b0] sm:$0xff]
  %v3116 = vld [vmem:[%s3 + $0x9b8] sm:$0xff]
  %v3117 = vld [vmem:[%s3 + $0x9c0] sm:$0xff]
  %v3118 = vld [vmem:[%s3 + $0x9c8] sm:$0xff]
  %v3119 = vld [vmem:[%s3 + $0x9d0] sm:$0xff]
  %v3120 = vld [vmem:[%s3 + $0x9d8] sm:$0xff]
  %v3121 = vld [vmem:[%s3 + $0x9e0] sm:$0xff]
  %v3122 = vld [vmem:[%s3 + $0x9e8] sm:$0xff]
  %v3123 = vld [vmem:[%s3 + $0x9f0] sm:$0xff]
  %v3124 = vld [vmem:[%s3 + $0x9f8] sm:$0xff]
  %v3127 = vunpack.c.l.b16 %v3059
  %v3128 = vunpack.c.l.b16 %v3060
  %v3129 = vpack.c.b16 %v3128, %v3127
  %v3195 = vunpack.c.l.b16 %v3061
  %v3196 = vunpack.c.h.b16 %v3061
  %v3197 = vunpack.c.l.b16 %v3062
  %v3198 = vunpack.c.h.b16 %v3062
  %v3199 = vunpack.c.l.b16 %v3063
  %v3200 = vunpack.c.h.b16 %v3063
  %v3201 = vunpack.c.l.b16 %v3064
  %v3202 = vunpack.c.h.b16 %v3064
  %v3203 = vunpack.c.l.b16 %v3065
  %v3204 = vunpack.c.h.b16 %v3065
  %v3205 = vunpack.c.l.b16 %v3066
  %v3206 = vunpack.c.h.b16 %v3066
  %v3207 = vunpack.c.l.b16 %v3067
  %v3208 = vunpack.c.h.b16 %v3067
  %v3209 = vunpack.c.l.b16 %v3068
  %v3210 = vunpack.c.h.b16 %v3068
  %v3211 = vunpack.c.l.b16 %v3069
  %v3212 = vunpack.c.h.b16 %v3069
  %v3213 = vunpack.c.l.b16 %v3070
  %v3214 = vunpack.c.h.b16 %v3070
  %v3215 = vunpack.c.l.b16 %v3071
  %v3216 = vunpack.c.h.b16 %v3071
  %v3217 = vunpack.c.l.b16 %v3072
  %v3218 = vunpack.c.h.b16 %v3072
  %v3219 = vunpack.c.l.b16 %v3073
  %v3220 = vunpack.c.h.b16 %v3073
  %v3221 = vunpack.c.l.b16 %v3074
  %v3222 = vunpack.c.h.b16 %v3074
  %v3223 = vunpack.c.l.b16 %v3075
  %v3224 = vunpack.c.h.b16 %v3075
  %v3225 = vunpack.c.l.b16 %v3076
  %v3226 = vunpack.c.h.b16 %v3076
  %v3227 = vunpack.c.l.b16 %v3077
  %v3228 = vunpack.c.h.b16 %v3077
  %v3229 = vunpack.c.l.b16 %v3078
  %v3230 = vunpack.c.h.b16 %v3078
  %v3231 = vunpack.c.l.b16 %v3079
  %v3232 = vunpack.c.h.b16 %v3079
  %v3233 = vunpack.c.l.b16 %v3080
  %v3234 = vunpack.c.h.b16 %v3080
  %v3235 = vunpack.c.l.b16 %v3081
  %v3236 = vunpack.c.h.b16 %v3081
  %v3237 = vunpack.c.l.b16 %v3082
  %v3238 = vunpack.c.h.b16 %v3082
  %v3239 = vunpack.c.l.b16 %v3083
  %v3240 = vunpack.c.h.b16 %v3083
  %v3241 = vunpack.c.l.b16 %v3084
  %v3242 = vunpack.c.h.b16 %v3084
  %v3243 = vunpack.c.l.b16 %v3085
  %v3244 = vunpack.c.h.b16 %v3085
  %v3245 = vunpack.c.l.b16 %v3086
  %v3246 = vunpack.c.h.b16 %v3086
  %v3247 = vunpack.c.l.b16 %v3087
  %v3248 = vunpack.c.h.b16 %v3087
  %v3249 = vunpack.c.l.b16 %v3088
  %v3250 = vunpack.c.h.b16 %v3088
  %v3251 = vunpack.c.l.b16 %v3089
  %v3252 = vunpack.c.h.b16 %v3089
  %v3253 = vunpack.c.l.b16 %v3090
  %v3254 = vunpack.c.h.b16 %v3090
  %v3255 = vunpack.c.l.b16 %v3091
  %v3256 = vunpack.c.h.b16 %v3091
  %v3257 = vunpack.c.l.b16 %v3092
  %v3258 = vunpack.c.h.b16 %v3092
  %v3259 = vunpack.c.l.b16 %v3093
  %v3260 = vunpack.c.h.b16 %v3093
  %v3261 = vunpack.c.l.b16 %v3094
  %v3262 = vunpack.c.h.b16 %v3094
  %v3263 = vunpack.c.l.b16 %v3095
  %v3264 = vunpack.c.h.b16 %v3095
  %v3265 = vunpack.c.l.b16 %v3096
  %v3266 = vunpack.c.h.b16 %v3096
  %v3267 = vunpack.c.l.b16 %v3097
  %v3268 = vunpack.c.h.b16 %v3097
  %v3269 = vunpack.c.l.b16 %v3098
  %v3270 = vunpack.c.h.b16 %v3098
  %v3271 = vunpack.c.l.b16 %v3099
  %v3272 = vunpack.c.h.b16 %v3099
  %v3273 = vunpack.c.l.b16 %v3100
  %v3274 = vunpack.c.h.b16 %v3100
  %v3275 = vunpack.c.l.b16 %v3101
  %v3276 = vunpack.c.h.b16 %v3101
  %v3277 = vunpack.c.l.b16 %v3102
  %v3278 = vunpack.c.h.b16 %v3102
  %v3279 = vunpack.c.l.b16 %v3103
  %v3280 = vunpack.c.h.b16 %v3103
  %v3281 = vunpack.c.l.b16 %v3104
  %v3282 = vunpack.c.h.b16 %v3104
  %v3283 = vunpack.c.l.b16 %v3105
  %v3284 = vunpack.c.h.b16 %v3105
  %v3285 = vunpack.c.l.b16 %v3106
  %v3286 = vunpack.c.h.b16 %v3106
  %v3287 = vunpack.c.l.b16 %v3107
  %v3288 = vunpack.c.h.b16 %v3107
  %v3289 = vunpack.c.l.b16 %v3108
  %v3290 = vunpack.c.h.b16 %v3108
  %v3291 = vunpack.c.l.b16 %v3109
  %v3292 = vunpack.c.h.b16 %v3109
  %v3293 = vunpack.c.l.b16 %v3110
  %v3294 = vunpack.c.h.b16 %v3110
  %v3295 = vunpack.c.l.b16 %v3111
  %v3296 = vunpack.c.h.b16 %v3111
  %v3297 = vunpack.c.l.b16 %v3112
  %v3298 = vunpack.c.h.b16 %v3112
  %v3299 = vunpack.c.l.b16 %v3113
  %v3300 = vunpack.c.h.b16 %v3113
  %v3301 = vunpack.c.l.b16 %v3114
  %v3302 = vunpack.c.h.b16 %v3114
  %v3303 = vunpack.c.l.b16 %v3115
  %v3304 = vunpack.c.h.b16 %v3115
  %v3305 = vunpack.c.l.b16 %v3116
  %v3306 = vunpack.c.h.b16 %v3116
  %v3307 = vunpack.c.l.b16 %v3117
  %v3308 = vunpack.c.h.b16 %v3117
  %v3309 = vunpack.c.l.b16 %v3118
  %v3310 = vunpack.c.h.b16 %v3118
  %v3311 = vunpack.c.l.b16 %v3119
  %v3312 = vunpack.c.h.b16 %v3119
  %v3313 = vunpack.c.l.b16 %v3120
  %v3314 = vunpack.c.h.b16 %v3120
  %v3315 = vunpack.c.l.b16 %v3121
  %v3316 = vunpack.c.h.b16 %v3121
  %v3317 = vunpack.c.l.b16 %v3122
  %v3318 = vunpack.c.h.b16 %v3122
  %v3319 = vunpack.c.l.b16 %v3123
  %v3320 = vunpack.c.h.b16 %v3123
  %v3321 = vunpack.c.l.b16 %v3124
  %v3322 = vunpack.c.h.b16 %v3124
  %v3323 = vpack.c.b16 %v3203, %v3195
  %v3324 = vpack.c.b16 %v3204, %v3196
  %v3325 = vpack.c.b16 %v3205, %v3197
  %v3326 = vpack.c.b16 %v3206, %v3198
  %v3327 = vpack.c.b16 %v3207, %v3199
  %v3328 = vpack.c.b16 %v3208, %v3200
  %v3329 = vpack.c.b16 %v3209, %v3201
  %v3330 = vpack.c.b16 %v3210, %v3202
  %v3331 = vpack.c.b16 %v3219, %v3211
  %v3332 = vpack.c.b16 %v3220, %v3212
  %v3333 = vpack.c.b16 %v3221, %v3213
  %v3334 = vpack.c.b16 %v3222, %v3214
  %v3335 = vpack.c.b16 %v3223, %v3215
  %v3336 = vpack.c.b16 %v3224, %v3216
  %v3337 = vpack.c.b16 %v3225, %v3217
  %v3338 = vpack.c.b16 %v3226, %v3218
  %v3339 = vpack.c.b16 %v3235, %v3227
  %v3340 = vpack.c.b16 %v3236, %v3228
  %v3341 = vpack.c.b16 %v3237, %v3229
  %v3342 = vpack.c.b16 %v3238, %v3230
  %v3343 = vpack.c.b16 %v3239, %v3231
  %v3344 = vpack.c.b16 %v3240, %v3232
  %v3345 = vpack.c.b16 %v3241, %v3233
  %v3346 = vpack.c.b16 %v3242, %v3234
  %v3347 = vpack.c.b16 %v3251, %v3243
  %v3348 = vpack.c.b16 %v3252, %v3244
  %v3349 = vpack.c.b16 %v3253, %v3245
  %v3350 = vpack.c.b16 %v3254, %v3246
  %v3351 = vpack.c.b16 %v3255, %v3247
  %v3352 = vpack.c.b16 %v3256, %v3248
  %v3353 = vpack.c.b16 %v3257, %v3249
  %v3354 = vpack.c.b16 %v3258, %v3250
  %v3355 = vpack.c.b16 %v3267, %v3259
  %v3356 = vpack.c.b16 %v3268, %v3260
  %v3357 = vpack.c.b16 %v3269, %v3261
  %v3358 = vpack.c.b16 %v3270, %v3262
  %v3359 = vpack.c.b16 %v3271, %v3263
  %v3360 = vpack.c.b16 %v3272, %v3264
  %v3361 = vpack.c.b16 %v3273, %v3265
  %v3362 = vpack.c.b16 %v3274, %v3266
  %v3363 = vpack.c.b16 %v3283, %v3275
  %v3364 = vpack.c.b16 %v3284, %v3276
  %v3365 = vpack.c.b16 %v3285, %v3277
  %v3366 = vpack.c.b16 %v3286, %v3278
  %v3367 = vpack.c.b16 %v3287, %v3279
  %v3368 = vpack.c.b16 %v3288, %v3280
  %v3369 = vpack.c.b16 %v3289, %v3281
  %v3370 = vpack.c.b16 %v3290, %v3282
  %v3371 = vpack.c.b16 %v3299, %v3291
  %v3372 = vpack.c.b16 %v3300, %v3292
  %v3373 = vpack.c.b16 %v3301, %v3293
  %v3374 = vpack.c.b16 %v3302, %v3294
  %v3375 = vpack.c.b16 %v3303, %v3295
  %v3376 = vpack.c.b16 %v3304, %v3296
  %v3377 = vpack.c.b16 %v3305, %v3297
  %v3378 = vpack.c.b16 %v3306, %v3298
  %v3379 = vpack.c.b16 %v3315, %v3307
  %v3380 = vpack.c.b16 %v3316, %v3308
  %v3381 = vpack.c.b16 %v3317, %v3309
  %v3382 = vpack.c.b16 %v3318, %v3310
  %v3383 = vpack.c.b16 %v3319, %v3311
  %v3384 = vpack.c.b16 %v3320, %v3312
  %v3385 = vpack.c.b16 %v3321, %v3313
  %v3386 = vpack.c.b16 %v3322, %v3314
  %3451 = vmatprep.subr.bf16.mxu0 %v3380
  %3452 = vmatpush1.bf16.msra.mxu0 %v3379
  %3453 = vmatprep.subr.bf16.mxu0 %v3372
  %3454 = vmatpush1.bf16.msra.mxu0 %v3371
  %3455 = vmatprep.subr.bf16.mxu0 %v3364
  %3456 = vmatpush1.bf16.msra.mxu0 %v3363
  %3457 = vmatprep.subr.bf16.mxu0 %v3356
  %3458 = vmatpush1.bf16.msra.mxu0 %v3355
  %3459 = vmatprep.subr.bf16.mxu0 %v3348
  %3460 = vmatpush1.bf16.msra.mxu0 %v3347
  %3461 = vmatprep.subr.bf16.mxu0 %v3340
  %3462 = vmatpush1.bf16.msra.mxu0 %v3339
  %3463 = vmatprep.subr.bf16.mxu0 %v3332
  %3464 = vmatpush1.bf16.msra.mxu0 %v3331
  %3465 = vmatprep.subr.bf16.mxu0 %v3324
  %3466 = vmatpush1.bf16.msra.mxu0 %v3323
  %3467 = vmatprep.subr.bf16.mxu0 0
  %3468 = vmatpush2.bf16.msra.mxu0 0
  %3469 = vmatprep.subr.bf16.mxu0 0
  %3470 = vmatpush2.bf16.msra.mxu0 0
  %3471 = vmatprep.subr.bf16.mxu0 0
  %3472 = vmatpush2.bf16.msra.mxu0 0
  %3473 = vmatprep.subr.bf16.mxu0 0
  %3474 = vmatpush2.bf16.msra.mxu0 0
  %3475 = vmatprep.subr.bf16.mxu0 0
  %3476 = vmatpush2.bf16.msra.mxu0 0
  %3477 = vmatprep.subr.bf16.mxu0 0
  %3478 = vmatpush2.bf16.msra.mxu0 0
  %3479 = vmatprep.subr.bf16.mxu0 0
  %3480 = vmatpush2.bf16.msra.mxu0 0
  %3481 = vmatprep.subr.bf16.mxu0 0
  %3482 = vmatpush2.bf16.msra.mxu0 0
  %3483 = vmatprep.mubr.bf16.mxu0 0
  %3484 = vmatmul.mubr.bf16.gmra.mxu0 %v3129
  %v3485 = vpop.f32.mrf.mxu0
  %v3486 = vadd.f32 0.0, %v3485
  %v3487 = vpop.f32.mrf.mxu0
  %v3488 = vadd.f32 0.0, %v3487
  %v3489 = vpop.f32.mrf.mxu0
  %v3490 = vadd.f32 0.0, %v3489
  %v3491 = vpop.f32.mrf.mxu0
  %v3492 = vadd.f32 0.0, %v3491
  %3493 = vdwg.mxu0
  %3494 = vmatprep.subr.bf16.mxu0 %v3382
  %3495 = vmatpush1.bf16.msra.mxu0 %v3381
  %3496 = vmatprep.subr.bf16.mxu0 %v3374
  %3497 = vmatpush1.bf16.msra.mxu0 %v3373
  %3498 = vmatprep.subr.bf16.mxu0 %v3366
  %3499 = vmatpush1.bf16.msra.mxu0 %v3365
  %3500 = vmatprep.subr.bf16.mxu0 %v3358
  %3501 = vmatpush1.bf16.msra.mxu0 %v3357
  %3502 = vmatprep.subr.bf16.mxu0 %v3350
  %3503 = vmatpush1.bf16.msra.mxu0 %v3349
  %3504 = vmatprep.subr.bf16.mxu0 %v3342
  %3505 = vmatpush1.bf16.msra.mxu0 %v3341
  %3506 = vmatprep.subr.bf16.mxu0 %v3334
  %3507 = vmatpush1.bf16.msra.mxu0 %v3333
  %3508 = vmatprep.subr.bf16.mxu0 %v3326
  %3509 = vmatpush1.bf16.msra.mxu0 %v3325
  %3510 = vmatprep.subr.bf16.mxu0 0
  %3511 = vmatpush2.bf16.msra.mxu0 0
  %3512 = vmatprep.subr.bf16.mxu0 0
  %3513 = vmatpush2.bf16.msra.mxu0 0
  %3514 = vmatprep.subr.bf16.mxu0 0
  %3515 = vmatpush2.bf16.msra.mxu0 0
  %3516 = vmatprep.subr.bf16.mxu0 0
  %3517 = vmatpush2.bf16.msra.mxu0 0
  %3518 = vmatprep.subr.bf16.mxu0 0
  %3519 = vmatpush2.bf16.msra.mxu0 0
  %3520 = vmatprep.subr.bf16.mxu0 0
  %3521 = vmatpush2.bf16.msra.mxu0 0
  %3522 = vmatprep.subr.bf16.mxu0 0
  %3523 = vmatpush2.bf16.msra.mxu0 0
  %3524 = vmatprep.subr.bf16.mxu0 0
  %3525 = vmatpush2.bf16.msra.mxu0 0
  %3526 = vmatprep.mubr.bf16.mxu0 0
  %3527 = vmatmul.mubr.bf16.gmra.mxu0 %v3129
  %v3528 = vpop.f32.mrf.mxu0
  %v3529 = vadd.f32 0.0, %v3528
  %v3530 = vpop.f32.mrf.mxu0
  %v3531 = vadd.f32 0.0, %v3530
  %v3532 = vpop.f32.mrf.mxu0
  %v3533 = vadd.f32 0.0, %v3532
  %v3534 = vpop.f32.mrf.mxu0
  %v3535 = vadd.f32 0.0, %v3534
  %3536 = vdwg.mxu0
  %3537 = vmatprep.subr.bf16.mxu0 %v3384
  %3538 = vmatpush1.bf16.msra.mxu0 %v3383
  %3539 = vmatprep.subr.bf16.mxu0 %v3376
  %3540 = vmatpush1.bf16.msra.mxu0 %v3375
  %3541 = vmatprep.subr.bf16.mxu0 %v3368
  %3542 = vmatpush1.bf16.msra.mxu0 %v3367
  %3543 = vmatprep.subr.bf16.mxu0 %v3360
  %3544 = vmatpush1.bf16.msra.mxu0 %v3359
  %3545 = vmatprep.subr.bf16.mxu0 %v3352
  %3546 = vmatpush1.bf16.msra.mxu0 %v3351
  %3547 = vmatprep.subr.bf16.mxu0 %v3344
  %3548 = vmatpush1.bf16.msra.mxu0 %v3343
  %3549 = vmatprep.subr.bf16.mxu0 %v3336
  %3550 = vmatpush1.bf16.msra.mxu0 %v3335
  %3551 = vmatprep.subr.bf16.mxu0 %v3328
  %3552 = vmatpush1.bf16.msra.mxu0 %v3327
  %3553 = vmatprep.subr.bf16.mxu0 0
  %3554 = vmatpush2.bf16.msra.mxu0 0
  %3555 = vmatprep.subr.bf16.mxu0 0
  %3556 = vmatpush2.bf16.msra.mxu0 0
  %3557 = vmatprep.subr.bf16.mxu0 0
  %3558 = vmatpush2.bf16.msra.mxu0 0
  %3559 = vmatprep.subr.bf16.mxu0 0
  %3560 = vmatpush2.bf16.msra.mxu0 0
  %3561 = vmatprep.subr.bf16.mxu0 0
  %3562 = vmatpush2.bf16.msra.mxu0 0
  %3563 = vmatprep.subr.bf16.mxu0 0
  %3564 = vmatpush2.bf16.msra.mxu0 0
  %3565 = vmatprep.subr.bf16.mxu0 0
  %3566 = vmatpush2.bf16.msra.mxu0 0
  %3567 = vmatprep.subr.bf16.mxu0 0
  %3568 = vmatpush2.bf16.msra.mxu0 0
  %3569 = vmatprep.mubr.bf16.mxu0 0
  %3570 = vmatmul.mubr.bf16.gmra.mxu0 %v3129
  %v3571 = vpop.f32.mrf.mxu0
  %v3572 = vadd.f32 0.0, %v3571
  %v3573 = vpop.f32.mrf.mxu0
  %v3574 = vadd.f32 0.0, %v3573
  %v3575 = vpop.f32.mrf.mxu0
  %v3576 = vadd.f32 0.0, %v3575
  %v3577 = vpop.f32.mrf.mxu0
  %v3578 = vadd.f32 0.0, %v3577
  %3579 = vdwg.mxu0
  %3580 = vmatprep.subr.bf16.mxu0 %v3386
  %3581 = vmatpush1.bf16.msra.mxu0 %v3385
  %3582 = vmatprep.subr.bf16.mxu0 %v3378
  %3583 = vmatpush1.bf16.msra.mxu0 %v3377
  %3584 = vmatprep.subr.bf16.mxu0 %v3370
  %3585 = vmatpush1.bf16.msra.mxu0 %v3369
  %3586 = vmatprep.subr.bf16.mxu0 %v3362
  %3587 = vmatpush1.bf16.msra.mxu0 %v3361
  %3588 = vmatprep.subr.bf16.mxu0 %v3354
  %3589 = vmatpush1.bf16.msra.mxu0 %v3353
  %3590 = vmatprep.subr.bf16.mxu0 %v3346
  %3591 = vmatpush1.bf16.msra.mxu0 %v3345
  %3592 = vmatprep.subr.bf16.mxu0 %v3338
  %3593 = vmatpush1.bf16.msra.mxu0 %v3337
  %3594 = vmatprep.subr.bf16.mxu0 %v3330
  %3595 = vmatpush1.bf16.msra.mxu0 %v3329
  %3596 = vmatprep.subr.bf16.mxu0 0
  %3597 = vmatpush2.bf16.msra.mxu0 0
  %3598 = vmatprep.subr.bf16.mxu0 0
  %3599 = vmatpush2.bf16.msra.mxu0 0
  %3600 = vmatprep.subr.bf16.mxu0 0
  %3601 = vmatpush2.bf16.msra.mxu0 0
  %3602 = vmatprep.subr.bf16.mxu0 0
  %3603 = vmatpush2.bf16.msra.mxu0 0
  %3604 = vmatprep.subr.bf16.mxu0 0
  %3605 = vmatpush2.bf16.msra.mxu0 0
  %3606 = vmatprep.subr.bf16.mxu0 0
  %3607 = vmatpush2.bf16.msra.mxu0 0
  %3608 = vmatprep.subr.bf16.mxu0 0
  %3609 = vmatpush2.bf16.msra.mxu0 0
  %3610 = vmatprep.subr.bf16.mxu0 0
  %3611 = vmatpush2.bf16.msra.mxu0 0
  %3612 = vmatprep.mubr.bf16.mxu0 0
  %3613 = vmatmul.mubr.bf16.gmra.mxu0 %v3129
  %v3614 = vpop.f32.mrf.mxu0
  %v3615 = vadd.f32 0.0, %v3614
  %v3616 = vpop.f32.mrf.mxu0
  %v3617 = vadd.f32 0.0, %v3616
  %v3618 = vpop.f32.mrf.mxu0
  %v3619 = vadd.f32 0.0, %v3618
  %v3620 = vpop.f32.mrf.mxu0
  %v3621 = vadd.f32 0.0, %v3620
  %3622 = vdwg.mxu0
  %v3623 = vadd.f32 %v3043, %v3486
  %v3624 = vadd.f32 %v3044, %v3488
  %v3625 = vadd.f32 %v3045, %v3529
  %v3626 = vadd.f32 %v3046, %v3531
  %v3627 = vadd.f32 %v3047, %v3572
  %v3628 = vadd.f32 %v3048, %v3574
  %v3629 = vadd.f32 %v3049, %v3615
  %v3630 = vadd.f32 %v3050, %v3617
  %v3631 = vadd.f32 %v3051, %v3490
  %v3632 = vadd.f32 %v3052, %v3492
  %v3633 = vadd.f32 %v3053, %v3533
  %v3634 = vadd.f32 %v3054, %v3535
  %v3635 = vadd.f32 %v3055, %v3576
  %v3636 = vadd.f32 %v3056, %v3578
  %v3637 = vadd.f32 %v3057, %v3619
  %v3638 = vadd.f32 %v3058, %v3621
  %3639 = vst [vmem:[#allocation3] sm:$0xff] %v3623
  %3640 = vst [vmem:[#allocation3 + $0x8] sm:$0xff] %v3624
  %3641 = vst [vmem:[#allocation3 + $0x10] sm:$0xff] %v3625
  %3642 = vst [vmem:[#allocation3 + $0x18] sm:$0xff] %v3626
  %3643 = vst [vmem:[#allocation3 + $0x20] sm:$0xff] %v3627
  %3644 = vst [vmem:[#allocation3 + $0x28] sm:$0xff] %v3628
  %3645 = vst [vmem:[#allocation3 + $0x30] sm:$0xff] %v3629
  %3646 = vst [vmem:[#allocation3 + $0x38] sm:$0xff] %v3630
  %3647 = vst [vmem:[#allocation3 + $0x40] sm:$0xff] %v3631
  %3648 = vst [vmem:[#allocation3 + $0x48] sm:$0xff] %v3632
  %3649 = vst [vmem:[#allocation3 + $0x50] sm:$0xff] %v3633
  %3650 = vst [vmem:[#allocation3 + $0x58] sm:$0xff] %v3634
  %3651 = vst [vmem:[#allocation3 + $0x60] sm:$0xff] %v3635
  %3652 = vst [vmem:[#allocation3 + $0x68] sm:$0xff] %v3636
  %3653 = vst [vmem:[#allocation3 + $0x70] sm:$0xff] %v3637
  %3654 = vst [vmem:[#allocation3 + $0x78] sm:$0xff] %v3638
  %v3655 = vld [vmem:[#allocation3] sm:$0xff]
  %v3656 = vld [vmem:[#allocation3 + $0x8] sm:$0xff]
  %v3657 = vld [vmem:[#allocation3 + $0x10] sm:$0xff]
  %v3658 = vld [vmem:[#allocation3 + $0x18] sm:$0xff]
  %v3659 = vld [vmem:[#allocation3 + $0x20] sm:$0xff]
  %v3660 = vld [vmem:[#allocation3 + $0x28] sm:$0xff]
  %v3661 = vld [vmem:[#allocation3 + $0x30] sm:$0xff]
  %v3662 = vld [vmem:[#allocation3 + $0x38] sm:$0xff]
  %v3663 = vld [vmem:[#allocation3 + $0x40] sm:$0xff]
  %v3664 = vld [vmem:[#allocation3 + $0x48] sm:$0xff]
  %v3665 = vld [vmem:[#allocation3 + $0x50] sm:$0xff]
  %v3666 = vld [vmem:[#allocation3 + $0x58] sm:$0xff]
  %v3667 = vld [vmem:[#allocation3 + $0x60] sm:$0xff]
  %v3668 = vld [vmem:[#allocation3 + $0x68] sm:$0xff]
  %v3669 = vld [vmem:[#allocation3 + $0x70] sm:$0xff]
  %v3670 = vld [vmem:[#allocation3 + $0x78] sm:$0xff]
  %v3671 = vld [vmem:[#allocation2 + $0x28] sm:$0xf]
  %v3672 = vld [vmem:[#allocation2 + $0x2c] sm:$0xf]
  %v3673 = vld [vmem:[%s3 + $0xa00] sm:$0xff]
  %v3674 = vld [vmem:[%s3 + $0xa08] sm:$0xff]
  %v3675 = vld [vmem:[%s3 + $0xa10] sm:$0xff]
  %v3676 = vld [vmem:[%s3 + $0xa18] sm:$0xff]
  %v3677 = vld [vmem:[%s3 + $0xa20] sm:$0xff]
  %v3678 = vld [vmem:[%s3 + $0xa28] sm:$0xff]
  %v3679 = vld [vmem:[%s3 + $0xa30] sm:$0xff]
  %v3680 = vld [vmem:[%s3 + $0xa38] sm:$0xff]
  %v3681 = vld [vmem:[%s3 + $0xa40] sm:$0xff]
  %v3682 = vld [vmem:[%s3 + $0xa48] sm:$0xff]
  %v3683 = vld [vmem:[%s3 + $0xa50] sm:$0xff]
  %v3684 = vld [vmem:[%s3 + $0xa58] sm:$0xff]
  %v3685 = vld [vmem:[%s3 + $0xa60] sm:$0xff]
  %v3686 = vld [vmem:[%s3 + $0xa68] sm:$0xff]
  %v3687 = vld [vmem:[%s3 + $0xa70] sm:$0xff]
  %v3688 = vld [vmem:[%s3 + $0xa78] sm:$0xff]
  %v3689 = vld [vmem:[%s3 + $0xa80] sm:$0xff]
  %v3690 = vld [vmem:[%s3 + $0xa88] sm:$0xff]
  %v3691 = vld [vmem:[%s3 + $0xa90] sm:$0xff]
  %v3692 = vld [vmem:[%s3 + $0xa98] sm:$0xff]
  %v3693 = vld [vmem:[%s3 + $0xaa0] sm:$0xff]
  %v3694 = vld [vmem:[%s3 + $0xaa8] sm:$0xff]
  %v3695 = vld [vmem:[%s3 + $0xab0] sm:$0xff]
  %v3696 = vld [vmem:[%s3 + $0xab8] sm:$0xff]
  %v3697 = vld [vmem:[%s3 + $0xac0] sm:$0xff]
  %v3698 = vld [vmem:[%s3 + $0xac8] sm:$0xff]
  %v3699 = vld [vmem:[%s3 + $0xad0] sm:$0xff]
  %v3700 = vld [vmem:[%s3 + $0xad8] sm:$0xff]
  %v3701 = vld [vmem:[%s3 + $0xae0] sm:$0xff]
  %v3702 = vld [vmem:[%s3 + $0xae8] sm:$0xff]
  %v3703 = vld [vmem:[%s3 + $0xaf0] sm:$0xff]
  %v3704 = vld [vmem:[%s3 + $0xaf8] sm:$0xff]
  %v3705 = vld [vmem:[%s3 + $0xb00] sm:$0xff]
  %v3706 = vld [vmem:[%s3 + $0xb08] sm:$0xff]
  %v3707 = vld [vmem:[%s3 + $0xb10] sm:$0xff]
  %v3708 = vld [vmem:[%s3 + $0xb18] sm:$0xff]
  %v3709 = vld [vmem:[%s3 + $0xb20] sm:$0xff]
  %v3710 = vld [vmem:[%s3 + $0xb28] sm:$0xff]
  %v3711 = vld [vmem:[%s3 + $0xb30] sm:$0xff]
  %v3712 = vld [vmem:[%s3 + $0xb38] sm:$0xff]
  %v3713 = vld [vmem:[%s3 + $0xb40] sm:$0xff]
  %v3714 = vld [vmem:[%s3 + $0xb48] sm:$0xff]
  %v3715 = vld [vmem:[%s3 + $0xb50] sm:$0xff]
  %v3716 = vld [vmem:[%s3 + $0xb58] sm:$0xff]
  %v3717 = vld [vmem:[%s3 + $0xb60] sm:$0xff]
  %v3718 = vld [vmem:[%s3 + $0xb68] sm:$0xff]
  %v3719 = vld [vmem:[%s3 + $0xb70] sm:$0xff]
  %v3720 = vld [vmem:[%s3 + $0xb78] sm:$0xff]
  %v3721 = vld [vmem:[%s3 + $0xb80] sm:$0xff]
  %v3722 = vld [vmem:[%s3 + $0xb88] sm:$0xff]
  %v3723 = vld [vmem:[%s3 + $0xb90] sm:$0xff]
  %v3724 = vld [vmem:[%s3 + $0xb98] sm:$0xff]
  %v3725 = vld [vmem:[%s3 + $0xba0] sm:$0xff]
  %v3726 = vld [vmem:[%s3 + $0xba8] sm:$0xff]
  %v3727 = vld [vmem:[%s3 + $0xbb0] sm:$0xff]
  %v3728 = vld [vmem:[%s3 + $0xbb8] sm:$0xff]
  %v3729 = vld [vmem:[%s3 + $0xbc0] sm:$0xff]
  %v3730 = vld [vmem:[%s3 + $0xbc8] sm:$0xff]
  %v3731 = vld [vmem:[%s3 + $0xbd0] sm:$0xff]
  %v3732 = vld [vmem:[%s3 + $0xbd8] sm:$0xff]
  %v3733 = vld [vmem:[%s3 + $0xbe0] sm:$0xff]
  %v3734 = vld [vmem:[%s3 + $0xbe8] sm:$0xff]
  %v3735 = vld [vmem:[%s3 + $0xbf0] sm:$0xff]
  %v3736 = vld [vmem:[%s3 + $0xbf8] sm:$0xff]
  %v3739 = vunpack.c.l.b16 %v3671
  %v3740 = vunpack.c.l.b16 %v3672
  %v3741 = vpack.c.b16 %v3740, %v3739
  %v3807 = vunpack.c.l.b16 %v3673
  %v3808 = vunpack.c.h.b16 %v3673
  %v3809 = vunpack.c.l.b16 %v3674
  %v3810 = vunpack.c.h.b16 %v3674
  %v3811 = vunpack.c.l.b16 %v3675
  %v3812 = vunpack.c.h.b16 %v3675
  %v3813 = vunpack.c.l.b16 %v3676
  %v3814 = vunpack.c.h.b16 %v3676
  %v3815 = vunpack.c.l.b16 %v3677
  %v3816 = vunpack.c.h.b16 %v3677
  %v3817 = vunpack.c.l.b16 %v3678
  %v3818 = vunpack.c.h.b16 %v3678
  %v3819 = vunpack.c.l.b16 %v3679
  %v3820 = vunpack.c.h.b16 %v3679
  %v3821 = vunpack.c.l.b16 %v3680
  %v3822 = vunpack.c.h.b16 %v3680
  %v3823 = vunpack.c.l.b16 %v3681
  %v3824 = vunpack.c.h.b16 %v3681
  %v3825 = vunpack.c.l.b16 %v3682
  %v3826 = vunpack.c.h.b16 %v3682
  %v3827 = vunpack.c.l.b16 %v3683
  %v3828 = vunpack.c.h.b16 %v3683
  %v3829 = vunpack.c.l.b16 %v3684
  %v3830 = vunpack.c.h.b16 %v3684
  %v3831 = vunpack.c.l.b16 %v3685
  %v3832 = vunpack.c.h.b16 %v3685
  %v3833 = vunpack.c.l.b16 %v3686
  %v3834 = vunpack.c.h.b16 %v3686
  %v3835 = vunpack.c.l.b16 %v3687
  %v3836 = vunpack.c.h.b16 %v3687
  %v3837 = vunpack.c.l.b16 %v3688
  %v3838 = vunpack.c.h.b16 %v3688
  %v3839 = vunpack.c.l.b16 %v3689
  %v3840 = vunpack.c.h.b16 %v3689
  %v3841 = vunpack.c.l.b16 %v3690
  %v3842 = vunpack.c.h.b16 %v3690
  %v3843 = vunpack.c.l.b16 %v3691
  %v3844 = vunpack.c.h.b16 %v3691
  %v3845 = vunpack.c.l.b16 %v3692
  %v3846 = vunpack.c.h.b16 %v3692
  %v3847 = vunpack.c.l.b16 %v3693
  %v3848 = vunpack.c.h.b16 %v3693
  %v3849 = vunpack.c.l.b16 %v3694
  %v3850 = vunpack.c.h.b16 %v3694
  %v3851 = vunpack.c.l.b16 %v3695
  %v3852 = vunpack.c.h.b16 %v3695
  %v3853 = vunpack.c.l.b16 %v3696
  %v3854 = vunpack.c.h.b16 %v3696
  %v3855 = vunpack.c.l.b16 %v3697
  %v3856 = vunpack.c.h.b16 %v3697
  %v3857 = vunpack.c.l.b16 %v3698
  %v3858 = vunpack.c.h.b16 %v3698
  %v3859 = vunpack.c.l.b16 %v3699
  %v3860 = vunpack.c.h.b16 %v3699
  %v3861 = vunpack.c.l.b16 %v3700
  %v3862 = vunpack.c.h.b16 %v3700
  %v3863 = vunpack.c.l.b16 %v3701
  %v3864 = vunpack.c.h.b16 %v3701
  %v3865 = vunpack.c.l.b16 %v3702
  %v3866 = vunpack.c.h.b16 %v3702
  %v3867 = vunpack.c.l.b16 %v3703
  %v3868 = vunpack.c.h.b16 %v3703
  %v3869 = vunpack.c.l.b16 %v3704
  %v3870 = vunpack.c.h.b16 %v3704
  %v3871 = vunpack.c.l.b16 %v3705
  %v3872 = vunpack.c.h.b16 %v3705
  %v3873 = vunpack.c.l.b16 %v3706
  %v3874 = vunpack.c.h.b16 %v3706
  %v3875 = vunpack.c.l.b16 %v3707
  %v3876 = vunpack.c.h.b16 %v3707
  %v3877 = vunpack.c.l.b16 %v3708
  %v3878 = vunpack.c.h.b16 %v3708
  %v3879 = vunpack.c.l.b16 %v3709
  %v3880 = vunpack.c.h.b16 %v3709
  %v3881 = vunpack.c.l.b16 %v3710
  %v3882 = vunpack.c.h.b16 %v3710
  %v3883 = vunpack.c.l.b16 %v3711
  %v3884 = vunpack.c.h.b16 %v3711
  %v3885 = vunpack.c.l.b16 %v3712
  %v3886 = vunpack.c.h.b16 %v3712
  %v3887 = vunpack.c.l.b16 %v3713
  %v3888 = vunpack.c.h.b16 %v3713
  %v3889 = vunpack.c.l.b16 %v3714
  %v3890 = vunpack.c.h.b16 %v3714
  %v3891 = vunpack.c.l.b16 %v3715
  %v3892 = vunpack.c.h.b16 %v3715
  %v3893 = vunpack.c.l.b16 %v3716
  %v3894 = vunpack.c.h.b16 %v3716
  %v3895 = vunpack.c.l.b16 %v3717
  %v3896 = vunpack.c.h.b16 %v3717
  %v3897 = vunpack.c.l.b16 %v3718
  %v3898 = vunpack.c.h.b16 %v3718
  %v3899 = vunpack.c.l.b16 %v3719
  %v3900 = vunpack.c.h.b16 %v3719
  %v3901 = vunpack.c.l.b16 %v3720
  %v3902 = vunpack.c.h.b16 %v3720
  %v3903 = vunpack.c.l.b16 %v3721
  %v3904 = vunpack.c.h.b16 %v3721
  %v3905 = vunpack.c.l.b16 %v3722
  %v3906 = vunpack.c.h.b16 %v3722
  %v3907 = vunpack.c.l.b16 %v3723
  %v3908 = vunpack.c.h.b16 %v3723
  %v3909 = vunpack.c.l.b16 %v3724
  %v3910 = vunpack.c.h.b16 %v3724
  %v3911 = vunpack.c.l.b16 %v3725
  %v3912 = vunpack.c.h.b16 %v3725
  %v3913 = vunpack.c.l.b16 %v3726
  %v3914 = vunpack.c.h.b16 %v3726
  %v3915 = vunpack.c.l.b16 %v3727
  %v3916 = vunpack.c.h.b16 %v3727
  %v3917 = vunpack.c.l.b16 %v3728
  %v3918 = vunpack.c.h.b16 %v3728
  %v3919 = vunpack.c.l.b16 %v3729
  %v3920 = vunpack.c.h.b16 %v3729
  %v3921 = vunpack.c.l.b16 %v3730
  %v3922 = vunpack.c.h.b16 %v3730
  %v3923 = vunpack.c.l.b16 %v3731
  %v3924 = vunpack.c.h.b16 %v3731
  %v3925 = vunpack.c.l.b16 %v3732
  %v3926 = vunpack.c.h.b16 %v3732
  %v3927 = vunpack.c.l.b16 %v3733
  %v3928 = vunpack.c.h.b16 %v3733
  %v3929 = vunpack.c.l.b16 %v3734
  %v3930 = vunpack.c.h.b16 %v3734
  %v3931 = vunpack.c.l.b16 %v3735
  %v3932 = vunpack.c.h.b16 %v3735
  %v3933 = vunpack.c.l.b16 %v3736
  %v3934 = vunpack.c.h.b16 %v3736
  %v3935 = vpack.c.b16 %v3815, %v3807
  %v3936 = vpack.c.b16 %v3816, %v3808
  %v3937 = vpack.c.b16 %v3817, %v3809
  %v3938 = vpack.c.b16 %v3818, %v3810
  %v3939 = vpack.c.b16 %v3819, %v3811
  %v3940 = vpack.c.b16 %v3820, %v3812
  %v3941 = vpack.c.b16 %v3821, %v3813
  %v3942 = vpack.c.b16 %v3822, %v3814
  %v3943 = vpack.c.b16 %v3831, %v3823
  %v3944 = vpack.c.b16 %v3832, %v3824
  %v3945 = vpack.c.b16 %v3833, %v3825
  %v3946 = vpack.c.b16 %v3834, %v3826
  %v3947 = vpack.c.b16 %v3835, %v3827
  %v3948 = vpack.c.b16 %v3836, %v3828
  %v3949 = vpack.c.b16 %v3837, %v3829
  %v3950 = vpack.c.b16 %v3838, %v3830
  %v3951 = vpack.c.b16 %v3847, %v3839
  %v3952 = vpack.c.b16 %v3848, %v3840
  %v3953 = vpack.c.b16 %v3849, %v3841
  %v3954 = vpack.c.b16 %v3850, %v3842
  %v3955 = vpack.c.b16 %v3851, %v3843
  %v3956 = vpack.c.b16 %v3852, %v3844
  %v3957 = vpack.c.b16 %v3853, %v3845
  %v3958 = vpack.c.b16 %v3854, %v3846
  %v3959 = vpack.c.b16 %v3863, %v3855
  %v3960 = vpack.c.b16 %v3864, %v3856
  %v3961 = vpack.c.b16 %v3865, %v3857
  %v3962 = vpack.c.b16 %v3866, %v3858
  %v3963 = vpack.c.b16 %v3867, %v3859
  %v3964 = vpack.c.b16 %v3868, %v3860
  %v3965 = vpack.c.b16 %v3869, %v3861
  %v3966 = vpack.c.b16 %v3870, %v3862
  %v3967 = vpack.c.b16 %v3879, %v3871
  %v3968 = vpack.c.b16 %v3880, %v3872
  %v3969 = vpack.c.b16 %v3881, %v3873
  %v3970 = vpack.c.b16 %v3882, %v3874
  %v3971 = vpack.c.b16 %v3883, %v3875
  %v3972 = vpack.c.b16 %v3884, %v3876
  %v3973 = vpack.c.b16 %v3885, %v3877
  %v3974 = vpack.c.b16 %v3886, %v3878
  %v3975 = vpack.c.b16 %v3895, %v3887
  %v3976 = vpack.c.b16 %v3896, %v3888
  %v3977 = vpack.c.b16 %v3897, %v3889
  %v3978 = vpack.c.b16 %v3898, %v3890
  %v3979 = vpack.c.b16 %v3899, %v3891
  %v3980 = vpack.c.b16 %v3900, %v3892
  %v3981 = vpack.c.b16 %v3901, %v3893
  %v3982 = vpack.c.b16 %v3902, %v3894
  %v3983 = vpack.c.b16 %v3911, %v3903
  %v3984 = vpack.c.b16 %v3912, %v3904
  %v3985 = vpack.c.b16 %v3913, %v3905
  %v3986 = vpack.c.b16 %v3914, %v3906
  %v3987 = vpack.c.b16 %v3915, %v3907
  %v3988 = vpack.c.b16 %v3916, %v3908
  %v3989 = vpack.c.b16 %v3917, %v3909
  %v3990 = vpack.c.b16 %v3918, %v3910
  %v3991 = vpack.c.b16 %v3927, %v3919
  %v3992 = vpack.c.b16 %v3928, %v3920
  %v3993 = vpack.c.b16 %v3929, %v3921
  %v3994 = vpack.c.b16 %v3930, %v3922
  %v3995 = vpack.c.b16 %v3931, %v3923
  %v3996 = vpack.c.b16 %v3932, %v3924
  %v3997 = vpack.c.b16 %v3933, %v3925
  %v3998 = vpack.c.b16 %v3934, %v3926
  %4063 = vmatprep.subr.bf16.mxu0 %v3992
  %4064 = vmatpush1.bf16.msra.mxu0 %v3991
  %4065 = vmatprep.subr.bf16.mxu0 %v3984
  %4066 = vmatpush1.bf16.msra.mxu0 %v3983
  %4067 = vmatprep.subr.bf16.mxu0 %v3976
  %4068 = vmatpush1.bf16.msra.mxu0 %v3975
  %4069 = vmatprep.subr.bf16.mxu0 %v3968
  %4070 = vmatpush1.bf16.msra.mxu0 %v3967
  %4071 = vmatprep.subr.bf16.mxu0 %v3960
  %4072 = vmatpush1.bf16.msra.mxu0 %v3959
  %4073 = vmatprep.subr.bf16.mxu0 %v3952
  %4074 = vmatpush1.bf16.msra.mxu0 %v3951
  %4075 = vmatprep.subr.bf16.mxu0 %v3944
  %4076 = vmatpush1.bf16.msra.mxu0 %v3943
  %4077 = vmatprep.subr.bf16.mxu0 %v3936
  %4078 = vmatpush1.bf16.msra.mxu0 %v3935
  %4079 = vmatprep.subr.bf16.mxu0 0
  %4080 = vmatpush2.bf16.msra.mxu0 0
  %4081 = vmatprep.subr.bf16.mxu0 0
  %4082 = vmatpush2.bf16.msra.mxu0 0
  %4083 = vmatprep.subr.bf16.mxu0 0
  %4084 = vmatpush2.bf16.msra.mxu0 0
  %4085 = vmatprep.subr.bf16.mxu0 0
  %4086 = vmatpush2.bf16.msra.mxu0 0
  %4087 = vmatprep.subr.bf16.mxu0 0
  %4088 = vmatpush2.bf16.msra.mxu0 0
  %4089 = vmatprep.subr.bf16.mxu0 0
  %4090 = vmatpush2.bf16.msra.mxu0 0
  %4091 = vmatprep.subr.bf16.mxu0 0
  %4092 = vmatpush2.bf16.msra.mxu0 0
  %4093 = vmatprep.subr.bf16.mxu0 0
  %4094 = vmatpush2.bf16.msra.mxu0 0
  %4095 = vmatprep.mubr.bf16.mxu0 0
  %4096 = vmatmul.mubr.bf16.gmra.mxu0 %v3741
  %v4097 = vpop.f32.mrf.mxu0
  %v4098 = vadd.f32 0.0, %v4097
  %v4099 = vpop.f32.mrf.mxu0
  %v4100 = vadd.f32 0.0, %v4099
  %v4101 = vpop.f32.mrf.mxu0
  %v4102 = vadd.f32 0.0, %v4101
  %v4103 = vpop.f32.mrf.mxu0
  %v4104 = vadd.f32 0.0, %v4103
  %4105 = vdwg.mxu0
  %4106 = vmatprep.subr.bf16.mxu0 %v3994
  %4107 = vmatpush1.bf16.msra.mxu0 %v3993
  %4108 = vmatprep.subr.bf16.mxu0 %v3986
  %4109 = vmatpush1.bf16.msra.mxu0 %v3985
  %4110 = vmatprep.subr.bf16.mxu0 %v3978
  %4111 = vmatpush1.bf16.msra.mxu0 %v3977
  %4112 = vmatprep.subr.bf16.mxu0 %v3970
  %4113 = vmatpush1.bf16.msra.mxu0 %v3969
  %4114 = vmatprep.subr.bf16.mxu0 %v3962
  %4115 = vmatpush1.bf16.msra.mxu0 %v3961
  %4116 = vmatprep.subr.bf16.mxu0 %v3954
  %4117 = vmatpush1.bf16.msra.mxu0 %v3953
  %4118 = vmatprep.subr.bf16.mxu0 %v3946
  %4119 = vmatpush1.bf16.msra.mxu0 %v3945
  %4120 = vmatprep.subr.bf16.mxu0 %v3938
  %4121 = vmatpush1.bf16.msra.mxu0 %v3937
  %4122 = vmatprep.subr.bf16.mxu0 0
  %4123 = vmatpush2.bf16.msra.mxu0 0
  %4124 = vmatprep.subr.bf16.mxu0 0
  %4125 = vmatpush2.bf16.msra.mxu0 0
  %4126 = vmatprep.subr.bf16.mxu0 0
  %4127 = vmatpush2.bf16.msra.mxu0 0
  %4128 = vmatprep.subr.bf16.mxu0 0
  %4129 = vmatpush2.bf16.msra.mxu0 0
  %4130 = vmatprep.subr.bf16.mxu0 0
  %4131 = vmatpush2.bf16.msra.mxu0 0
  %4132 = vmatprep.subr.bf16.mxu0 0
  %4133 = vmatpush2.bf16.msra.mxu0 0
  %4134 = vmatprep.subr.bf16.mxu0 0
  %4135 = vmatpush2.bf16.msra.mxu0 0
  %4136 = vmatprep.subr.bf16.mxu0 0
  %4137 = vmatpush2.bf16.msra.mxu0 0
  %4138 = vmatprep.mubr.bf16.mxu0 0
  %4139 = vmatmul.mubr.bf16.gmra.mxu0 %v3741
  %v4140 = vpop.f32.mrf.mxu0
  %v4141 = vadd.f32 0.0, %v4140
  %v4142 = vpop.f32.mrf.mxu0
  %v4143 = vadd.f32 0.0, %v4142
  %v4144 = vpop.f32.mrf.mxu0
  %v4145 = vadd.f32 0.0, %v4144
  %v4146 = vpop.f32.mrf.mxu0
  %v4147 = vadd.f32 0.0, %v4146
  %4148 = vdwg.mxu0
  %4149 = vmatprep.subr.bf16.mxu0 %v3996
  %4150 = vmatpush1.bf16.msra.mxu0 %v3995
  %4151 = vmatprep.subr.bf16.mxu0 %v3988
  %4152 = vmatpush1.bf16.msra.mxu0 %v3987
  %4153 = vmatprep.subr.bf16.mxu0 %v3980
  %4154 = vmatpush1.bf16.msra.mxu0 %v3979
  %4155 = vmatprep.subr.bf16.mxu0 %v3972
  %4156 = vmatpush1.bf16.msra.mxu0 %v3971
  %4157 = vmatprep.subr.bf16.mxu0 %v3964
  %4158 = vmatpush1.bf16.msra.mxu0 %v3963
  %4159 = vmatprep.subr.bf16.mxu0 %v3956
  %4160 = vmatpush1.bf16.msra.mxu0 %v3955
  %4161 = vmatprep.subr.bf16.mxu0 %v3948
  %4162 = vmatpush1.bf16.msra.mxu0 %v3947
  %4163 = vmatprep.subr.bf16.mxu0 %v3940
  %4164 = vmatpush1.bf16.msra.mxu0 %v3939
  %4165 = vmatprep.subr.bf16.mxu0 0
  %4166 = vmatpush2.bf16.msra.mxu0 0
  %4167 = vmatprep.subr.bf16.mxu0 0
  %4168 = vmatpush2.bf16.msra.mxu0 0
  %4169 = vmatprep.subr.bf16.mxu0 0
  %4170 = vmatpush2.bf16.msra.mxu0 0
  %4171 = vmatprep.subr.bf16.mxu0 0
  %4172 = vmatpush2.bf16.msra.mxu0 0
  %4173 = vmatprep.subr.bf16.mxu0 0
  %4174 = vmatpush2.bf16.msra.mxu0 0
  %4175 = vmatprep.subr.bf16.mxu0 0
  %4176 = vmatpush2.bf16.msra.mxu0 0
  %4177 = vmatprep.subr.bf16.mxu0 0
  %4178 = vmatpush2.bf16.msra.mxu0 0
  %4179 = vmatprep.subr.bf16.mxu0 0
  %4180 = vmatpush2.bf16.msra.mxu0 0
  %4181 = vmatprep.mubr.bf16.mxu0 0
  %4182 = vmatmul.mubr.bf16.gmra.mxu0 %v3741
  %v4183 = vpop.f32.mrf.mxu0
  %v4184 = vadd.f32 0.0, %v4183
  %v4185 = vpop.f32.mrf.mxu0
  %v4186 = vadd.f32 0.0, %v4185
  %v4187 = vpop.f32.mrf.mxu0
  %v4188 = vadd.f32 0.0, %v4187
  %v4189 = vpop.f32.mrf.mxu0
  %v4190 = vadd.f32 0.0, %v4189
  %4191 = vdwg.mxu0
  %4192 = vmatprep.subr.bf16.mxu0 %v3998
  %4193 = vmatpush1.bf16.msra.mxu0 %v3997
  %4194 = vmatprep.subr.bf16.mxu0 %v3990
  %4195 = vmatpush1.bf16.msra.mxu0 %v3989
  %4196 = vmatprep.subr.bf16.mxu0 %v3982
  %4197 = vmatpush1.bf16.msra.mxu0 %v3981
  %4198 = vmatprep.subr.bf16.mxu0 %v3974
  %4199 = vmatpush1.bf16.msra.mxu0 %v3973
  %4200 = vmatprep.subr.bf16.mxu0 %v3966
  %4201 = vmatpush1.bf16.msra.mxu0 %v3965
  %4202 = vmatprep.subr.bf16.mxu0 %v3958
  %4203 = vmatpush1.bf16.msra.mxu0 %v3957
  %4204 = vmatprep.subr.bf16.mxu0 %v3950
  %4205 = vmatpush1.bf16.msra.mxu0 %v3949
  %4206 = vmatprep.subr.bf16.mxu0 %v3942
  %4207 = vmatpush1.bf16.msra.mxu0 %v3941
  %4208 = vmatprep.subr.bf16.mxu0 0
  %4209 = vmatpush2.bf16.msra.mxu0 0
  %4210 = vmatprep.subr.bf16.mxu0 0
  %4211 = vmatpush2.bf16.msra.mxu0 0
  %4212 = vmatprep.subr.bf16.mxu0 0
  %4213 = vmatpush2.bf16.msra.mxu0 0
  %4214 = vmatprep.subr.bf16.mxu0 0
  %4215 = vmatpush2.bf16.msra.mxu0 0
  %4216 = vmatprep.subr.bf16.mxu0 0
  %4217 = vmatpush2.bf16.msra.mxu0 0
  %4218 = vmatprep.subr.bf16.mxu0 0
  %4219 = vmatpush2.bf16.msra.mxu0 0
  %4220 = vmatprep.subr.bf16.mxu0 0
  %4221 = vmatpush2.bf16.msra.mxu0 0
  %4222 = vmatprep.subr.bf16.mxu0 0
  %4223 = vmatpush2.bf16.msra.mxu0 0
  %4224 = vmatprep.mubr.bf16.mxu0 0
  %4225 = vmatmul.mubr.bf16.gmra.mxu0 %v3741
  %v4226 = vpop.f32.mrf.mxu0
  %v4227 = vadd.f32 0.0, %v4226
  %v4228 = vpop.f32.mrf.mxu0
  %v4229 = vadd.f32 0.0, %v4228
  %v4230 = vpop.f32.mrf.mxu0
  %v4231 = vadd.f32 0.0, %v4230
  %v4232 = vpop.f32.mrf.mxu0
  %v4233 = vadd.f32 0.0, %v4232
  %4234 = vdwg.mxu0
  %v4235 = vadd.f32 %v3655, %v4098
  %v4236 = vadd.f32 %v3656, %v4100
  %v4237 = vadd.f32 %v3657, %v4141
  %v4238 = vadd.f32 %v3658, %v4143
  %v4239 = vadd.f32 %v3659, %v4184
  %v4240 = vadd.f32 %v3660, %v4186
  %v4241 = vadd.f32 %v3661, %v4227
  %v4242 = vadd.f32 %v3662, %v4229
  %v4243 = vadd.f32 %v3663, %v4102
  %v4244 = vadd.f32 %v3664, %v4104
  %v4245 = vadd.f32 %v3665, %v4145
  %v4246 = vadd.f32 %v3666, %v4147
  %v4247 = vadd.f32 %v3667, %v4188
  %v4248 = vadd.f32 %v3668, %v4190
  %v4249 = vadd.f32 %v3669, %v4231
  %v4250 = vadd.f32 %v3670, %v4233
  %4251 = vst [vmem:[#allocation3] sm:$0xff] %v4235
  %4252 = vst [vmem:[#allocation3 + $0x8] sm:$0xff] %v4236
  %4253 = vst [vmem:[#allocation3 + $0x10] sm:$0xff] %v4237
  %4254 = vst [vmem:[#allocation3 + $0x18] sm:$0xff] %v4238
  %4255 = vst [vmem:[#allocation3 + $0x20] sm:$0xff] %v4239
  %4256 = vst [vmem:[#allocation3 + $0x28] sm:$0xff] %v4240
  %4257 = vst [vmem:[#allocation3 + $0x30] sm:$0xff] %v4241
  %4258 = vst [vmem:[#allocation3 + $0x38] sm:$0xff] %v4242
  %4259 = vst [vmem:[#allocation3 + $0x40] sm:$0xff] %v4243
  %4260 = vst [vmem:[#allocation3 + $0x48] sm:$0xff] %v4244
  %4261 = vst [vmem:[#allocation3 + $0x50] sm:$0xff] %v4245
  %4262 = vst [vmem:[#allocation3 + $0x58] sm:$0xff] %v4246
  %4263 = vst [vmem:[#allocation3 + $0x60] sm:$0xff] %v4247
  %4264 = vst [vmem:[#allocation3 + $0x68] sm:$0xff] %v4248
  %4265 = vst [vmem:[#allocation3 + $0x70] sm:$0xff] %v4249
  %4266 = vst [vmem:[#allocation3 + $0x78] sm:$0xff] %v4250
  %v4267 = vld [vmem:[#allocation3] sm:$0xff]
  %v4268 = vld [vmem:[#allocation3 + $0x8] sm:$0xff]
  %v4269 = vld [vmem:[#allocation3 + $0x10] sm:$0xff]
  %v4270 = vld [vmem:[#allocation3 + $0x18] sm:$0xff]
  %v4271 = vld [vmem:[#allocation3 + $0x20] sm:$0xff]
  %v4272 = vld [vmem:[#allocation3 + $0x28] sm:$0xff]
  %v4273 = vld [vmem:[#allocation3 + $0x30] sm:$0xff]
  %v4274 = vld [vmem:[#allocation3 + $0x38] sm:$0xff]
  %v4275 = vld [vmem:[#allocation3 + $0x40] sm:$0xff]
  %v4276 = vld [vmem:[#allocation3 + $0x48] sm:$0xff]
  %v4277 = vld [vmem:[#allocation3 + $0x50] sm:$0xff]
  %v4278 = vld [vmem:[#allocation3 + $0x58] sm:$0xff]
  %v4279 = vld [vmem:[#allocation3 + $0x60] sm:$0xff]
  %v4280 = vld [vmem:[#allocation3 + $0x68] sm:$0xff]
  %v4281 = vld [vmem:[#allocation3 + $0x70] sm:$0xff]
  %v4282 = vld [vmem:[#allocation3 + $0x78] sm:$0xff]
  %v4283 = vld [vmem:[#allocation2 + $0x30] sm:$0xf]
  %v4284 = vld [vmem:[#allocation2 + $0x34] sm:$0xf]
  %v4285 = vld [vmem:[%s3 + $0xc00] sm:$0xff]
  %v4286 = vld [vmem:[%s3 + $0xc08] sm:$0xff]
  %v4287 = vld [vmem:[%s3 + $0xc10] sm:$0xff]
  %v4288 = vld [vmem:[%s3 + $0xc18] sm:$0xff]
  %v4289 = vld [vmem:[%s3 + $0xc20] sm:$0xff]
  %v4290 = vld [vmem:[%s3 + $0xc28] sm:$0xff]
  %v4291 = vld [vmem:[%s3 + $0xc30] sm:$0xff]
  %v4292 = vld [vmem:[%s3 + $0xc38] sm:$0xff]
  %v4293 = vld [vmem:[%s3 + $0xc40] sm:$0xff]
  %v4294 = vld [vmem:[%s3 + $0xc48] sm:$0xff]
  %v4295 = vld [vmem:[%s3 + $0xc50] sm:$0xff]
  %v4296 = vld [vmem:[%s3 + $0xc58] sm:$0xff]
  %v4297 = vld [vmem:[%s3 + $0xc60] sm:$0xff]
  %v4298 = vld [vmem:[%s3 + $0xc68] sm:$0xff]
  %v4299 = vld [vmem:[%s3 + $0xc70] sm:$0xff]
  %v4300 = vld [vmem:[%s3 + $0xc78] sm:$0xff]
  %v4301 = vld [vmem:[%s3 + $0xc80] sm:$0xff]
  %v4302 = vld [vmem:[%s3 + $0xc88] sm:$0xff]
  %v4303 = vld [vmem:[%s3 + $0xc90] sm:$0xff]
  %v4304 = vld [vmem:[%s3 + $0xc98] sm:$0xff]
  %v4305 = vld [vmem:[%s3 + $0xca0] sm:$0xff]
  %v4306 = vld [vmem:[%s3 + $0xca8] sm:$0xff]
  %v4307 = vld [vmem:[%s3 + $0xcb0] sm:$0xff]
  %v4308 = vld [vmem:[%s3 + $0xcb8] sm:$0xff]
  %v4309 = vld [vmem:[%s3 + $0xcc0] sm:$0xff]
  %v4310 = vld [vmem:[%s3 + $0xcc8] sm:$0xff]
  %v4311 = vld [vmem:[%s3 + $0xcd0] sm:$0xff]
  %v4312 = vld [vmem:[%s3 + $0xcd8] sm:$0xff]
  %v4313 = vld [vmem:[%s3 + $0xce0] sm:$0xff]
  %v4314 = vld [vmem:[%s3 + $0xce8] sm:$0xff]
  %v4315 = vld [vmem:[%s3 + $0xcf0] sm:$0xff]
  %v4316 = vld [vmem:[%s3 + $0xcf8] sm:$0xff]
  %v4317 = vld [vmem:[%s3 + $0xd00] sm:$0xff]
  %v4318 = vld [vmem:[%s3 + $0xd08] sm:$0xff]
  %v4319 = vld [vmem:[%s3 + $0xd10] sm:$0xff]
  %v4320 = vld [vmem:[%s3 + $0xd18] sm:$0xff]
  %v4321 = vld [vmem:[%s3 + $0xd20] sm:$0xff]
  %v4322 = vld [vmem:[%s3 + $0xd28] sm:$0xff]
  %v4323 = vld [vmem:[%s3 + $0xd30] sm:$0xff]
  %v4324 = vld [vmem:[%s3 + $0xd38] sm:$0xff]
  %v4325 = vld [vmem:[%s3 + $0xd40] sm:$0xff]
  %v4326 = vld [vmem:[%s3 + $0xd48] sm:$0xff]
  %v4327 = vld [vmem:[%s3 + $0xd50] sm:$0xff]
  %v4328 = vld [vmem:[%s3 + $0xd58] sm:$0xff]
  %v4329 = vld [vmem:[%s3 + $0xd60] sm:$0xff]
  %v4330 = vld [vmem:[%s3 + $0xd68] sm:$0xff]
  %v4331 = vld [vmem:[%s3 + $0xd70] sm:$0xff]
  %v4332 = vld [vmem:[%s3 + $0xd78] sm:$0xff]
  %v4333 = vld [vmem:[%s3 + $0xd80] sm:$0xff]
  %v4334 = vld [vmem:[%s3 + $0xd88] sm:$0xff]
  %v4335 = vld [vmem:[%s3 + $0xd90] sm:$0xff]
  %v4336 = vld [vmem:[%s3 + $0xd98] sm:$0xff]
  %v4337 = vld [vmem:[%s3 + $0xda0] sm:$0xff]
  %v4338 = vld [vmem:[%s3 + $0xda8] sm:$0xff]
  %v4339 = vld [vmem:[%s3 + $0xdb0] sm:$0xff]
  %v4340 = vld [vmem:[%s3 + $0xdb8] sm:$0xff]
  %v4341 = vld [vmem:[%s3 + $0xdc0] sm:$0xff]
  %v4342 = vld [vmem:[%s3 + $0xdc8] sm:$0xff]
  %v4343 = vld [vmem:[%s3 + $0xdd0] sm:$0xff]
  %v4344 = vld [vmem:[%s3 + $0xdd8] sm:$0xff]
  %v4345 = vld [vmem:[%s3 + $0xde0] sm:$0xff]
  %v4346 = vld [vmem:[%s3 + $0xde8] sm:$0xff]
  %v4347 = vld [vmem:[%s3 + $0xdf0] sm:$0xff]
  %v4348 = vld [vmem:[%s3 + $0xdf8] sm:$0xff]
  %v4351 = vunpack.c.l.b16 %v4283
  %v4352 = vunpack.c.l.b16 %v4284
  %v4353 = vpack.c.b16 %v4352, %v4351
  %v4419 = vunpack.c.l.b16 %v4285
  %v4420 = vunpack.c.h.b16 %v4285
  %v4421 = vunpack.c.l.b16 %v4286
  %v4422 = vunpack.c.h.b16 %v4286
  %v4423 = vunpack.c.l.b16 %v4287
  %v4424 = vunpack.c.h.b16 %v4287
  %v4425 = vunpack.c.l.b16 %v4288
  %v4426 = vunpack.c.h.b16 %v4288
  %v4427 = vunpack.c.l.b16 %v4289
  %v4428 = vunpack.c.h.b16 %v4289
  %v4429 = vunpack.c.l.b16 %v4290
  %v4430 = vunpack.c.h.b16 %v4290
  %v4431 = vunpack.c.l.b16 %v4291
  %v4432 = vunpack.c.h.b16 %v4291
  %v4433 = vunpack.c.l.b16 %v4292
  %v4434 = vunpack.c.h.b16 %v4292
  %v4435 = vunpack.c.l.b16 %v4293
  %v4436 = vunpack.c.h.b16 %v4293
  %v4437 = vunpack.c.l.b16 %v4294
  %v4438 = vunpack.c.h.b16 %v4294
  %v4439 = vunpack.c.l.b16 %v4295
  %v4440 = vunpack.c.h.b16 %v4295
  %v4441 = vunpack.c.l.b16 %v4296
  %v4442 = vunpack.c.h.b16 %v4296
  %v4443 = vunpack.c.l.b16 %v4297
  %v4444 = vunpack.c.h.b16 %v4297
  %v4445 = vunpack.c.l.b16 %v4298
  %v4446 = vunpack.c.h.b16 %v4298
  %v4447 = vunpack.c.l.b16 %v4299
  %v4448 = vunpack.c.h.b16 %v4299
  %v4449 = vunpack.c.l.b16 %v4300
  %v4450 = vunpack.c.h.b16 %v4300
  %v4451 = vunpack.c.l.b16 %v4301
  %v4452 = vunpack.c.h.b16 %v4301
  %v4453 = vunpack.c.l.b16 %v4302
  %v4454 = vunpack.c.h.b16 %v4302
  %v4455 = vunpack.c.l.b16 %v4303
  %v4456 = vunpack.c.h.b16 %v4303
  %v4457 = vunpack.c.l.b16 %v4304
  %v4458 = vunpack.c.h.b16 %v4304
  %v4459 = vunpack.c.l.b16 %v4305
  %v4460 = vunpack.c.h.b16 %v4305
  %v4461 = vunpack.c.l.b16 %v4306
  %v4462 = vunpack.c.h.b16 %v4306
  %v4463 = vunpack.c.l.b16 %v4307
  %v4464 = vunpack.c.h.b16 %v4307
  %v4465 = vunpack.c.l.b16 %v4308
  %v4466 = vunpack.c.h.b16 %v4308
  %v4467 = vunpack.c.l.b16 %v4309
  %v4468 = vunpack.c.h.b16 %v4309
  %v4469 = vunpack.c.l.b16 %v4310
  %v4470 = vunpack.c.h.b16 %v4310
  %v4471 = vunpack.c.l.b16 %v4311
  %v4472 = vunpack.c.h.b16 %v4311
  %v4473 = vunpack.c.l.b16 %v4312
  %v4474 = vunpack.c.h.b16 %v4312
  %v4475 = vunpack.c.l.b16 %v4313
  %v4476 = vunpack.c.h.b16 %v4313
  %v4477 = vunpack.c.l.b16 %v4314
  %v4478 = vunpack.c.h.b16 %v4314
  %v4479 = vunpack.c.l.b16 %v4315
  %v4480 = vunpack.c.h.b16 %v4315
  %v4481 = vunpack.c.l.b16 %v4316
  %v4482 = vunpack.c.h.b16 %v4316
  %v4483 = vunpack.c.l.b16 %v4317
  %v4484 = vunpack.c.h.b16 %v4317
  %v4485 = vunpack.c.l.b16 %v4318
  %v4486 = vunpack.c.h.b16 %v4318
  %v4487 = vunpack.c.l.b16 %v4319
  %v4488 = vunpack.c.h.b16 %v4319
  %v4489 = vunpack.c.l.b16 %v4320
  %v4490 = vunpack.c.h.b16 %v4320
  %v4491 = vunpack.c.l.b16 %v4321
  %v4492 = vunpack.c.h.b16 %v4321
  %v4493 = vunpack.c.l.b16 %v4322
  %v4494 = vunpack.c.h.b16 %v4322
  %v4495 = vunpack.c.l.b16 %v4323
  %v4496 = vunpack.c.h.b16 %v4323
  %v4497 = vunpack.c.l.b16 %v4324
  %v4498 = vunpack.c.h.b16 %v4324
  %v4499 = vunpack.c.l.b16 %v4325
  %v4500 = vunpack.c.h.b16 %v4325
  %v4501 = vunpack.c.l.b16 %v4326
  %v4502 = vunpack.c.h.b16 %v4326
  %v4503 = vunpack.c.l.b16 %v4327
  %v4504 = vunpack.c.h.b16 %v4327
  %v4505 = vunpack.c.l.b16 %v4328
  %v4506 = vunpack.c.h.b16 %v4328
  %v4507 = vunpack.c.l.b16 %v4329
  %v4508 = vunpack.c.h.b16 %v4329
  %v4509 = vunpack.c.l.b16 %v4330
  %v4510 = vunpack.c.h.b16 %v4330
  %v4511 = vunpack.c.l.b16 %v4331
  %v4512 = vunpack.c.h.b16 %v4331
  %v4513 = vunpack.c.l.b16 %v4332
  %v4514 = vunpack.c.h.b16 %v4332
  %v4515 = vunpack.c.l.b16 %v4333
  %v4516 = vunpack.c.h.b16 %v4333
  %v4517 = vunpack.c.l.b16 %v4334
  %v4518 = vunpack.c.h.b16 %v4334
  %v4519 = vunpack.c.l.b16 %v4335
  %v4520 = vunpack.c.h.b16 %v4335
  %v4521 = vunpack.c.l.b16 %v4336
  %v4522 = vunpack.c.h.b16 %v4336
  %v4523 = vunpack.c.l.b16 %v4337
  %v4524 = vunpack.c.h.b16 %v4337
  %v4525 = vunpack.c.l.b16 %v4338
  %v4526 = vunpack.c.h.b16 %v4338
  %v4527 = vunpack.c.l.b16 %v4339
  %v4528 = vunpack.c.h.b16 %v4339
  %v4529 = vunpack.c.l.b16 %v4340
  %v4530 = vunpack.c.h.b16 %v4340
  %v4531 = vunpack.c.l.b16 %v4341
  %v4532 = vunpack.c.h.b16 %v4341
  %v4533 = vunpack.c.l.b16 %v4342
  %v4534 = vunpack.c.h.b16 %v4342
  %v4535 = vunpack.c.l.b16 %v4343
  %v4536 = vunpack.c.h.b16 %v4343
  %v4537 = vunpack.c.l.b16 %v4344
  %v4538 = vunpack.c.h.b16 %v4344
  %v4539 = vunpack.c.l.b16 %v4345
  %v4540 = vunpack.c.h.b16 %v4345
  %v4541 = vunpack.c.l.b16 %v4346
  %v4542 = vunpack.c.h.b16 %v4346
  %v4543 = vunpack.c.l.b16 %v4347
  %v4544 = vunpack.c.h.b16 %v4347
  %v4545 = vunpack.c.l.b16 %v4348
  %v4546 = vunpack.c.h.b16 %v4348
  %v4547 = vpack.c.b16 %v4427, %v4419
  %v4548 = vpack.c.b16 %v4428, %v4420
  %v4549 = vpack.c.b16 %v4429, %v4421
  %v4550 = vpack.c.b16 %v4430, %v4422
  %v4551 = vpack.c.b16 %v4431, %v4423
  %v4552 = vpack.c.b16 %v4432, %v4424
  %v4553 = vpack.c.b16 %v4433, %v4425
  %v4554 = vpack.c.b16 %v4434, %v4426
  %v4555 = vpack.c.b16 %v4443, %v4435
  %v4556 = vpack.c.b16 %v4444, %v4436
  %v4557 = vpack.c.b16 %v4445, %v4437
  %v4558 = vpack.c.b16 %v4446, %v4438
  %v4559 = vpack.c.b16 %v4447, %v4439
  %v4560 = vpack.c.b16 %v4448, %v4440
  %v4561 = vpack.c.b16 %v4449, %v4441
  %v4562 = vpack.c.b16 %v4450, %v4442
  %v4563 = vpack.c.b16 %v4459, %v4451
  %v4564 = vpack.c.b16 %v4460, %v4452
  %v4565 = vpack.c.b16 %v4461, %v4453
  %v4566 = vpack.c.b16 %v4462, %v4454
  %v4567 = vpack.c.b16 %v4463, %v4455
  %v4568 = vpack.c.b16 %v4464, %v4456
  %v4569 = vpack.c.b16 %v4465, %v4457
  %v4570 = vpack.c.b16 %v4466, %v4458
  %v4571 = vpack.c.b16 %v4475, %v4467
  %v4572 = vpack.c.b16 %v4476, %v4468
  %v4573 = vpack.c.b16 %v4477, %v4469
  %v4574 = vpack.c.b16 %v4478, %v4470
  %v4575 = vpack.c.b16 %v4479, %v4471
  %v4576 = vpack.c.b16 %v4480, %v4472
  %v4577 = vpack.c.b16 %v4481, %v4473
  %v4578 = vpack.c.b16 %v4482, %v4474
  %v4579 = vpack.c.b16 %v4491, %v4483
  %v4580 = vpack.c.b16 %v4492, %v4484
  %v4581 = vpack.c.b16 %v4493, %v4485
  %v4582 = vpack.c.b16 %v4494, %v4486
  %v4583 = vpack.c.b16 %v4495, %v4487
  %v4584 = vpack.c.b16 %v4496, %v4488
  %v4585 = vpack.c.b16 %v4497, %v4489
  %v4586 = vpack.c.b16 %v4498, %v4490
  %v4587 = vpack.c.b16 %v4507, %v4499
  %v4588 = vpack.c.b16 %v4508, %v4500
  %v4589 = vpack.c.b16 %v4509, %v4501
  %v4590 = vpack.c.b16 %v4510, %v4502
  %v4591 = vpack.c.b16 %v4511, %v4503
  %v4592 = vpack.c.b16 %v4512, %v4504
  %v4593 = vpack.c.b16 %v4513, %v4505
  %v4594 = vpack.c.b16 %v4514, %v4506
  %v4595 = vpack.c.b16 %v4523, %v4515
  %v4596 = vpack.c.b16 %v4524, %v4516
  %v4597 = vpack.c.b16 %v4525, %v4517
  %v4598 = vpack.c.b16 %v4526, %v4518
  %v4599 = vpack.c.b16 %v4527, %v4519
  %v4600 = vpack.c.b16 %v4528, %v4520
  %v4601 = vpack.c.b16 %v4529, %v4521
  %v4602 = vpack.c.b16 %v4530, %v4522
  %v4603 = vpack.c.b16 %v4539, %v4531
  %v4604 = vpack.c.b16 %v4540, %v4532
  %v4605 = vpack.c.b16 %v4541, %v4533
  %v4606 = vpack.c.b16 %v4542, %v4534
  %v4607 = vpack.c.b16 %v4543, %v4535
  %v4608 = vpack.c.b16 %v4544, %v4536
  %v4609 = vpack.c.b16 %v4545, %v4537
  %v4610 = vpack.c.b16 %v4546, %v4538
  %4675 = vmatprep.subr.bf16.mxu0 %v4604
  %4676 = vmatpush1.bf16.msra.mxu0 %v4603
  %4677 = vmatprep.subr.bf16.mxu0 %v4596
  %4678 = vmatpush1.bf16.msra.mxu0 %v4595
  %4679 = vmatprep.subr.bf16.mxu0 %v4588
  %4680 = vmatpush1.bf16.msra.mxu0 %v4587
  %4681 = vmatprep.subr.bf16.mxu0 %v4580
  %4682 = vmatpush1.bf16.msra.mxu0 %v4579
  %4683 = vmatprep.subr.bf16.mxu0 %v4572
  %4684 = vmatpush1.bf16.msra.mxu0 %v4571
  %4685 = vmatprep.subr.bf16.mxu0 %v4564
  %4686 = vmatpush1.bf16.msra.mxu0 %v4563
  %4687 = vmatprep.subr.bf16.mxu0 %v4556
  %4688 = vmatpush1.bf16.msra.mxu0 %v4555
  %4689 = vmatprep.subr.bf16.mxu0 %v4548
  %4690 = vmatpush1.bf16.msra.mxu0 %v4547
  %4691 = vmatprep.subr.bf16.mxu0 0
  %4692 = vmatpush2.bf16.msra.mxu0 0
  %4693 = vmatprep.subr.bf16.mxu0 0
  %4694 = vmatpush2.bf16.msra.mxu0 0
  %4695 = vmatprep.subr.bf16.mxu0 0
  %4696 = vmatpush2.bf16.msra.mxu0 0
  %4697 = vmatprep.subr.bf16.mxu0 0
  %4698 = vmatpush2.bf16.msra.mxu0 0
  %4699 = vmatprep.subr.bf16.mxu0 0
  %4700 = vmatpush2.bf16.msra.mxu0 0
  %4701 = vmatprep.subr.bf16.mxu0 0
  %4702 = vmatpush2.bf16.msra.mxu0 0
  %4703 = vmatprep.subr.bf16.mxu0 0
  %4704 = vmatpush2.bf16.msra.mxu0 0
  %4705 = vmatprep.subr.bf16.mxu0 0
  %4706 = vmatpush2.bf16.msra.mxu0 0
  %4707 = vmatprep.mubr.bf16.mxu0 0
  %4708 = vmatmul.mubr.bf16.gmra.mxu0 %v4353
  %v4709 = vpop.f32.mrf.mxu0
  %v4710 = vadd.f32 0.0, %v4709
  %v4711 = vpop.f32.mrf.mxu0
  %v4712 = vadd.f32 0.0, %v4711
  %v4713 = vpop.f32.mrf.mxu0
  %v4714 = vadd.f32 0.0, %v4713
  %v4715 = vpop.f32.mrf.mxu0
  %v4716 = vadd.f32 0.0, %v4715
  %4717 = vdwg.mxu0
  %4718 = vmatprep.subr.bf16.mxu0 %v4606
  %4719 = vmatpush1.bf16.msra.mxu0 %v4605
  %4720 = vmatprep.subr.bf16.mxu0 %v4598
  %4721 = vmatpush1.bf16.msra.mxu0 %v4597
  %4722 = vmatprep.subr.bf16.mxu0 %v4590
  %4723 = vmatpush1.bf16.msra.mxu0 %v4589
  %4724 = vmatprep.subr.bf16.mxu0 %v4582
  %4725 = vmatpush1.bf16.msra.mxu0 %v4581
  %4726 = vmatprep.subr.bf16.mxu0 %v4574
  %4727 = vmatpush1.bf16.msra.mxu0 %v4573
  %4728 = vmatprep.subr.bf16.mxu0 %v4566
  %4729 = vmatpush1.bf16.msra.mxu0 %v4565
  %4730 = vmatprep.subr.bf16.mxu0 %v4558
  %4731 = vmatpush1.bf16.msra.mxu0 %v4557
  %4732 = vmatprep.subr.bf16.mxu0 %v4550
  %4733 = vmatpush1.bf16.msra.mxu0 %v4549
  %4734 = vmatprep.subr.bf16.mxu0 0
  %4735 = vmatpush2.bf16.msra.mxu0 0
  %4736 = vmatprep.subr.bf16.mxu0 0
  %4737 = vmatpush2.bf16.msra.mxu0 0
  %4738 = vmatprep.subr.bf16.mxu0 0
  %4739 = vmatpush2.bf16.msra.mxu0 0
  %4740 = vmatprep.subr.bf16.mxu0 0
  %4741 = vmatpush2.bf16.msra.mxu0 0
  %4742 = vmatprep.subr.bf16.mxu0 0
  %4743 = vmatpush2.bf16.msra.mxu0 0
  %4744 = vmatprep.subr.bf16.mxu0 0
  %4745 = vmatpush2.bf16.msra.mxu0 0
  %4746 = vmatprep.subr.bf16.mxu0 0
  %4747 = vmatpush2.bf16.msra.mxu0 0
  %4748 = vmatprep.subr.bf16.mxu0 0
  %4749 = vmatpush2.bf16.msra.mxu0 0
  %4750 = vmatprep.mubr.bf16.mxu0 0
  %4751 = vmatmul.mubr.bf16.gmra.mxu0 %v4353
  %v4752 = vpop.f32.mrf.mxu0
  %v4753 = vadd.f32 0.0, %v4752
  %v4754 = vpop.f32.mrf.mxu0
  %v4755 = vadd.f32 0.0, %v4754
  %v4756 = vpop.f32.mrf.mxu0
  %v4757 = vadd.f32 0.0, %v4756
  %v4758 = vpop.f32.mrf.mxu0
  %v4759 = vadd.f32 0.0, %v4758
  %4760 = vdwg.mxu0
  %4761 = vmatprep.subr.bf16.mxu0 %v4608
  %4762 = vmatpush1.bf16.msra.mxu0 %v4607
  %4763 = vmatprep.subr.bf16.mxu0 %v4600
  %4764 = vmatpush1.bf16.msra.mxu0 %v4599
  %4765 = vmatprep.subr.bf16.mxu0 %v4592
  %4766 = vmatpush1.bf16.msra.mxu0 %v4591
  %4767 = vmatprep.subr.bf16.mxu0 %v4584
  %4768 = vmatpush1.bf16.msra.mxu0 %v4583
  %4769 = vmatprep.subr.bf16.mxu0 %v4576
  %4770 = vmatpush1.bf16.msra.mxu0 %v4575
  %4771 = vmatprep.subr.bf16.mxu0 %v4568
  %4772 = vmatpush1.bf16.msra.mxu0 %v4567
  %4773 = vmatprep.subr.bf16.mxu0 %v4560
  %4774 = vmatpush1.bf16.msra.mxu0 %v4559
  %4775 = vmatprep.subr.bf16.mxu0 %v4552
  %4776 = vmatpush1.bf16.msra.mxu0 %v4551
  %4777 = vmatprep.subr.bf16.mxu0 0
  %4778 = vmatpush2.bf16.msra.mxu0 0
  %4779 = vmatprep.subr.bf16.mxu0 0
  %4780 = vmatpush2.bf16.msra.mxu0 0
  %4781 = vmatprep.subr.bf16.mxu0 0
  %4782 = vmatpush2.bf16.msra.mxu0 0
  %4783 = vmatprep.subr.bf16.mxu0 0
  %4784 = vmatpush2.bf16.msra.mxu0 0
  %4785 = vmatprep.subr.bf16.mxu0 0
  %4786 = vmatpush2.bf16.msra.mxu0 0
  %4787 = vmatprep.subr.bf16.mxu0 0
  %4788 = vmatpush2.bf16.msra.mxu0 0
  %4789 = vmatprep.subr.bf16.mxu0 0
  %4790 = vmatpush2.bf16.msra.mxu0 0
  %4791 = vmatprep.subr.bf16.mxu0 0
  %4792 = vmatpush2.bf16.msra.mxu0 0
  %4793 = vmatprep.mubr.bf16.mxu0 0
  %4794 = vmatmul.mubr.bf16.gmra.mxu0 %v4353
  %v4795 = vpop.f32.mrf.mxu0
  %v4796 = vadd.f32 0.0, %v4795
  %v4797 = vpop.f32.mrf.mxu0
  %v4798 = vadd.f32 0.0, %v4797
  %v4799 = vpop.f32.mrf.mxu0
  %v4800 = vadd.f32 0.0, %v4799
  %v4801 = vpop.f32.mrf.mxu0
  %v4802 = vadd.f32 0.0, %v4801
  %4803 = vdwg.mxu0
  %4804 = vmatprep.subr.bf16.mxu0 %v4610
  %4805 = vmatpush1.bf16.msra.mxu0 %v4609
  %4806 = vmatprep.subr.bf16.mxu0 %v4602
  %4807 = vmatpush1.bf16.msra.mxu0 %v4601
  %4808 = vmatprep.subr.bf16.mxu0 %v4594
  %4809 = vmatpush1.bf16.msra.mxu0 %v4593
  %4810 = vmatprep.subr.bf16.mxu0 %v4586
  %4811 = vmatpush1.bf16.msra.mxu0 %v4585
  %4812 = vmatprep.subr.bf16.mxu0 %v4578
  %4813 = vmatpush1.bf16.msra.mxu0 %v4577
  %4814 = vmatprep.subr.bf16.mxu0 %v4570
  %4815 = vmatpush1.bf16.msra.mxu0 %v4569
  %4816 = vmatprep.subr.bf16.mxu0 %v4562
  %4817 = vmatpush1.bf16.msra.mxu0 %v4561
  %4818 = vmatprep.subr.bf16.mxu0 %v4554
  %4819 = vmatpush1.bf16.msra.mxu0 %v4553
  %4820 = vmatprep.subr.bf16.mxu0 0
  %4821 = vmatpush2.bf16.msra.mxu0 0
  %4822 = vmatprep.subr.bf16.mxu0 0
  %4823 = vmatpush2.bf16.msra.mxu0 0
  %4824 = vmatprep.subr.bf16.mxu0 0
  %4825 = vmatpush2.bf16.msra.mxu0 0
  %4826 = vmatprep.subr.bf16.mxu0 0
  %4827 = vmatpush2.bf16.msra.mxu0 0
  %4828 = vmatprep.subr.bf16.mxu0 0
  %4829 = vmatpush2.bf16.msra.mxu0 0
  %4830 = vmatprep.subr.bf16.mxu0 0
  %4831 = vmatpush2.bf16.msra.mxu0 0
  %4832 = vmatprep.subr.bf16.mxu0 0
  %4833 = vmatpush2.bf16.msra.mxu0 0
  %4834 = vmatprep.subr.bf16.mxu0 0
  %4835 = vmatpush2.bf16.msra.mxu0 0
  %4836 = vmatprep.mubr.bf16.mxu0 0
  %4837 = vmatmul.mubr.bf16.gmra.mxu0 %v4353
  %v4838 = vpop.f32.mrf.mxu0
  %v4839 = vadd.f32 0.0, %v4838
  %v4840 = vpop.f32.mrf.mxu0
  %v4841 = vadd.f32 0.0, %v4840
  %v4842 = vpop.f32.mrf.mxu0
  %v4843 = vadd.f32 0.0, %v4842
  %v4844 = vpop.f32.mrf.mxu0
  %v4845 = vadd.f32 0.0, %v4844
  %4846 = vdwg.mxu0
  %v4847 = vadd.f32 %v4267, %v4710
  %v4848 = vadd.f32 %v4268, %v4712
  %v4849 = vadd.f32 %v4269, %v4753
  %v4850 = vadd.f32 %v4270, %v4755
  %v4851 = vadd.f32 %v4271, %v4796
  %v4852 = vadd.f32 %v4272, %v4798
  %v4853 = vadd.f32 %v4273, %v4839
  %v4854 = vadd.f32 %v4274, %v4841
  %v4855 = vadd.f32 %v4275, %v4714
  %v4856 = vadd.f32 %v4276, %v4716
  %v4857 = vadd.f32 %v4277, %v4757
  %v4858 = vadd.f32 %v4278, %v4759
  %v4859 = vadd.f32 %v4279, %v4800
  %v4860 = vadd.f32 %v4280, %v4802
  %v4861 = vadd.f32 %v4281, %v4843
  %v4862 = vadd.f32 %v4282, %v4845
  %4863 = vst [vmem:[#allocation3] sm:$0xff] %v4847
  %4864 = vst [vmem:[#allocation3 + $0x8] sm:$0xff] %v4848
  %4865 = vst [vmem:[#allocation3 + $0x10] sm:$0xff] %v4849
  %4866 = vst [vmem:[#allocation3 + $0x18] sm:$0xff] %v4850
  %4867 = vst [vmem:[#allocation3 + $0x20] sm:$0xff] %v4851
  %4868 = vst [vmem:[#allocation3 + $0x28] sm:$0xff] %v4852
  %4869 = vst [vmem:[#allocation3 + $0x30] sm:$0xff] %v4853
  %4870 = vst [vmem:[#allocation3 + $0x38] sm:$0xff] %v4854
  %4871 = vst [vmem:[#allocation3 + $0x40] sm:$0xff] %v4855
  %4872 = vst [vmem:[#allocation3 + $0x48] sm:$0xff] %v4856
  %4873 = vst [vmem:[#allocation3 + $0x50] sm:$0xff] %v4857
  %4874 = vst [vmem:[#allocation3 + $0x58] sm:$0xff] %v4858
  %4875 = vst [vmem:[#allocation3 + $0x60] sm:$0xff] %v4859
  %4876 = vst [vmem:[#allocation3 + $0x68] sm:$0xff] %v4860
  %4877 = vst [vmem:[#allocation3 + $0x70] sm:$0xff] %v4861
  %4878 = vst [vmem:[#allocation3 + $0x78] sm:$0xff] %v4862
  %v4879 = vld [vmem:[#allocation3] sm:$0xff]
  %v4880 = vld [vmem:[#allocation3 + $0x8] sm:$0xff]
  %v4881 = vld [vmem:[#allocation3 + $0x10] sm:$0xff]
  %v4882 = vld [vmem:[#allocation3 + $0x18] sm:$0xff]
  %v4883 = vld [vmem:[#allocation3 + $0x20] sm:$0xff]
  %v4884 = vld [vmem:[#allocation3 + $0x28] sm:$0xff]
  %v4885 = vld [vmem:[#allocation3 + $0x30] sm:$0xff]
  %v4886 = vld [vmem:[#allocation3 + $0x38] sm:$0xff]
  %v4887 = vld [vmem:[#allocation3 + $0x40] sm:$0xff]
  %v4888 = vld [vmem:[#allocation3 + $0x48] sm:$0xff]
  %v4889 = vld [vmem:[#allocation3 + $0x50] sm:$0xff]
  %v4890 = vld [vmem:[#allocation3 + $0x58] sm:$0xff]
  %v4891 = vld [vmem:[#allocation3 + $0x60] sm:$0xff]
  %v4892 = vld [vmem:[#allocation3 + $0x68] sm:$0xff]
  %v4893 = vld [vmem:[#allocation3 + $0x70] sm:$0xff]
  %v4894 = vld [vmem:[#allocation3 + $0x78] sm:$0xff]
  %v4895 = vld [vmem:[#allocation2 + $0x38] sm:$0xf]
  %v4896 = vld [vmem:[#allocation2 + $0x3c] sm:$0xf]
  %v4897 = vld [vmem:[%s3 + $0xe00] sm:$0xff]
  %v4898 = vld [vmem:[%s3 + $0xe08] sm:$0xff]
  %v4899 = vld [vmem:[%s3 + $0xe10] sm:$0xff]
  %v4900 = vld [vmem:[%s3 + $0xe18] sm:$0xff]
  %v4901 = vld [vmem:[%s3 + $0xe20] sm:$0xff]
  %v4902 = vld [vmem:[%s3 + $0xe28] sm:$0xff]
  %v4903 = vld [vmem:[%s3 + $0xe30] sm:$0xff]
  %v4904 = vld [vmem:[%s3 + $0xe38] sm:$0xff]
  %v4905 = vld [vmem:[%s3 + $0xe40] sm:$0xff]
  %v4906 = vld [vmem:[%s3 + $0xe48] sm:$0xff]
  %v4907 = vld [vmem:[%s3 + $0xe50] sm:$0xff]
  %v4908 = vld [vmem:[%s3 + $0xe58] sm:$0xff]
  %v4909 = vld [vmem:[%s3 + $0xe60] sm:$0xff]
  %v4910 = vld [vmem:[%s3 + $0xe68] sm:$0xff]
  %v4911 = vld [vmem:[%s3 + $0xe70] sm:$0xff]
  %v4912 = vld [vmem:[%s3 + $0xe78] sm:$0xff]
  %v4913 = vld [vmem:[%s3 + $0xe80] sm:$0xff]
  %v4914 = vld [vmem:[%s3 + $0xe88] sm:$0xff]
  %v4915 = vld [vmem:[%s3 + $0xe90] sm:$0xff]
  %v4916 = vld [vmem:[%s3 + $0xe98] sm:$0xff]
  %v4917 = vld [vmem:[%s3 + $0xea0] sm:$0xff]
  %v4918 = vld [vmem:[%s3 + $0xea8] sm:$0xff]
  %v4919 = vld [vmem:[%s3 + $0xeb0] sm:$0xff]
  %v4920 = vld [vmem:[%s3 + $0xeb8] sm:$0xff]
  %v4921 = vld [vmem:[%s3 + $0xec0] sm:$0xff]
  %v4922 = vld [vmem:[%s3 + $0xec8] sm:$0xff]
  %v4923 = vld [vmem:[%s3 + $0xed0] sm:$0xff]
  %v4924 = vld [vmem:[%s3 + $0xed8] sm:$0xff]
  %v4925 = vld [vmem:[%s3 + $0xee0] sm:$0xff]
  %v4926 = vld [vmem:[%s3 + $0xee8] sm:$0xff]
  %v4927 = vld [vmem:[%s3 + $0xef0] sm:$0xff]
  %v4928 = vld [vmem:[%s3 + $0xef8] sm:$0xff]
  %v4929 = vld [vmem:[%s3 + $0xf00] sm:$0xff]
  %v4930 = vld [vmem:[%s3 + $0xf08] sm:$0xff]
  %v4931 = vld [vmem:[%s3 + $0xf10] sm:$0xff]
  %v4932 = vld [vmem:[%s3 + $0xf18] sm:$0xff]
  %v4933 = vld [vmem:[%s3 + $0xf20] sm:$0xff]
  %v4934 = vld [vmem:[%s3 + $0xf28] sm:$0xff]
  %v4935 = vld [vmem:[%s3 + $0xf30] sm:$0xff]
  %v4936 = vld [vmem:[%s3 + $0xf38] sm:$0xff]
  %v4937 = vld [vmem:[%s3 + $0xf40] sm:$0xff]
  %v4938 = vld [vmem:[%s3 + $0xf48] sm:$0xff]
  %v4939 = vld [vmem:[%s3 + $0xf50] sm:$0xff]
  %v4940 = vld [vmem:[%s3 + $0xf58] sm:$0xff]
  %v4941 = vld [vmem:[%s3 + $0xf60] sm:$0xff]
  %v4942 = vld [vmem:[%s3 + $0xf68] sm:$0xff]
  %v4943 = vld [vmem:[%s3 + $0xf70] sm:$0xff]
  %v4944 = vld [vmem:[%s3 + $0xf78] sm:$0xff]
  %v4945 = vld [vmem:[%s3 + $0xf80] sm:$0xff]
  %v4946 = vld [vmem:[%s3 + $0xf88] sm:$0xff]
  %v4947 = vld [vmem:[%s3 + $0xf90] sm:$0xff]
  %v4948 = vld [vmem:[%s3 + $0xf98] sm:$0xff]
  %v4949 = vld [vmem:[%s3 + $0xfa0] sm:$0xff]
  %v4950 = vld [vmem:[%s3 + $0xfa8] sm:$0xff]
  %v4951 = vld [vmem:[%s3 + $0xfb0] sm:$0xff]
  %v4952 = vld [vmem:[%s3 + $0xfb8] sm:$0xff]
  %v4953 = vld [vmem:[%s3 + $0xfc0] sm:$0xff]
  %v4954 = vld [vmem:[%s3 + $0xfc8] sm:$0xff]
  %v4955 = vld [vmem:[%s3 + $0xfd0] sm:$0xff]
  %v4956 = vld [vmem:[%s3 + $0xfd8] sm:$0xff]
  %v4957 = vld [vmem:[%s3 + $0xfe0] sm:$0xff]
  %v4958 = vld [vmem:[%s3 + $0xfe8] sm:$0xff]
  %v4959 = vld [vmem:[%s3 + $0xff0] sm:$0xff]
  %v4960 = vld [vmem:[%s3 + $0xff8] sm:$0xff]
  %v4963 = vunpack.c.l.b16 %v4895
  %v4964 = vunpack.c.l.b16 %v4896
  %v4965 = vpack.c.b16 %v4964, %v4963
  %v5031 = vunpack.c.l.b16 %v4897
  %v5032 = vunpack.c.h.b16 %v4897
  %v5033 = vunpack.c.l.b16 %v4898
  %v5034 = vunpack.c.h.b16 %v4898
  %v5035 = vunpack.c.l.b16 %v4899
  %v5036 = vunpack.c.h.b16 %v4899
  %v5037 = vunpack.c.l.b16 %v4900
  %v5038 = vunpack.c.h.b16 %v4900
  %v5039 = vunpack.c.l.b16 %v4901
  %v5040 = vunpack.c.h.b16 %v4901
  %v5041 = vunpack.c.l.b16 %v4902
  %v5042 = vunpack.c.h.b16 %v4902
  %v5043 = vunpack.c.l.b16 %v4903
  %v5044 = vunpack.c.h.b16 %v4903
  %v5045 = vunpack.c.l.b16 %v4904
  %v5046 = vunpack.c.h.b16 %v4904
  %v5047 = vunpack.c.l.b16 %v4905
  %v5048 = vunpack.c.h.b16 %v4905
  %v5049 = vunpack.c.l.b16 %v4906
  %v5050 = vunpack.c.h.b16 %v4906
  %v5051 = vunpack.c.l.b16 %v4907
  %v5052 = vunpack.c.h.b16 %v4907
  %v5053 = vunpack.c.l.b16 %v4908
  %v5054 = vunpack.c.h.b16 %v4908
  %v5055 = vunpack.c.l.b16 %v4909
  %v5056 = vunpack.c.h.b16 %v4909
  %v5057 = vunpack.c.l.b16 %v4910
  %v5058 = vunpack.c.h.b16 %v4910
  %v5059 = vunpack.c.l.b16 %v4911
  %v5060 = vunpack.c.h.b16 %v4911
  %v5061 = vunpack.c.l.b16 %v4912
  %v5062 = vunpack.c.h.b16 %v4912
  %v5063 = vunpack.c.l.b16 %v4913
  %v5064 = vunpack.c.h.b16 %v4913
  %v5065 = vunpack.c.l.b16 %v4914
  %v5066 = vunpack.c.h.b16 %v4914
  %v5067 = vunpack.c.l.b16 %v4915
  %v5068 = vunpack.c.h.b16 %v4915
  %v5069 = vunpack.c.l.b16 %v4916
  %v5070 = vunpack.c.h.b16 %v4916
  %v5071 = vunpack.c.l.b16 %v4917
  %v5072 = vunpack.c.h.b16 %v4917
  %v5073 = vunpack.c.l.b16 %v4918
  %v5074 = vunpack.c.h.b16 %v4918
  %v5075 = vunpack.c.l.b16 %v4919
  %v5076 = vunpack.c.h.b16 %v4919
  %v5077 = vunpack.c.l.b16 %v4920
  %v5078 = vunpack.c.h.b16 %v4920
  %v5079 = vunpack.c.l.b16 %v4921
  %v5080 = vunpack.c.h.b16 %v4921
  %v5081 = vunpack.c.l.b16 %v4922
  %v5082 = vunpack.c.h.b16 %v4922
  %v5083 = vunpack.c.l.b16 %v4923
  %v5084 = vunpack.c.h.b16 %v4923
  %v5085 = vunpack.c.l.b16 %v4924
  %v5086 = vunpack.c.h.b16 %v4924
  %v5087 = vunpack.c.l.b16 %v4925
  %v5088 = vunpack.c.h.b16 %v4925
  %v5089 = vunpack.c.l.b16 %v4926
  %v5090 = vunpack.c.h.b16 %v4926
  %v5091 = vunpack.c.l.b16 %v4927
  %v5092 = vunpack.c.h.b16 %v4927
  %v5093 = vunpack.c.l.b16 %v4928
  %v5094 = vunpack.c.h.b16 %v4928
  %v5095 = vunpack.c.l.b16 %v4929
  %v5096 = vunpack.c.h.b16 %v4929
  %v5097 = vunpack.c.l.b16 %v4930
  %v5098 = vunpack.c.h.b16 %v4930
  %v5099 = vunpack.c.l.b16 %v4931
  %v5100 = vunpack.c.h.b16 %v4931
  %v5101 = vunpack.c.l.b16 %v4932
  %v5102 = vunpack.c.h.b16 %v4932
  %v5103 = vunpack.c.l.b16 %v4933
  %v5104 = vunpack.c.h.b16 %v4933
  %v5105 = vunpack.c.l.b16 %v4934
  %v5106 = vunpack.c.h.b16 %v4934
  %v5107 = vunpack.c.l.b16 %v4935
  %v5108 = vunpack.c.h.b16 %v4935
  %v5109 = vunpack.c.l.b16 %v4936
  %v5110 = vunpack.c.h.b16 %v4936
  %v5111 = vunpack.c.l.b16 %v4937
  %v5112 = vunpack.c.h.b16 %v4937
  %v5113 = vunpack.c.l.b16 %v4938
  %v5114 = vunpack.c.h.b16 %v4938
  %v5115 = vunpack.c.l.b16 %v4939
  %v5116 = vunpack.c.h.b16 %v4939
  %v5117 = vunpack.c.l.b16 %v4940
  %v5118 = vunpack.c.h.b16 %v4940
  %v5119 = vunpack.c.l.b16 %v4941
  %v5120 = vunpack.c.h.b16 %v4941
  %v5121 = vunpack.c.l.b16 %v4942
  %v5122 = vunpack.c.h.b16 %v4942
  %v5123 = vunpack.c.l.b16 %v4943
  %v5124 = vunpack.c.h.b16 %v4943
  %v5125 = vunpack.c.l.b16 %v4944
  %v5126 = vunpack.c.h.b16 %v4944
  %v5127 = vunpack.c.l.b16 %v4945
  %v5128 = vunpack.c.h.b16 %v4945
  %v5129 = vunpack.c.l.b16 %v4946
  %v5130 = vunpack.c.h.b16 %v4946
  %v5131 = vunpack.c.l.b16 %v4947
  %v5132 = vunpack.c.h.b16 %v4947
  %v5133 = vunpack.c.l.b16 %v4948
  %v5134 = vunpack.c.h.b16 %v4948
  %v5135 = vunpack.c.l.b16 %v4949
  %v5136 = vunpack.c.h.b16 %v4949
  %v5137 = vunpack.c.l.b16 %v4950
  %v5138 = vunpack.c.h.b16 %v4950
  %v5139 = vunpack.c.l.b16 %v4951
  %v5140 = vunpack.c.h.b16 %v4951
  %v5141 = vunpack.c.l.b16 %v4952
  %v5142 = vunpack.c.h.b16 %v4952
  %v5143 = vunpack.c.l.b16 %v4953
  %v5144 = vunpack.c.h.b16 %v4953
  %v5145 = vunpack.c.l.b16 %v4954
  %v5146 = vunpack.c.h.b16 %v4954
  %v5147 = vunpack.c.l.b16 %v4955
  %v5148 = vunpack.c.h.b16 %v4955
  %v5149 = vunpack.c.l.b16 %v4956
  %v5150 = vunpack.c.h.b16 %v4956
  %v5151 = vunpack.c.l.b16 %v4957
  %v5152 = vunpack.c.h.b16 %v4957
  %v5153 = vunpack.c.l.b16 %v4958
  %v5154 = vunpack.c.h.b16 %v4958
  %v5155 = vunpack.c.l.b16 %v4959
  %v5156 = vunpack.c.h.b16 %v4959
  %v5157 = vunpack.c.l.b16 %v4960
  %v5158 = vunpack.c.h.b16 %v4960
  %v5159 = vpack.c.b16 %v5039, %v5031
  %v5160 = vpack.c.b16 %v5040, %v5032
  %v5161 = vpack.c.b16 %v5041, %v5033
  %v5162 = vpack.c.b16 %v5042, %v5034
  %v5163 = vpack.c.b16 %v5043, %v5035
  %v5164 = vpack.c.b16 %v5044, %v5036
  %v5165 = vpack.c.b16 %v5045, %v5037
  %v5166 = vpack.c.b16 %v5046, %v5038
  %v5167 = vpack.c.b16 %v5055, %v5047
  %v5168 = vpack.c.b16 %v5056, %v5048
  %v5169 = vpack.c.b16 %v5057, %v5049
  %v5170 = vpack.c.b16 %v5058, %v5050
  %v5171 = vpack.c.b16 %v5059, %v5051
  %v5172 = vpack.c.b16 %v5060, %v5052
  %v5173 = vpack.c.b16 %v5061, %v5053
  %v5174 = vpack.c.b16 %v5062, %v5054
  %v5175 = vpack.c.b16 %v5071, %v5063
  %v5176 = vpack.c.b16 %v5072, %v5064
  %v5177 = vpack.c.b16 %v5073, %v5065
  %v5178 = vpack.c.b16 %v5074, %v5066
  %v5179 = vpack.c.b16 %v5075, %v5067
  %v5180 = vpack.c.b16 %v5076, %v5068
  %v5181 = vpack.c.b16 %v5077, %v5069
  %v5182 = vpack.c.b16 %v5078, %v5070
  %v5183 = vpack.c.b16 %v5087, %v5079
  %v5184 = vpack.c.b16 %v5088, %v5080
  %v5185 = vpack.c.b16 %v5089, %v5081
  %v5186 = vpack.c.b16 %v5090, %v5082
  %v5187 = vpack.c.b16 %v5091, %v5083
  %v5188 = vpack.c.b16 %v5092, %v5084
  %v5189 = vpack.c.b16 %v5093, %v5085
  %v5190 = vpack.c.b16 %v5094, %v5086
  %v5191 = vpack.c.b16 %v5103, %v5095
  %v5192 = vpack.c.b16 %v5104, %v5096
  %v5193 = vpack.c.b16 %v5105, %v5097
  %v5194 = vpack.c.b16 %v5106, %v5098
  %v5195 = vpack.c.b16 %v5107, %v5099
  %v5196 = vpack.c.b16 %v5108, %v5100
  %v5197 = vpack.c.b16 %v5109, %v5101
  %v5198 = vpack.c.b16 %v5110, %v5102
  %v5199 = vpack.c.b16 %v5119, %v5111
  %v5200 = vpack.c.b16 %v5120, %v5112
  %v5201 = vpack.c.b16 %v5121, %v5113
  %v5202 = vpack.c.b16 %v5122, %v5114
  %v5203 = vpack.c.b16 %v5123, %v5115
  %v5204 = vpack.c.b16 %v5124, %v5116
  %v5205 = vpack.c.b16 %v5125, %v5117
  %v5206 = vpack.c.b16 %v5126, %v5118
  %v5207 = vpack.c.b16 %v5135, %v5127
  %v5208 = vpack.c.b16 %v5136, %v5128
  %v5209 = vpack.c.b16 %v5137, %v5129
  %v5210 = vpack.c.b16 %v5138, %v5130
  %v5211 = vpack.c.b16 %v5139, %v5131
  %v5212 = vpack.c.b16 %v5140, %v5132
  %v5213 = vpack.c.b16 %v5141, %v5133
  %v5214 = vpack.c.b16 %v5142, %v5134
  %v5215 = vpack.c.b16 %v5151, %v5143
  %v5216 = vpack.c.b16 %v5152, %v5144
  %v5217 = vpack.c.b16 %v5153, %v5145
  %v5218 = vpack.c.b16 %v5154, %v5146
  %v5219 = vpack.c.b16 %v5155, %v5147
  %v5220 = vpack.c.b16 %v5156, %v5148
  %v5221 = vpack.c.b16 %v5157, %v5149
  %v5222 = vpack.c.b16 %v5158, %v5150
  %5287 = vmatprep.subr.bf16.mxu0 %v5216
  %5288 = vmatpush1.bf16.msra.mxu0 %v5215
  %5289 = vmatprep.subr.bf16.mxu0 %v5208
  %5290 = vmatpush1.bf16.msra.mxu0 %v5207
  %5291 = vmatprep.subr.bf16.mxu0 %v5200
  %5292 = vmatpush1.bf16.msra.mxu0 %v5199
  %5293 = vmatprep.subr.bf16.mxu0 %v5192
  %5294 = vmatpush1.bf16.msra.mxu0 %v5191
  %5295 = vmatprep.subr.bf16.mxu0 %v5184
  %5296 = vmatpush1.bf16.msra.mxu0 %v5183
  %5297 = vmatprep.subr.bf16.mxu0 %v5176
  %5298 = vmatpush1.bf16.msra.mxu0 %v5175
  %5299 = vmatprep.subr.bf16.mxu0 %v5168
  %5300 = vmatpush1.bf16.msra.mxu0 %v5167
  %5301 = vmatprep.subr.bf16.mxu0 %v5160
  %5302 = vmatpush1.bf16.msra.mxu0 %v5159
  %5303 = vmatprep.subr.bf16.mxu0 0
  %5304 = vmatpush2.bf16.msra.mxu0 0
  %5305 = vmatprep.subr.bf16.mxu0 0
  %5306 = vmatpush2.bf16.msra.mxu0 0
  %5307 = vmatprep.subr.bf16.mxu0 0
  %5308 = vmatpush2.bf16.msra.mxu0 0
  %5309 = vmatprep.subr.bf16.mxu0 0
  %5310 = vmatpush2.bf16.msra.mxu0 0
  %5311 = vmatprep.subr.bf16.mxu0 0
  %5312 = vmatpush2.bf16.msra.mxu0 0
  %5313 = vmatprep.subr.bf16.mxu0 0
  %5314 = vmatpush2.bf16.msra.mxu0 0
  %5315 = vmatprep.subr.bf16.mxu0 0
  %5316 = vmatpush2.bf16.msra.mxu0 0
  %5317 = vmatprep.subr.bf16.mxu0 0
  %5318 = vmatpush2.bf16.msra.mxu0 0
  %5319 = vmatprep.mubr.bf16.mxu0 0
  %5320 = vmatmul.mubr.bf16.gmra.mxu0 %v4965
  %v5321 = vpop.f32.mrf.mxu0
  %v5322 = vadd.f32 0.0, %v5321
  %v5323 = vpop.f32.mrf.mxu0
  %v5324 = vadd.f32 0.0, %v5323
  %v5325 = vpop.f32.mrf.mxu0
  %v5326 = vadd.f32 0.0, %v5325
  %v5327 = vpop.f32.mrf.mxu0
  %v5328 = vadd.f32 0.0, %v5327
  %5329 = vdwg.mxu0
  %5330 = vmatprep.subr.bf16.mxu0 %v5218
  %5331 = vmatpush1.bf16.msra.mxu0 %v5217
  %5332 = vmatprep.subr.bf16.mxu0 %v5210
  %5333 = vmatpush1.bf16.msra.mxu0 %v5209
  %5334 = vmatprep.subr.bf16.mxu0 %v5202
  %5335 = vmatpush1.bf16.msra.mxu0 %v5201
  %5336 = vmatprep.subr.bf16.mxu0 %v5194
  %5337 = vmatpush1.bf16.msra.mxu0 %v5193
  %5338 = vmatprep.subr.bf16.mxu0 %v5186
  %5339 = vmatpush1.bf16.msra.mxu0 %v5185
  %5340 = vmatprep.subr.bf16.mxu0 %v5178
  %5341 = vmatpush1.bf16.msra.mxu0 %v5177
  %5342 = vmatprep.subr.bf16.mxu0 %v5170
  %5343 = vmatpush1.bf16.msra.mxu0 %v5169
  %5344 = vmatprep.subr.bf16.mxu0 %v5162
  %5345 = vmatpush1.bf16.msra.mxu0 %v5161
  %5346 = vmatprep.subr.bf16.mxu0 0
  %5347 = vmatpush2.bf16.msra.mxu0 0
  %5348 = vmatprep.subr.bf16.mxu0 0
  %5349 = vmatpush2.bf16.msra.mxu0 0
  %5350 = vmatprep.subr.bf16.mxu0 0
  %5351 = vmatpush2.bf16.msra.mxu0 0
  %5352 = vmatprep.subr.bf16.mxu0 0
  %5353 = vmatpush2.bf16.msra.mxu0 0
  %5354 = vmatprep.subr.bf16.mxu0 0
  %5355 = vmatpush2.bf16.msra.mxu0 0
  %5356 = vmatprep.subr.bf16.mxu0 0
  %5357 = vmatpush2.bf16.msra.mxu0 0
  %5358 = vmatprep.subr.bf16.mxu0 0
  %5359 = vmatpush2.bf16.msra.mxu0 0
  %5360 = vmatprep.subr.bf16.mxu0 0
  %5361 = vmatpush2.bf16.msra.mxu0 0
  %5362 = vmatprep.mubr.bf16.mxu0 0
  %5363 = vmatmul.mubr.bf16.gmra.mxu0 %v4965
  %v5364 = vpop.f32.mrf.mxu0
  %v5365 = vadd.f32 0.0, %v5364
  %v5366 = vpop.f32.mrf.mxu0
  %v5367 = vadd.f32 0.0, %v5366
  %v5368 = vpop.f32.mrf.mxu0
  %v5369 = vadd.f32 0.0, %v5368
  %v5370 = vpop.f32.mrf.mxu0
  %v5371 = vadd.f32 0.0, %v5370
  %5372 = vdwg.mxu0
  %5373 = vmatprep.subr.bf16.mxu0 %v5220
  %5374 = vmatpush1.bf16.msra.mxu0 %v5219
  %5375 = vmatprep.subr.bf16.mxu0 %v5212
  %5376 = vmatpush1.bf16.msra.mxu0 %v5211
  %5377 = vmatprep.subr.bf16.mxu0 %v5204
  %5378 = vmatpush1.bf16.msra.mxu0 %v5203
  %5379 = vmatprep.subr.bf16.mxu0 %v5196
  %5380 = vmatpush1.bf16.msra.mxu0 %v5195
  %5381 = vmatprep.subr.bf16.mxu0 %v5188
  %5382 = vmatpush1.bf16.msra.mxu0 %v5187
  %5383 = vmatprep.subr.bf16.mxu0 %v5180
  %5384 = vmatpush1.bf16.msra.mxu0 %v5179
  %5385 = vmatprep.subr.bf16.mxu0 %v5172
  %5386 = vmatpush1.bf16.msra.mxu0 %v5171
  %5387 = vmatprep.subr.bf16.mxu0 %v5164
  %5388 = vmatpush1.bf16.msra.mxu0 %v5163
  %5389 = vmatprep.subr.bf16.mxu0 0
  %5390 = vmatpush2.bf16.msra.mxu0 0
  %5391 = vmatprep.subr.bf16.mxu0 0
  %5392 = vmatpush2.bf16.msra.mxu0 0
  %5393 = vmatprep.subr.bf16.mxu0 0
  %5394 = vmatpush2.bf16.msra.mxu0 0
  %5395 = vmatprep.subr.bf16.mxu0 0
  %5396 = vmatpush2.bf16.msra.mxu0 0
  %5397 = vmatprep.subr.bf16.mxu0 0
  %5398 = vmatpush2.bf16.msra.mxu0 0
  %5399 = vmatprep.subr.bf16.mxu0 0
  %5400 = vmatpush2.bf16.msra.mxu0 0
  %5401 = vmatprep.subr.bf16.mxu0 0
  %5402 = vmatpush2.bf16.msra.mxu0 0
  %5403 = vmatprep.subr.bf16.mxu0 0
  %5404 = vmatpush2.bf16.msra.mxu0 0
  %5405 = vmatprep.mubr.bf16.mxu0 0
  %5406 = vmatmul.mubr.bf16.gmra.mxu0 %v4965
  %v5407 = vpop.f32.mrf.mxu0
  %v5408 = vadd.f32 0.0, %v5407
  %v5409 = vpop.f32.mrf.mxu0
  %v5410 = vadd.f32 0.0, %v5409
  %v5411 = vpop.f32.mrf.mxu0
  %v5412 = vadd.f32 0.0, %v5411
  %v5413 = vpop.f32.mrf.mxu0
  %v5414 = vadd.f32 0.0, %v5413
  %5415 = vdwg.mxu0
  %5416 = vmatprep.subr.bf16.mxu0 %v5222
  %5417 = vmatpush1.bf16.msra.mxu0 %v5221
  %5418 = vmatprep.subr.bf16.mxu0 %v5214
  %5419 = vmatpush1.bf16.msra.mxu0 %v5213
  %5420 = vmatprep.subr.bf16.mxu0 %v5206
  %5421 = vmatpush1.bf16.msra.mxu0 %v5205
  %5422 = vmatprep.subr.bf16.mxu0 %v5198
  %5423 = vmatpush1.bf16.msra.mxu0 %v5197
  %5424 = vmatprep.subr.bf16.mxu0 %v5190
  %5425 = vmatpush1.bf16.msra.mxu0 %v5189
  %5426 = vmatprep.subr.bf16.mxu0 %v5182
  %5427 = vmatpush1.bf16.msra.mxu0 %v5181
  %5428 = vmatprep.subr.bf16.mxu0 %v5174
  %5429 = vmatpush1.bf16.msra.mxu0 %v5173
  %5430 = vmatprep.subr.bf16.mxu0 %v5166
  %5431 = vmatpush1.bf16.msra.mxu0 %v5165
  %5432 = vmatprep.subr.bf16.mxu0 0
  %5433 = vmatpush2.bf16.msra.mxu0 0
  %5434 = vmatprep.subr.bf16.mxu0 0
  %5435 = vmatpush2.bf16.msra.mxu0 0
  %5436 = vmatprep.subr.bf16.mxu0 0
  %5437 = vmatpush2.bf16.msra.mxu0 0
  %5438 = vmatprep.subr.bf16.mxu0 0
  %5439 = vmatpush2.bf16.msra.mxu0 0
  %5440 = vmatprep.subr.bf16.mxu0 0
  %5441 = vmatpush2.bf16.msra.mxu0 0
  %5442 = vmatprep.subr.bf16.mxu0 0
  %5443 = vmatpush2.bf16.msra.mxu0 0
  %5444 = vmatprep.subr.bf16.mxu0 0
  %5445 = vmatpush2.bf16.msra.mxu0 0
  %5446 = vmatprep.subr.bf16.mxu0 0
  %5447 = vmatpush2.bf16.msra.mxu0 0
  %5448 = vmatprep.mubr.bf16.mxu0 0
  %5449 = vmatmul.mubr.bf16.gmra.mxu0 %v4965
  %v5450 = vpop.f32.mrf.mxu0
  %v5451 = vadd.f32 0.0, %v5450
  %v5452 = vpop.f32.mrf.mxu0
  %v5453 = vadd.f32 0.0, %v5452
  %v5454 = vpop.f32.mrf.mxu0
  %v5455 = vadd.f32 0.0, %v5454
  %v5456 = vpop.f32.mrf.mxu0
  %v5457 = vadd.f32 0.0, %v5456
  %5458 = vdwg.mxu0
  %v5459 = vadd.f32 %v4879, %v5322
  %v5460 = vadd.f32 %v4880, %v5324
  %v5461 = vadd.f32 %v4881, %v5365
  %v5462 = vadd.f32 %v4882, %v5367
  %v5463 = vadd.f32 %v4883, %v5408
  %v5464 = vadd.f32 %v4884, %v5410
  %v5465 = vadd.f32 %v4885, %v5451
  %v5466 = vadd.f32 %v4886, %v5453
  %v5467 = vadd.f32 %v4887, %v5326
  %v5468 = vadd.f32 %v4888, %v5328
  %v5469 = vadd.f32 %v4889, %v5369
  %v5470 = vadd.f32 %v4890, %v5371
  %v5471 = vadd.f32 %v4891, %v5412
  %v5472 = vadd.f32 %v4892, %v5414
  %v5473 = vadd.f32 %v4893, %v5455
  %v5474 = vadd.f32 %v4894, %v5457
  %5475 = vst [vmem:[#allocation3] sm:$0xff] %v5459
  %5476 = vst [vmem:[#allocation3 + $0x8] sm:$0xff] %v5460
  %5477 = vst [vmem:[#allocation3 + $0x10] sm:$0xff] %v5461
  %5478 = vst [vmem:[#allocation3 + $0x18] sm:$0xff] %v5462
  %5479 = vst [vmem:[#allocation3 + $0x20] sm:$0xff] %v5463
  %5480 = vst [vmem:[#allocation3 + $0x28] sm:$0xff] %v5464
  %5481 = vst [vmem:[#allocation3 + $0x30] sm:$0xff] %v5465
  %5482 = vst [vmem:[#allocation3 + $0x38] sm:$0xff] %v5466
  %5483 = vst [vmem:[#allocation3 + $0x40] sm:$0xff] %v5467
  %5484 = vst [vmem:[#allocation3 + $0x48] sm:$0xff] %v5468
  %5485 = vst [vmem:[#allocation3 + $0x50] sm:$0xff] %v5469
  %5486 = vst [vmem:[#allocation3 + $0x58] sm:$0xff] %v5470
  %5487 = vst [vmem:[#allocation3 + $0x60] sm:$0xff] %v5471
  %5488 = vst [vmem:[#allocation3 + $0x68] sm:$0xff] %v5472
  %5489 = vst [vmem:[#allocation3 + $0x70] sm:$0xff] %v5473
  %5490 = vst [vmem:[#allocation3 + $0x78] sm:$0xff] %v5474
  %v5491 = vld [vmem:[#allocation3] sm:$0xff]
  %v5492 = vld [vmem:[#allocation3 + $0x8] sm:$0xff]
  %v5493 = vld [vmem:[#allocation3 + $0x10] sm:$0xff]
  %v5494 = vld [vmem:[#allocation3 + $0x18] sm:$0xff]
  %v5495 = vld [vmem:[#allocation3 + $0x20] sm:$0xff]
  %v5496 = vld [vmem:[#allocation3 + $0x28] sm:$0xff]
  %v5497 = vld [vmem:[#allocation3 + $0x30] sm:$0xff]
  %v5498 = vld [vmem:[#allocation3 + $0x38] sm:$0xff]
  %v5499 = vld [vmem:[#allocation3 + $0x40] sm:$0xff]
  %v5500 = vld [vmem:[#allocation3 + $0x48] sm:$0xff]
  %v5501 = vld [vmem:[#allocation3 + $0x50] sm:$0xff]
  %v5502 = vld [vmem:[#allocation3 + $0x58] sm:$0xff]
  %v5503 = vld [vmem:[#allocation3 + $0x60] sm:$0xff]
  %v5504 = vld [vmem:[#allocation3 + $0x68] sm:$0xff]
  %v5505 = vld [vmem:[#allocation3 + $0x70] sm:$0xff]
  %v5506 = vld [vmem:[#allocation3 + $0x78] sm:$0xff]
  %v5507 = vld [vmem:[#allocation2 + $0x40] sm:$0xf]
  %v5508 = vld [vmem:[#allocation2 + $0x44] sm:$0xf]
  %v5509 = vld [vmem:[%s3 + $0x1000] sm:$0xff]
  %v5510 = vld [vmem:[%s3 + $0x1008] sm:$0xff]
  %v5511 = vld [vmem:[%s3 + $0x1010] sm:$0xff]
  %v5512 = vld [vmem:[%s3 + $0x1018] sm:$0xff]
  %v5513 = vld [vmem:[%s3 + $0x1020] sm:$0xff]
  %v5514 = vld [vmem:[%s3 + $0x1028] sm:$0xff]
  %v5515 = vld [vmem:[%s3 + $0x1030] sm:$0xff]
  %v5516 = vld [vmem:[%s3 + $0x1038] sm:$0xff]
  %v5517 = vld [vmem:[%s3 + $0x1040] sm:$0xff]
  %v5518 = vld [vmem:[%s3 + $0x1048] sm:$0xff]
  %v5519 = vld [vmem:[%s3 + $0x1050] sm:$0xff]
  %v5520 = vld [vmem:[%s3 + $0x1058] sm:$0xff]
  %v5521 = vld [vmem:[%s3 + $0x1060] sm:$0xff]
  %v5522 = vld [vmem:[%s3 + $0x1068] sm:$0xff]
  %v5523 = vld [vmem:[%s3 + $0x1070] sm:$0xff]
  %v5524 = vld [vmem:[%s3 + $0x1078] sm:$0xff]
  %v5525 = vld [vmem:[%s3 + $0x1080] sm:$0xff]
  %v5526 = vld [vmem:[%s3 + $0x1088] sm:$0xff]
  %v5527 = vld [vmem:[%s3 + $0x1090] sm:$0xff]
  %v5528 = vld [vmem:[%s3 + $0x1098] sm:$0xff]
  %v5529 = vld [vmem:[%s3 + $0x10a0] sm:$0xff]
  %v5530 = vld [vmem:[%s3 + $0x10a8] sm:$0xff]
  %v5531 = vld [vmem:[%s3 + $0x10b0] sm:$0xff]
  %v5532 = vld [vmem:[%s3 + $0x10b8] sm:$0xff]
  %v5533 = vld [vmem:[%s3 + $0x10c0] sm:$0xff]
  %v5534 = vld [vmem:[%s3 + $0x10c8] sm:$0xff]
  %v5535 = vld [vmem:[%s3 + $0x10d0] sm:$0xff]
  %v5536 = vld [vmem:[%s3 + $0x10d8] sm:$0xff]
  %v5537 = vld [vmem:[%s3 + $0x10e0] sm:$0xff]
  %v5538 = vld [vmem:[%s3 + $0x10e8] sm:$0xff]
  %v5539 = vld [vmem:[%s3 + $0x10f0] sm:$0xff]
  %v5540 = vld [vmem:[%s3 + $0x10f8] sm:$0xff]
  %v5541 = vld [vmem:[%s3 + $0x1100] sm:$0xff]
  %v5542 = vld [vmem:[%s3 + $0x1108] sm:$0xff]
  %v5543 = vld [vmem:[%s3 + $0x1110] sm:$0xff]
  %v5544 = vld [vmem:[%s3 + $0x1118] sm:$0xff]
  %v5545 = vld [vmem:[%s3 + $0x1120] sm:$0xff]
  %v5546 = vld [vmem:[%s3 + $0x1128] sm:$0xff]
  %v5547 = vld [vmem:[%s3 + $0x1130] sm:$0xff]
  %v5548 = vld [vmem:[%s3 + $0x1138] sm:$0xff]
  %v5549 = vld [vmem:[%s3 + $0x1140] sm:$0xff]
  %v5550 = vld [vmem:[%s3 + $0x1148] sm:$0xff]
  %v5551 = vld [vmem:[%s3 + $0x1150] sm:$0xff]
  %v5552 = vld [vmem:[%s3 + $0x1158] sm:$0xff]
  %v5553 = vld [vmem:[%s3 + $0x1160] sm:$0xff]
  %v5554 = vld [vmem:[%s3 + $0x1168] sm:$0xff]
  %v5555 = vld [vmem:[%s3 + $0x1170] sm:$0xff]
  %v5556 = vld [vmem:[%s3 + $0x1178] sm:$0xff]
  %v5557 = vld [vmem:[%s3 + $0x1180] sm:$0xff]
  %v5558 = vld [vmem:[%s3 + $0x1188] sm:$0xff]
  %v5559 = vld [vmem:[%s3 + $0x1190] sm:$0xff]
  %v5560 = vld [vmem:[%s3 + $0x1198] sm:$0xff]
  %v5561 = vld [vmem:[%s3 + $0x11a0] sm:$0xff]
  %v5562 = vld [vmem:[%s3 + $0x11a8] sm:$0xff]
  %v5563 = vld [vmem:[%s3 + $0x11b0] sm:$0xff]
  %v5564 = vld [vmem:[%s3 + $0x11b8] sm:$0xff]
  %v5565 = vld [vmem:[%s3 + $0x11c0] sm:$0xff]
  %v5566 = vld [vmem:[%s3 + $0x11c8] sm:$0xff]
  %v5567 = vld [vmem:[%s3 + $0x11d0] sm:$0xff]
  %v5568 = vld [vmem:[%s3 + $0x11d8] sm:$0xff]
  %v5569 = vld [vmem:[%s3 + $0x11e0] sm:$0xff]
  %v5570 = vld [vmem:[%s3 + $0x11e8] sm:$0xff]
  %v5571 = vld [vmem:[%s3 + $0x11f0] sm:$0xff]
  %v5572 = vld [vmem:[%s3 + $0x11f8] sm:$0xff]
  %v5575 = vunpack.c.l.b16 %v5507
  %v5576 = vunpack.c.l.b16 %v5508
  %v5577 = vpack.c.b16 %v5576, %v5575
  %v5643 = vunpack.c.l.b16 %v5509
  %v5644 = vunpack.c.h.b16 %v5509
  %v5645 = vunpack.c.l.b16 %v5510
  %v5646 = vunpack.c.h.b16 %v5510
  %v5647 = vunpack.c.l.b16 %v5511
  %v5648 = vunpack.c.h.b16 %v5511
  %v5649 = vunpack.c.l.b16 %v5512
  %v5650 = vunpack.c.h.b16 %v5512
  %v5651 = vunpack.c.l.b16 %v5513
  %v5652 = vunpack.c.h.b16 %v5513
  %v5653 = vunpack.c.l.b16 %v5514
  %v5654 = vunpack.c.h.b16 %v5514
  %v5655 = vunpack.c.l.b16 %v5515
  %v5656 = vunpack.c.h.b16 %v5515
  %v5657 = vunpack.c.l.b16 %v5516
  %v5658 = vunpack.c.h.b16 %v5516
  %v5659 = vunpack.c.l.b16 %v5517
  %v5660 = vunpack.c.h.b16 %v5517
  %v5661 = vunpack.c.l.b16 %v5518
  %v5662 = vunpack.c.h.b16 %v5518
  %v5663 = vunpack.c.l.b16 %v5519
  %v5664 = vunpack.c.h.b16 %v5519
  %v5665 = vunpack.c.l.b16 %v5520
  %v5666 = vunpack.c.h.b16 %v5520
  %v5667 = vunpack.c.l.b16 %v5521
  %v5668 = vunpack.c.h.b16 %v5521
  %v5669 = vunpack.c.l.b16 %v5522
  %v5670 = vunpack.c.h.b16 %v5522
  %v5671 = vunpack.c.l.b16 %v5523
  %v5672 = vunpack.c.h.b16 %v5523
  %v5673 = vunpack.c.l.b16 %v5524
  %v5674 = vunpack.c.h.b16 %v5524
  %v5675 = vunpack.c.l.b16 %v5525
  %v5676 = vunpack.c.h.b16 %v5525
  %v5677 = vunpack.c.l.b16 %v5526
  %v5678 = vunpack.c.h.b16 %v5526
  %v5679 = vunpack.c.l.b16 %v5527
  %v5680 = vunpack.c.h.b16 %v5527
  %v5681 = vunpack.c.l.b16 %v5528
  %v5682 = vunpack.c.h.b16 %v5528
  %v5683 = vunpack.c.l.b16 %v5529
  %v5684 = vunpack.c.h.b16 %v5529
  %v5685 = vunpack.c.l.b16 %v5530
  %v5686 = vunpack.c.h.b16 %v5530
  %v5687 = vunpack.c.l.b16 %v5531
  %v5688 = vunpack.c.h.b16 %v5531
  %v5689 = vunpack.c.l.b16 %v5532
  %v5690 = vunpack.c.h.b16 %v5532
  %v5691 = vunpack.c.l.b16 %v5533
  %v5692 = vunpack.c.h.b16 %v5533
  %v5693 = vunpack.c.l.b16 %v5534
  %v5694 = vunpack.c.h.b16 %v5534
  %v5695 = vunpack.c.l.b16 %v5535
  %v5696 = vunpack.c.h.b16 %v5535
  %v5697 = vunpack.c.l.b16 %v5536
  %v5698 = vunpack.c.h.b16 %v5536
  %v5699 = vunpack.c.l.b16 %v5537
  %v5700 = vunpack.c.h.b16 %v5537
  %v5701 = vunpack.c.l.b16 %v5538
  %v5702 = vunpack.c.h.b16 %v5538
  %v5703 = vunpack.c.l.b16 %v5539
  %v5704 = vunpack.c.h.b16 %v5539
  %v5705 = vunpack.c.l.b16 %v5540
  %v5706 = vunpack.c.h.b16 %v5540
  %v5707 = vunpack.c.l.b16 %v5541
  %v5708 = vunpack.c.h.b16 %v5541
  %v5709 = vunpack.c.l.b16 %v5542
  %v5710 = vunpack.c.h.b16 %v5542
  %v5711 = vunpack.c.l.b16 %v5543
  %v5712 = vunpack.c.h.b16 %v5543
  %v5713 = vunpack.c.l.b16 %v5544
  %v5714 = vunpack.c.h.b16 %v5544
  %v5715 = vunpack.c.l.b16 %v5545
  %v5716 = vunpack.c.h.b16 %v5545
  %v5717 = vunpack.c.l.b16 %v5546
  %v5718 = vunpack.c.h.b16 %v5546
  %v5719 = vunpack.c.l.b16 %v5547
  %v5720 = vunpack.c.h.b16 %v5547
  %v5721 = vunpack.c.l.b16 %v5548
  %v5722 = vunpack.c.h.b16 %v5548
  %v5723 = vunpack.c.l.b16 %v5549
  %v5724 = vunpack.c.h.b16 %v5549
  %v5725 = vunpack.c.l.b16 %v5550
  %v5726 = vunpack.c.h.b16 %v5550
  %v5727 = vunpack.c.l.b16 %v5551
  %v5728 = vunpack.c.h.b16 %v5551
  %v5729 = vunpack.c.l.b16 %v5552
  %v5730 = vunpack.c.h.b16 %v5552
  %v5731 = vunpack.c.l.b16 %v5553
  %v5732 = vunpack.c.h.b16 %v5553
  %v5733 = vunpack.c.l.b16 %v5554
  %v5734 = vunpack.c.h.b16 %v5554
  %v5735 = vunpack.c.l.b16 %v5555
  %v5736 = vunpack.c.h.b16 %v5555
  %v5737 = vunpack.c.l.b16 %v5556
  %v5738 = vunpack.c.h.b16 %v5556
  %v5739 = vunpack.c.l.b16 %v5557
  %v5740 = vunpack.c.h.b16 %v5557
  %v5741 = vunpack.c.l.b16 %v5558
  %v5742 = vunpack.c.h.b16 %v5558
  %v5743 = vunpack.c.l.b16 %v5559
  %v5744 = vunpack.c.h.b16 %v5559
  %v5745 = vunpack.c.l.b16 %v5560
  %v5746 = vunpack.c.h.b16 %v5560
  %v5747 = vunpack.c.l.b16 %v5561
  %v5748 = vunpack.c.h.b16 %v5561
  %v5749 = vunpack.c.l.b16 %v5562
  %v5750 = vunpack.c.h.b16 %v5562
  %v5751 = vunpack.c.l.b16 %v5563
  %v5752 = vunpack.c.h.b16 %v5563
  %v5753 = vunpack.c.l.b16 %v5564
  %v5754 = vunpack.c.h.b16 %v5564
  %v5755 = vunpack.c.l.b16 %v5565
  %v5756 = vunpack.c.h.b16 %v5565
  %v5757 = vunpack.c.l.b16 %v5566
  %v5758 = vunpack.c.h.b16 %v5566
  %v5759 = vunpack.c.l.b16 %v5567
  %v5760 = vunpack.c.h.b16 %v5567
  %v5761 = vunpack.c.l.b16 %v5568
  %v5762 = vunpack.c.h.b16 %v5568
  %v5763 = vunpack.c.l.b16 %v5569
  %v5764 = vunpack.c.h.b16 %v5569
  %v5765 = vunpack.c.l.b16 %v5570
  %v5766 = vunpack.c.h.b16 %v5570
  %v5767 = vunpack.c.l.b16 %v5571
  %v5768 = vunpack.c.h.b16 %v5571
  %v5769 = vunpack.c.l.b16 %v5572
  %v5770 = vunpack.c.h.b16 %v5572
  %v5771 = vpack.c.b16 %v5651, %v5643
  %v5772 = vpack.c.b16 %v5652, %v5644
  %v5773 = vpack.c.b16 %v5653, %v5645
  %v5774 = vpack.c.b16 %v5654, %v5646
  %v5775 = vpack.c.b16 %v5655, %v5647
  %v5776 = vpack.c.b16 %v5656, %v5648
  %v5777 = vpack.c.b16 %v5657, %v5649
  %v5778 = vpack.c.b16 %v5658, %v5650
  %v5779 = vpack.c.b16 %v5667, %v5659
  %v5780 = vpack.c.b16 %v5668, %v5660
  %v5781 = vpack.c.b16 %v5669, %v5661
  %v5782 = vpack.c.b16 %v5670, %v5662
  %v5783 = vpack.c.b16 %v5671, %v5663
  %v5784 = vpack.c.b16 %v5672, %v5664
  %v5785 = vpack.c.b16 %v5673, %v5665
  %v5786 = vpack.c.b16 %v5674, %v5666
  %v5787 = vpack.c.b16 %v5683, %v5675
  %v5788 = vpack.c.b16 %v5684, %v5676
  %v5789 = vpack.c.b16 %v5685, %v5677
  %v5790 = vpack.c.b16 %v5686, %v5678
  %v5791 = vpack.c.b16 %v5687, %v5679
  %v5792 = vpack.c.b16 %v5688, %v5680
  %v5793 = vpack.c.b16 %v5689, %v5681
  %v5794 = vpack.c.b16 %v5690, %v5682
  %v5795 = vpack.c.b16 %v5699, %v5691
  %v5796 = vpack.c.b16 %v5700, %v5692
  %v5797 = vpack.c.b16 %v5701, %v5693
  %v5798 = vpack.c.b16 %v5702, %v5694
  %v5799 = vpack.c.b16 %v5703, %v5695
  %v5800 = vpack.c.b16 %v5704, %v5696
  %v5801 = vpack.c.b16 %v5705, %v5697
  %v5802 = vpack.c.b16 %v5706, %v5698
  %v5803 = vpack.c.b16 %v5715, %v5707
  %v5804 = vpack.c.b16 %v5716, %v5708
  %v5805 = vpack.c.b16 %v5717, %v5709
  %v5806 = vpack.c.b16 %v5718, %v5710
  %v5807 = vpack.c.b16 %v5719, %v5711
  %v5808 = vpack.c.b16 %v5720, %v5712
  %v5809 = vpack.c.b16 %v5721, %v5713
  %v5810 = vpack.c.b16 %v5722, %v5714
  %v5811 = vpack.c.b16 %v5731, %v5723
  %v5812 = vpack.c.b16 %v5732, %v5724
  %v5813 = vpack.c.b16 %v5733, %v5725
  %v5814 = vpack.c.b16 %v5734, %v5726
  %v5815 = vpack.c.b16 %v5735, %v5727
  %v5816 = vpack.c.b16 %v5736, %v5728
  %v5817 = vpack.c.b16 %v5737, %v5729
  %v5818 = vpack.c.b16 %v5738, %v5730
  %v5819 = vpack.c.b16 %v5747, %v5739
  %v5820 = vpack.c.b16 %v5748, %v5740
  %v5821 = vpack.c.b16 %v5749, %v5741
  %v5822 = vpack.c.b16 %v5750, %v5742
  %v5823 = vpack.c.b16 %v5751, %v5743
  %v5824 = vpack.c.b16 %v5752, %v5744
  %v5825 = vpack.c.b16 %v5753, %v5745
  %v5826 = vpack.c.b16 %v5754, %v5746
  %v5827 = vpack.c.b16 %v5763, %v5755
  %v5828 = vpack.c.b16 %v5764, %v5756
  %v5829 = vpack.c.b16 %v5765, %v5757
  %v5830 = vpack.c.b16 %v5766, %v5758
  %v5831 = vpack.c.b16 %v5767, %v5759
  %v5832 = vpack.c.b16 %v5768, %v5760
  %v5833 = vpack.c.b16 %v5769, %v5761
  %v5834 = vpack.c.b16 %v5770, %v5762
  %5899 = vmatprep.subr.bf16.mxu0 %v5828
  %5900 = vmatpush1.bf16.msra.mxu0 %v5827
  %5901 = vmatprep.subr.bf16.mxu0 %v5820
  %5902 = vmatpush1.bf16.msra.mxu0 %v5819
  %5903 = vmatprep.subr.bf16.mxu0 %v5812
  %5904 = vmatpush1.bf16.msra.mxu0 %v5811
  %5905 = vmatprep.subr.bf16.mxu0 %v5804
  %5906 = vmatpush1.bf16.msra.mxu0 %v5803
  %5907 = vmatprep.subr.bf16.mxu0 %v5796
  %5908 = vmatpush1.bf16.msra.mxu0 %v5795
  %5909 = vmatprep.subr.bf16.mxu0 %v5788
  %5910 = vmatpush1.bf16.msra.mxu0 %v5787
  %5911 = vmatprep.subr.bf16.mxu0 %v5780
  %5912 = vmatpush1.bf16.msra.mxu0 %v5779
  %5913 = vmatprep.subr.bf16.mxu0 %v5772
  %5914 = vmatpush1.bf16.msra.mxu0 %v5771
  %5915 = vmatprep.subr.bf16.mxu0 0
  %5916 = vmatpush2.bf16.msra.mxu0 0
  %5917 = vmatprep.subr.bf16.mxu0 0
  %5918 = vmatpush2.bf16.msra.mxu0 0
  %5919 = vmatprep.subr.bf16.mxu0 0
  %5920 = vmatpush2.bf16.msra.mxu0 0
  %5921 = vmatprep.subr.bf16.mxu0 0
  %5922 = vmatpush2.bf16.msra.mxu0 0
  %5923 = vmatprep.subr.bf16.mxu0 0
  %5924 = vmatpush2.bf16.msra.mxu0 0
  %5925 = vmatprep.subr.bf16.mxu0 0
  %5926 = vmatpush2.bf16.msra.mxu0 0
  %5927 = vmatprep.subr.bf16.mxu0 0
  %5928 = vmatpush2.bf16.msra.mxu0 0
  %5929 = vmatprep.subr.bf16.mxu0 0
  %5930 = vmatpush2.bf16.msra.mxu0 0
  %5931 = vmatprep.mubr.bf16.mxu0 0
  %5932 = vmatmul.mubr.bf16.gmra.mxu0 %v5577
  %v5933 = vpop.f32.mrf.mxu0
  %v5934 = vadd.f32 0.0, %v5933
  %v5935 = vpop.f32.mrf.mxu0
  %v5936 = vadd.f32 0.0, %v5935
  %v5937 = vpop.f32.mrf.mxu0
  %v5938 = vadd.f32 0.0, %v5937
  %v5939 = vpop.f32.mrf.mxu0
  %v5940 = vadd.f32 0.0, %v5939
  %5941 = vdwg.mxu0
  %5942 = vmatprep.subr.bf16.mxu0 %v5830
  %5943 = vmatpush1.bf16.msra.mxu0 %v5829
  %5944 = vmatprep.subr.bf16.mxu0 %v5822
  %5945 = vmatpush1.bf16.msra.mxu0 %v5821
  %5946 = vmatprep.subr.bf16.mxu0 %v5814
  %5947 = vmatpush1.bf16.msra.mxu0 %v5813
  %5948 = vmatprep.subr.bf16.mxu0 %v5806
  %5949 = vmatpush1.bf16.msra.mxu0 %v5805
  %5950 = vmatprep.subr.bf16.mxu0 %v5798
  %5951 = vmatpush1.bf16.msra.mxu0 %v5797
  %5952 = vmatprep.subr.bf16.mxu0 %v5790
  %5953 = vmatpush1.bf16.msra.mxu0 %v5789
  %5954 = vmatprep.subr.bf16.mxu0 %v5782
  %5955 = vmatpush1.bf16.msra.mxu0 %v5781
  %5956 = vmatprep.subr.bf16.mxu0 %v5774
  %5957 = vmatpush1.bf16.msra.mxu0 %v5773
  %5958 = vmatprep.subr.bf16.mxu0 0
  %5959 = vmatpush2.bf16.msra.mxu0 0
  %5960 = vmatprep.subr.bf16.mxu0 0
  %5961 = vmatpush2.bf16.msra.mxu0 0
  %5962 = vmatprep.subr.bf16.mxu0 0
  %5963 = vmatpush2.bf16.msra.mxu0 0
  %5964 = vmatprep.subr.bf16.mxu0 0
  %5965 = vmatpush2.bf16.msra.mxu0 0
  %5966 = vmatprep.subr.bf16.mxu0 0
  %5967 = vmatpush2.bf16.msra.mxu0 0
  %5968 = vmatprep.subr.bf16.mxu0 0
  %5969 = vmatpush2.bf16.msra.mxu0 0
  %5970 = vmatprep.subr.bf16.mxu0 0
  %5971 = vmatpush2.bf16.msra.mxu0 0
  %5972 = vmatprep.subr.bf16.mxu0 0
  %5973 = vmatpush2.bf16.msra.mxu0 0
  %5974 = vmatprep.mubr.bf16.mxu0 0
  %5975 = vmatmul.mubr.bf16.gmra.mxu0 %v5577
  %v5976 = vpop.f32.mrf.mxu0
  %v5977 = vadd.f32 0.0, %v5976
  %v5978 = vpop.f32.mrf.mxu0
  %v5979 = vadd.f32 0.0, %v5978
  %v5980 = vpop.f32.mrf.mxu0
  %v5981 = vadd.f32 0.0, %v5980
  %v5982 = vpop.f32.mrf.mxu0
  %v5983 = vadd.f32 0.0, %v5982
  %5984 = vdwg.mxu0
  %5985 = vmatprep.subr.bf16.mxu0 %v5832
  %5986 = vmatpush1.bf16.msra.mxu0 %v5831
  %5987 = vmatprep.subr.bf16.mxu0 %v5824
  %5988 = vmatpush1.bf16.msra.mxu0 %v5823
  %5989 = vmatprep.subr.bf16.mxu0 %v5816
  %5990 = vmatpush1.bf16.msra.mxu0 %v5815
  %5991 = vmatprep.subr.bf16.mxu0 %v5808
  %5992 = vmatpush1.bf16.msra.mxu0 %v5807
  %5993 = vmatprep.subr.bf16.mxu0 %v5800
  %5994 = vmatpush1.bf16.msra.mxu0 %v5799
  %5995 = vmatprep.subr.bf16.mxu0 %v5792
  %5996 = vmatpush1.bf16.msra.mxu0 %v5791
  %5997 = vmatprep.subr.bf16.mxu0 %v5784
  %5998 = vmatpush1.bf16.msra.mxu0 %v5783
  %5999 = vmatprep.subr.bf16.mxu0 %v5776
  %6000 = vmatpush1.bf16.msra.mxu0 %v5775
  %6001 = vmatprep.subr.bf16.mxu0 0
  %6002 = vmatpush2.bf16.msra.mxu0 0
  %6003 = vmatprep.subr.bf16.mxu0 0
  %6004 = vmatpush2.bf16.msra.mxu0 0
  %6005 = vmatprep.subr.bf16.mxu0 0
  %6006 = vmatpush2.bf16.msra.mxu0 0
  %6007 = vmatprep.subr.bf16.mxu0 0
  %6008 = vmatpush2.bf16.msra.mxu0 0
  %6009 = vmatprep.subr.bf16.mxu0 0
  %6010 = vmatpush2.bf16.msra.mxu0 0
  %6011 = vmatprep.subr.bf16.mxu0 0
  %6012 = vmatpush2.bf16.msra.mxu0 0
  %6013 = vmatprep.subr.bf16.mxu0 0
  %6014 = vmatpush2.bf16.msra.mxu0 0
  %6015 = vmatprep.subr.bf16.mxu0 0
  %6016 = vmatpush2.bf16.msra.mxu0 0
  %6017 = vmatprep.mubr.bf16.mxu0 0
  %6018 = vmatmul.mubr.bf16.gmra.mxu0 %v5577
  %v6019 = vpop.f32.mrf.mxu0
  %v6020 = vadd.f32 0.0, %v6019
  %v6021 = vpop.f32.mrf.mxu0
  %v6022 = vadd.f32 0.0, %v6021
  %v6023 = vpop.f32.mrf.mxu0
  %v6024 = vadd.f32 0.0, %v6023
  %v6025 = vpop.f32.mrf.mxu0
  %v6026 = vadd.f32 0.0, %v6025
  %6027 = vdwg.mxu0
  %6028 = vmatprep.subr.bf16.mxu0 %v5834
  %6029 = vmatpush1.bf16.msra.mxu0 %v5833
  %6030 = vmatprep.subr.bf16.mxu0 %v5826
  %6031 = vmatpush1.bf16.msra.mxu0 %v5825
  %6032 = vmatprep.subr.bf16.mxu0 %v5818
  %6033 = vmatpush1.bf16.msra.mxu0 %v5817
  %6034 = vmatprep.subr.bf16.mxu0 %v5810
  %6035 = vmatpush1.bf16.msra.mxu0 %v5809
  %6036 = vmatprep.subr.bf16.mxu0 %v5802
  %6037 = vmatpush1.bf16.msra.mxu0 %v5801
  %6038 = vmatprep.subr.bf16.mxu0 %v5794
  %6039 = vmatpush1.bf16.msra.mxu0 %v5793
  %6040 = vmatprep.subr.bf16.mxu0 %v5786
  %6041 = vmatpush1.bf16.msra.mxu0 %v5785
  %6042 = vmatprep.subr.bf16.mxu0 %v5778
  %6043 = vmatpush1.bf16.msra.mxu0 %v5777
  %6044 = vmatprep.subr.bf16.mxu0 0
  %6045 = vmatpush2.bf16.msra.mxu0 0
  %6046 = vmatprep.subr.bf16.mxu0 0
  %6047 = vmatpush2.bf16.msra.mxu0 0
  %6048 = vmatprep.subr.bf16.mxu0 0
  %6049 = vmatpush2.bf16.msra.mxu0 0
  %6050 = vmatprep.subr.bf16.mxu0 0
  %6051 = vmatpush2.bf16.msra.mxu0 0
  %6052 = vmatprep.subr.bf16.mxu0 0
  %6053 = vmatpush2.bf16.msra.mxu0 0
  %6054 = vmatprep.subr.bf16.mxu0 0
  %6055 = vmatpush2.bf16.msra.mxu0 0
  %6056 = vmatprep.subr.bf16.mxu0 0
  %6057 = vmatpush2.bf16.msra.mxu0 0
  %6058 = vmatprep.subr.bf16.mxu0 0
  %6059 = vmatpush2.bf16.msra.mxu0 0
  %6060 = vmatprep.mubr.bf16.mxu0 0
  %6061 = vmatmul.mubr.bf16.gmra.mxu0 %v5577
  %v6062 = vpop.f32.mrf.mxu0
  %v6063 = vadd.f32 0.0, %v6062
  %v6064 = vpop.f32.mrf.mxu0
  %v6065 = vadd.f32 0.0, %v6064
  %v6066 = vpop.f32.mrf.mxu0
  %v6067 = vadd.f32 0.0, %v6066
  %v6068 = vpop.f32.mrf.mxu0
  %v6069 = vadd.f32 0.0, %v6068
  %6070 = vdwg.mxu0
  %v6071 = vadd.f32 %v5491, %v5934
  %v6072 = vadd.f32 %v5492, %v5936
  %v6073 = vadd.f32 %v5493, %v5977
  %v6074 = vadd.f32 %v5494, %v5979
  %v6075 = vadd.f32 %v5495, %v6020
  %v6076 = vadd.f32 %v5496, %v6022
  %v6077 = vadd.f32 %v5497, %v6063
  %v6078 = vadd.f32 %v5498, %v6065
  %v6079 = vadd.f32 %v5499, %v5938
  %v6080 = vadd.f32 %v5500, %v5940
  %v6081 = vadd.f32 %v5501, %v5981
  %v6082 = vadd.f32 %v5502, %v5983
  %v6083 = vadd.f32 %v5503, %v6024
  %v6084 = vadd.f32 %v5504, %v6026
  %v6085 = vadd.f32 %v5505, %v6067
  %v6086 = vadd.f32 %v5506, %v6069
  %6087 = vst [vmem:[#allocation3] sm:$0xff] %v6071
  %6088 = vst [vmem:[#allocation3 + $0x8] sm:$0xff] %v6072
  %6089 = vst [vmem:[#allocation3 + $0x10] sm:$0xff] %v6073
  %6090 = vst [vmem:[#allocation3 + $0x18] sm:$0xff] %v6074
  %6091 = vst [vmem:[#allocation3 + $0x20] sm:$0xff] %v6075
  %6092 = vst [vmem:[#allocation3 + $0x28] sm:$0xff] %v6076
  %6093 = vst [vmem:[#allocation3 + $0x30] sm:$0xff] %v6077
  %6094 = vst [vmem:[#allocation3 + $0x38] sm:$0xff] %v6078
  %6095 = vst [vmem:[#allocation3 + $0x40] sm:$0xff] %v6079
  %6096 = vst [vmem:[#allocation3 + $0x48] sm:$0xff] %v6080
  %6097 = vst [vmem:[#allocation3 + $0x50] sm:$0xff] %v6081
  %6098 = vst [vmem:[#allocation3 + $0x58] sm:$0xff] %v6082
  %6099 = vst [vmem:[#allocation3 + $0x60] sm:$0xff] %v6083
  %6100 = vst [vmem:[#allocation3 + $0x68] sm:$0xff] %v6084
  %6101 = vst [vmem:[#allocation3 + $0x70] sm:$0xff] %v6085
  %6102 = vst [vmem:[#allocation3 + $0x78] sm:$0xff] %v6086
  %v6103 = vld [vmem:[#allocation3] sm:$0xff]
  %v6104 = vld [vmem:[#allocation3 + $0x8] sm:$0xff]
  %v6105 = vld [vmem:[#allocation3 + $0x10] sm:$0xff]
  %v6106 = vld [vmem:[#allocation3 + $0x18] sm:$0xff]
  %v6107 = vld [vmem:[#allocation3 + $0x20] sm:$0xff]
  %v6108 = vld [vmem:[#allocation3 + $0x28] sm:$0xff]
  %v6109 = vld [vmem:[#allocation3 + $0x30] sm:$0xff]
  %v6110 = vld [vmem:[#allocation3 + $0x38] sm:$0xff]
  %v6111 = vld [vmem:[#allocation3 + $0x40] sm:$0xff]
  %v6112 = vld [vmem:[#allocation3 + $0x48] sm:$0xff]
  %v6113 = vld [vmem:[#allocation3 + $0x50] sm:$0xff]
  %v6114 = vld [vmem:[#allocation3 + $0x58] sm:$0xff]
  %v6115 = vld [vmem:[#allocation3 + $0x60] sm:$0xff]
  %v6116 = vld [vmem:[#allocation3 + $0x68] sm:$0xff]
  %v6117 = vld [vmem:[#allocation3 + $0x70] sm:$0xff]
  %v6118 = vld [vmem:[#allocation3 + $0x78] sm:$0xff]
  %v6119 = vld [vmem:[#allocation2 + $0x48] sm:$0xf]
  %v6120 = vld [vmem:[#allocation2 + $0x4c] sm:$0xf]
  %v6121 = vld [vmem:[%s3 + $0x1200] sm:$0xff]
  %v6122 = vld [vmem:[%s3 + $0x1208] sm:$0xff]
  %v6123 = vld [vmem:[%s3 + $0x1210] sm:$0xff]
  %v6124 = vld [vmem:[%s3 + $0x1218] sm:$0xff]
  %v6125 = vld [vmem:[%s3 + $0x1220] sm:$0xff]
  %v6126 = vld [vmem:[%s3 + $0x1228] sm:$0xff]
  %v6127 = vld [vmem:[%s3 + $0x1230] sm:$0xff]
  %v6128 = vld [vmem:[%s3 + $0x1238] sm:$0xff]
  %v6129 = vld [vmem:[%s3 + $0x1240] sm:$0xff]
  %v6130 = vld [vmem:[%s3 + $0x1248] sm:$0xff]
  %v6131 = vld [vmem:[%s3 + $0x1250] sm:$0xff]
  %v6132 = vld [vmem:[%s3 + $0x1258] sm:$0xff]
  %v6133 = vld [vmem:[%s3 + $0x1260] sm:$0xff]
  %v6134 = vld [vmem:[%s3 + $0x1268] sm:$0xff]
  %v6135 = vld [vmem:[%s3 + $0x1270] sm:$0xff]
  %v6136 = vld [vmem:[%s3 + $0x1278] sm:$0xff]
  %v6137 = vld [vmem:[%s3 + $0x1280] sm:$0xff]
  %v6138 = vld [vmem:[%s3 + $0x1288] sm:$0xff]
  %v6139 = vld [vmem:[%s3 + $0x1290] sm:$0xff]
  %v6140 = vld [vmem:[%s3 + $0x1298] sm:$0xff]
  %v6141 = vld [vmem:[%s3 + $0x12a0] sm:$0xff]
  %v6142 = vld [vmem:[%s3 + $0x12a8] sm:$0xff]
  %v6143 = vld [vmem:[%s3 + $0x12b0] sm:$0xff]
  %v6144 = vld [vmem:[%s3 + $0x12b8] sm:$0xff]
  %v6145 = vld [vmem:[%s3 + $0x12c0] sm:$0xff]
  %v6146 = vld [vmem:[%s3 + $0x12c8] sm:$0xff]
  %v6147 = vld [vmem:[%s3 + $0x12d0] sm:$0xff]
  %v6148 = vld [vmem:[%s3 + $0x12d8] sm:$0xff]
  %v6149 = vld [vmem:[%s3 + $0x12e0] sm:$0xff]
  %v6150 = vld [vmem:[%s3 + $0x12e8] sm:$0xff]
  %v6151 = vld [vmem:[%s3 + $0x12f0] sm:$0xff]
  %v6152 = vld [vmem:[%s3 + $0x12f8] sm:$0xff]
  %v6153 = vld [vmem:[%s3 + $0x1300] sm:$0xff]
  %v6154 = vld [vmem:[%s3 + $0x1308] sm:$0xff]
  %v6155 = vld [vmem:[%s3 + $0x1310] sm:$0xff]
  %v6156 = vld [vmem:[%s3 + $0x1318] sm:$0xff]
  %v6157 = vld [vmem:[%s3 + $0x1320] sm:$0xff]
  %v6158 = vld [vmem:[%s3 + $0x1328] sm:$0xff]
  %v6159 = vld [vmem:[%s3 + $0x1330] sm:$0xff]
  %v6160 = vld [vmem:[%s3 + $0x1338] sm:$0xff]
  %v6161 = vld [vmem:[%s3 + $0x1340] sm:$0xff]
  %v6162 = vld [vmem:[%s3 + $0x1348] sm:$0xff]
  %v6163 = vld [vmem:[%s3 + $0x1350] sm:$0xff]
  %v6164 = vld [vmem:[%s3 + $0x1358] sm:$0xff]
  %v6165 = vld [vmem:[%s3 + $0x1360] sm:$0xff]
  %v6166 = vld [vmem:[%s3 + $0x1368] sm:$0xff]
  %v6167 = vld [vmem:[%s3 + $0x1370] sm:$0xff]
  %v6168 = vld [vmem:[%s3 + $0x1378] sm:$0xff]
  %v6169 = vld [vmem:[%s3 + $0x1380] sm:$0xff]
  %v6170 = vld [vmem:[%s3 + $0x1388] sm:$0xff]
  %v6171 = vld [vmem:[%s3 + $0x1390] sm:$0xff]
  %v6172 = vld [vmem:[%s3 + $0x1398] sm:$0xff]
  %v6173 = vld [vmem:[%s3 + $0x13a0] sm:$0xff]
  %v6174 = vld [vmem:[%s3 + $0x13a8] sm:$0xff]
  %v6175 = vld [vmem:[%s3 + $0x13b0] sm:$0xff]
  %v6176 = vld [vmem:[%s3 + $0x13b8] sm:$0xff]
  %v6177 = vld [vmem:[%s3 + $0x13c0] sm:$0xff]
  %v6178 = vld [vmem:[%s3 + $0x13c8] sm:$0xff]
  %v6179 = vld [vmem:[%s3 + $0x13d0] sm:$0xff]
  %v6180 = vld [vmem:[%s3 + $0x13d8] sm:$0xff]
  %v6181 = vld [vmem:[%s3 + $0x13e0] sm:$0xff]
  %v6182 = vld [vmem:[%s3 + $0x13e8] sm:$0xff]
  %v6183 = vld [vmem:[%s3 + $0x13f0] sm:$0xff]
  %v6184 = vld [vmem:[%s3 + $0x13f8] sm:$0xff]
  %v6187 = vunpack.c.l.b16 %v6119
  %v6188 = vunpack.c.l.b16 %v6120
  %v6189 = vpack.c.b16 %v6188, %v6187
  %v6255 = vunpack.c.l.b16 %v6121
  %v6256 = vunpack.c.h.b16 %v6121
  %v6257 = vunpack.c.l.b16 %v6122
  %v6258 = vunpack.c.h.b16 %v6122
  %v6259 = vunpack.c.l.b16 %v6123
  %v6260 = vunpack.c.h.b16 %v6123
  %v6261 = vunpack.c.l.b16 %v6124
  %v6262 = vunpack.c.h.b16 %v6124
  %v6263 = vunpack.c.l.b16 %v6125
  %v6264 = vunpack.c.h.b16 %v6125
  %v6265 = vunpack.c.l.b16 %v6126
  %v6266 = vunpack.c.h.b16 %v6126
  %v6267 = vunpack.c.l.b16 %v6127
  %v6268 = vunpack.c.h.b16 %v6127
  %v6269 = vunpack.c.l.b16 %v6128
  %v6270 = vunpack.c.h.b16 %v6128
  %v6271 = vunpack.c.l.b16 %v6129
  %v6272 = vunpack.c.h.b16 %v6129
  %v6273 = vunpack.c.l.b16 %v6130
  %v6274 = vunpack.c.h.b16 %v6130
  %v6275 = vunpack.c.l.b16 %v6131
  %v6276 = vunpack.c.h.b16 %v6131
  %v6277 = vunpack.c.l.b16 %v6132
  %v6278 = vunpack.c.h.b16 %v6132
  %v6279 = vunpack.c.l.b16 %v6133
  %v6280 = vunpack.c.h.b16 %v6133
  %v6281 = vunpack.c.l.b16 %v6134
  %v6282 = vunpack.c.h.b16 %v6134
  %v6283 = vunpack.c.l.b16 %v6135
  %v6284 = vunpack.c.h.b16 %v6135
  %v6285 = vunpack.c.l.b16 %v6136
  %v6286 = vunpack.c.h.b16 %v6136
  %v6287 = vunpack.c.l.b16 %v6137
  %v6288 = vunpack.c.h.b16 %v6137
  %v6289 = vunpack.c.l.b16 %v6138
  %v6290 = vunpack.c.h.b16 %v6138
  %v6291 = vunpack.c.l.b16 %v6139
  %v6292 = vunpack.c.h.b16 %v6139
  %v6293 = vunpack.c.l.b16 %v6140
  %v6294 = vunpack.c.h.b16 %v6140
  %v6295 = vunpack.c.l.b16 %v6141
  %v6296 = vunpack.c.h.b16 %v6141
  %v6297 = vunpack.c.l.b16 %v6142
  %v6298 = vunpack.c.h.b16 %v6142
  %v6299 = vunpack.c.l.b16 %v6143
  %v6300 = vunpack.c.h.b16 %v6143
  %v6301 = vunpack.c.l.b16 %v6144
  %v6302 = vunpack.c.h.b16 %v6144
  %v6303 = vunpack.c.l.b16 %v6145
  %v6304 = vunpack.c.h.b16 %v6145
  %v6305 = vunpack.c.l.b16 %v6146
  %v6306 = vunpack.c.h.b16 %v6146
  %v6307 = vunpack.c.l.b16 %v6147
  %v6308 = vunpack.c.h.b16 %v6147
  %v6309 = vunpack.c.l.b16 %v6148
  %v6310 = vunpack.c.h.b16 %v6148
  %v6311 = vunpack.c.l.b16 %v6149
  %v6312 = vunpack.c.h.b16 %v6149
  %v6313 = vunpack.c.l.b16 %v6150
  %v6314 = vunpack.c.h.b16 %v6150
  %v6315 = vunpack.c.l.b16 %v6151
  %v6316 = vunpack.c.h.b16 %v6151
  %v6317 = vunpack.c.l.b16 %v6152
  %v6318 = vunpack.c.h.b16 %v6152
  %v6319 = vunpack.c.l.b16 %v6153
  %v6320 = vunpack.c.h.b16 %v6153
  %v6321 = vunpack.c.l.b16 %v6154
  %v6322 = vunpack.c.h.b16 %v6154
  %v6323 = vunpack.c.l.b16 %v6155
  %v6324 = vunpack.c.h.b16 %v6155
  %v6325 = vunpack.c.l.b16 %v6156
  %v6326 = vunpack.c.h.b16 %v6156
  %v6327 = vunpack.c.l.b16 %v6157
  %v6328 = vunpack.c.h.b16 %v6157
  %v6329 = vunpack.c.l.b16 %v6158
  %v6330 = vunpack.c.h.b16 %v6158
  %v6331 = vunpack.c.l.b16 %v6159
  %v6332 = vunpack.c.h.b16 %v6159
  %v6333 = vunpack.c.l.b16 %v6160
  %v6334 = vunpack.c.h.b16 %v6160
  %v6335 = vunpack.c.l.b16 %v6161
  %v6336 = vunpack.c.h.b16 %v6161
  %v6337 = vunpack.c.l.b16 %v6162
  %v6338 = vunpack.c.h.b16 %v6162
  %v6339 = vunpack.c.l.b16 %v6163
  %v6340 = vunpack.c.h.b16 %v6163
  %v6341 = vunpack.c.l.b16 %v6164
  %v6342 = vunpack.c.h.b16 %v6164
  %v6343 = vunpack.c.l.b16 %v6165
  %v6344 = vunpack.c.h.b16 %v6165
  %v6345 = vunpack.c.l.b16 %v6166
  %v6346 = vunpack.c.h.b16 %v6166
  %v6347 = vunpack.c.l.b16 %v6167
  %v6348 = vunpack.c.h.b16 %v6167
  %v6349 = vunpack.c.l.b16 %v6168
  %v6350 = vunpack.c.h.b16 %v6168
  %v6351 = vunpack.c.l.b16 %v6169
  %v6352 = vunpack.c.h.b16 %v6169
  %v6353 = vunpack.c.l.b16 %v6170
  %v6354 = vunpack.c.h.b16 %v6170
  %v6355 = vunpack.c.l.b16 %v6171
  %v6356 = vunpack.c.h.b16 %v6171
  %v6357 = vunpack.c.l.b16 %v6172
  %v6358 = vunpack.c.h.b16 %v6172
  %v6359 = vunpack.c.l.b16 %v6173
  %v6360 = vunpack.c.h.b16 %v6173
  %v6361 = vunpack.c.l.b16 %v6174
  %v6362 = vunpack.c.h.b16 %v6174
  %v6363 = vunpack.c.l.b16 %v6175
  %v6364 = vunpack.c.h.b16 %v6175
  %v6365 = vunpack.c.l.b16 %v6176
  %v6366 = vunpack.c.h.b16 %v6176
  %v6367 = vunpack.c.l.b16 %v6177
  %v6368 = vunpack.c.h.b16 %v6177
  %v6369 = vunpack.c.l.b16 %v6178
  %v6370 = vunpack.c.h.b16 %v6178
  %v6371 = vunpack.c.l.b16 %v6179
  %v6372 = vunpack.c.h.b16 %v6179
  %v6373 = vunpack.c.l.b16 %v6180
  %v6374 = vunpack.c.h.b16 %v6180
  %v6375 = vunpack.c.l.b16 %v6181
  %v6376 = vunpack.c.h.b16 %v6181
  %v6377 = vunpack.c.l.b16 %v6182
  %v6378 = vunpack.c.h.b16 %v6182
  %v6379 = vunpack.c.l.b16 %v6183
  %v6380 = vunpack.c.h.b16 %v6183
  %v6381 = vunpack.c.l.b16 %v6184
  %v6382 = vunpack.c.h.b16 %v6184
  %v6383 = vpack.c.b16 %v6263, %v6255
  %v6384 = vpack.c.b16 %v6264, %v6256
  %v6385 = vpack.c.b16 %v6265, %v6257
  %v6386 = vpack.c.b16 %v6266, %v6258
  %v6387 = vpack.c.b16 %v6267, %v6259
  %v6388 = vpack.c.b16 %v6268, %v6260
  %v6389 = vpack.c.b16 %v6269, %v6261
  %v6390 = vpack.c.b16 %v6270, %v6262
  %v6391 = vpack.c.b16 %v6279, %v6271
  %v6392 = vpack.c.b16 %v6280, %v6272
  %v6393 = vpack.c.b16 %v6281, %v6273
  %v6394 = vpack.c.b16 %v6282, %v6274
  %v6395 = vpack.c.b16 %v6283, %v6275
  %v6396 = vpack.c.b16 %v6284, %v6276
  %v6397 = vpack.c.b16 %v6285, %v6277
  %v6398 = vpack.c.b16 %v6286, %v6278
  %v6399 = vpack.c.b16 %v6295, %v6287
  %v6400 = vpack.c.b16 %v6296, %v6288
  %v6401 = vpack.c.b16 %v6297, %v6289
  %v6402 = vpack.c.b16 %v6298, %v6290
  %v6403 = vpack.c.b16 %v6299, %v6291
  %v6404 = vpack.c.b16 %v6300, %v6292
  %v6405 = vpack.c.b16 %v6301, %v6293
  %v6406 = vpack.c.b16 %v6302, %v6294
  %v6407 = vpack.c.b16 %v6311, %v6303
  %v6408 = vpack.c.b16 %v6312, %v6304
  %v6409 = vpack.c.b16 %v6313, %v6305
  %v6410 = vpack.c.b16 %v6314, %v6306
  %v6411 = vpack.c.b16 %v6315, %v6307
  %v6412 = vpack.c.b16 %v6316, %v6308
  %v6413 = vpack.c.b16 %v6317, %v6309
  %v6414 = vpack.c.b16 %v6318, %v6310
  %v6415 = vpack.c.b16 %v6327, %v6319
  %v6416 = vpack.c.b16 %v6328, %v6320
  %v6417 = vpack.c.b16 %v6329, %v6321
  %v6418 = vpack.c.b16 %v6330, %v6322
  %v6419 = vpack.c.b16 %v6331, %v6323
  %v6420 = vpack.c.b16 %v6332, %v6324
  %v6421 = vpack.c.b16 %v6333, %v6325
  %v6422 = vpack.c.b16 %v6334, %v6326
  %v6423 = vpack.c.b16 %v6343, %v6335
  %v6424 = vpack.c.b16 %v6344, %v6336
  %v6425 = vpack.c.b16 %v6345, %v6337
  %v6426 = vpack.c.b16 %v6346, %v6338
  %v6427 = vpack.c.b16 %v6347, %v6339
  %v6428 = vpack.c.b16 %v6348, %v6340
  %v6429 = vpack.c.b16 %v6349, %v6341
  %v6430 = vpack.c.b16 %v6350, %v6342
  %v6431 = vpack.c.b16 %v6359, %v6351
  %v6432 = vpack.c.b16 %v6360, %v6352
  %v6433 = vpack.c.b16 %v6361, %v6353
  %v6434 = vpack.c.b16 %v6362, %v6354
  %v6435 = vpack.c.b16 %v6363, %v6355
  %v6436 = vpack.c.b16 %v6364, %v6356
  %v6437 = vpack.c.b16 %v6365, %v6357
  %v6438 = vpack.c.b16 %v6366, %v6358
  %v6439 = vpack.c.b16 %v6375, %v6367
  %v6440 = vpack.c.b16 %v6376, %v6368
  %v6441 = vpack.c.b16 %v6377, %v6369
  %v6442 = vpack.c.b16 %v6378, %v6370
  %v6443 = vpack.c.b16 %v6379, %v6371
  %v6444 = vpack.c.b16 %v6380, %v6372
  %v6445 = vpack.c.b16 %v6381, %v6373
  %v6446 = vpack.c.b16 %v6382, %v6374
  %6511 = vmatprep.subr.bf16.mxu0 %v6440
  %6512 = vmatpush1.bf16.msra.mxu0 %v6439
  %6513 = vmatprep.subr.bf16.mxu0 %v6432
  %6514 = vmatpush1.bf16.msra.mxu0 %v6431
  %6515 = vmatprep.subr.bf16.mxu0 %v6424
  %6516 = vmatpush1.bf16.msra.mxu0 %v6423
  %6517 = vmatprep.subr.bf16.mxu0 %v6416
  %6518 = vmatpush1.bf16.msra.mxu0 %v6415
  %6519 = vmatprep.subr.bf16.mxu0 %v6408
  %6520 = vmatpush1.bf16.msra.mxu0 %v6407
  %6521 = vmatprep.subr.bf16.mxu0 %v6400
  %6522 = vmatpush1.bf16.msra.mxu0 %v6399
  %6523 = vmatprep.subr.bf16.mxu0 %v6392
  %6524 = vmatpush1.bf16.msra.mxu0 %v6391
  %6525 = vmatprep.subr.bf16.mxu0 %v6384
  %6526 = vmatpush1.bf16.msra.mxu0 %v6383
  %6527 = vmatprep.subr.bf16.mxu0 0
  %6528 = vmatpush2.bf16.msra.mxu0 0
  %6529 = vmatprep.subr.bf16.mxu0 0
  %6530 = vmatpush2.bf16.msra.mxu0 0
  %6531 = vmatprep.subr.bf16.mxu0 0
  %6532 = vmatpush2.bf16.msra.mxu0 0
  %6533 = vmatprep.subr.bf16.mxu0 0
  %6534 = vmatpush2.bf16.msra.mxu0 0
  %6535 = vmatprep.subr.bf16.mxu0 0
  %6536 = vmatpush2.bf16.msra.mxu0 0
  %6537 = vmatprep.subr.bf16.mxu0 0
  %6538 = vmatpush2.bf16.msra.mxu0 0
  %6539 = vmatprep.subr.bf16.mxu0 0
  %6540 = vmatpush2.bf16.msra.mxu0 0
  %6541 = vmatprep.subr.bf16.mxu0 0
  %6542 = vmatpush2.bf16.msra.mxu0 0
  %6543 = vmatprep.mubr.bf16.mxu0 0
  %6544 = vmatmul.mubr.bf16.gmra.mxu0 %v6189
  %v6545 = vpop.f32.mrf.mxu0
  %v6546 = vadd.f32 0.0, %v6545
  %v6547 = vpop.f32.mrf.mxu0
  %v6548 = vadd.f32 0.0, %v6547
  %v6549 = vpop.f32.mrf.mxu0
  %v6550 = vadd.f32 0.0, %v6549
  %v6551 = vpop.f32.mrf.mxu0
  %v6552 = vadd.f32 0.0, %v6551
  %6553 = vdwg.mxu0
  %6554 = vmatprep.subr.bf16.mxu0 %v6442
  %6555 = vmatpush1.bf16.msra.mxu0 %v6441
  %6556 = vmatprep.subr.bf16.mxu0 %v6434
  %6557 = vmatpush1.bf16.msra.mxu0 %v6433
  %6558 = vmatprep.subr.bf16.mxu0 %v6426
  %6559 = vmatpush1.bf16.msra.mxu0 %v6425
  %6560 = vmatprep.subr.bf16.mxu0 %v6418
  %6561 = vmatpush1.bf16.msra.mxu0 %v6417
  %6562 = vmatprep.subr.bf16.mxu0 %v6410
  %6563 = vmatpush1.bf16.msra.mxu0 %v6409
  %6564 = vmatprep.subr.bf16.mxu0 %v6402
  %6565 = vmatpush1.bf16.msra.mxu0 %v6401
  %6566 = vmatprep.subr.bf16.mxu0 %v6394
  %6567 = vmatpush1.bf16.msra.mxu0 %v6393
  %6568 = vmatprep.subr.bf16.mxu0 %v6386
  %6569 = vmatpush1.bf16.msra.mxu0 %v6385
  %6570 = vmatprep.subr.bf16.mxu0 0
  %6571 = vmatpush2.bf16.msra.mxu0 0
  %6572 = vmatprep.subr.bf16.mxu0 0
  %6573 = vmatpush2.bf16.msra.mxu0 0
  %6574 = vmatprep.subr.bf16.mxu0 0
  %6575 = vmatpush2.bf16.msra.mxu0 0
  %6576 = vmatprep.subr.bf16.mxu0 0
  %6577 = vmatpush2.bf16.msra.mxu0 0
  %6578 = vmatprep.subr.bf16.mxu0 0
  %6579 = vmatpush2.bf16.msra.mxu0 0
  %6580 = vmatprep.subr.bf16.mxu0 0
  %6581 = vmatpush2.bf16.msra.mxu0 0
  %6582 = vmatprep.subr.bf16.mxu0 0
  %6583 = vmatpush2.bf16.msra.mxu0 0
  %6584 = vmatprep.subr.bf16.mxu0 0
  %6585 = vmatpush2.bf16.msra.mxu0 0
  %6586 = vmatprep.mubr.bf16.mxu0 0
  %6587 = vmatmul.mubr.bf16.gmra.mxu0 %v6189
  %v6588 = vpop.f32.mrf.mxu0
  %v6589 = vadd.f32 0.0, %v6588
  %v6590 = vpop.f32.mrf.mxu0
  %v6591 = vadd.f32 0.0, %v6590
  %v6592 = vpop.f32.mrf.mxu0
  %v6593 = vadd.f32 0.0, %v6592
  %v6594 = vpop.f32.mrf.mxu0
  %v6595 = vadd.f32 0.0, %v6594
  %6596 = vdwg.mxu0
  %6597 = vmatprep.subr.bf16.mxu0 %v6444
  %6598 = vmatpush1.bf16.msra.mxu0 %v6443
  %6599 = vmatprep.subr.bf16.mxu0 %v6436
  %6600 = vmatpush1.bf16.msra.mxu0 %v6435
  %6601 = vmatprep.subr.bf16.mxu0 %v6428
  %6602 = vmatpush1.bf16.msra.mxu0 %v6427
  %6603 = vmatprep.subr.bf16.mxu0 %v6420
  %6604 = vmatpush1.bf16.msra.mxu0 %v6419
  %6605 = vmatprep.subr.bf16.mxu0 %v6412
  %6606 = vmatpush1.bf16.msra.mxu0 %v6411
  %6607 = vmatprep.subr.bf16.mxu0 %v6404
  %6608 = vmatpush1.bf16.msra.mxu0 %v6403
  %6609 = vmatprep.subr.bf16.mxu0 %v6396
  %6610 = vmatpush1.bf16.msra.mxu0 %v6395
  %6611 = vmatprep.subr.bf16.mxu0 %v6388
  %6612 = vmatpush1.bf16.msra.mxu0 %v6387
  %6613 = vmatprep.subr.bf16.mxu0 0
  %6614 = vmatpush2.bf16.msra.mxu0 0
  %6615 = vmatprep.subr.bf16.mxu0 0
  %6616 = vmatpush2.bf16.msra.mxu0 0
  %6617 = vmatprep.subr.bf16.mxu0 0
  %6618 = vmatpush2.bf16.msra.mxu0 0
  %6619 = vmatprep.subr.bf16.mxu0 0
  %6620 = vmatpush2.bf16.msra.mxu0 0
  %6621 = vmatprep.subr.bf16.mxu0 0
  %6622 = vmatpush2.bf16.msra.mxu0 0
  %6623 = vmatprep.subr.bf16.mxu0 0
  %6624 = vmatpush2.bf16.msra.mxu0 0
  %6625 = vmatprep.subr.bf16.mxu0 0
  %6626 = vmatpush2.bf16.msra.mxu0 0
  %6627 = vmatprep.subr.bf16.mxu0 0
  %6628 = vmatpush2.bf16.msra.mxu0 0
  %6629 = vmatprep.mubr.bf16.mxu0 0
  %6630 = vmatmul.mubr.bf16.gmra.mxu0 %v6189
  %v6631 = vpop.f32.mrf.mxu0
  %v6632 = vadd.f32 0.0, %v6631
  %v6633 = vpop.f32.mrf.mxu0
  %v6634 = vadd.f32 0.0, %v6633
  %v6635 = vpop.f32.mrf.mxu0
  %v6636 = vadd.f32 0.0, %v6635
  %v6637 = vpop.f32.mrf.mxu0
  %v6638 = vadd.f32 0.0, %v6637
  %6639 = vdwg.mxu0
  %6640 = vmatprep.subr.bf16.mxu0 %v6446
  %6641 = vmatpush1.bf16.msra.mxu0 %v6445
  %6642 = vmatprep.subr.bf16.mxu0 %v6438
  %6643 = vmatpush1.bf16.msra.mxu0 %v6437
  %6644 = vmatprep.subr.bf16.mxu0 %v6430
  %6645 = vmatpush1.bf16.msra.mxu0 %v6429
  %6646 = vmatprep.subr.bf16.mxu0 %v6422
  %6647 = vmatpush1.bf16.msra.mxu0 %v6421
  %6648 = vmatprep.subr.bf16.mxu0 %v6414
  %6649 = vmatpush1.bf16.msra.mxu0 %v6413
  %6650 = vmatprep.subr.bf16.mxu0 %v6406
  %6651 = vmatpush1.bf16.msra.mxu0 %v6405
  %6652 = vmatprep.subr.bf16.mxu0 %v6398
  %6653 = vmatpush1.bf16.msra.mxu0 %v6397
  %6654 = vmatprep.subr.bf16.mxu0 %v6390
  %6655 = vmatpush1.bf16.msra.mxu0 %v6389
  %6656 = vmatprep.subr.bf16.mxu0 0
  %6657 = vmatpush2.bf16.msra.mxu0 0
  %6658 = vmatprep.subr.bf16.mxu0 0
  %6659 = vmatpush2.bf16.msra.mxu0 0
  %6660 = vmatprep.subr.bf16.mxu0 0
  %6661 = vmatpush2.bf16.msra.mxu0 0
  %6662 = vmatprep.subr.bf16.mxu0 0
  %6663 = vmatpush2.bf16.msra.mxu0 0
  %6664 = vmatprep.subr.bf16.mxu0 0
  %6665 = vmatpush2.bf16.msra.mxu0 0
  %6666 = vmatprep.subr.bf16.mxu0 0
  %6667 = vmatpush2.bf16.msra.mxu0 0
  %6668 = vmatprep.subr.bf16.mxu0 0
  %6669 = vmatpush2.bf16.msra.mxu0 0
  %6670 = vmatprep.subr.bf16.mxu0 0
  %6671 = vmatpush2.bf16.msra.mxu0 0
  %6672 = vmatprep.mubr.bf16.mxu0 0
  %6673 = vmatmul.mubr.bf16.gmra.mxu0 %v6189
  %v6674 = vpop.f32.mrf.mxu0
  %v6675 = vadd.f32 0.0, %v6674
  %v6676 = vpop.f32.mrf.mxu0
  %v6677 = vadd.f32 0.0, %v6676
  %v6678 = vpop.f32.mrf.mxu0
  %v6679 = vadd.f32 0.0, %v6678
  %v6680 = vpop.f32.mrf.mxu0
  %v6681 = vadd.f32 0.0, %v6680
  %6682 = vdwg.mxu0
  %v6683 = vadd.f32 %v6103, %v6546
  %v6684 = vadd.f32 %v6104, %v6548
  %v6685 = vadd.f32 %v6105, %v6589
  %v6686 = vadd.f32 %v6106, %v6591
  %v6687 = vadd.f32 %v6107, %v6632
  %v6688 = vadd.f32 %v6108, %v6634
  %v6689 = vadd.f32 %v6109, %v6675
  %v6690 = vadd.f32 %v6110, %v6677
  %v6691 = vadd.f32 %v6111, %v6550
  %v6692 = vadd.f32 %v6112, %v6552
  %v6693 = vadd.f32 %v6113, %v6593
  %v6694 = vadd.f32 %v6114, %v6595
  %v6695 = vadd.f32 %v6115, %v6636
  %v6696 = vadd.f32 %v6116, %v6638
  %v6697 = vadd.f32 %v6117, %v6679
  %v6698 = vadd.f32 %v6118, %v6681
  %6699 = vst [vmem:[#allocation3] sm:$0xff] %v6683
  %6700 = vst [vmem:[#allocation3 + $0x8] sm:$0xff] %v6684
  %6701 = vst [vmem:[#allocation3 + $0x10] sm:$0xff] %v6685
  %6702 = vst [vmem:[#allocation3 + $0x18] sm:$0xff] %v6686
  %6703 = vst [vmem:[#allocation3 + $0x20] sm:$0xff] %v6687
  %6704 = vst [vmem:[#allocation3 + $0x28] sm:$0xff] %v6688
  %6705 = vst [vmem:[#allocation3 + $0x30] sm:$0xff] %v6689
  %6706 = vst [vmem:[#allocation3 + $0x38] sm:$0xff] %v6690
  %6707 = vst [vmem:[#allocation3 + $0x40] sm:$0xff] %v6691
  %6708 = vst [vmem:[#allocation3 + $0x48] sm:$0xff] %v6692
  %6709 = vst [vmem:[#allocation3 + $0x50] sm:$0xff] %v6693
  %6710 = vst [vmem:[#allocation3 + $0x58] sm:$0xff] %v6694
  %6711 = vst [vmem:[#allocation3 + $0x60] sm:$0xff] %v6695
  %6712 = vst [vmem:[#allocation3 + $0x68] sm:$0xff] %v6696
  %6713 = vst [vmem:[#allocation3 + $0x70] sm:$0xff] %v6697
  %6714 = vst [vmem:[#allocation3 + $0x78] sm:$0xff] %v6698
  %v6715 = vld [vmem:[#allocation3] sm:$0xff]
  %v6716 = vld [vmem:[#allocation3 + $0x8] sm:$0xff]
  %v6717 = vld [vmem:[#allocation3 + $0x10] sm:$0xff]
  %v6718 = vld [vmem:[#allocation3 + $0x18] sm:$0xff]
  %v6719 = vld [vmem:[#allocation3 + $0x20] sm:$0xff]
  %v6720 = vld [vmem:[#allocation3 + $0x28] sm:$0xff]
  %v6721 = vld [vmem:[#allocation3 + $0x30] sm:$0xff]
  %v6722 = vld [vmem:[#allocation3 + $0x38] sm:$0xff]
  %v6723 = vld [vmem:[#allocation3 + $0x40] sm:$0xff]
  %v6724 = vld [vmem:[#allocation3 + $0x48] sm:$0xff]
  %v6725 = vld [vmem:[#allocation3 + $0x50] sm:$0xff]
  %v6726 = vld [vmem:[#allocation3 + $0x58] sm:$0xff]
  %v6727 = vld [vmem:[#allocation3 + $0x60] sm:$0xff]
  %v6728 = vld [vmem:[#allocation3 + $0x68] sm:$0xff]
  %v6729 = vld [vmem:[#allocation3 + $0x70] sm:$0xff]
  %v6730 = vld [vmem:[#allocation3 + $0x78] sm:$0xff]
  %v6731 = vld [vmem:[#allocation2 + $0x50] sm:$0xf]
  %v6732 = vld [vmem:[#allocation2 + $0x54] sm:$0xf]
  %v6733 = vld [vmem:[%s3 + $0x1400] sm:$0xff]
  %v6734 = vld [vmem:[%s3 + $0x1408] sm:$0xff]
  %v6735 = vld [vmem:[%s3 + $0x1410] sm:$0xff]
  %v6736 = vld [vmem:[%s3 + $0x1418] sm:$0xff]
  %v6737 = vld [vmem:[%s3 + $0x1420] sm:$0xff]
  %v6738 = vld [vmem:[%s3 + $0x1428] sm:$0xff]
  %v6739 = vld [vmem:[%s3 + $0x1430] sm:$0xff]
  %v6740 = vld [vmem:[%s3 + $0x1438] sm:$0xff]
  %v6741 = vld [vmem:[%s3 + $0x1440] sm:$0xff]
  %v6742 = vld [vmem:[%s3 + $0x1448] sm:$0xff]
  %v6743 = vld [vmem:[%s3 + $0x1450] sm:$0xff]
  %v6744 = vld [vmem:[%s3 + $0x1458] sm:$0xff]
  %v6745 = vld [vmem:[%s3 + $0x1460] sm:$0xff]
  %v6746 = vld [vmem:[%s3 + $0x1468] sm:$0xff]
  %v6747 = vld [vmem:[%s3 + $0x1470] sm:$0xff]
  %v6748 = vld [vmem:[%s3 + $0x1478] sm:$0xff]
  %v6749 = vld [vmem:[%s3 + $0x1480] sm:$0xff]
  %v6750 = vld [vmem:[%s3 + $0x1488] sm:$0xff]
  %v6751 = vld [vmem:[%s3 + $0x1490] sm:$0xff]
  %v6752 = vld [vmem:[%s3 + $0x1498] sm:$0xff]
  %v6753 = vld [vmem:[%s3 + $0x14a0] sm:$0xff]
  %v6754 = vld [vmem:[%s3 + $0x14a8] sm:$0xff]
  %v6755 = vld [vmem:[%s3 + $0x14b0] sm:$0xff]
  %v6756 = vld [vmem:[%s3 + $0x14b8] sm:$0xff]
  %v6757 = vld [vmem:[%s3 + $0x14c0] sm:$0xff]
  %v6758 = vld [vmem:[%s3 + $0x14c8] sm:$0xff]
  %v6759 = vld [vmem:[%s3 + $0x14d0] sm:$0xff]
  %v6760 = vld [vmem:[%s3 + $0x14d8] sm:$0xff]
  %v6761 = vld [vmem:[%s3 + $0x14e0] sm:$0xff]
  %v6762 = vld [vmem:[%s3 + $0x14e8] sm:$0xff]
  %v6763 = vld [vmem:[%s3 + $0x14f0] sm:$0xff]
  %v6764 = vld [vmem:[%s3 + $0x14f8] sm:$0xff]
  %v6765 = vld [vmem:[%s3 + $0x1500] sm:$0xff]
  %v6766 = vld [vmem:[%s3 + $0x1508] sm:$0xff]
  %v6767 = vld [vmem:[%s3 + $0x1510] sm:$0xff]
  %v6768 = vld [vmem:[%s3 + $0x1518] sm:$0xff]
  %v6769 = vld [vmem:[%s3 + $0x1520] sm:$0xff]
  %v6770 = vld [vmem:[%s3 + $0x1528] sm:$0xff]
  %v6771 = vld [vmem:[%s3 + $0x1530] sm:$0xff]
  %v6772 = vld [vmem:[%s3 + $0x1538] sm:$0xff]
  %v6773 = vld [vmem:[%s3 + $0x1540] sm:$0xff]
  %v6774 = vld [vmem:[%s3 + $0x1548] sm:$0xff]
  %v6775 = vld [vmem:[%s3 + $0x1550] sm:$0xff]
  %v6776 = vld [vmem:[%s3 + $0x1558] sm:$0xff]
  %v6777 = vld [vmem:[%s3 + $0x1560] sm:$0xff]
  %v6778 = vld [vmem:[%s3 + $0x1568] sm:$0xff]
  %v6779 = vld [vmem:[%s3 + $0x1570] sm:$0xff]
  %v6780 = vld [vmem:[%s3 + $0x1578] sm:$0xff]
  %v6781 = vld [vmem:[%s3 + $0x1580] sm:$0xff]
  %v6782 = vld [vmem:[%s3 + $0x1588] sm:$0xff]
  %v6783 = vld [vmem:[%s3 + $0x1590] sm:$0xff]
  %v6784 = vld [vmem:[%s3 + $0x1598] sm:$0xff]
  %v6785 = vld [vmem:[%s3 + $0x15a0] sm:$0xff]
  %v6786 = vld [vmem:[%s3 + $0x15a8] sm:$0xff]
  %v6787 = vld [vmem:[%s3 + $0x15b0] sm:$0xff]
  %v6788 = vld [vmem:[%s3 + $0x15b8] sm:$0xff]
  %v6789 = vld [vmem:[%s3 + $0x15c0] sm:$0xff]
  %v6790 = vld [vmem:[%s3 + $0x15c8] sm:$0xff]
  %v6791 = vld [vmem:[%s3 + $0x15d0] sm:$0xff]
  %v6792 = vld [vmem:[%s3 + $0x15d8] sm:$0xff]
  %v6793 = vld [vmem:[%s3 + $0x15e0] sm:$0xff]
  %v6794 = vld [vmem:[%s3 + $0x15e8] sm:$0xff]
  %v6795 = vld [vmem:[%s3 + $0x15f0] sm:$0xff]
  %v6796 = vld [vmem:[%s3 + $0x15f8] sm:$0xff]
  %v6799 = vunpack.c.l.b16 %v6731
  %v6800 = vunpack.c.l.b16 %v6732
  %v6801 = vpack.c.b16 %v6800, %v6799
  %v6867 = vunpack.c.l.b16 %v6733
  %v6868 = vunpack.c.h.b16 %v6733
  %v6869 = vunpack.c.l.b16 %v6734
  %v6870 = vunpack.c.h.b16 %v6734
  %v6871 = vunpack.c.l.b16 %v6735
  %v6872 = vunpack.c.h.b16 %v6735
  %v6873 = vunpack.c.l.b16 %v6736
  %v6874 = vunpack.c.h.b16 %v6736
  %v6875 = vunpack.c.l.b16 %v6737
  %v6876 = vunpack.c.h.b16 %v6737
  %v6877 = vunpack.c.l.b16 %v6738
  %v6878 = vunpack.c.h.b16 %v6738
  %v6879 = vunpack.c.l.b16 %v6739
  %v6880 = vunpack.c.h.b16 %v6739
  %v6881 = vunpack.c.l.b16 %v6740
  %v6882 = vunpack.c.h.b16 %v6740
  %v6883 = vunpack.c.l.b16 %v6741
  %v6884 = vunpack.c.h.b16 %v6741
  %v6885 = vunpack.c.l.b16 %v6742
  %v6886 = vunpack.c.h.b16 %v6742
  %v6887 = vunpack.c.l.b16 %v6743
  %v6888 = vunpack.c.h.b16 %v6743
  %v6889 = vunpack.c.l.b16 %v6744
  %v6890 = vunpack.c.h.b16 %v6744
  %v6891 = vunpack.c.l.b16 %v6745
  %v6892 = vunpack.c.h.b16 %v6745
  %v6893 = vunpack.c.l.b16 %v6746
  %v6894 = vunpack.c.h.b16 %v6746
  %v6895 = vunpack.c.l.b16 %v6747
  %v6896 = vunpack.c.h.b16 %v6747
  %v6897 = vunpack.c.l.b16 %v6748
  %v6898 = vunpack.c.h.b16 %v6748
  %v6899 = vunpack.c.l.b16 %v6749
  %v6900 = vunpack.c.h.b16 %v6749
  %v6901 = vunpack.c.l.b16 %v6750
  %v6902 = vunpack.c.h.b16 %v6750
  %v6903 = vunpack.c.l.b16 %v6751
  %v6904 = vunpack.c.h.b16 %v6751
  %v6905 = vunpack.c.l.b16 %v6752
  %v6906 = vunpack.c.h.b16 %v6752
  %v6907 = vunpack.c.l.b16 %v6753
  %v6908 = vunpack.c.h.b16 %v6753
  %v6909 = vunpack.c.l.b16 %v6754
  %v6910 = vunpack.c.h.b16 %v6754
  %v6911 = vunpack.c.l.b16 %v6755
  %v6912 = vunpack.c.h.b16 %v6755
  %v6913 = vunpack.c.l.b16 %v6756
  %v6914 = vunpack.c.h.b16 %v6756
  %v6915 = vunpack.c.l.b16 %v6757
  %v6916 = vunpack.c.h.b16 %v6757
  %v6917 = vunpack.c.l.b16 %v6758
  %v6918 = vunpack.c.h.b16 %v6758
  %v6919 = vunpack.c.l.b16 %v6759
  %v6920 = vunpack.c.h.b16 %v6759
  %v6921 = vunpack.c.l.b16 %v6760
  %v6922 = vunpack.c.h.b16 %v6760
  %v6923 = vunpack.c.l.b16 %v6761
  %v6924 = vunpack.c.h.b16 %v6761
  %v6925 = vunpack.c.l.b16 %v6762
  %v6926 = vunpack.c.h.b16 %v6762
  %v6927 = vunpack.c.l.b16 %v6763
  %v6928 = vunpack.c.h.b16 %v6763
  %v6929 = vunpack.c.l.b16 %v6764
  %v6930 = vunpack.c.h.b16 %v6764
  %v6931 = vunpack.c.l.b16 %v6765
  %v6932 = vunpack.c.h.b16 %v6765
  %v6933 = vunpack.c.l.b16 %v6766
  %v6934 = vunpack.c.h.b16 %v6766
  %v6935 = vunpack.c.l.b16 %v6767
  %v6936 = vunpack.c.h.b16 %v6767
  %v6937 = vunpack.c.l.b16 %v6768
  %v6938 = vunpack.c.h.b16 %v6768
  %v6939 = vunpack.c.l.b16 %v6769
  %v6940 = vunpack.c.h.b16 %v6769
  %v6941 = vunpack.c.l.b16 %v6770
  %v6942 = vunpack.c.h.b16 %v6770
  %v6943 = vunpack.c.l.b16 %v6771
  %v6944 = vunpack.c.h.b16 %v6771
  %v6945 = vunpack.c.l.b16 %v6772
  %v6946 = vunpack.c.h.b16 %v6772
  %v6947 = vunpack.c.l.b16 %v6773
  %v6948 = vunpack.c.h.b16 %v6773
  %v6949 = vunpack.c.l.b16 %v6774
  %v6950 = vunpack.c.h.b16 %v6774
  %v6951 = vunpack.c.l.b16 %v6775
  %v6952 = vunpack.c.h.b16 %v6775
  %v6953 = vunpack.c.l.b16 %v6776
  %v6954 = vunpack.c.h.b16 %v6776
  %v6955 = vunpack.c.l.b16 %v6777
  %v6956 = vunpack.c.h.b16 %v6777
  %v6957 = vunpack.c.l.b16 %v6778
  %v6958 = vunpack.c.h.b16 %v6778
  %v6959 = vunpack.c.l.b16 %v6779
  %v6960 = vunpack.c.h.b16 %v6779
  %v6961 = vunpack.c.l.b16 %v6780
  %v6962 = vunpack.c.h.b16 %v6780
  %v6963 = vunpack.c.l.b16 %v6781
  %v6964 = vunpack.c.h.b16 %v6781
  %v6965 = vunpack.c.l.b16 %v6782
  %v6966 = vunpack.c.h.b16 %v6782
  %v6967 = vunpack.c.l.b16 %v6783
  %v6968 = vunpack.c.h.b16 %v6783
  %v6969 = vunpack.c.l.b16 %v6784
  %v6970 = vunpack.c.h.b16 %v6784
  %v6971 = vunpack.c.l.b16 %v6785
  %v6972 = vunpack.c.h.b16 %v6785
  %v6973 = vunpack.c.l.b16 %v6786
  %v6974 = vunpack.c.h.b16 %v6786
  %v6975 = vunpack.c.l.b16 %v6787
  %v6976 = vunpack.c.h.b16 %v6787
  %v6977 = vunpack.c.l.b16 %v6788
  %v6978 = vunpack.c.h.b16 %v6788
  %v6979 = vunpack.c.l.b16 %v6789
  %v6980 = vunpack.c.h.b16 %v6789
  %v6981 = vunpack.c.l.b16 %v6790
  %v6982 = vunpack.c.h.b16 %v6790
  %v6983 = vunpack.c.l.b16 %v6791
  %v6984 = vunpack.c.h.b16 %v6791
  %v6985 = vunpack.c.l.b16 %v6792
  %v6986 = vunpack.c.h.b16 %v6792
  %v6987 = vunpack.c.l.b16 %v6793
  %v6988 = vunpack.c.h.b16 %v6793
  %v6989 = vunpack.c.l.b16 %v6794
  %v6990 = vunpack.c.h.b16 %v6794
  %v6991 = vunpack.c.l.b16 %v6795
  %v6992 = vunpack.c.h.b16 %v6795
  %v6993 = vunpack.c.l.b16 %v6796
  %v6994 = vunpack.c.h.b16 %v6796
  %v6995 = vpack.c.b16 %v6875, %v6867
  %v6996 = vpack.c.b16 %v6876, %v6868
  %v6997 = vpack.c.b16 %v6877, %v6869
  %v6998 = vpack.c.b16 %v6878, %v6870
  %v6999 = vpack.c.b16 %v6879, %v6871
  %v7000 = vpack.c.b16 %v6880, %v6872
  %v7001 = vpack.c.b16 %v6881, %v6873
  %v7002 = vpack.c.b16 %v6882, %v6874
  %v7003 = vpack.c.b16 %v6891, %v6883
  %v7004 = vpack.c.b16 %v6892, %v6884
  %v7005 = vpack.c.b16 %v6893, %v6885
  %v7006 = vpack.c.b16 %v6894, %v6886
  %v7007 = vpack.c.b16 %v6895, %v6887
  %v7008 = vpack.c.b16 %v6896, %v6888
  %v7009 = vpack.c.b16 %v6897, %v6889
  %v7010 = vpack.c.b16 %v6898, %v6890
  %v7011 = vpack.c.b16 %v6907, %v6899
  %v7012 = vpack.c.b16 %v6908, %v6900
  %v7013 = vpack.c.b16 %v6909, %v6901
  %v7014 = vpack.c.b16 %v6910, %v6902
  %v7015 = vpack.c.b16 %v6911, %v6903
  %v7016 = vpack.c.b16 %v6912, %v6904
  %v7017 = vpack.c.b16 %v6913, %v6905
  %v7018 = vpack.c.b16 %v6914, %v6906
  %v7019 = vpack.c.b16 %v6923, %v6915
  %v7020 = vpack.c.b16 %v6924, %v6916
  %v7021 = vpack.c.b16 %v6925, %v6917
  %v7022 = vpack.c.b16 %v6926, %v6918
  %v7023 = vpack.c.b16 %v6927, %v6919
  %v7024 = vpack.c.b16 %v6928, %v6920
  %v7025 = vpack.c.b16 %v6929, %v6921
  %v7026 = vpack.c.b16 %v6930, %v6922
  %v7027 = vpack.c.b16 %v6939, %v6931
  %v7028 = vpack.c.b16 %v6940, %v6932
  %v7029 = vpack.c.b16 %v6941, %v6933
  %v7030 = vpack.c.b16 %v6942, %v6934
  %v7031 = vpack.c.b16 %v6943, %v6935
  %v7032 = vpack.c.b16 %v6944, %v6936
  %v7033 = vpack.c.b16 %v6945, %v6937
  %v7034 = vpack.c.b16 %v6946, %v6938
  %v7035 = vpack.c.b16 %v6955, %v6947
  %v7036 = vpack.c.b16 %v6956, %v6948
  %v7037 = vpack.c.b16 %v6957, %v6949
  %v7038 = vpack.c.b16 %v6958, %v6950
  %v7039 = vpack.c.b16 %v6959, %v6951
  %v7040 = vpack.c.b16 %v6960, %v6952
  %v7041 = vpack.c.b16 %v6961, %v6953
  %v7042 = vpack.c.b16 %v6962, %v6954
  %v7043 = vpack.c.b16 %v6971, %v6963
  %v7044 = vpack.c.b16 %v6972, %v6964
  %v7045 = vpack.c.b16 %v6973, %v6965
  %v7046 = vpack.c.b16 %v6974, %v6966
  %v7047 = vpack.c.b16 %v6975, %v6967
  %v7048 = vpack.c.b16 %v6976, %v6968
  %v7049 = vpack.c.b16 %v6977, %v6969
  %v7050 = vpack.c.b16 %v6978, %v6970
  %v7051 = vpack.c.b16 %v6987, %v6979
  %v7052 = vpack.c.b16 %v6988, %v6980
  %v7053 = vpack.c.b16 %v6989, %v6981
  %v7054 = vpack.c.b16 %v6990, %v6982
  %v7055 = vpack.c.b16 %v6991, %v6983
  %v7056 = vpack.c.b16 %v6992, %v6984
  %v7057 = vpack.c.b16 %v6993, %v6985
  %v7058 = vpack.c.b16 %v6994, %v6986
  %7123 = vmatprep.subr.bf16.mxu0 %v7052
  %7124 = vmatpush1.bf16.msra.mxu0 %v7051
  %7125 = vmatprep.subr.bf16.mxu0 %v7044
  %7126 = vmatpush1.bf16.msra.mxu0 %v7043
  %7127 = vmatprep.subr.bf16.mxu0 %v7036
  %7128 = vmatpush1.bf16.msra.mxu0 %v7035
  %7129 = vmatprep.subr.bf16.mxu0 %v7028
  %7130 = vmatpush1.bf16.msra.mxu0 %v7027
  %7131 = vmatprep.subr.bf16.mxu0 %v7020
  %7132 = vmatpush1.bf16.msra.mxu0 %v7019
  %7133 = vmatprep.subr.bf16.mxu0 %v7012
  %7134 = vmatpush1.bf16.msra.mxu0 %v7011
  %7135 = vmatprep.subr.bf16.mxu0 %v7004
  %7136 = vmatpush1.bf16.msra.mxu0 %v7003
  %7137 = vmatprep.subr.bf16.mxu0 %v6996
  %7138 = vmatpush1.bf16.msra.mxu0 %v6995
  %7139 = vmatprep.subr.bf16.mxu0 0
  %7140 = vmatpush2.bf16.msra.mxu0 0
  %7141 = vmatprep.subr.bf16.mxu0 0
  %7142 = vmatpush2.bf16.msra.mxu0 0
  %7143 = vmatprep.subr.bf16.mxu0 0
  %7144 = vmatpush2.bf16.msra.mxu0 0
  %7145 = vmatprep.subr.bf16.mxu0 0
  %7146 = vmatpush2.bf16.msra.mxu0 0
  %7147 = vmatprep.subr.bf16.mxu0 0
  %7148 = vmatpush2.bf16.msra.mxu0 0
  %7149 = vmatprep.subr.bf16.mxu0 0
  %7150 = vmatpush2.bf16.msra.mxu0 0
  %7151 = vmatprep.subr.bf16.mxu0 0
  %7152 = vmatpush2.bf16.msra.mxu0 0
  %7153 = vmatprep.subr.bf16.mxu0 0
  %7154 = vmatpush2.bf16.msra.mxu0 0
  %7155 = vmatprep.mubr.bf16.mxu0 0
  %7156 = vmatmul.mubr.bf16.gmra.mxu0 %v6801
  %v7157 = vpop.f32.mrf.mxu0
  %v7158 = vadd.f32 0.0, %v7157
  %v7159 = vpop.f32.mrf.mxu0
  %v7160 = vadd.f32 0.0, %v7159
  %v7161 = vpop.f32.mrf.mxu0
  %v7162 = vadd.f32 0.0, %v7161
  %v7163 = vpop.f32.mrf.mxu0
  %v7164 = vadd.f32 0.0, %v7163
  %7165 = vdwg.mxu0
  %7166 = vmatprep.subr.bf16.mxu0 %v7054
  %7167 = vmatpush1.bf16.msra.mxu0 %v7053
  %7168 = vmatprep.subr.bf16.mxu0 %v7046
  %7169 = vmatpush1.bf16.msra.mxu0 %v7045
  %7170 = vmatprep.subr.bf16.mxu0 %v7038
  %7171 = vmatpush1.bf16.msra.mxu0 %v7037
  %7172 = vmatprep.subr.bf16.mxu0 %v7030
  %7173 = vmatpush1.bf16.msra.mxu0 %v7029
  %7174 = vmatprep.subr.bf16.mxu0 %v7022
  %7175 = vmatpush1.bf16.msra.mxu0 %v7021
  %7176 = vmatprep.subr.bf16.mxu0 %v7014
  %7177 = vmatpush1.bf16.msra.mxu0 %v7013
  %7178 = vmatprep.subr.bf16.mxu0 %v7006
  %7179 = vmatpush1.bf16.msra.mxu0 %v7005
  %7180 = vmatprep.subr.bf16.mxu0 %v6998
  %7181 = vmatpush1.bf16.msra.mxu0 %v6997
  %7182 = vmatprep.subr.bf16.mxu0 0
  %7183 = vmatpush2.bf16.msra.mxu0 0
  %7184 = vmatprep.subr.bf16.mxu0 0
  %7185 = vmatpush2.bf16.msra.mxu0 0
  %7186 = vmatprep.subr.bf16.mxu0 0
  %7187 = vmatpush2.bf16.msra.mxu0 0
  %7188 = vmatprep.subr.bf16.mxu0 0
  %7189 = vmatpush2.bf16.msra.mxu0 0
  %7190 = vmatprep.subr.bf16.mxu0 0
  %7191 = vmatpush2.bf16.msra.mxu0 0
  %7192 = vmatprep.subr.bf16.mxu0 0
  %7193 = vmatpush2.bf16.msra.mxu0 0
  %7194 = vmatprep.subr.bf16.mxu0 0
  %7195 = vmatpush2.bf16.msra.mxu0 0
  %7196 = vmatprep.subr.bf16.mxu0 0
  %7197 = vmatpush2.bf16.msra.mxu0 0
  %7198 = vmatprep.mubr.bf16.mxu0 0
  %7199 = vmatmul.mubr.bf16.gmra.mxu0 %v6801
  %v7200 = vpop.f32.mrf.mxu0
  %v7201 = vadd.f32 0.0, %v7200
  %v7202 = vpop.f32.mrf.mxu0
  %v7203 = vadd.f32 0.0, %v7202
  %v7204 = vpop.f32.mrf.mxu0
  %v7205 = vadd.f32 0.0, %v7204
  %v7206 = vpop.f32.mrf.mxu0
  %v7207 = vadd.f32 0.0, %v7206
  %7208 = vdwg.mxu0
  %7209 = vmatprep.subr.bf16.mxu0 %v7056
  %7210 = vmatpush1.bf16.msra.mxu0 %v7055
  %7211 = vmatprep.subr.bf16.mxu0 %v7048
  %7212 = vmatpush1.bf16.msra.mxu0 %v7047
  %7213 = vmatprep.subr.bf16.mxu0 %v7040
  %7214 = vmatpush1.bf16.msra.mxu0 %v7039
  %7215 = vmatprep.subr.bf16.mxu0 %v7032
  %7216 = vmatpush1.bf16.msra.mxu0 %v7031
  %7217 = vmatprep.subr.bf16.mxu0 %v7024
  %7218 = vmatpush1.bf16.msra.mxu0 %v7023
  %7219 = vmatprep.subr.bf16.mxu0 %v7016
  %7220 = vmatpush1.bf16.msra.mxu0 %v7015
  %7221 = vmatprep.subr.bf16.mxu0 %v7008
  %7222 = vmatpush1.bf16.msra.mxu0 %v7007
  %7223 = vmatprep.subr.bf16.mxu0 %v7000
  %7224 = vmatpush1.bf16.msra.mxu0 %v6999
  %7225 = vmatprep.subr.bf16.mxu0 0
  %7226 = vmatpush2.bf16.msra.mxu0 0
  %7227 = vmatprep.subr.bf16.mxu0 0
  %7228 = vmatpush2.bf16.msra.mxu0 0
  %7229 = vmatprep.subr.bf16.mxu0 0
  %7230 = vmatpush2.bf16.msra.mxu0 0
  %7231 = vmatprep.subr.bf16.mxu0 0
  %7232 = vmatpush2.bf16.msra.mxu0 0
  %7233 = vmatprep.subr.bf16.mxu0 0
  %7234 = vmatpush2.bf16.msra.mxu0 0
  %7235 = vmatprep.subr.bf16.mxu0 0
  %7236 = vmatpush2.bf16.msra.mxu0 0
  %7237 = vmatprep.subr.bf16.mxu0 0
  %7238 = vmatpush2.bf16.msra.mxu0 0
  %7239 = vmatprep.subr.bf16.mxu0 0
  %7240 = vmatpush2.bf16.msra.mxu0 0
  %7241 = vmatprep.mubr.bf16.mxu0 0
  %7242 = vmatmul.mubr.bf16.gmra.mxu0 %v6801
  %v7243 = vpop.f32.mrf.mxu0
  %v7244 = vadd.f32 0.0, %v7243
  %v7245 = vpop.f32.mrf.mxu0
  %v7246 = vadd.f32 0.0, %v7245
  %v7247 = vpop.f32.mrf.mxu0
  %v7248 = vadd.f32 0.0, %v7247
  %v7249 = vpop.f32.mrf.mxu0
  %v7250 = vadd.f32 0.0, %v7249
  %7251 = vdwg.mxu0
  %7252 = vmatprep.subr.bf16.mxu0 %v7058
  %7253 = vmatpush1.bf16.msra.mxu0 %v7057
  %7254 = vmatprep.subr.bf16.mxu0 %v7050
  %7255 = vmatpush1.bf16.msra.mxu0 %v7049
  %7256 = vmatprep.subr.bf16.mxu0 %v7042
  %7257 = vmatpush1.bf16.msra.mxu0 %v7041
  %7258 = vmatprep.subr.bf16.mxu0 %v7034
  %7259 = vmatpush1.bf16.msra.mxu0 %v7033
  %7260 = vmatprep.subr.bf16.mxu0 %v7026
  %7261 = vmatpush1.bf16.msra.mxu0 %v7025
  %7262 = vmatprep.subr.bf16.mxu0 %v7018
  %7263 = vmatpush1.bf16.msra.mxu0 %v7017
  %7264 = vmatprep.subr.bf16.mxu0 %v7010
  %7265 = vmatpush1.bf16.msra.mxu0 %v7009
  %7266 = vmatprep.subr.bf16.mxu0 %v7002
  %7267 = vmatpush1.bf16.msra.mxu0 %v7001
  %7268 = vmatprep.subr.bf16.mxu0 0
  %7269 = vmatpush2.bf16.msra.mxu0 0
  %7270 = vmatprep.subr.bf16.mxu0 0
  %7271 = vmatpush2.bf16.msra.mxu0 0
  %7272 = vmatprep.subr.bf16.mxu0 0
  %7273 = vmatpush2.bf16.msra.mxu0 0
  %7274 = vmatprep.subr.bf16.mxu0 0
  %7275 = vmatpush2.bf16.msra.mxu0 0
  %7276 = vmatprep.subr.bf16.mxu0 0
  %7277 = vmatpush2.bf16.msra.mxu0 0
  %7278 = vmatprep.subr.bf16.mxu0 0
  %7279 = vmatpush2.bf16.msra.mxu0 0
  %7280 = vmatprep.subr.bf16.mxu0 0
  %7281 = vmatpush2.bf16.msra.mxu0 0
  %7282 = vmatprep.subr.bf16.mxu0 0
  %7283 = vmatpush2.bf16.msra.mxu0 0
  %7284 = vmatprep.mubr.bf16.mxu0 0
  %7285 = vmatmul.mubr.bf16.gmra.mxu0 %v6801
  %v7286 = vpop.f32.mrf.mxu0
  %v7287 = vadd.f32 0.0, %v7286
  %v7288 = vpop.f32.mrf.mxu0
  %v7289 = vadd.f32 0.0, %v7288
  %v7290 = vpop.f32.mrf.mxu0
  %v7291 = vadd.f32 0.0, %v7290
  %v7292 = vpop.f32.mrf.mxu0
  %v7293 = vadd.f32 0.0, %v7292
  %7294 = vdwg.mxu0
  %v7295 = vadd.f32 %v6715, %v7158
  %v7296 = vadd.f32 %v6716, %v7160
  %v7297 = vadd.f32 %v6717, %v7201
  %v7298 = vadd.f32 %v6718, %v7203
  %v7299 = vadd.f32 %v6719, %v7244
  %v7300 = vadd.f32 %v6720, %v7246
  %v7301 = vadd.f32 %v6721, %v7287
  %v7302 = vadd.f32 %v6722, %v7289
  %v7303 = vadd.f32 %v6723, %v7162
  %v7304 = vadd.f32 %v6724, %v7164
  %v7305 = vadd.f32 %v6725, %v7205
  %v7306 = vadd.f32 %v6726, %v7207
  %v7307 = vadd.f32 %v6727, %v7248
  %v7308 = vadd.f32 %v6728, %v7250
  %v7309 = vadd.f32 %v6729, %v7291
  %v7310 = vadd.f32 %v6730, %v7293
  %7311 = vst [vmem:[#allocation3] sm:$0xff] %v7295
  %7312 = vst [vmem:[#allocation3 + $0x8] sm:$0xff] %v7296
  %7313 = vst [vmem:[#allocation3 + $0x10] sm:$0xff] %v7297
  %7314 = vst [vmem:[#allocation3 + $0x18] sm:$0xff] %v7298
  %7315 = vst [vmem:[#allocation3 + $0x20] sm:$0xff] %v7299
  %7316 = vst [vmem:[#allocation3 + $0x28] sm:$0xff] %v7300
  %7317 = vst [vmem:[#allocation3 + $0x30] sm:$0xff] %v7301
  %7318 = vst [vmem:[#allocation3 + $0x38] sm:$0xff] %v7302
  %7319 = vst [vmem:[#allocation3 + $0x40] sm:$0xff] %v7303
  %7320 = vst [vmem:[#allocation3 + $0x48] sm:$0xff] %v7304
  %7321 = vst [vmem:[#allocation3 + $0x50] sm:$0xff] %v7305
  %7322 = vst [vmem:[#allocation3 + $0x58] sm:$0xff] %v7306
  %7323 = vst [vmem:[#allocation3 + $0x60] sm:$0xff] %v7307
  %7324 = vst [vmem:[#allocation3 + $0x68] sm:$0xff] %v7308
  %7325 = vst [vmem:[#allocation3 + $0x70] sm:$0xff] %v7309
  %7326 = vst [vmem:[#allocation3 + $0x78] sm:$0xff] %v7310
  %v7327 = vld [vmem:[#allocation3] sm:$0xff]
  %v7328 = vld [vmem:[#allocation3 + $0x8] sm:$0xff]
  %v7329 = vld [vmem:[#allocation3 + $0x10] sm:$0xff]
  %v7330 = vld [vmem:[#allocation3 + $0x18] sm:$0xff]
  %v7331 = vld [vmem:[#allocation3 + $0x20] sm:$0xff]
  %v7332 = vld [vmem:[#allocation3 + $0x28] sm:$0xff]
  %v7333 = vld [vmem:[#allocation3 + $0x30] sm:$0xff]
  %v7334 = vld [vmem:[#allocation3 + $0x38] sm:$0xff]
  %v7335 = vld [vmem:[#allocation3 + $0x40] sm:$0xff]
  %v7336 = vld [vmem:[#allocation3 + $0x48] sm:$0xff]
  %v7337 = vld [vmem:[#allocation3 + $0x50] sm:$0xff]
  %v7338 = vld [vmem:[#allocation3 + $0x58] sm:$0xff]
  %v7339 = vld [vmem:[#allocation3 + $0x60] sm:$0xff]
  %v7340 = vld [vmem:[#allocation3 + $0x68] sm:$0xff]
  %v7341 = vld [vmem:[#allocation3 + $0x70] sm:$0xff]
  %v7342 = vld [vmem:[#allocation3 + $0x78] sm:$0xff]
  %v7343 = vld [vmem:[#allocation2 + $0x58] sm:$0xf]
  %v7344 = vld [vmem:[#allocation2 + $0x5c] sm:$0xf]
  %v7345 = vld [vmem:[%s3 + $0x1600] sm:$0xff]
  %v7346 = vld [vmem:[%s3 + $0x1608] sm:$0xff]
  %v7347 = vld [vmem:[%s3 + $0x1610] sm:$0xff]
  %v7348 = vld [vmem:[%s3 + $0x1618] sm:$0xff]
  %v7349 = vld [vmem:[%s3 + $0x1620] sm:$0xff]
  %v7350 = vld [vmem:[%s3 + $0x1628] sm:$0xff]
  %v7351 = vld [vmem:[%s3 + $0x1630] sm:$0xff]
  %v7352 = vld [vmem:[%s3 + $0x1638] sm:$0xff]
  %v7353 = vld [vmem:[%s3 + $0x1640] sm:$0xff]
  %v7354 = vld [vmem:[%s3 + $0x1648] sm:$0xff]
  %v7355 = vld [vmem:[%s3 + $0x1650] sm:$0xff]
  %v7356 = vld [vmem:[%s3 + $0x1658] sm:$0xff]
  %v7357 = vld [vmem:[%s3 + $0x1660] sm:$0xff]
  %v7358 = vld [vmem:[%s3 + $0x1668] sm:$0xff]
  %v7359 = vld [vmem:[%s3 + $0x1670] sm:$0xff]
  %v7360 = vld [vmem:[%s3 + $0x1678] sm:$0xff]
  %v7361 = vld [vmem:[%s3 + $0x1680] sm:$0xff]
  %v7362 = vld [vmem:[%s3 + $0x1688] sm:$0xff]
  %v7363 = vld [vmem:[%s3 + $0x1690] sm:$0xff]
  %v7364 = vld [vmem:[%s3 + $0x1698] sm:$0xff]
  %v7365 = vld [vmem:[%s3 + $0x16a0] sm:$0xff]
  %v7366 = vld [vmem:[%s3 + $0x16a8] sm:$0xff]
  %v7367 = vld [vmem:[%s3 + $0x16b0] sm:$0xff]
  %v7368 = vld [vmem:[%s3 + $0x16b8] sm:$0xff]
  %v7369 = vld [vmem:[%s3 + $0x16c0] sm:$0xff]
  %v7370 = vld [vmem:[%s3 + $0x16c8] sm:$0xff]
  %v7371 = vld [vmem:[%s3 + $0x16d0] sm:$0xff]
  %v7372 = vld [vmem:[%s3 + $0x16d8] sm:$0xff]
  %v7373 = vld [vmem:[%s3 + $0x16e0] sm:$0xff]
  %v7374 = vld [vmem:[%s3 + $0x16e8] sm:$0xff]
  %v7375 = vld [vmem:[%s3 + $0x16f0] sm:$0xff]
  %v7376 = vld [vmem:[%s3 + $0x16f8] sm:$0xff]
  %v7377 = vld [vmem:[%s3 + $0x1700] sm:$0xff]
  %v7378 = vld [vmem:[%s3 + $0x1708] sm:$0xff]
  %v7379 = vld [vmem:[%s3 + $0x1710] sm:$0xff]
  %v7380 = vld [vmem:[%s3 + $0x1718] sm:$0xff]
  %v7381 = vld [vmem:[%s3 + $0x1720] sm:$0xff]
  %v7382 = vld [vmem:[%s3 + $0x1728] sm:$0xff]
  %v7383 = vld [vmem:[%s3 + $0x1730] sm:$0xff]
  %v7384 = vld [vmem:[%s3 + $0x1738] sm:$0xff]
  %v7385 = vld [vmem:[%s3 + $0x1740] sm:$0xff]
  %v7386 = vld [vmem:[%s3 + $0x1748] sm:$0xff]
  %v7387 = vld [vmem:[%s3 + $0x1750] sm:$0xff]
  %v7388 = vld [vmem:[%s3 + $0x1758] sm:$0xff]
  %v7389 = vld [vmem:[%s3 + $0x1760] sm:$0xff]
  %v7390 = vld [vmem:[%s3 + $0x1768] sm:$0xff]
  %v7391 = vld [vmem:[%s3 + $0x1770] sm:$0xff]
  %v7392 = vld [vmem:[%s3 + $0x1778] sm:$0xff]
  %v7393 = vld [vmem:[%s3 + $0x1780] sm:$0xff]
  %v7394 = vld [vmem:[%s3 + $0x1788] sm:$0xff]
  %v7395 = vld [vmem:[%s3 + $0x1790] sm:$0xff]
  %v7396 = vld [vmem:[%s3 + $0x1798] sm:$0xff]
  %v7397 = vld [vmem:[%s3 + $0x17a0] sm:$0xff]
  %v7398 = vld [vmem:[%s3 + $0x17a8] sm:$0xff]
  %v7399 = vld [vmem:[%s3 + $0x17b0] sm:$0xff]
  %v7400 = vld [vmem:[%s3 + $0x17b8] sm:$0xff]
  %v7401 = vld [vmem:[%s3 + $0x17c0] sm:$0xff]
  %v7402 = vld [vmem:[%s3 + $0x17c8] sm:$0xff]
  %v7403 = vld [vmem:[%s3 + $0x17d0] sm:$0xff]
  %v7404 = vld [vmem:[%s3 + $0x17d8] sm:$0xff]
  %v7405 = vld [vmem:[%s3 + $0x17e0] sm:$0xff]
  %v7406 = vld [vmem:[%s3 + $0x17e8] sm:$0xff]
  %v7407 = vld [vmem:[%s3 + $0x17f0] sm:$0xff]
  %v7408 = vld [vmem:[%s3 + $0x17f8] sm:$0xff]
  %v7411 = vunpack.c.l.b16 %v7343
  %v7412 = vunpack.c.l.b16 %v7344
  %v7413 = vpack.c.b16 %v7412, %v7411
  %v7479 = vunpack.c.l.b16 %v7345
  %v7480 = vunpack.c.h.b16 %v7345
  %v7481 = vunpack.c.l.b16 %v7346
  %v7482 = vunpack.c.h.b16 %v7346
  %v7483 = vunpack.c.l.b16 %v7347
  %v7484 = vunpack.c.h.b16 %v7347
  %v7485 = vunpack.c.l.b16 %v7348
  %v7486 = vunpack.c.h.b16 %v7348
  %v7487 = vunpack.c.l.b16 %v7349
  %v7488 = vunpack.c.h.b16 %v7349
  %v7489 = vunpack.c.l.b16 %v7350
  %v7490 = vunpack.c.h.b16 %v7350
  %v7491 = vunpack.c.l.b16 %v7351
  %v7492 = vunpack.c.h.b16 %v7351
  %v7493 = vunpack.c.l.b16 %v7352
  %v7494 = vunpack.c.h.b16 %v7352
  %v7495 = vunpack.c.l.b16 %v7353
  %v7496 = vunpack.c.h.b16 %v7353
  %v7497 = vunpack.c.l.b16 %v7354
  %v7498 = vunpack.c.h.b16 %v7354
  %v7499 = vunpack.c.l.b16 %v7355
  %v7500 = vunpack.c.h.b16 %v7355
  %v7501 = vunpack.c.l.b16 %v7356
  %v7502 = vunpack.c.h.b16 %v7356
  %v7503 = vunpack.c.l.b16 %v7357
  %v7504 = vunpack.c.h.b16 %v7357
  %v7505 = vunpack.c.l.b16 %v7358
  %v7506 = vunpack.c.h.b16 %v7358
  %v7507 = vunpack.c.l.b16 %v7359
  %v7508 = vunpack.c.h.b16 %v7359
  %v7509 = vunpack.c.l.b16 %v7360
  %v7510 = vunpack.c.h.b16 %v7360
  %v7511 = vunpack.c.l.b16 %v7361
  %v7512 = vunpack.c.h.b16 %v7361
  %v7513 = vunpack.c.l.b16 %v7362
  %v7514 = vunpack.c.h.b16 %v7362
  %v7515 = vunpack.c.l.b16 %v7363
  %v7516 = vunpack.c.h.b16 %v7363
  %v7517 = vunpack.c.l.b16 %v7364
  %v7518 = vunpack.c.h.b16 %v7364
  %v7519 = vunpack.c.l.b16 %v7365
  %v7520 = vunpack.c.h.b16 %v7365
  %v7521 = vunpack.c.l.b16 %v7366
  %v7522 = vunpack.c.h.b16 %v7366
  %v7523 = vunpack.c.l.b16 %v7367
  %v7524 = vunpack.c.h.b16 %v7367
  %v7525 = vunpack.c.l.b16 %v7368
  %v7526 = vunpack.c.h.b16 %v7368
  %v7527 = vunpack.c.l.b16 %v7369
  %v7528 = vunpack.c.h.b16 %v7369
  %v7529 = vunpack.c.l.b16 %v7370
  %v7530 = vunpack.c.h.b16 %v7370
  %v7531 = vunpack.c.l.b16 %v7371
  %v7532 = vunpack.c.h.b16 %v7371
  %v7533 = vunpack.c.l.b16 %v7372
  %v7534 = vunpack.c.h.b16 %v7372
  %v7535 = vunpack.c.l.b16 %v7373
  %v7536 = vunpack.c.h.b16 %v7373
  %v7537 = vunpack.c.l.b16 %v7374
  %v7538 = vunpack.c.h.b16 %v7374
  %v7539 = vunpack.c.l.b16 %v7375
  %v7540 = vunpack.c.h.b16 %v7375
  %v7541 = vunpack.c.l.b16 %v7376
  %v7542 = vunpack.c.h.b16 %v7376
  %v7543 = vunpack.c.l.b16 %v7377
  %v7544 = vunpack.c.h.b16 %v7377
  %v7545 = vunpack.c.l.b16 %v7378
  %v7546 = vunpack.c.h.b16 %v7378
  %v7547 = vunpack.c.l.b16 %v7379
  %v7548 = vunpack.c.h.b16 %v7379
  %v7549 = vunpack.c.l.b16 %v7380
  %v7550 = vunpack.c.h.b16 %v7380
  %v7551 = vunpack.c.l.b16 %v7381
  %v7552 = vunpack.c.h.b16 %v7381
  %v7553 = vunpack.c.l.b16 %v7382
  %v7554 = vunpack.c.h.b16 %v7382
  %v7555 = vunpack.c.l.b16 %v7383
  %v7556 = vunpack.c.h.b16 %v7383
  %v7557 = vunpack.c.l.b16 %v7384
  %v7558 = vunpack.c.h.b16 %v7384
  %v7559 = vunpack.c.l.b16 %v7385
  %v7560 = vunpack.c.h.b16 %v7385
  %v7561 = vunpack.c.l.b16 %v7386
  %v7562 = vunpack.c.h.b16 %v7386
  %v7563 = vunpack.c.l.b16 %v7387
  %v7564 = vunpack.c.h.b16 %v7387
  %v7565 = vunpack.c.l.b16 %v7388
  %v7566 = vunpack.c.h.b16 %v7388
  %v7567 = vunpack.c.l.b16 %v7389
  %v7568 = vunpack.c.h.b16 %v7389
  %v7569 = vunpack.c.l.b16 %v7390
  %v7570 = vunpack.c.h.b16 %v7390
  %v7571 = vunpack.c.l.b16 %v7391
  %v7572 = vunpack.c.h.b16 %v7391
  %v7573 = vunpack.c.l.b16 %v7392
  %v7574 = vunpack.c.h.b16 %v7392
  %v7575 = vunpack.c.l.b16 %v7393
  %v7576 = vunpack.c.h.b16 %v7393
  %v7577 = vunpack.c.l.b16 %v7394
  %v7578 = vunpack.c.h.b16 %v7394
  %v7579 = vunpack.c.l.b16 %v7395
  %v7580 = vunpack.c.h.b16 %v7395
  %v7581 = vunpack.c.l.b16 %v7396
  %v7582 = vunpack.c.h.b16 %v7396
  %v7583 = vunpack.c.l.b16 %v7397
  %v7584 = vunpack.c.h.b16 %v7397
  %v7585 = vunpack.c.l.b16 %v7398
  %v7586 = vunpack.c.h.b16 %v7398
  %v7587 = vunpack.c.l.b16 %v7399
  %v7588 = vunpack.c.h.b16 %v7399
  %v7589 = vunpack.c.l.b16 %v7400
  %v7590 = vunpack.c.h.b16 %v7400
  %v7591 = vunpack.c.l.b16 %v7401
  %v7592 = vunpack.c.h.b16 %v7401
  %v7593 = vunpack.c.l.b16 %v7402
  %v7594 = vunpack.c.h.b16 %v7402
  %v7595 = vunpack.c.l.b16 %v7403
  %v7596 = vunpack.c.h.b16 %v7403
  %v7597 = vunpack.c.l.b16 %v7404
  %v7598 = vunpack.c.h.b16 %v7404
  %v7599 = vunpack.c.l.b16 %v7405
  %v7600 = vunpack.c.h.b16 %v7405
  %v7601 = vunpack.c.l.b16 %v7406
  %v7602 = vunpack.c.h.b16 %v7406
  %v7603 = vunpack.c.l.b16 %v7407
  %v7604 = vunpack.c.h.b16 %v7407
  %v7605 = vunpack.c.l.b16 %v7408
  %v7606 = vunpack.c.h.b16 %v7408
  %v7607 = vpack.c.b16 %v7487, %v7479
  %v7608 = vpack.c.b16 %v7488, %v7480
  %v7609 = vpack.c.b16 %v7489, %v7481
  %v7610 = vpack.c.b16 %v7490, %v7482
  %v7611 = vpack.c.b16 %v7491, %v7483
  %v7612 = vpack.c.b16 %v7492, %v7484
  %v7613 = vpack.c.b16 %v7493, %v7485
  %v7614 = vpack.c.b16 %v7494, %v7486
  %v7615 = vpack.c.b16 %v7503, %v7495
  %v7616 = vpack.c.b16 %v7504, %v7496
  %v7617 = vpack.c.b16 %v7505, %v7497
  %v7618 = vpack.c.b16 %v7506, %v7498
  %v7619 = vpack.c.b16 %v7507, %v7499
  %v7620 = vpack.c.b16 %v7508, %v7500
  %v7621 = vpack.c.b16 %v7509, %v7501
  %v7622 = vpack.c.b16 %v7510, %v7502
  %v7623 = vpack.c.b16 %v7519, %v7511
  %v7624 = vpack.c.b16 %v7520, %v7512
  %v7625 = vpack.c.b16 %v7521, %v7513
  %v7626 = vpack.c.b16 %v7522, %v7514
  %v7627 = vpack.c.b16 %v7523, %v7515
  %v7628 = vpack.c.b16 %v7524, %v7516
  %v7629 = vpack.c.b16 %v7525, %v7517
  %v7630 = vpack.c.b16 %v7526, %v7518
  %v7631 = vpack.c.b16 %v7535, %v7527
  %v7632 = vpack.c.b16 %v7536, %v7528
  %v7633 = vpack.c.b16 %v7537, %v7529
  %v7634 = vpack.c.b16 %v7538, %v7530
  %v7635 = vpack.c.b16 %v7539, %v7531
  %v7636 = vpack.c.b16 %v7540, %v7532
  %v7637 = vpack.c.b16 %v7541, %v7533
  %v7638 = vpack.c.b16 %v7542, %v7534
  %v7639 = vpack.c.b16 %v7551, %v7543
  %v7640 = vpack.c.b16 %v7552, %v7544
  %v7641 = vpack.c.b16 %v7553, %v7545
  %v7642 = vpack.c.b16 %v7554, %v7546
  %v7643 = vpack.c.b16 %v7555, %v7547
  %v7644 = vpack.c.b16 %v7556, %v7548
  %v7645 = vpack.c.b16 %v7557, %v7549
  %v7646 = vpack.c.b16 %v7558, %v7550
  %v7647 = vpack.c.b16 %v7567, %v7559
  %v7648 = vpack.c.b16 %v7568, %v7560
  %v7649 = vpack.c.b16 %v7569, %v7561
  %v7650 = vpack.c.b16 %v7570, %v7562
  %v7651 = vpack.c.b16 %v7571, %v7563
  %v7652 = vpack.c.b16 %v7572, %v7564
  %v7653 = vpack.c.b16 %v7573, %v7565
  %v7654 = vpack.c.b16 %v7574, %v7566
  %v7655 = vpack.c.b16 %v7583, %v7575
  %v7656 = vpack.c.b16 %v7584, %v7576
  %v7657 = vpack.c.b16 %v7585, %v7577
  %v7658 = vpack.c.b16 %v7586, %v7578
  %v7659 = vpack.c.b16 %v7587, %v7579
  %v7660 = vpack.c.b16 %v7588, %v7580
  %v7661 = vpack.c.b16 %v7589, %v7581
  %v7662 = vpack.c.b16 %v7590, %v7582
  %v7663 = vpack.c.b16 %v7599, %v7591
  %v7664 = vpack.c.b16 %v7600, %v7592
  %v7665 = vpack.c.b16 %v7601, %v7593
  %v7666 = vpack.c.b16 %v7602, %v7594
  %v7667 = vpack.c.b16 %v7603, %v7595
  %v7668 = vpack.c.b16 %v7604, %v7596
  %v7669 = vpack.c.b16 %v7605, %v7597
  %v7670 = vpack.c.b16 %v7606, %v7598
  %7735 = vmatprep.subr.bf16.mxu0 %v7664
  %7736 = vmatpush1.bf16.msra.mxu0 %v7663
  %7737 = vmatprep.subr.bf16.mxu0 %v7656
  %7738 = vmatpush1.bf16.msra.mxu0 %v7655
  %7739 = vmatprep.subr.bf16.mxu0 %v7648
  %7740 = vmatpush1.bf16.msra.mxu0 %v7647
  %7741 = vmatprep.subr.bf16.mxu0 %v7640
  %7742 = vmatpush1.bf16.msra.mxu0 %v7639
  %7743 = vmatprep.subr.bf16.mxu0 %v7632
  %7744 = vmatpush1.bf16.msra.mxu0 %v7631
  %7745 = vmatprep.subr.bf16.mxu0 %v7624
  %7746 = vmatpush1.bf16.msra.mxu0 %v7623
  %7747 = vmatprep.subr.bf16.mxu0 %v7616
  %7748 = vmatpush1.bf16.msra.mxu0 %v7615
  %7749 = vmatprep.subr.bf16.mxu0 %v7608
  %7750 = vmatpush1.bf16.msra.mxu0 %v7607
  %7751 = vmatprep.subr.bf16.mxu0 0
  %7752 = vmatpush2.bf16.msra.mxu0 0
  %7753 = vmatprep.subr.bf16.mxu0 0
  %7754 = vmatpush2.bf16.msra.mxu0 0
  %7755 = vmatprep.subr.bf16.mxu0 0
  %7756 = vmatpush2.bf16.msra.mxu0 0
  %7757 = vmatprep.subr.bf16.mxu0 0
  %7758 = vmatpush2.bf16.msra.mxu0 0
  %7759 = vmatprep.subr.bf16.mxu0 0
  %7760 = vmatpush2.bf16.msra.mxu0 0
  %7761 = vmatprep.subr.bf16.mxu0 0
  %7762 = vmatpush2.bf16.msra.mxu0 0
  %7763 = vmatprep.subr.bf16.mxu0 0
  %7764 = vmatpush2.bf16.msra.mxu0 0
  %7765 = vmatprep.subr.bf16.mxu0 0
  %7766 = vmatpush2.bf16.msra.mxu0 0
  %7767 = vmatprep.mubr.bf16.mxu0 0
  %7768 = vmatmul.mubr.bf16.gmra.mxu0 %v7413
  %v7769 = vpop.f32.mrf.mxu0
  %v7770 = vadd.f32 0.0, %v7769
  %v7771 = vpop.f32.mrf.mxu0
  %v7772 = vadd.f32 0.0, %v7771
  %v7773 = vpop.f32.mrf.mxu0
  %v7774 = vadd.f32 0.0, %v7773
  %v7775 = vpop.f32.mrf.mxu0
  %v7776 = vadd.f32 0.0, %v7775
  %7777 = vdwg.mxu0
  %7778 = vmatprep.subr.bf16.mxu0 %v7666
  %7779 = vmatpush1.bf16.msra.mxu0 %v7665
  %7780 = vmatprep.subr.bf16.mxu0 %v7658
  %7781 = vmatpush1.bf16.msra.mxu0 %v7657
  %7782 = vmatprep.subr.bf16.mxu0 %v7650
  %7783 = vmatpush1.bf16.msra.mxu0 %v7649
  %7784 = vmatprep.subr.bf16.mxu0 %v7642
  %7785 = vmatpush1.bf16.msra.mxu0 %v7641
  %7786 = vmatprep.subr.bf16.mxu0 %v7634
  %7787 = vmatpush1.bf16.msra.mxu0 %v7633
  %7788 = vmatprep.subr.bf16.mxu0 %v7626
  %7789 = vmatpush1.bf16.msra.mxu0 %v7625
  %7790 = vmatprep.subr.bf16.mxu0 %v7618
  %7791 = vmatpush1.bf16.msra.mxu0 %v7617
  %7792 = vmatprep.subr.bf16.mxu0 %v7610
  %7793 = vmatpush1.bf16.msra.mxu0 %v7609
  %7794 = vmatprep.subr.bf16.mxu0 0
  %7795 = vmatpush2.bf16.msra.mxu0 0
  %7796 = vmatprep.subr.bf16.mxu0 0
  %7797 = vmatpush2.bf16.msra.mxu0 0
  %7798 = vmatprep.subr.bf16.mxu0 0
  %7799 = vmatpush2.bf16.msra.mxu0 0
  %7800 = vmatprep.subr.bf16.mxu0 0
  %7801 = vmatpush2.bf16.msra.mxu0 0
  %7802 = vmatprep.subr.bf16.mxu0 0
  %7803 = vmatpush2.bf16.msra.mxu0 0
  %7804 = vmatprep.subr.bf16.mxu0 0
  %7805 = vmatpush2.bf16.msra.mxu0 0
  %7806 = vmatprep.subr.bf16.mxu0 0
  %7807 = vmatpush2.bf16.msra.mxu0 0
  %7808 = vmatprep.subr.bf16.mxu0 0
  %7809 = vmatpush2.bf16.msra.mxu0 0
  %7810 = vmatprep.mubr.bf16.mxu0 0
  %7811 = vmatmul.mubr.bf16.gmra.mxu0 %v7413
  %v7812 = vpop.f32.mrf.mxu0
  %v7813 = vadd.f32 0.0, %v7812
  %v7814 = vpop.f32.mrf.mxu0
  %v7815 = vadd.f32 0.0, %v7814
  %v7816 = vpop.f32.mrf.mxu0
  %v7817 = vadd.f32 0.0, %v7816
  %v7818 = vpop.f32.mrf.mxu0
  %v7819 = vadd.f32 0.0, %v7818
  %7820 = vdwg.mxu0
  %7821 = vmatprep.subr.bf16.mxu0 %v7668
  %7822 = vmatpush1.bf16.msra.mxu0 %v7667
  %7823 = vmatprep.subr.bf16.mxu0 %v7660
  %7824 = vmatpush1.bf16.msra.mxu0 %v7659
  %7825 = vmatprep.subr.bf16.mxu0 %v7652
  %7826 = vmatpush1.bf16.msra.mxu0 %v7651
  %7827 = vmatprep.subr.bf16.mxu0 %v7644
  %7828 = vmatpush1.bf16.msra.mxu0 %v7643
  %7829 = vmatprep.subr.bf16.mxu0 %v7636
  %7830 = vmatpush1.bf16.msra.mxu0 %v7635
  %7831 = vmatprep.subr.bf16.mxu0 %v7628
  %7832 = vmatpush1.bf16.msra.mxu0 %v7627
  %7833 = vmatprep.subr.bf16.mxu0 %v7620
  %7834 = vmatpush1.bf16.msra.mxu0 %v7619
  %7835 = vmatprep.subr.bf16.mxu0 %v7612
  %7836 = vmatpush1.bf16.msra.mxu0 %v7611
  %7837 = vmatprep.subr.bf16.mxu0 0
  %7838 = vmatpush2.bf16.msra.mxu0 0
  %7839 = vmatprep.subr.bf16.mxu0 0
  %7840 = vmatpush2.bf16.msra.mxu0 0
  %7841 = vmatprep.subr.bf16.mxu0 0
  %7842 = vmatpush2.bf16.msra.mxu0 0
  %7843 = vmatprep.subr.bf16.mxu0 0
  %7844 = vmatpush2.bf16.msra.mxu0 0
  %7845 = vmatprep.subr.bf16.mxu0 0
  %7846 = vmatpush2.bf16.msra.mxu0 0
  %7847 = vmatprep.subr.bf16.mxu0 0
  %7848 = vmatpush2.bf16.msra.mxu0 0
  %7849 = vmatprep.subr.bf16.mxu0 0
  %7850 = vmatpush2.bf16.msra.mxu0 0
  %7851 = vmatprep.subr.bf16.mxu0 0
  %7852 = vmatpush2.bf16.msra.mxu0 0
  %7853 = vmatprep.mubr.bf16.mxu0 0
  %7854 = vmatmul.mubr.bf16.gmra.mxu0 %v7413
  %v7855 = vpop.f32.mrf.mxu0
  %v7856 = vadd.f32 0.0, %v7855
  %v7857 = vpop.f32.mrf.mxu0
  %v7858 = vadd.f32 0.0, %v7857
  %v7859 = vpop.f32.mrf.mxu0
  %v7860 = vadd.f32 0.0, %v7859
  %v7861 = vpop.f32.mrf.mxu0
  %v7862 = vadd.f32 0.0, %v7861
  %7863 = vdwg.mxu0
  %7864 = vmatprep.subr.bf16.mxu0 %v7670
  %7865 = vmatpush1.bf16.msra.mxu0 %v7669
  %7866 = vmatprep.subr.bf16.mxu0 %v7662
  %7867 = vmatpush1.bf16.msra.mxu0 %v7661
  %7868 = vmatprep.subr.bf16.mxu0 %v7654
  %7869 = vmatpush1.bf16.msra.mxu0 %v7653
  %7870 = vmatprep.subr.bf16.mxu0 %v7646
  %7871 = vmatpush1.bf16.msra.mxu0 %v7645
  %7872 = vmatprep.subr.bf16.mxu0 %v7638
  %7873 = vmatpush1.bf16.msra.mxu0 %v7637
  %7874 = vmatprep.subr.bf16.mxu0 %v7630
  %7875 = vmatpush1.bf16.msra.mxu0 %v7629
  %7876 = vmatprep.subr.bf16.mxu0 %v7622
  %7877 = vmatpush1.bf16.msra.mxu0 %v7621
  %7878 = vmatprep.subr.bf16.mxu0 %v7614
  %7879 = vmatpush1.bf16.msra.mxu0 %v7613
  %7880 = vmatprep.subr.bf16.mxu0 0
  %7881 = vmatpush2.bf16.msra.mxu0 0
  %7882 = vmatprep.subr.bf16.mxu0 0
  %7883 = vmatpush2.bf16.msra.mxu0 0
  %7884 = vmatprep.subr.bf16.mxu0 0
  %7885 = vmatpush2.bf16.msra.mxu0 0
  %7886 = vmatprep.subr.bf16.mxu0 0
  %7887 = vmatpush2.bf16.msra.mxu0 0
  %7888 = vmatprep.subr.bf16.mxu0 0
  %7889 = vmatpush2.bf16.msra.mxu0 0
  %7890 = vmatprep.subr.bf16.mxu0 0
  %7891 = vmatpush2.bf16.msra.mxu0 0
  %7892 = vmatprep.subr.bf16.mxu0 0
  %7893 = vmatpush2.bf16.msra.mxu0 0
  %7894 = vmatprep.subr.bf16.mxu0 0
  %7895 = vmatpush2.bf16.msra.mxu0 0
  %7896 = vmatprep.mubr.bf16.mxu0 0
  %7897 = vmatmul.mubr.bf16.gmra.mxu0 %v7413
  %v7898 = vpop.f32.mrf.mxu0
  %v7899 = vadd.f32 0.0, %v7898
  %v7900 = vpop.f32.mrf.mxu0
  %v7901 = vadd.f32 0.0, %v7900
  %v7902 = vpop.f32.mrf.mxu0
  %v7903 = vadd.f32 0.0, %v7902
  %v7904 = vpop.f32.mrf.mxu0
  %v7905 = vadd.f32 0.0, %v7904
  %7906 = vdwg.mxu0
  %v7907 = vadd.f32 %v7327, %v7770
  %v7908 = vadd.f32 %v7328, %v7772
  %v7909 = vadd.f32 %v7329, %v7813
  %v7910 = vadd.f32 %v7330, %v7815
  %v7911 = vadd.f32 %v7331, %v7856
  %v7912 = vadd.f32 %v7332, %v7858
  %v7913 = vadd.f32 %v7333, %v7899
  %v7914 = vadd.f32 %v7334, %v7901
  %v7915 = vadd.f32 %v7335, %v7774
  %v7916 = vadd.f32 %v7336, %v7776
  %v7917 = vadd.f32 %v7337, %v7817
  %v7918 = vadd.f32 %v7338, %v7819
  %v7919 = vadd.f32 %v7339, %v7860
  %v7920 = vadd.f32 %v7340, %v7862
  %v7921 = vadd.f32 %v7341, %v7903
  %v7922 = vadd.f32 %v7342, %v7905
  %7923 = vst [vmem:[#allocation3] sm:$0xff] %v7907
  %7924 = vst [vmem:[#allocation3 + $0x8] sm:$0xff] %v7908
  %7925 = vst [vmem:[#allocation3 + $0x10] sm:$0xff] %v7909
  %7926 = vst [vmem:[#allocation3 + $0x18] sm:$0xff] %v7910
  %7927 = vst [vmem:[#allocation3 + $0x20] sm:$0xff] %v7911
  %7928 = vst [vmem:[#allocation3 + $0x28] sm:$0xff] %v7912
  %7929 = vst [vmem:[#allocation3 + $0x30] sm:$0xff] %v7913
  %7930 = vst [vmem:[#allocation3 + $0x38] sm:$0xff] %v7914
  %7931 = vst [vmem:[#allocation3 + $0x40] sm:$0xff] %v7915
  %7932 = vst [vmem:[#allocation3 + $0x48] sm:$0xff] %v7916
  %7933 = vst [vmem:[#allocation3 + $0x50] sm:$0xff] %v7917
  %7934 = vst [vmem:[#allocation3 + $0x58] sm:$0xff] %v7918
  %7935 = vst [vmem:[#allocation3 + $0x60] sm:$0xff] %v7919
  %7936 = vst [vmem:[#allocation3 + $0x68] sm:$0xff] %v7920
  %7937 = vst [vmem:[#allocation3 + $0x70] sm:$0xff] %v7921
  %7938 = vst [vmem:[#allocation3 + $0x78] sm:$0xff] %v7922
  %v7939 = vld [vmem:[#allocation3] sm:$0xff]
  %v7940 = vld [vmem:[#allocation3 + $0x8] sm:$0xff]
  %v7941 = vld [vmem:[#allocation3 + $0x10] sm:$0xff]
  %v7942 = vld [vmem:[#allocation3 + $0x18] sm:$0xff]
  %v7943 = vld [vmem:[#allocation3 + $0x20] sm:$0xff]
  %v7944 = vld [vmem:[#allocation3 + $0x28] sm:$0xff]
  %v7945 = vld [vmem:[#allocation3 + $0x30] sm:$0xff]
  %v7946 = vld [vmem:[#allocation3 + $0x38] sm:$0xff]
  %v7947 = vld [vmem:[#allocation3 + $0x40] sm:$0xff]
  %v7948 = vld [vmem:[#allocation3 + $0x48] sm:$0xff]
  %v7949 = vld [vmem:[#allocation3 + $0x50] sm:$0xff]
  %v7950 = vld [vmem:[#allocation3 + $0x58] sm:$0xff]
  %v7951 = vld [vmem:[#allocation3 + $0x60] sm:$0xff]
  %v7952 = vld [vmem:[#allocation3 + $0x68] sm:$0xff]
  %v7953 = vld [vmem:[#allocation3 + $0x70] sm:$0xff]
  %v7954 = vld [vmem:[#allocation3 + $0x78] sm:$0xff]
  %v7955 = vld [vmem:[#allocation2 + $0x60] sm:$0xf]
  %v7956 = vld [vmem:[#allocation2 + $0x64] sm:$0xf]
  %v7957 = vld [vmem:[%s3 + $0x1800] sm:$0xff]
  %v7958 = vld [vmem:[%s3 + $0x1808] sm:$0xff]
  %v7959 = vld [vmem:[%s3 + $0x1810] sm:$0xff]
  %v7960 = vld [vmem:[%s3 + $0x1818] sm:$0xff]
  %v7961 = vld [vmem:[%s3 + $0x1820] sm:$0xff]
  %v7962 = vld [vmem:[%s3 + $0x1828] sm:$0xff]
  %v7963 = vld [vmem:[%s3 + $0x1830] sm:$0xff]
  %v7964 = vld [vmem:[%s3 + $0x1838] sm:$0xff]
  %v7965 = vld [vmem:[%s3 + $0x1840] sm:$0xff]
  %v7966 = vld [vmem:[%s3 + $0x1848] sm:$0xff]
  %v7967 = vld [vmem:[%s3 + $0x1850] sm:$0xff]
  %v7968 = vld [vmem:[%s3 + $0x1858] sm:$0xff]
  %v7969 = vld [vmem:[%s3 + $0x1860] sm:$0xff]
  %v7970 = vld [vmem:[%s3 + $0x1868] sm:$0xff]
  %v7971 = vld [vmem:[%s3 + $0x1870] sm:$0xff]
  %v7972 = vld [vmem:[%s3 + $0x1878] sm:$0xff]
  %v7973 = vld [vmem:[%s3 + $0x1880] sm:$0xff]
  %v7974 = vld [vmem:[%s3 + $0x1888] sm:$0xff]
  %v7975 = vld [vmem:[%s3 + $0x1890] sm:$0xff]
  %v7976 = vld [vmem:[%s3 + $0x1898] sm:$0xff]
  %v7977 = vld [vmem:[%s3 + $0x18a0] sm:$0xff]
  %v7978 = vld [vmem:[%s3 + $0x18a8] sm:$0xff]
  %v7979 = vld [vmem:[%s3 + $0x18b0] sm:$0xff]
  %v7980 = vld [vmem:[%s3 + $0x18b8] sm:$0xff]
  %v7981 = vld [vmem:[%s3 + $0x18c0] sm:$0xff]
  %v7982 = vld [vmem:[%s3 + $0x18c8] sm:$0xff]
  %v7983 = vld [vmem:[%s3 + $0x18d0] sm:$0xff]
  %v7984 = vld [vmem:[%s3 + $0x18d8] sm:$0xff]
  %v7985 = vld [vmem:[%s3 + $0x18e0] sm:$0xff]
  %v7986 = vld [vmem:[%s3 + $0x18e8] sm:$0xff]
  %v7987 = vld [vmem:[%s3 + $0x18f0] sm:$0xff]
  %v7988 = vld [vmem:[%s3 + $0x18f8] sm:$0xff]
  %v7989 = vld [vmem:[%s3 + $0x1900] sm:$0xff]
  %v7990 = vld [vmem:[%s3 + $0x1908] sm:$0xff]
  %v7991 = vld [vmem:[%s3 + $0x1910] sm:$0xff]
  %v7992 = vld [vmem:[%s3 + $0x1918] sm:$0xff]
  %v7993 = vld [vmem:[%s3 + $0x1920] sm:$0xff]
  %v7994 = vld [vmem:[%s3 + $0x1928] sm:$0xff]
  %v7995 = vld [vmem:[%s3 + $0x1930] sm:$0xff]
  %v7996 = vld [vmem:[%s3 + $0x1938] sm:$0xff]
  %v7997 = vld [vmem:[%s3 + $0x1940] sm:$0xff]
  %v7998 = vld [vmem:[%s3 + $0x1948] sm:$0xff]
  %v7999 = vld [vmem:[%s3 + $0x1950] sm:$0xff]
  %v8000 = vld [vmem:[%s3 + $0x1958] sm:$0xff]
  %v8001 = vld [vmem:[%s3 + $0x1960] sm:$0xff]
  %v8002 = vld [vmem:[%s3 + $0x1968] sm:$0xff]
  %v8003 = vld [vmem:[%s3 + $0x1970] sm:$0xff]
  %v8004 = vld [vmem:[%s3 + $0x1978] sm:$0xff]
  %v8005 = vld [vmem:[%s3 + $0x1980] sm:$0xff]
  %v8006 = vld [vmem:[%s3 + $0x1988] sm:$0xff]
  %v8007 = vld [vmem:[%s3 + $0x1990] sm:$0xff]
  %v8008 = vld [vmem:[%s3 + $0x1998] sm:$0xff]
  %v8009 = vld [vmem:[%s3 + $0x19a0] sm:$0xff]
  %v8010 = vld [vmem:[%s3 + $0x19a8] sm:$0xff]
  %v8011 = vld [vmem:[%s3 + $0x19b0] sm:$0xff]
  %v8012 = vld [vmem:[%s3 + $0x19b8] sm:$0xff]
  %v8013 = vld [vmem:[%s3 + $0x19c0] sm:$0xff]
  %v8014 = vld [vmem:[%s3 + $0x19c8] sm:$0xff]
  %v8015 = vld [vmem:[%s3 + $0x19d0] sm:$0xff]
  %v8016 = vld [vmem:[%s3 + $0x19d8] sm:$0xff]
  %v8017 = vld [vmem:[%s3 + $0x19e0] sm:$0xff]
  %v8018 = vld [vmem:[%s3 + $0x19e8] sm:$0xff]
  %v8019 = vld [vmem:[%s3 + $0x19f0] sm:$0xff]
  %v8020 = vld [vmem:[%s3 + $0x19f8] sm:$0xff]
  %v8023 = vunpack.c.l.b16 %v7955
  %v8024 = vunpack.c.l.b16 %v7956
  %v8025 = vpack.c.b16 %v8024, %v8023
  %v8091 = vunpack.c.l.b16 %v7957
  %v8092 = vunpack.c.h.b16 %v7957
  %v8093 = vunpack.c.l.b16 %v7958
  %v8094 = vunpack.c.h.b16 %v7958
  %v8095 = vunpack.c.l.b16 %v7959
  %v8096 = vunpack.c.h.b16 %v7959
  %v8097 = vunpack.c.l.b16 %v7960
  %v8098 = vunpack.c.h.b16 %v7960
  %v8099 = vunpack.c.l.b16 %v7961
  %v8100 = vunpack.c.h.b16 %v7961
  %v8101 = vunpack.c.l.b16 %v7962
  %v8102 = vunpack.c.h.b16 %v7962
  %v8103 = vunpack.c.l.b16 %v7963
  %v8104 = vunpack.c.h.b16 %v7963
  %v8105 = vunpack.c.l.b16 %v7964
  %v8106 = vunpack.c.h.b16 %v7964
  %v8107 = vunpack.c.l.b16 %v7965
  %v8108 = vunpack.c.h.b16 %v7965
  %v8109 = vunpack.c.l.b16 %v7966
  %v8110 = vunpack.c.h.b16 %v7966
  %v8111 = vunpack.c.l.b16 %v7967
  %v8112 = vunpack.c.h.b16 %v7967
  %v8113 = vunpack.c.l.b16 %v7968
  %v8114 = vunpack.c.h.b16 %v7968
  %v8115 = vunpack.c.l.b16 %v7969
  %v8116 = vunpack.c.h.b16 %v7969
  %v8117 = vunpack.c.l.b16 %v7970
  %v8118 = vunpack.c.h.b16 %v7970
  %v8119 = vunpack.c.l.b16 %v7971
  %v8120 = vunpack.c.h.b16 %v7971
  %v8121 = vunpack.c.l.b16 %v7972
  %v8122 = vunpack.c.h.b16 %v7972
  %v8123 = vunpack.c.l.b16 %v7973
  %v8124 = vunpack.c.h.b16 %v7973
  %v8125 = vunpack.c.l.b16 %v7974
  %v8126 = vunpack.c.h.b16 %v7974
  %v8127 = vunpack.c.l.b16 %v7975
  %v8128 = vunpack.c.h.b16 %v7975
  %v8129 = vunpack.c.l.b16 %v7976
  %v8130 = vunpack.c.h.b16 %v7976
  %v8131 = vunpack.c.l.b16 %v7977
  %v8132 = vunpack.c.h.b16 %v7977
  %v8133 = vunpack.c.l.b16 %v7978
  %v8134 = vunpack.c.h.b16 %v7978
  %v8135 = vunpack.c.l.b16 %v7979
  %v8136 = vunpack.c.h.b16 %v7979
  %v8137 = vunpack.c.l.b16 %v7980
  %v8138 = vunpack.c.h.b16 %v7980
  %v8139 = vunpack.c.l.b16 %v7981
  %v8140 = vunpack.c.h.b16 %v7981
  %v8141 = vunpack.c.l.b16 %v7982
  %v8142 = vunpack.c.h.b16 %v7982
  %v8143 = vunpack.c.l.b16 %v7983
  %v8144 = vunpack.c.h.b16 %v7983
  %v8145 = vunpack.c.l.b16 %v7984
  %v8146 = vunpack.c.h.b16 %v7984
  %v8147 = vunpack.c.l.b16 %v7985
  %v8148 = vunpack.c.h.b16 %v7985
  %v8149 = vunpack.c.l.b16 %v7986
  %v8150 = vunpack.c.h.b16 %v7986
  %v8151 = vunpack.c.l.b16 %v7987
  %v8152 = vunpack.c.h.b16 %v7987
  %v8153 = vunpack.c.l.b16 %v7988
  %v8154 = vunpack.c.h.b16 %v7988
  %v8155 = vunpack.c.l.b16 %v7989
  %v8156 = vunpack.c.h.b16 %v7989
  %v8157 = vunpack.c.l.b16 %v7990
  %v8158 = vunpack.c.h.b16 %v7990
  %v8159 = vunpack.c.l.b16 %v7991
  %v8160 = vunpack.c.h.b16 %v7991
  %v8161 = vunpack.c.l.b16 %v7992
  %v8162 = vunpack.c.h.b16 %v7992
  %v8163 = vunpack.c.l.b16 %v7993
  %v8164 = vunpack.c.h.b16 %v7993
  %v8165 = vunpack.c.l.b16 %v7994
  %v8166 = vunpack.c.h.b16 %v7994
  %v8167 = vunpack.c.l.b16 %v7995
  %v8168 = vunpack.c.h.b16 %v7995
  %v8169 = vunpack.c.l.b16 %v7996
  %v8170 = vunpack.c.h.b16 %v7996
  %v8171 = vunpack.c.l.b16 %v7997
  %v8172 = vunpack.c.h.b16 %v7997
  %v8173 = vunpack.c.l.b16 %v7998
  %v8174 = vunpack.c.h.b16 %v7998
  %v8175 = vunpack.c.l.b16 %v7999
  %v8176 = vunpack.c.h.b16 %v7999
  %v8177 = vunpack.c.l.b16 %v8000
  %v8178 = vunpack.c.h.b16 %v8000
  %v8179 = vunpack.c.l.b16 %v8001
  %v8180 = vunpack.c.h.b16 %v8001
  %v8181 = vunpack.c.l.b16 %v8002
  %v8182 = vunpack.c.h.b16 %v8002
  %v8183 = vunpack.c.l.b16 %v8003
  %v8184 = vunpack.c.h.b16 %v8003
  %v8185 = vunpack.c.l.b16 %v8004
  %v8186 = vunpack.c.h.b16 %v8004
  %v8187 = vunpack.c.l.b16 %v8005
  %v8188 = vunpack.c.h.b16 %v8005
  %v8189 = vunpack.c.l.b16 %v8006
  %v8190 = vunpack.c.h.b16 %v8006
  %v8191 = vunpack.c.l.b16 %v8007
  %v8192 = vunpack.c.h.b16 %v8007
  %v8193 = vunpack.c.l.b16 %v8008
  %v8194 = vunpack.c.h.b16 %v8008
  %v8195 = vunpack.c.l.b16 %v8009
  %v8196 = vunpack.c.h.b16 %v8009
  %v8197 = vunpack.c.l.b16 %v8010
  %v8198 = vunpack.c.h.b16 %v8010
  %v8199 = vunpack.c.l.b16 %v8011
  %v8200 = vunpack.c.h.b16 %v8011
  %v8201 = vunpack.c.l.b16 %v8012
  %v8202 = vunpack.c.h.b16 %v8012
  %v8203 = vunpack.c.l.b16 %v8013
  %v8204 = vunpack.c.h.b16 %v8013
  %v8205 = vunpack.c.l.b16 %v8014
  %v8206 = vunpack.c.h.b16 %v8014
  %v8207 = vunpack.c.l.b16 %v8015
  %v8208 = vunpack.c.h.b16 %v8015
  %v8209 = vunpack.c.l.b16 %v8016
  %v8210 = vunpack.c.h.b16 %v8016
  %v8211 = vunpack.c.l.b16 %v8017
  %v8212 = vunpack.c.h.b16 %v8017
  %v8213 = vunpack.c.l.b16 %v8018
  %v8214 = vunpack.c.h.b16 %v8018
  %v8215 = vunpack.c.l.b16 %v8019
  %v8216 = vunpack.c.h.b16 %v8019
  %v8217 = vunpack.c.l.b16 %v8020
  %v8218 = vunpack.c.h.b16 %v8020
  %v8219 = vpack.c.b16 %v8099, %v8091
  %v8220 = vpack.c.b16 %v8100, %v8092
  %v8221 = vpack.c.b16 %v8101, %v8093
  %v8222 = vpack.c.b16 %v8102, %v8094
  %v8223 = vpack.c.b16 %v8103, %v8095
  %v8224 = vpack.c.b16 %v8104, %v8096
  %v8225 = vpack.c.b16 %v8105, %v8097
  %v8226 = vpack.c.b16 %v8106, %v8098
  %v8227 = vpack.c.b16 %v8115, %v8107
  %v8228 = vpack.c.b16 %v8116, %v8108
  %v8229 = vpack.c.b16 %v8117, %v8109
  %v8230 = vpack.c.b16 %v8118, %v8110
  %v8231 = vpack.c.b16 %v8119, %v8111
  %v8232 = vpack.c.b16 %v8120, %v8112
  %v8233 = vpack.c.b16 %v8121, %v8113
  %v8234 = vpack.c.b16 %v8122, %v8114
  %v8235 = vpack.c.b16 %v8131, %v8123
  %v8236 = vpack.c.b16 %v8132, %v8124
  %v8237 = vpack.c.b16 %v8133, %v8125
  %v8238 = vpack.c.b16 %v8134, %v8126
  %v8239 = vpack.c.b16 %v8135, %v8127
  %v8240 = vpack.c.b16 %v8136, %v8128
  %v8241 = vpack.c.b16 %v8137, %v8129
  %v8242 = vpack.c.b16 %v8138, %v8130
  %v8243 = vpack.c.b16 %v8147, %v8139
  %v8244 = vpack.c.b16 %v8148, %v8140
  %v8245 = vpack.c.b16 %v8149, %v8141
  %v8246 = vpack.c.b16 %v8150, %v8142
  %v8247 = vpack.c.b16 %v8151, %v8143
  %v8248 = vpack.c.b16 %v8152, %v8144
  %v8249 = vpack.c.b16 %v8153, %v8145
  %v8250 = vpack.c.b16 %v8154, %v8146
  %v8251 = vpack.c.b16 %v8163, %v8155
  %v8252 = vpack.c.b16 %v8164, %v8156
  %v8253 = vpack.c.b16 %v8165, %v8157
  %v8254 = vpack.c.b16 %v8166, %v8158
  %v8255 = vpack.c.b16 %v8167, %v8159
  %v8256 = vpack.c.b16 %v8168, %v8160
  %v8257 = vpack.c.b16 %v8169, %v8161
  %v8258 = vpack.c.b16 %v8170, %v8162
  %v8259 = vpack.c.b16 %v8179, %v8171
  %v8260 = vpack.c.b16 %v8180, %v8172
  %v8261 = vpack.c.b16 %v8181, %v8173
  %v8262 = vpack.c.b16 %v8182, %v8174
  %v8263 = vpack.c.b16 %v8183, %v8175
  %v8264 = vpack.c.b16 %v8184, %v8176
  %v8265 = vpack.c.b16 %v8185, %v8177
  %v8266 = vpack.c.b16 %v8186, %v8178
  %v8267 = vpack.c.b16 %v8195, %v8187
  %v8268 = vpack.c.b16 %v8196, %v8188
  %v8269 = vpack.c.b16 %v8197, %v8189
  %v8270 = vpack.c.b16 %v8198, %v8190
  %v8271 = vpack.c.b16 %v8199, %v8191
  %v8272 = vpack.c.b16 %v8200, %v8192
  %v8273 = vpack.c.b16 %v8201, %v8193
  %v8274 = vpack.c.b16 %v8202, %v8194
  %v8275 = vpack.c.b16 %v8211, %v8203
  %v8276 = vpack.c.b16 %v8212, %v8204
  %v8277 = vpack.c.b16 %v8213, %v8205
  %v8278 = vpack.c.b16 %v8214, %v8206
  %v8279 = vpack.c.b16 %v8215, %v8207
  %v8280 = vpack.c.b16 %v8216, %v8208
  %v8281 = vpack.c.b16 %v8217, %v8209
  %v8282 = vpack.c.b16 %v8218, %v8210
  %8347 = vmatprep.subr.bf16.mxu0 %v8276
  %8348 = vmatpush1.bf16.msra.mxu0 %v8275
  %8349 = vmatprep.subr.bf16.mxu0 %v8268
  %8350 = vmatpush1.bf16.msra.mxu0 %v8267
  %8351 = vmatprep.subr.bf16.mxu0 %v8260
  %8352 = vmatpush1.bf16.msra.mxu0 %v8259
  %8353 = vmatprep.subr.bf16.mxu0 %v8252
  %8354 = vmatpush1.bf16.msra.mxu0 %v8251
  %8355 = vmatprep.subr.bf16.mxu0 %v8244
  %8356 = vmatpush1.bf16.msra.mxu0 %v8243
  %8357 = vmatprep.subr.bf16.mxu0 %v8236
  %8358 = vmatpush1.bf16.msra.mxu0 %v8235
  %8359 = vmatprep.subr.bf16.mxu0 %v8228
  %8360 = vmatpush1.bf16.msra.mxu0 %v8227
  %8361 = vmatprep.subr.bf16.mxu0 %v8220
  %8362 = vmatpush1.bf16.msra.mxu0 %v8219
  %8363 = vmatprep.subr.bf16.mxu0 0
  %8364 = vmatpush2.bf16.msra.mxu0 0
  %8365 = vmatprep.subr.bf16.mxu0 0
  %8366 = vmatpush2.bf16.msra.mxu0 0
  %8367 = vmatprep.subr.bf16.mxu0 0
  %8368 = vmatpush2.bf16.msra.mxu0 0
  %8369 = vmatprep.subr.bf16.mxu0 0
  %8370 = vmatpush2.bf16.msra.mxu0 0
  %8371 = vmatprep.subr.bf16.mxu0 0
  %8372 = vmatpush2.bf16.msra.mxu0 0
  %8373 = vmatprep.subr.bf16.mxu0 0
  %8374 = vmatpush2.bf16.msra.mxu0 0
  %8375 = vmatprep.subr.bf16.mxu0 0
  %8376 = vmatpush2.bf16.msra.mxu0 0
  %8377 = vmatprep.subr.bf16.mxu0 0
  %8378 = vmatpush2.bf16.msra.mxu0 0
  %8379 = vmatprep.mubr.bf16.mxu0 0
  %8380 = vmatmul.mubr.bf16.gmra.mxu0 %v8025
  %v8381 = vpop.f32.mrf.mxu0
  %v8382 = vadd.f32 0.0, %v8381
  %v8383 = vpop.f32.mrf.mxu0
  %v8384 = vadd.f32 0.0, %v8383
  %v8385 = vpop.f32.mrf.mxu0
  %v8386 = vadd.f32 0.0, %v8385
  %v8387 = vpop.f32.mrf.mxu0
  %v8388 = vadd.f32 0.0, %v8387
  %8389 = vdwg.mxu0
  %8390 = vmatprep.subr.bf16.mxu0 %v8278
  %8391 = vmatpush1.bf16.msra.mxu0 %v8277
  %8392 = vmatprep.subr.bf16.mxu0 %v8270
  %8393 = vmatpush1.bf16.msra.mxu0 %v8269
  %8394 = vmatprep.subr.bf16.mxu0 %v8262
  %8395 = vmatpush1.bf16.msra.mxu0 %v8261
  %8396 = vmatprep.subr.bf16.mxu0 %v8254
  %8397 = vmatpush1.bf16.msra.mxu0 %v8253
  %8398 = vmatprep.subr.bf16.mxu0 %v8246
  %8399 = vmatpush1.bf16.msra.mxu0 %v8245
  %8400 = vmatprep.subr.bf16.mxu0 %v8238
  %8401 = vmatpush1.bf16.msra.mxu0 %v8237
  %8402 = vmatprep.subr.bf16.mxu0 %v8230
  %8403 = vmatpush1.bf16.msra.mxu0 %v8229
  %8404 = vmatprep.subr.bf16.mxu0 %v8222
  %8405 = vmatpush1.bf16.msra.mxu0 %v8221
  %8406 = vmatprep.subr.bf16.mxu0 0
  %8407 = vmatpush2.bf16.msra.mxu0 0
  %8408 = vmatprep.subr.bf16.mxu0 0
  %8409 = vmatpush2.bf16.msra.mxu0 0
  %8410 = vmatprep.subr.bf16.mxu0 0
  %8411 = vmatpush2.bf16.msra.mxu0 0
  %8412 = vmatprep.subr.bf16.mxu0 0
  %8413 = vmatpush2.bf16.msra.mxu0 0
  %8414 = vmatprep.subr.bf16.mxu0 0
  %8415 = vmatpush2.bf16.msra.mxu0 0
  %8416 = vmatprep.subr.bf16.mxu0 0
  %8417 = vmatpush2.bf16.msra.mxu0 0
  %8418 = vmatprep.subr.bf16.mxu0 0
  %8419 = vmatpush2.bf16.msra.mxu0 0
  %8420 = vmatprep.subr.bf16.mxu0 0
  %8421 = vmatpush2.bf16.msra.mxu0 0
  %8422 = vmatprep.mubr.bf16.mxu0 0
  %8423 = vmatmul.mubr.bf16.gmra.mxu0 %v8025
  %v8424 = vpop.f32.mrf.mxu0
  %v8425 = vadd.f32 0.0, %v8424
  %v8426 = vpop.f32.mrf.mxu0
  %v8427 = vadd.f32 0.0, %v8426
  %v8428 = vpop.f32.mrf.mxu0
  %v8429 = vadd.f32 0.0, %v8428
  %v8430 = vpop.f32.mrf.mxu0
  %v8431 = vadd.f32 0.0, %v8430
  %8432 = vdwg.mxu0
  %8433 = vmatprep.subr.bf16.mxu0 %v8280
  %8434 = vmatpush1.bf16.msra.mxu0 %v8279
  %8435 = vmatprep.subr.bf16.mxu0 %v8272
  %8436 = vmatpush1.bf16.msra.mxu0 %v8271
  %8437 = vmatprep.subr.bf16.mxu0 %v8264
  %8438 = vmatpush1.bf16.msra.mxu0 %v8263
  %8439 = vmatprep.subr.bf16.mxu0 %v8256
  %8440 = vmatpush1.bf16.msra.mxu0 %v8255
  %8441 = vmatprep.subr.bf16.mxu0 %v8248
  %8442 = vmatpush1.bf16.msra.mxu0 %v8247
  %8443 = vmatprep.subr.bf16.mxu0 %v8240
  %8444 = vmatpush1.bf16.msra.mxu0 %v8239
  %8445 = vmatprep.subr.bf16.mxu0 %v8232
  %8446 = vmatpush1.bf16.msra.mxu0 %v8231
  %8447 = vmatprep.subr.bf16.mxu0 %v8224
  %8448 = vmatpush1.bf16.msra.mxu0 %v8223
  %8449 = vmatprep.subr.bf16.mxu0 0
  %8450 = vmatpush2.bf16.msra.mxu0 0
  %8451 = vmatprep.subr.bf16.mxu0 0
  %8452 = vmatpush2.bf16.msra.mxu0 0
  %8453 = vmatprep.subr.bf16.mxu0 0
  %8454 = vmatpush2.bf16.msra.mxu0 0
  %8455 = vmatprep.subr.bf16.mxu0 0
  %8456 = vmatpush2.bf16.msra.mxu0 0
  %8457 = vmatprep.subr.bf16.mxu0 0
  %8458 = vmatpush2.bf16.msra.mxu0 0
  %8459 = vmatprep.subr.bf16.mxu0 0
  %8460 = vmatpush2.bf16.msra.mxu0 0
  %8461 = vmatprep.subr.bf16.mxu0 0
  %8462 = vmatpush2.bf16.msra.mxu0 0
  %8463 = vmatprep.subr.bf16.mxu0 0
  %8464 = vmatpush2.bf16.msra.mxu0 0
  %8465 = vmatprep.mubr.bf16.mxu0 0
  %8466 = vmatmul.mubr.bf16.gmra.mxu0 %v8025
  %v8467 = vpop.f32.mrf.mxu0
  %v8468 = vadd.f32 0.0, %v8467
  %v8469 = vpop.f32.mrf.mxu0
  %v8470 = vadd.f32 0.0, %v8469
  %v8471 = vpop.f32.mrf.mxu0
  %v8472 = vadd.f32 0.0, %v8471
  %v8473 = vpop.f32.mrf.mxu0
  %v8474 = vadd.f32 0.0, %v8473
  %8475 = vdwg.mxu0
  %8476 = vmatprep.subr.bf16.mxu0 %v8282
  %8477 = vmatpush1.bf16.msra.mxu0 %v8281
  %8478 = vmatprep.subr.bf16.mxu0 %v8274
  %8479 = vmatpush1.bf16.msra.mxu0 %v8273
  %8480 = vmatprep.subr.bf16.mxu0 %v8266
  %8481 = vmatpush1.bf16.msra.mxu0 %v8265
  %8482 = vmatprep.subr.bf16.mxu0 %v8258
  %8483 = vmatpush1.bf16.msra.mxu0 %v8257
  %8484 = vmatprep.subr.bf16.mxu0 %v8250
  %8485 = vmatpush1.bf16.msra.mxu0 %v8249
  %8486 = vmatprep.subr.bf16.mxu0 %v8242
  %8487 = vmatpush1.bf16.msra.mxu0 %v8241
  %8488 = vmatprep.subr.bf16.mxu0 %v8234
  %8489 = vmatpush1.bf16.msra.mxu0 %v8233
  %8490 = vmatprep.subr.bf16.mxu0 %v8226
  %8491 = vmatpush1.bf16.msra.mxu0 %v8225
  %8492 = vmatprep.subr.bf16.mxu0 0
  %8493 = vmatpush2.bf16.msra.mxu0 0
  %8494 = vmatprep.subr.bf16.mxu0 0
  %8495 = vmatpush2.bf16.msra.mxu0 0
  %8496 = vmatprep.subr.bf16.mxu0 0
  %8497 = vmatpush2.bf16.msra.mxu0 0
  %8498 = vmatprep.subr.bf16.mxu0 0
  %8499 = vmatpush2.bf16.msra.mxu0 0
  %8500 = vmatprep.subr.bf16.mxu0 0
  %8501 = vmatpush2.bf16.msra.mxu0 0
  %8502 = vmatprep.subr.bf16.mxu0 0
  %8503 = vmatpush2.bf16.msra.mxu0 0
  %8504 = vmatprep.subr.bf16.mxu0 0
  %8505 = vmatpush2.bf16.msra.mxu0 0
  %8506 = vmatprep.subr.bf16.mxu0 0
  %8507 = vmatpush2.bf16.msra.mxu0 0
  %8508 = vmatprep.mubr.bf16.mxu0 0
  %8509 = vmatmul.mubr.bf16.gmra.mxu0 %v8025
  %v8510 = vpop.f32.mrf.mxu0
  %v8511 = vadd.f32 0.0, %v8510
  %v8512 = vpop.f32.mrf.mxu0
  %v8513 = vadd.f32 0.0, %v8512
  %v8514 = vpop.f32.mrf.mxu0
  %v8515 = vadd.f32 0.0, %v8514
  %v8516 = vpop.f32.mrf.mxu0
  %v8517 = vadd.f32 0.0, %v8516
  %8518 = vdwg.mxu0
  %v8519 = vadd.f32 %v7939, %v8382
  %v8520 = vadd.f32 %v7940, %v8384
  %v8521 = vadd.f32 %v7941, %v8425
  %v8522 = vadd.f32 %v7942, %v8427
  %v8523 = vadd.f32 %v7943, %v8468
  %v8524 = vadd.f32 %v7944, %v8470
  %v8525 = vadd.f32 %v7945, %v8511
  %v8526 = vadd.f32 %v7946, %v8513
  %v8527 = vadd.f32 %v7947, %v8386
  %v8528 = vadd.f32 %v7948, %v8388
  %v8529 = vadd.f32 %v7949, %v8429
  %v8530 = vadd.f32 %v7950, %v8431
  %v8531 = vadd.f32 %v7951, %v8472
  %v8532 = vadd.f32 %v7952, %v8474
  %v8533 = vadd.f32 %v7953, %v8515
  %v8534 = vadd.f32 %v7954, %v8517
  %8535 = vst [vmem:[#allocation3] sm:$0xff] %v8519
  %8536 = vst [vmem:[#allocation3 + $0x8] sm:$0xff] %v8520
  %8537 = vst [vmem:[#allocation3 + $0x10] sm:$0xff] %v8521
  %8538 = vst [vmem:[#allocation3 + $0x18] sm:$0xff] %v8522
  %8539 = vst [vmem:[#allocation3 + $0x20] sm:$0xff] %v8523
  %8540 = vst [vmem:[#allocation3 + $0x28] sm:$0xff] %v8524
  %8541 = vst [vmem:[#allocation3 + $0x30] sm:$0xff] %v8525
  %8542 = vst [vmem:[#allocation3 + $0x38] sm:$0xff] %v8526
  %8543 = vst [vmem:[#allocation3 + $0x40] sm:$0xff] %v8527
  %8544 = vst [vmem:[#allocation3 + $0x48] sm:$0xff] %v8528
  %8545 = vst [vmem:[#allocation3 + $0x50] sm:$0xff] %v8529
  %8546 = vst [vmem:[#allocation3 + $0x58] sm:$0xff] %v8530
  %8547 = vst [vmem:[#allocation3 + $0x60] sm:$0xff] %v8531
  %8548 = vst [vmem:[#allocation3 + $0x68] sm:$0xff] %v8532
  %8549 = vst [vmem:[#allocation3 + $0x70] sm:$0xff] %v8533
  %8550 = vst [vmem:[#allocation3 + $0x78] sm:$0xff] %v8534
  %v8551 = vld [vmem:[#allocation3] sm:$0xff]
  %v8552 = vld [vmem:[#allocation3 + $0x8] sm:$0xff]
  %v8553 = vld [vmem:[#allocation3 + $0x10] sm:$0xff]
  %v8554 = vld [vmem:[#allocation3 + $0x18] sm:$0xff]
  %v8555 = vld [vmem:[#allocation3 + $0x20] sm:$0xff]
  %v8556 = vld [vmem:[#allocation3 + $0x28] sm:$0xff]
  %v8557 = vld [vmem:[#allocation3 + $0x30] sm:$0xff]
  %v8558 = vld [vmem:[#allocation3 + $0x38] sm:$0xff]
  %v8559 = vld [vmem:[#allocation3 + $0x40] sm:$0xff]
  %v8560 = vld [vmem:[#allocation3 + $0x48] sm:$0xff]
  %v8561 = vld [vmem:[#allocation3 + $0x50] sm:$0xff]
  %v8562 = vld [vmem:[#allocation3 + $0x58] sm:$0xff]
  %v8563 = vld [vmem:[#allocation3 + $0x60] sm:$0xff]
  %v8564 = vld [vmem:[#allocation3 + $0x68] sm:$0xff]
  %v8565 = vld [vmem:[#allocation3 + $0x70] sm:$0xff]
  %v8566 = vld [vmem:[#allocation3 + $0x78] sm:$0xff]
  %v8567 = vld [vmem:[#allocation2 + $0x68] sm:$0xf]
  %v8568 = vld [vmem:[#allocation2 + $0x6c] sm:$0xf]
  %v8569 = vld [vmem:[%s3 + $0x1a00] sm:$0xff]
  %v8570 = vld [vmem:[%s3 + $0x1a08] sm:$0xff]
  %v8571 = vld [vmem:[%s3 + $0x1a10] sm:$0xff]
  %v8572 = vld [vmem:[%s3 + $0x1a18] sm:$0xff]
  %v8573 = vld [vmem:[%s3 + $0x1a20] sm:$0xff]
  %v8574 = vld [vmem:[%s3 + $0x1a28] sm:$0xff]
  %v8575 = vld [vmem:[%s3 + $0x1a30] sm:$0xff]
  %v8576 = vld [vmem:[%s3 + $0x1a38] sm:$0xff]
  %v8577 = vld [vmem:[%s3 + $0x1a40] sm:$0xff]
  %v8578 = vld [vmem:[%s3 + $0x1a48] sm:$0xff]
  %v8579 = vld [vmem:[%s3 + $0x1a50] sm:$0xff]
  %v8580 = vld [vmem:[%s3 + $0x1a58] sm:$0xff]
  %v8581 = vld [vmem:[%s3 + $0x1a60] sm:$0xff]
  %v8582 = vld [vmem:[%s3 + $0x1a68] sm:$0xff]
  %v8583 = vld [vmem:[%s3 + $0x1a70] sm:$0xff]
  %v8584 = vld [vmem:[%s3 + $0x1a78] sm:$0xff]
  %v8585 = vld [vmem:[%s3 + $0x1a80] sm:$0xff]
  %v8586 = vld [vmem:[%s3 + $0x1a88] sm:$0xff]
  %v8587 = vld [vmem:[%s3 + $0x1a90] sm:$0xff]
  %v8588 = vld [vmem:[%s3 + $0x1a98] sm:$0xff]
  %v8589 = vld [vmem:[%s3 + $0x1aa0] sm:$0xff]
  %v8590 = vld [vmem:[%s3 + $0x1aa8] sm:$0xff]
  %v8591 = vld [vmem:[%s3 + $0x1ab0] sm:$0xff]
  %v8592 = vld [vmem:[%s3 + $0x1ab8] sm:$0xff]
  %v8593 = vld [vmem:[%s3 + $0x1ac0] sm:$0xff]
  %v8594 = vld [vmem:[%s3 + $0x1ac8] sm:$0xff]
  %v8595 = vld [vmem:[%s3 + $0x1ad0] sm:$0xff]
  %v8596 = vld [vmem:[%s3 + $0x1ad8] sm:$0xff]
  %v8597 = vld [vmem:[%s3 + $0x1ae0] sm:$0xff]
  %v8598 = vld [vmem:[%s3 + $0x1ae8] sm:$0xff]
  %v8599 = vld [vmem:[%s3 + $0x1af0] sm:$0xff]
  %v8600 = vld [vmem:[%s3 + $0x1af8] sm:$0xff]
  %v8601 = vld [vmem:[%s3 + $0x1b00] sm:$0xff]
  %v8602 = vld [vmem:[%s3 + $0x1b08] sm:$0xff]
  %v8603 = vld [vmem:[%s3 + $0x1b10] sm:$0xff]
  %v8604 = vld [vmem:[%s3 + $0x1b18] sm:$0xff]
  %v8605 = vld [vmem:[%s3 + $0x1b20] sm:$0xff]
  %v8606 = vld [vmem:[%s3 + $0x1b28] sm:$0xff]
  %v8607 = vld [vmem:[%s3 + $0x1b30] sm:$0xff]
  %v8608 = vld [vmem:[%s3 + $0x1b38] sm:$0xff]
  %v8609 = vld [vmem:[%s3 + $0x1b40] sm:$0xff]
  %v8610 = vld [vmem:[%s3 + $0x1b48] sm:$0xff]
  %v8611 = vld [vmem:[%s3 + $0x1b50] sm:$0xff]
  %v8612 = vld [vmem:[%s3 + $0x1b58] sm:$0xff]
  %v8613 = vld [vmem:[%s3 + $0x1b60] sm:$0xff]
  %v8614 = vld [vmem:[%s3 + $0x1b68] sm:$0xff]
  %v8615 = vld [vmem:[%s3 + $0x1b70] sm:$0xff]
  %v8616 = vld [vmem:[%s3 + $0x1b78] sm:$0xff]
  %v8617 = vld [vmem:[%s3 + $0x1b80] sm:$0xff]
  %v8618 = vld [vmem:[%s3 + $0x1b88] sm:$0xff]
  %v8619 = vld [vmem:[%s3 + $0x1b90] sm:$0xff]
  %v8620 = vld [vmem:[%s3 + $0x1b98] sm:$0xff]
  %v8621 = vld [vmem:[%s3 + $0x1ba0] sm:$0xff]
  %v8622 = vld [vmem:[%s3 + $0x1ba8] sm:$0xff]
  %v8623 = vld [vmem:[%s3 + $0x1bb0] sm:$0xff]
  %v8624 = vld [vmem:[%s3 + $0x1bb8] sm:$0xff]
  %v8625 = vld [vmem:[%s3 + $0x1bc0] sm:$0xff]
  %v8626 = vld [vmem:[%s3 + $0x1bc8] sm:$0xff]
  %v8627 = vld [vmem:[%s3 + $0x1bd0] sm:$0xff]
  %v8628 = vld [vmem:[%s3 + $0x1bd8] sm:$0xff]
  %v8629 = vld [vmem:[%s3 + $0x1be0] sm:$0xff]
  %v8630 = vld [vmem:[%s3 + $0x1be8] sm:$0xff]
  %v8631 = vld [vmem:[%s3 + $0x1bf0] sm:$0xff]
  %v8632 = vld [vmem:[%s3 + $0x1bf8] sm:$0xff]
  %v8635 = vunpack.c.l.b16 %v8567
  %v8636 = vunpack.c.l.b16 %v8568
  %v8637 = vpack.c.b16 %v8636, %v8635
  %v8703 = vunpack.c.l.b16 %v8569
  %v8704 = vunpack.c.h.b16 %v8569
  %v8705 = vunpack.c.l.b16 %v8570
  %v8706 = vunpack.c.h.b16 %v8570
  %v8707 = vunpack.c.l.b16 %v8571
  %v8708 = vunpack.c.h.b16 %v8571
  %v8709 = vunpack.c.l.b16 %v8572
  %v8710 = vunpack.c.h.b16 %v8572
  %v8711 = vunpack.c.l.b16 %v8573
  %v8712 = vunpack.c.h.b16 %v8573
  %v8713 = vunpack.c.l.b16 %v8574
  %v8714 = vunpack.c.h.b16 %v8574
  %v8715 = vunpack.c.l.b16 %v8575
  %v8716 = vunpack.c.h.b16 %v8575
  %v8717 = vunpack.c.l.b16 %v8576
  %v8718 = vunpack.c.h.b16 %v8576
  %v8719 = vunpack.c.l.b16 %v8577
  %v8720 = vunpack.c.h.b16 %v8577
  %v8721 = vunpack.c.l.b16 %v8578
  %v8722 = vunpack.c.h.b16 %v8578
  %v8723 = vunpack.c.l.b16 %v8579
  %v8724 = vunpack.c.h.b16 %v8579
  %v8725 = vunpack.c.l.b16 %v8580
  %v8726 = vunpack.c.h.b16 %v8580
  %v8727 = vunpack.c.l.b16 %v8581
  %v8728 = vunpack.c.h.b16 %v8581
  %v8729 = vunpack.c.l.b16 %v8582
  %v8730 = vunpack.c.h.b16 %v8582
  %v8731 = vunpack.c.l.b16 %v8583
  %v8732 = vunpack.c.h.b16 %v8583
  %v8733 = vunpack.c.l.b16 %v8584
  %v8734 = vunpack.c.h.b16 %v8584
  %v8735 = vunpack.c.l.b16 %v8585
  %v8736 = vunpack.c.h.b16 %v8585
  %v8737 = vunpack.c.l.b16 %v8586
  %v8738 = vunpack.c.h.b16 %v8586
  %v8739 = vunpack.c.l.b16 %v8587
  %v8740 = vunpack.c.h.b16 %v8587
  %v8741 = vunpack.c.l.b16 %v8588
  %v8742 = vunpack.c.h.b16 %v8588
  %v8743 = vunpack.c.l.b16 %v8589
  %v8744 = vunpack.c.h.b16 %v8589
  %v8745 = vunpack.c.l.b16 %v8590
  %v8746 = vunpack.c.h.b16 %v8590
  %v8747 = vunpack.c.l.b16 %v8591
  %v8748 = vunpack.c.h.b16 %v8591
  %v8749 = vunpack.c.l.b16 %v8592
  %v8750 = vunpack.c.h.b16 %v8592
  %v8751 = vunpack.c.l.b16 %v8593
  %v8752 = vunpack.c.h.b16 %v8593
  %v8753 = vunpack.c.l.b16 %v8594
  %v8754 = vunpack.c.h.b16 %v8594
  %v8755 = vunpack.c.l.b16 %v8595
  %v8756 = vunpack.c.h.b16 %v8595
  %v8757 = vunpack.c.l.b16 %v8596
  %v8758 = vunpack.c.h.b16 %v8596
  %v8759 = vunpack.c.l.b16 %v8597
  %v8760 = vunpack.c.h.b16 %v8597
  %v8761 = vunpack.c.l.b16 %v8598
  %v8762 = vunpack.c.h.b16 %v8598
  %v8763 = vunpack.c.l.b16 %v8599
  %v8764 = vunpack.c.h.b16 %v8599
  %v8765 = vunpack.c.l.b16 %v8600
  %v8766 = vunpack.c.h.b16 %v8600
  %v8767 = vunpack.c.l.b16 %v8601
  %v8768 = vunpack.c.h.b16 %v8601
  %v8769 = vunpack.c.l.b16 %v8602
  %v8770 = vunpack.c.h.b16 %v8602
  %v8771 = vunpack.c.l.b16 %v8603
  %v8772 = vunpack.c.h.b16 %v8603
  %v8773 = vunpack.c.l.b16 %v8604
  %v8774 = vunpack.c.h.b16 %v8604
  %v8775 = vunpack.c.l.b16 %v8605
  %v8776 = vunpack.c.h.b16 %v8605
  %v8777 = vunpack.c.l.b16 %v8606
  %v8778 = vunpack.c.h.b16 %v8606
  %v8779 = vunpack.c.l.b16 %v8607
  %v8780 = vunpack.c.h.b16 %v8607
  %v8781 = vunpack.c.l.b16 %v8608
  %v8782 = vunpack.c.h.b16 %v8608
  %v8783 = vunpack.c.l.b16 %v8609
  %v8784 = vunpack.c.h.b16 %v8609
  %v8785 = vunpack.c.l.b16 %v8610
  %v8786 = vunpack.c.h.b16 %v8610
  %v8787 = vunpack.c.l.b16 %v8611
  %v8788 = vunpack.c.h.b16 %v8611
  %v8789 = vunpack.c.l.b16 %v8612
  %v8790 = vunpack.c.h.b16 %v8612
  %v8791 = vunpack.c.l.b16 %v8613
  %v8792 = vunpack.c.h.b16 %v8613
  %v8793 = vunpack.c.l.b16 %v8614
  %v8794 = vunpack.c.h.b16 %v8614
  %v8795 = vunpack.c.l.b16 %v8615
  %v8796 = vunpack.c.h.b16 %v8615
  %v8797 = vunpack.c.l.b16 %v8616
  %v8798 = vunpack.c.h.b16 %v8616
  %v8799 = vunpack.c.l.b16 %v8617
  %v8800 = vunpack.c.h.b16 %v8617
  %v8801 = vunpack.c.l.b16 %v8618
  %v8802 = vunpack.c.h.b16 %v8618
  %v8803 = vunpack.c.l.b16 %v8619
  %v8804 = vunpack.c.h.b16 %v8619
  %v8805 = vunpack.c.l.b16 %v8620
  %v8806 = vunpack.c.h.b16 %v8620
  %v8807 = vunpack.c.l.b16 %v8621
  %v8808 = vunpack.c.h.b16 %v8621
  %v8809 = vunpack.c.l.b16 %v8622
  %v8810 = vunpack.c.h.b16 %v8622
  %v8811 = vunpack.c.l.b16 %v8623
  %v8812 = vunpack.c.h.b16 %v8623
  %v8813 = vunpack.c.l.b16 %v8624
  %v8814 = vunpack.c.h.b16 %v8624
  %v8815 = vunpack.c.l.b16 %v8625
  %v8816 = vunpack.c.h.b16 %v8625
  %v8817 = vunpack.c.l.b16 %v8626
  %v8818 = vunpack.c.h.b16 %v8626
  %v8819 = vunpack.c.l.b16 %v8627
  %v8820 = vunpack.c.h.b16 %v8627
  %v8821 = vunpack.c.l.b16 %v8628
  %v8822 = vunpack.c.h.b16 %v8628
  %v8823 = vunpack.c.l.b16 %v8629
  %v8824 = vunpack.c.h.b16 %v8629
  %v8825 = vunpack.c.l.b16 %v8630
  %v8826 = vunpack.c.h.b16 %v8630
  %v8827 = vunpack.c.l.b16 %v8631
  %v8828 = vunpack.c.h.b16 %v8631
  %v8829 = vunpack.c.l.b16 %v8632
  %v8830 = vunpack.c.h.b16 %v8632
  %v8831 = vpack.c.b16 %v8711, %v8703
  %v8832 = vpack.c.b16 %v8712, %v8704
  %v8833 = vpack.c.b16 %v8713, %v8705
  %v8834 = vpack.c.b16 %v8714, %v8706
  %v8835 = vpack.c.b16 %v8715, %v8707
  %v8836 = vpack.c.b16 %v8716, %v8708
  %v8837 = vpack.c.b16 %v8717, %v8709
  %v8838 = vpack.c.b16 %v8718, %v8710
  %v8839 = vpack.c.b16 %v8727, %v8719
  %v8840 = vpack.c.b16 %v8728, %v8720
  %v8841 = vpack.c.b16 %v8729, %v8721
  %v8842 = vpack.c.b16 %v8730, %v8722
  %v8843 = vpack.c.b16 %v8731, %v8723
  %v8844 = vpack.c.b16 %v8732, %v8724
  %v8845 = vpack.c.b16 %v8733, %v8725
  %v8846 = vpack.c.b16 %v8734, %v8726
  %v8847 = vpack.c.b16 %v8743, %v8735
  %v8848 = vpack.c.b16 %v8744, %v8736
  %v8849 = vpack.c.b16 %v8745, %v8737
  %v8850 = vpack.c.b16 %v8746, %v8738
  %v8851 = vpack.c.b16 %v8747, %v8739
  %v8852 = vpack.c.b16 %v8748, %v8740
  %v8853 = vpack.c.b16 %v8749, %v8741
  %v8854 = vpack.c.b16 %v8750, %v8742
  %v8855 = vpack.c.b16 %v8759, %v8751
  %v8856 = vpack.c.b16 %v8760, %v8752
  %v8857 = vpack.c.b16 %v8761, %v8753
  %v8858 = vpack.c.b16 %v8762, %v8754
  %v8859 = vpack.c.b16 %v8763, %v8755
  %v8860 = vpack.c.b16 %v8764, %v8756
  %v8861 = vpack.c.b16 %v8765, %v8757
  %v8862 = vpack.c.b16 %v8766, %v8758
  %v8863 = vpack.c.b16 %v8775, %v8767
  %v8864 = vpack.c.b16 %v8776, %v8768
  %v8865 = vpack.c.b16 %v8777, %v8769
  %v8866 = vpack.c.b16 %v8778, %v8770
  %v8867 = vpack.c.b16 %v8779, %v8771
  %v8868 = vpack.c.b16 %v8780, %v8772
  %v8869 = vpack.c.b16 %v8781, %v8773
  %v8870 = vpack.c.b16 %v8782, %v8774
  %v8871 = vpack.c.b16 %v8791, %v8783
  %v8872 = vpack.c.b16 %v8792, %v8784
  %v8873 = vpack.c.b16 %v8793, %v8785
  %v8874 = vpack.c.b16 %v8794, %v8786
  %v8875 = vpack.c.b16 %v8795, %v8787
  %v8876 = vpack.c.b16 %v8796, %v8788
  %v8877 = vpack.c.b16 %v8797, %v8789
  %v8878 = vpack.c.b16 %v8798, %v8790
  %v8879 = vpack.c.b16 %v8807, %v8799
  %v8880 = vpack.c.b16 %v8808, %v8800
  %v8881 = vpack.c.b16 %v8809, %v8801
  %v8882 = vpack.c.b16 %v8810, %v8802
  %v8883 = vpack.c.b16 %v8811, %v8803
  %v8884 = vpack.c.b16 %v8812, %v8804
  %v8885 = vpack.c.b16 %v8813, %v8805
  %v8886 = vpack.c.b16 %v8814, %v8806
  %v8887 = vpack.c.b16 %v8823, %v8815
  %v8888 = vpack.c.b16 %v8824, %v8816
  %v8889 = vpack.c.b16 %v8825, %v8817
  %v8890 = vpack.c.b16 %v8826, %v8818
  %v8891 = vpack.c.b16 %v8827, %v8819
  %v8892 = vpack.c.b16 %v8828, %v8820
  %v8893 = vpack.c.b16 %v8829, %v8821
  %v8894 = vpack.c.b16 %v8830, %v8822
  %8959 = vmatprep.subr.bf16.mxu0 %v8888
  %8960 = vmatpush1.bf16.msra.mxu0 %v8887
  %8961 = vmatprep.subr.bf16.mxu0 %v8880
  %8962 = vmatpush1.bf16.msra.mxu0 %v8879
  %8963 = vmatprep.subr.bf16.mxu0 %v8872
  %8964 = vmatpush1.bf16.msra.mxu0 %v8871
  %8965 = vmatprep.subr.bf16.mxu0 %v8864
  %8966 = vmatpush1.bf16.msra.mxu0 %v8863
  %8967 = vmatprep.subr.bf16.mxu0 %v8856
  %8968 = vmatpush1.bf16.msra.mxu0 %v8855
  %8969 = vmatprep.subr.bf16.mxu0 %v8848
  %8970 = vmatpush1.bf16.msra.mxu0 %v8847
  %8971 = vmatprep.subr.bf16.mxu0 %v8840
  %8972 = vmatpush1.bf16.msra.mxu0 %v8839
  %8973 = vmatprep.subr.bf16.mxu0 %v8832
  %8974 = vmatpush1.bf16.msra.mxu0 %v8831
  %8975 = vmatprep.subr.bf16.mxu0 0
  %8976 = vmatpush2.bf16.msra.mxu0 0
  %8977 = vmatprep.subr.bf16.mxu0 0
  %8978 = vmatpush2.bf16.msra.mxu0 0
  %8979 = vmatprep.subr.bf16.mxu0 0
  %8980 = vmatpush2.bf16.msra.mxu0 0
  %8981 = vmatprep.subr.bf16.mxu0 0
  %8982 = vmatpush2.bf16.msra.mxu0 0
  %8983 = vmatprep.subr.bf16.mxu0 0
  %8984 = vmatpush2.bf16.msra.mxu0 0
  %8985 = vmatprep.subr.bf16.mxu0 0
  %8986 = vmatpush2.bf16.msra.mxu0 0
  %8987 = vmatprep.subr.bf16.mxu0 0
  %8988 = vmatpush2.bf16.msra.mxu0 0
  %8989 = vmatprep.subr.bf16.mxu0 0
  %8990 = vmatpush2.bf16.msra.mxu0 0
  %8991 = vmatprep.mubr.bf16.mxu0 0
  %8992 = vmatmul.mubr.bf16.gmra.mxu0 %v8637
  %v8993 = vpop.f32.mrf.mxu0
  %v8994 = vadd.f32 0.0, %v8993
  %v8995 = vpop.f32.mrf.mxu0
  %v8996 = vadd.f32 0.0, %v8995
  %v8997 = vpop.f32.mrf.mxu0
  %v8998 = vadd.f32 0.0, %v8997
  %v8999 = vpop.f32.mrf.mxu0
  %v9000 = vadd.f32 0.0, %v8999
  %9001 = vdwg.mxu0
  %9002 = vmatprep.subr.bf16.mxu0 %v8890
  %9003 = vmatpush1.bf16.msra.mxu0 %v8889
  %9004 = vmatprep.subr.bf16.mxu0 %v8882
  %9005 = vmatpush1.bf16.msra.mxu0 %v8881
  %9006 = vmatprep.subr.bf16.mxu0 %v8874
  %9007 = vmatpush1.bf16.msra.mxu0 %v8873
  %9008 = vmatprep.subr.bf16.mxu0 %v8866
  %9009 = vmatpush1.bf16.msra.mxu0 %v8865
  %9010 = vmatprep.subr.bf16.mxu0 %v8858
  %9011 = vmatpush1.bf16.msra.mxu0 %v8857
  %9012 = vmatprep.subr.bf16.mxu0 %v8850
  %9013 = vmatpush1.bf16.msra.mxu0 %v8849
  %9014 = vmatprep.subr.bf16.mxu0 %v8842
  %9015 = vmatpush1.bf16.msra.mxu0 %v8841
  %9016 = vmatprep.subr.bf16.mxu0 %v8834
  %9017 = vmatpush1.bf16.msra.mxu0 %v8833
  %9018 = vmatprep.subr.bf16.mxu0 0
  %9019 = vmatpush2.bf16.msra.mxu0 0
  %9020 = vmatprep.subr.bf16.mxu0 0
  %9021 = vmatpush2.bf16.msra.mxu0 0
  %9022 = vmatprep.subr.bf16.mxu0 0
  %9023 = vmatpush2.bf16.msra.mxu0 0
  %9024 = vmatprep.subr.bf16.mxu0 0
  %9025 = vmatpush2.bf16.msra.mxu0 0
  %9026 = vmatprep.subr.bf16.mxu0 0
  %9027 = vmatpush2.bf16.msra.mxu0 0
  %9028 = vmatprep.subr.bf16.mxu0 0
  %9029 = vmatpush2.bf16.msra.mxu0 0
  %9030 = vmatprep.subr.bf16.mxu0 0
  %9031 = vmatpush2.bf16.msra.mxu0 0
  %9032 = vmatprep.subr.bf16.mxu0 0
  %9033 = vmatpush2.bf16.msra.mxu0 0
  %9034 = vmatprep.mubr.bf16.mxu0 0
  %9035 = vmatmul.mubr.bf16.gmra.mxu0 %v8637
  %v9036 = vpop.f32.mrf.mxu0
  %v9037 = vadd.f32 0.0, %v9036
  %v9038 = vpop.f32.mrf.mxu0
  %v9039 = vadd.f32 0.0, %v9038
  %v9040 = vpop.f32.mrf.mxu0
  %v9041 = vadd.f32 0.0, %v9040
  %v9042 = vpop.f32.mrf.mxu0
  %v9043 = vadd.f32 0.0, %v9042
  %9044 = vdwg.mxu0
  %9045 = vmatprep.subr.bf16.mxu0 %v8892
  %9046 = vmatpush1.bf16.msra.mxu0 %v8891
  %9047 = vmatprep.subr.bf16.mxu0 %v8884
  %9048 = vmatpush1.bf16.msra.mxu0 %v8883
  %9049 = vmatprep.subr.bf16.mxu0 %v8876
  %9050 = vmatpush1.bf16.msra.mxu0 %v8875
  %9051 = vmatprep.subr.bf16.mxu0 %v8868
  %9052 = vmatpush1.bf16.msra.mxu0 %v8867
  %9053 = vmatprep.subr.bf16.mxu0 %v8860
  %9054 = vmatpush1.bf16.msra.mxu0 %v8859
  %9055 = vmatprep.subr.bf16.mxu0 %v8852
  %9056 = vmatpush1.bf16.msra.mxu0 %v8851
  %9057 = vmatprep.subr.bf16.mxu0 %v8844
  %9058 = vmatpush1.bf16.msra.mxu0 %v8843
  %9059 = vmatprep.subr.bf16.mxu0 %v8836
  %9060 = vmatpush1.bf16.msra.mxu0 %v8835
  %9061 = vmatprep.subr.bf16.mxu0 0
  %9062 = vmatpush2.bf16.msra.mxu0 0
  %9063 = vmatprep.subr.bf16.mxu0 0
  %9064 = vmatpush2.bf16.msra.mxu0 0
  %9065 = vmatprep.subr.bf16.mxu0 0
  %9066 = vmatpush2.bf16.msra.mxu0 0
  %9067 = vmatprep.subr.bf16.mxu0 0
  %9068 = vmatpush2.bf16.msra.mxu0 0
  %9069 = vmatprep.subr.bf16.mxu0 0
  %9070 = vmatpush2.bf16.msra.mxu0 0
  %9071 = vmatprep.subr.bf16.mxu0 0
  %9072 = vmatpush2.bf16.msra.mxu0 0
  %9073 = vmatprep.subr.bf16.mxu0 0
  %9074 = vmatpush2.bf16.msra.mxu0 0
  %9075 = vmatprep.subr.bf16.mxu0 0
  %9076 = vmatpush2.bf16.msra.mxu0 0
  %9077 = vmatprep.mubr.bf16.mxu0 0
  %9078 = vmatmul.mubr.bf16.gmra.mxu0 %v8637
  %v9079 = vpop.f32.mrf.mxu0
  %v9080 = vadd.f32 0.0, %v9079
  %v9081 = vpop.f32.mrf.mxu0
  %v9082 = vadd.f32 0.0, %v9081
  %v9083 = vpop.f32.mrf.mxu0
  %v9084 = vadd.f32 0.0, %v9083
  %v9085 = vpop.f32.mrf.mxu0
  %v9086 = vadd.f32 0.0, %v9085
  %9087 = vdwg.mxu0
  %9088 = vmatprep.subr.bf16.mxu0 %v8894
  %9089 = vmatpush1.bf16.msra.mxu0 %v8893
  %9090 = vmatprep.subr.bf16.mxu0 %v8886
  %9091 = vmatpush1.bf16.msra.mxu0 %v8885
  %9092 = vmatprep.subr.bf16.mxu0 %v8878
  %9093 = vmatpush1.bf16.msra.mxu0 %v8877
  %9094 = vmatprep.subr.bf16.mxu0 %v8870
  %9095 = vmatpush1.bf16.msra.mxu0 %v8869
  %9096 = vmatprep.subr.bf16.mxu0 %v8862
  %9097 = vmatpush1.bf16.msra.mxu0 %v8861
  %9098 = vmatprep.subr.bf16.mxu0 %v8854
  %9099 = vmatpush1.bf16.msra.mxu0 %v8853
  %9100 = vmatprep.subr.bf16.mxu0 %v8846
  %9101 = vmatpush1.bf16.msra.mxu0 %v8845
  %9102 = vmatprep.subr.bf16.mxu0 %v8838
  %9103 = vmatpush1.bf16.msra.mxu0 %v8837
  %9104 = vmatprep.subr.bf16.mxu0 0
  %9105 = vmatpush2.bf16.msra.mxu0 0
  %9106 = vmatprep.subr.bf16.mxu0 0
  %9107 = vmatpush2.bf16.msra.mxu0 0
  %9108 = vmatprep.subr.bf16.mxu0 0
  %9109 = vmatpush2.bf16.msra.mxu0 0
  %9110 = vmatprep.subr.bf16.mxu0 0
  %9111 = vmatpush2.bf16.msra.mxu0 0
  %9112 = vmatprep.subr.bf16.mxu0 0
  %9113 = vmatpush2.bf16.msra.mxu0 0
  %9114 = vmatprep.subr.bf16.mxu0 0
  %9115 = vmatpush2.bf16.msra.mxu0 0
  %9116 = vmatprep.subr.bf16.mxu0 0
  %9117 = vmatpush2.bf16.msra.mxu0 0
  %9118 = vmatprep.subr.bf16.mxu0 0
  %9119 = vmatpush2.bf16.msra.mxu0 0
  %9120 = vmatprep.mubr.bf16.mxu0 0
  %9121 = vmatmul.mubr.bf16.gmra.mxu0 %v8637
  %v9122 = vpop.f32.mrf.mxu0
  %v9123 = vadd.f32 0.0, %v9122
  %v9124 = vpop.f32.mrf.mxu0
  %v9125 = vadd.f32 0.0, %v9124
  %v9126 = vpop.f32.mrf.mxu0
  %v9127 = vadd.f32 0.0, %v9126
  %v9128 = vpop.f32.mrf.mxu0
  %v9129 = vadd.f32 0.0, %v9128
  %9130 = vdwg.mxu0
  %v9131 = vadd.f32 %v8551, %v8994
  %v9132 = vadd.f32 %v8552, %v8996
  %v9133 = vadd.f32 %v8553, %v9037
  %v9134 = vadd.f32 %v8554, %v9039
  %v9135 = vadd.f32 %v8555, %v9080
  %v9136 = vadd.f32 %v8556, %v9082
  %v9137 = vadd.f32 %v8557, %v9123
  %v9138 = vadd.f32 %v8558, %v9125
  %v9139 = vadd.f32 %v8559, %v8998
  %v9140 = vadd.f32 %v8560, %v9000
  %v9141 = vadd.f32 %v8561, %v9041
  %v9142 = vadd.f32 %v8562, %v9043
  %v9143 = vadd.f32 %v8563, %v9084
  %v9144 = vadd.f32 %v8564, %v9086
  %v9145 = vadd.f32 %v8565, %v9127
  %v9146 = vadd.f32 %v8566, %v9129
  %9147 = vst [vmem:[#allocation3] sm:$0xff] %v9131
  %9148 = vst [vmem:[#allocation3 + $0x8] sm:$0xff] %v9132
  %9149 = vst [vmem:[#allocation3 + $0x10] sm:$0xff] %v9133
  %9150 = vst [vmem:[#allocation3 + $0x18] sm:$0xff] %v9134
  %9151 = vst [vmem:[#allocation3 + $0x20] sm:$0xff] %v9135
  %9152 = vst [vmem:[#allocation3 + $0x28] sm:$0xff] %v9136
  %9153 = vst [vmem:[#allocation3 + $0x30] sm:$0xff] %v9137
  %9154 = vst [vmem:[#allocation3 + $0x38] sm:$0xff] %v9138
  %9155 = vst [vmem:[#allocation3 + $0x40] sm:$0xff] %v9139
  %9156 = vst [vmem:[#allocation3 + $0x48] sm:$0xff] %v9140
  %9157 = vst [vmem:[#allocation3 + $0x50] sm:$0xff] %v9141
  %9158 = vst [vmem:[#allocation3 + $0x58] sm:$0xff] %v9142
  %9159 = vst [vmem:[#allocation3 + $0x60] sm:$0xff] %v9143
  %9160 = vst [vmem:[#allocation3 + $0x68] sm:$0xff] %v9144
  %9161 = vst [vmem:[#allocation3 + $0x70] sm:$0xff] %v9145
  %9162 = vst [vmem:[#allocation3 + $0x78] sm:$0xff] %v9146
  %v9163 = vld [vmem:[#allocation3] sm:$0xff]
  %v9164 = vld [vmem:[#allocation3 + $0x8] sm:$0xff]
  %v9165 = vld [vmem:[#allocation3 + $0x10] sm:$0xff]
  %v9166 = vld [vmem:[#allocation3 + $0x18] sm:$0xff]
  %v9167 = vld [vmem:[#allocation3 + $0x20] sm:$0xff]
  %v9168 = vld [vmem:[#allocation3 + $0x28] sm:$0xff]
  %v9169 = vld [vmem:[#allocation3 + $0x30] sm:$0xff]
  %v9170 = vld [vmem:[#allocation3 + $0x38] sm:$0xff]
  %v9171 = vld [vmem:[#allocation3 + $0x40] sm:$0xff]
  %v9172 = vld [vmem:[#allocation3 + $0x48] sm:$0xff]
  %v9173 = vld [vmem:[#allocation3 + $0x50] sm:$0xff]
  %v9174 = vld [vmem:[#allocation3 + $0x58] sm:$0xff]
  %v9175 = vld [vmem:[#allocation3 + $0x60] sm:$0xff]
  %v9176 = vld [vmem:[#allocation3 + $0x68] sm:$0xff]
  %v9177 = vld [vmem:[#allocation3 + $0x70] sm:$0xff]
  %v9178 = vld [vmem:[#allocation3 + $0x78] sm:$0xff]
  %v9179 = vld [vmem:[#allocation2 + $0x70] sm:$0xf]
  %v9180 = vld [vmem:[#allocation2 + $0x74] sm:$0xf]
  %v9181 = vld [vmem:[%s3 + $0x1c00] sm:$0xff]
  %v9182 = vld [vmem:[%s3 + $0x1c08] sm:$0xff]
  %v9183 = vld [vmem:[%s3 + $0x1c10] sm:$0xff]
  %v9184 = vld [vmem:[%s3 + $0x1c18] sm:$0xff]
  %v9185 = vld [vmem:[%s3 + $0x1c20] sm:$0xff]
  %v9186 = vld [vmem:[%s3 + $0x1c28] sm:$0xff]
  %v9187 = vld [vmem:[%s3 + $0x1c30] sm:$0xff]
  %v9188 = vld [vmem:[%s3 + $0x1c38] sm:$0xff]
  %v9189 = vld [vmem:[%s3 + $0x1c40] sm:$0xff]
  %v9190 = vld [vmem:[%s3 + $0x1c48] sm:$0xff]
  %v9191 = vld [vmem:[%s3 + $0x1c50] sm:$0xff]
  %v9192 = vld [vmem:[%s3 + $0x1c58] sm:$0xff]
  %v9193 = vld [vmem:[%s3 + $0x1c60] sm:$0xff]
  %v9194 = vld [vmem:[%s3 + $0x1c68] sm:$0xff]
  %v9195 = vld [vmem:[%s3 + $0x1c70] sm:$0xff]
  %v9196 = vld [vmem:[%s3 + $0x1c78] sm:$0xff]
  %v9197 = vld [vmem:[%s3 + $0x1c80] sm:$0xff]
  %v9198 = vld [vmem:[%s3 + $0x1c88] sm:$0xff]
  %v9199 = vld [vmem:[%s3 + $0x1c90] sm:$0xff]
  %v9200 = vld [vmem:[%s3 + $0x1c98] sm:$0xff]
  %v9201 = vld [vmem:[%s3 + $0x1ca0] sm:$0xff]
  %v9202 = vld [vmem:[%s3 + $0x1ca8] sm:$0xff]
  %v9203 = vld [vmem:[%s3 + $0x1cb0] sm:$0xff]
  %v9204 = vld [vmem:[%s3 + $0x1cb8] sm:$0xff]
  %v9205 = vld [vmem:[%s3 + $0x1cc0] sm:$0xff]
  %v9206 = vld [vmem:[%s3 + $0x1cc8] sm:$0xff]
  %v9207 = vld [vmem:[%s3 + $0x1cd0] sm:$0xff]
  %v9208 = vld [vmem:[%s3 + $0x1cd8] sm:$0xff]
  %v9209 = vld [vmem:[%s3 + $0x1ce0] sm:$0xff]
  %v9210 = vld [vmem:[%s3 + $0x1ce8] sm:$0xff]
  %v9211 = vld [vmem:[%s3 + $0x1cf0] sm:$0xff]
  %v9212 = vld [vmem:[%s3 + $0x1cf8] sm:$0xff]
  %v9213 = vld [vmem:[%s3 + $0x1d00] sm:$0xff]
  %v9214 = vld [vmem:[%s3 + $0x1d08] sm:$0xff]
  %v9215 = vld [vmem:[%s3 + $0x1d10] sm:$0xff]
  %v9216 = vld [vmem:[%s3 + $0x1d18] sm:$0xff]
  %v9217 = vld [vmem:[%s3 + $0x1d20] sm:$0xff]
  %v9218 = vld [vmem:[%s3 + $0x1d28] sm:$0xff]
  %v9219 = vld [vmem:[%s3 + $0x1d30] sm:$0xff]
  %v9220 = vld [vmem:[%s3 + $0x1d38] sm:$0xff]
  %v9221 = vld [vmem:[%s3 + $0x1d40] sm:$0xff]
  %v9222 = vld [vmem:[%s3 + $0x1d48] sm:$0xff]
  %v9223 = vld [vmem:[%s3 + $0x1d50] sm:$0xff]
  %v9224 = vld [vmem:[%s3 + $0x1d58] sm:$0xff]
  %v9225 = vld [vmem:[%s3 + $0x1d60] sm:$0xff]
  %v9226 = vld [vmem:[%s3 + $0x1d68] sm:$0xff]
  %v9227 = vld [vmem:[%s3 + $0x1d70] sm:$0xff]
  %v9228 = vld [vmem:[%s3 + $0x1d78] sm:$0xff]
  %v9229 = vld [vmem:[%s3 + $0x1d80] sm:$0xff]
  %v9230 = vld [vmem:[%s3 + $0x1d88] sm:$0xff]
  %v9231 = vld [vmem:[%s3 + $0x1d90] sm:$0xff]
  %v9232 = vld [vmem:[%s3 + $0x1d98] sm:$0xff]
  %v9233 = vld [vmem:[%s3 + $0x1da0] sm:$0xff]
  %v9234 = vld [vmem:[%s3 + $0x1da8] sm:$0xff]
  %v9235 = vld [vmem:[%s3 + $0x1db0] sm:$0xff]
  %v9236 = vld [vmem:[%s3 + $0x1db8] sm:$0xff]
  %v9237 = vld [vmem:[%s3 + $0x1dc0] sm:$0xff]
  %v9238 = vld [vmem:[%s3 + $0x1dc8] sm:$0xff]
  %v9239 = vld [vmem:[%s3 + $0x1dd0] sm:$0xff]
  %v9240 = vld [vmem:[%s3 + $0x1dd8] sm:$0xff]
  %v9241 = vld [vmem:[%s3 + $0x1de0] sm:$0xff]
  %v9242 = vld [vmem:[%s3 + $0x1de8] sm:$0xff]
  %v9243 = vld [vmem:[%s3 + $0x1df0] sm:$0xff]
  %v9244 = vld [vmem:[%s3 + $0x1df8] sm:$0xff]
  %v9247 = vunpack.c.l.b16 %v9179
  %v9248 = vunpack.c.l.b16 %v9180
  %v9249 = vpack.c.b16 %v9248, %v9247
  %v9315 = vunpack.c.l.b16 %v9181
  %v9316 = vunpack.c.h.b16 %v9181
  %v9317 = vunpack.c.l.b16 %v9182
  %v9318 = vunpack.c.h.b16 %v9182
  %v9319 = vunpack.c.l.b16 %v9183
  %v9320 = vunpack.c.h.b16 %v9183
  %v9321 = vunpack.c.l.b16 %v9184
  %v9322 = vunpack.c.h.b16 %v9184
  %v9323 = vunpack.c.l.b16 %v9185
  %v9324 = vunpack.c.h.b16 %v9185
  %v9325 = vunpack.c.l.b16 %v9186
  %v9326 = vunpack.c.h.b16 %v9186
  %v9327 = vunpack.c.l.b16 %v9187
  %v9328 = vunpack.c.h.b16 %v9187
  %v9329 = vunpack.c.l.b16 %v9188
  %v9330 = vunpack.c.h.b16 %v9188
  %v9331 = vunpack.c.l.b16 %v9189
  %v9332 = vunpack.c.h.b16 %v9189
  %v9333 = vunpack.c.l.b16 %v9190
  %v9334 = vunpack.c.h.b16 %v9190
  %v9335 = vunpack.c.l.b16 %v9191
  %v9336 = vunpack.c.h.b16 %v9191
  %v9337 = vunpack.c.l.b16 %v9192
  %v9338 = vunpack.c.h.b16 %v9192
  %v9339 = vunpack.c.l.b16 %v9193
  %v9340 = vunpack.c.h.b16 %v9193
  %v9341 = vunpack.c.l.b16 %v9194
  %v9342 = vunpack.c.h.b16 %v9194
  %v9343 = vunpack.c.l.b16 %v9195
  %v9344 = vunpack.c.h.b16 %v9195
  %v9345 = vunpack.c.l.b16 %v9196
  %v9346 = vunpack.c.h.b16 %v9196
  %v9347 = vunpack.c.l.b16 %v9197
  %v9348 = vunpack.c.h.b16 %v9197
  %v9349 = vunpack.c.l.b16 %v9198
  %v9350 = vunpack.c.h.b16 %v9198
  %v9351 = vunpack.c.l.b16 %v9199
  %v9352 = vunpack.c.h.b16 %v9199
  %v9353 = vunpack.c.l.b16 %v9200
  %v9354 = vunpack.c.h.b16 %v9200
  %v9355 = vunpack.c.l.b16 %v9201
  %v9356 = vunpack.c.h.b16 %v9201
  %v9357 = vunpack.c.l.b16 %v9202
  %v9358 = vunpack.c.h.b16 %v9202
  %v9359 = vunpack.c.l.b16 %v9203
  %v9360 = vunpack.c.h.b16 %v9203
  %v9361 = vunpack.c.l.b16 %v9204
  %v9362 = vunpack.c.h.b16 %v9204
  %v9363 = vunpack.c.l.b16 %v9205
  %v9364 = vunpack.c.h.b16 %v9205
  %v9365 = vunpack.c.l.b16 %v9206
  %v9366 = vunpack.c.h.b16 %v9206
  %v9367 = vunpack.c.l.b16 %v9207
  %v9368 = vunpack.c.h.b16 %v9207
  %v9369 = vunpack.c.l.b16 %v9208
  %v9370 = vunpack.c.h.b16 %v9208
  %v9371 = vunpack.c.l.b16 %v9209
  %v9372 = vunpack.c.h.b16 %v9209
  %v9373 = vunpack.c.l.b16 %v9210
  %v9374 = vunpack.c.h.b16 %v9210
  %v9375 = vunpack.c.l.b16 %v9211
  %v9376 = vunpack.c.h.b16 %v9211
  %v9377 = vunpack.c.l.b16 %v9212
  %v9378 = vunpack.c.h.b16 %v9212
  %v9379 = vunpack.c.l.b16 %v9213
  %v9380 = vunpack.c.h.b16 %v9213
  %v9381 = vunpack.c.l.b16 %v9214
  %v9382 = vunpack.c.h.b16 %v9214
  %v9383 = vunpack.c.l.b16 %v9215
  %v9384 = vunpack.c.h.b16 %v9215
  %v9385 = vunpack.c.l.b16 %v9216
  %v9386 = vunpack.c.h.b16 %v9216
  %v9387 = vunpack.c.l.b16 %v9217
  %v9388 = vunpack.c.h.b16 %v9217
  %v9389 = vunpack.c.l.b16 %v9218
  %v9390 = vunpack.c.h.b16 %v9218
  %v9391 = vunpack.c.l.b16 %v9219
  %v9392 = vunpack.c.h.b16 %v9219
  %v9393 = vunpack.c.l.b16 %v9220
  %v9394 = vunpack.c.h.b16 %v9220
  %v9395 = vunpack.c.l.b16 %v9221
  %v9396 = vunpack.c.h.b16 %v9221
  %v9397 = vunpack.c.l.b16 %v9222
  %v9398 = vunpack.c.h.b16 %v9222
  %v9399 = vunpack.c.l.b16 %v9223
  %v9400 = vunpack.c.h.b16 %v9223
  %v9401 = vunpack.c.l.b16 %v9224
  %v9402 = vunpack.c.h.b16 %v9224
  %v9403 = vunpack.c.l.b16 %v9225
  %v9404 = vunpack.c.h.b16 %v9225
  %v9405 = vunpack.c.l.b16 %v9226
  %v9406 = vunpack.c.h.b16 %v9226
  %v9407 = vunpack.c.l.b16 %v9227
  %v9408 = vunpack.c.h.b16 %v9227
  %v9409 = vunpack.c.l.b16 %v9228
  %v9410 = vunpack.c.h.b16 %v9228
  %v9411 = vunpack.c.l.b16 %v9229
  %v9412 = vunpack.c.h.b16 %v9229
  %v9413 = vunpack.c.l.b16 %v9230
  %v9414 = vunpack.c.h.b16 %v9230
  %v9415 = vunpack.c.l.b16 %v9231
  %v9416 = vunpack.c.h.b16 %v9231
  %v9417 = vunpack.c.l.b16 %v9232
  %v9418 = vunpack.c.h.b16 %v9232
  %v9419 = vunpack.c.l.b16 %v9233
  %v9420 = vunpack.c.h.b16 %v9233
  %v9421 = vunpack.c.l.b16 %v9234
  %v9422 = vunpack.c.h.b16 %v9234
  %v9423 = vunpack.c.l.b16 %v9235
  %v9424 = vunpack.c.h.b16 %v9235
  %v9425 = vunpack.c.l.b16 %v9236
  %v9426 = vunpack.c.h.b16 %v9236
  %v9427 = vunpack.c.l.b16 %v9237
  %v9428 = vunpack.c.h.b16 %v9237
  %v9429 = vunpack.c.l.b16 %v9238
  %v9430 = vunpack.c.h.b16 %v9238
  %v9431 = vunpack.c.l.b16 %v9239
  %v9432 = vunpack.c.h.b16 %v9239
  %v9433 = vunpack.c.l.b16 %v9240
  %v9434 = vunpack.c.h.b16 %v9240
  %v9435 = vunpack.c.l.b16 %v9241
  %v9436 = vunpack.c.h.b16 %v9241
  %v9437 = vunpack.c.l.b16 %v9242
  %v9438 = vunpack.c.h.b16 %v9242
  %v9439 = vunpack.c.l.b16 %v9243
  %v9440 = vunpack.c.h.b16 %v9243
  %v9441 = vunpack.c.l.b16 %v9244
  %v9442 = vunpack.c.h.b16 %v9244
  %v9443 = vpack.c.b16 %v9323, %v9315
  %v9444 = vpack.c.b16 %v9324, %v9316
  %v9445 = vpack.c.b16 %v9325, %v9317
  %v9446 = vpack.c.b16 %v9326, %v9318
  %v9447 = vpack.c.b16 %v9327, %v9319
  %v9448 = vpack.c.b16 %v9328, %v9320
  %v9449 = vpack.c.b16 %v9329, %v9321
  %v9450 = vpack.c.b16 %v9330, %v9322
  %v9451 = vpack.c.b16 %v9339, %v9331
  %v9452 = vpack.c.b16 %v9340, %v9332
  %v9453 = vpack.c.b16 %v9341, %v9333
  %v9454 = vpack.c.b16 %v9342, %v9334
  %v9455 = vpack.c.b16 %v9343, %v9335
  %v9456 = vpack.c.b16 %v9344, %v9336
  %v9457 = vpack.c.b16 %v9345, %v9337
  %v9458 = vpack.c.b16 %v9346, %v9338
  %v9459 = vpack.c.b16 %v9355, %v9347
  %v9460 = vpack.c.b16 %v9356, %v9348
  %v9461 = vpack.c.b16 %v9357, %v9349
  %v9462 = vpack.c.b16 %v9358, %v9350
  %v9463 = vpack.c.b16 %v9359, %v9351
  %v9464 = vpack.c.b16 %v9360, %v9352
  %v9465 = vpack.c.b16 %v9361, %v9353
  %v9466 = vpack.c.b16 %v9362, %v9354
  %v9467 = vpack.c.b16 %v9371, %v9363
  %v9468 = vpack.c.b16 %v9372, %v9364
  %v9469 = vpack.c.b16 %v9373, %v9365
  %v9470 = vpack.c.b16 %v9374, %v9366
  %v9471 = vpack.c.b16 %v9375, %v9367
  %v9472 = vpack.c.b16 %v9376, %v9368
  %v9473 = vpack.c.b16 %v9377, %v9369
  %v9474 = vpack.c.b16 %v9378, %v9370
  %v9475 = vpack.c.b16 %v9387, %v9379
  %v9476 = vpack.c.b16 %v9388, %v9380
  %v9477 = vpack.c.b16 %v9389, %v9381
  %v9478 = vpack.c.b16 %v9390, %v9382
  %v9479 = vpack.c.b16 %v9391, %v9383
  %v9480 = vpack.c.b16 %v9392, %v9384
  %v9481 = vpack.c.b16 %v9393, %v9385
  %v9482 = vpack.c.b16 %v9394, %v9386
  %v9483 = vpack.c.b16 %v9403, %v9395
  %v9484 = vpack.c.b16 %v9404, %v9396
  %v9485 = vpack.c.b16 %v9405, %v9397
  %v9486 = vpack.c.b16 %v9406, %v9398
  %v9487 = vpack.c.b16 %v9407, %v9399
  %v9488 = vpack.c.b16 %v9408, %v9400
  %v9489 = vpack.c.b16 %v9409, %v9401
  %v9490 = vpack.c.b16 %v9410, %v9402
  %v9491 = vpack.c.b16 %v9419, %v9411
  %v9492 = vpack.c.b16 %v9420, %v9412
  %v9493 = vpack.c.b16 %v9421, %v9413
  %v9494 = vpack.c.b16 %v9422, %v9414
  %v9495 = vpack.c.b16 %v9423, %v9415
  %v9496 = vpack.c.b16 %v9424, %v9416
  %v9497 = vpack.c.b16 %v9425, %v9417
  %v9498 = vpack.c.b16 %v9426, %v9418
  %v9499 = vpack.c.b16 %v9435, %v9427
  %v9500 = vpack.c.b16 %v9436, %v9428
  %v9501 = vpack.c.b16 %v9437, %v9429
  %v9502 = vpack.c.b16 %v9438, %v9430
  %v9503 = vpack.c.b16 %v9439, %v9431
  %v9504 = vpack.c.b16 %v9440, %v9432
  %v9505 = vpack.c.b16 %v9441, %v9433
  %v9506 = vpack.c.b16 %v9442, %v9434
  %9571 = vmatprep.subr.bf16.mxu0 %v9500
  %9572 = vmatpush1.bf16.msra.mxu0 %v9499
  %9573 = vmatprep.subr.bf16.mxu0 %v9492
  %9574 = vmatpush1.bf16.msra.mxu0 %v9491
  %9575 = vmatprep.subr.bf16.mxu0 %v9484
  %9576 = vmatpush1.bf16.msra.mxu0 %v9483
  %9577 = vmatprep.subr.bf16.mxu0 %v9476
  %9578 = vmatpush1.bf16.msra.mxu0 %v9475
  %9579 = vmatprep.subr.bf16.mxu0 %v9468
  %9580 = vmatpush1.bf16.msra.mxu0 %v9467
  %9581 = vmatprep.subr.bf16.mxu0 %v9460
  %9582 = vmatpush1.bf16.msra.mxu0 %v9459
  %9583 = vmatprep.subr.bf16.mxu0 %v9452
  %9584 = vmatpush1.bf16.msra.mxu0 %v9451
  %9585 = vmatprep.subr.bf16.mxu0 %v9444
  %9586 = vmatpush1.bf16.msra.mxu0 %v9443
  %9587 = vmatprep.subr.bf16.mxu0 0
  %9588 = vmatpush2.bf16.msra.mxu0 0
  %9589 = vmatprep.subr.bf16.mxu0 0
  %9590 = vmatpush2.bf16.msra.mxu0 0
  %9591 = vmatprep.subr.bf16.mxu0 0
  %9592 = vmatpush2.bf16.msra.mxu0 0
  %9593 = vmatprep.subr.bf16.mxu0 0
  %9594 = vmatpush2.bf16.msra.mxu0 0
  %9595 = vmatprep.subr.bf16.mxu0 0
  %9596 = vmatpush2.bf16.msra.mxu0 0
  %9597 = vmatprep.subr.bf16.mxu0 0
  %9598 = vmatpush2.bf16.msra.mxu0 0
  %9599 = vmatprep.subr.bf16.mxu0 0
  %9600 = vmatpush2.bf16.msra.mxu0 0
  %9601 = vmatprep.subr.bf16.mxu0 0
  %9602 = vmatpush2.bf16.msra.mxu0 0
  %9603 = vmatprep.mubr.bf16.mxu0 0
  %9604 = vmatmul.mubr.bf16.gmra.mxu0 %v9249
  %v9605 = vpop.f32.mrf.mxu0
  %v9606 = vadd.f32 0.0, %v9605
  %v9607 = vpop.f32.mrf.mxu0
  %v9608 = vadd.f32 0.0, %v9607
  %v9609 = vpop.f32.mrf.mxu0
  %v9610 = vadd.f32 0.0, %v9609
  %v9611 = vpop.f32.mrf.mxu0
  %v9612 = vadd.f32 0.0, %v9611
  %9613 = vdwg.mxu0
  %9614 = vmatprep.subr.bf16.mxu0 %v9502
  %9615 = vmatpush1.bf16.msra.mxu0 %v9501
  %9616 = vmatprep.subr.bf16.mxu0 %v9494
  %9617 = vmatpush1.bf16.msra.mxu0 %v9493
  %9618 = vmatprep.subr.bf16.mxu0 %v9486
  %9619 = vmatpush1.bf16.msra.mxu0 %v9485
  %9620 = vmatprep.subr.bf16.mxu0 %v9478
  %9621 = vmatpush1.bf16.msra.mxu0 %v9477
  %9622 = vmatprep.subr.bf16.mxu0 %v9470
  %9623 = vmatpush1.bf16.msra.mxu0 %v9469
  %9624 = vmatprep.subr.bf16.mxu0 %v9462
  %9625 = vmatpush1.bf16.msra.mxu0 %v9461
  %9626 = vmatprep.subr.bf16.mxu0 %v9454
  %9627 = vmatpush1.bf16.msra.mxu0 %v9453
  %9628 = vmatprep.subr.bf16.mxu0 %v9446
  %9629 = vmatpush1.bf16.msra.mxu0 %v9445
  %9630 = vmatprep.subr.bf16.mxu0 0
  %9631 = vmatpush2.bf16.msra.mxu0 0
  %9632 = vmatprep.subr.bf16.mxu0 0
  %9633 = vmatpush2.bf16.msra.mxu0 0
  %9634 = vmatprep.subr.bf16.mxu0 0
  %9635 = vmatpush2.bf16.msra.mxu0 0
  %9636 = vmatprep.subr.bf16.mxu0 0
  %9637 = vmatpush2.bf16.msra.mxu0 0
  %9638 = vmatprep.subr.bf16.mxu0 0
  %9639 = vmatpush2.bf16.msra.mxu0 0
  %9640 = vmatprep.subr.bf16.mxu0 0
  %9641 = vmatpush2.bf16.msra.mxu0 0
  %9642 = vmatprep.subr.bf16.mxu0 0
  %9643 = vmatpush2.bf16.msra.mxu0 0
  %9644 = vmatprep.subr.bf16.mxu0 0
  %9645 = vmatpush2.bf16.msra.mxu0 0
  %9646 = vmatprep.mubr.bf16.mxu0 0
  %9647 = vmatmul.mubr.bf16.gmra.mxu0 %v9249
  %v9648 = vpop.f32.mrf.mxu0
  %v9649 = vadd.f32 0.0, %v9648
  %v9650 = vpop.f32.mrf.mxu0
  %v9651 = vadd.f32 0.0, %v9650
  %v9652 = vpop.f32.mrf.mxu0
  %v9653 = vadd.f32 0.0, %v9652
  %v9654 = vpop.f32.mrf.mxu0
  %v9655 = vadd.f32 0.0, %v9654
  %9656 = vdwg.mxu0
  %9657 = vmatprep.subr.bf16.mxu0 %v9504
  %9658 = vmatpush1.bf16.msra.mxu0 %v9503
  %9659 = vmatprep.subr.bf16.mxu0 %v9496
  %9660 = vmatpush1.bf16.msra.mxu0 %v9495
  %9661 = vmatprep.subr.bf16.mxu0 %v9488
  %9662 = vmatpush1.bf16.msra.mxu0 %v9487
  %9663 = vmatprep.subr.bf16.mxu0 %v9480
  %9664 = vmatpush1.bf16.msra.mxu0 %v9479
  %9665 = vmatprep.subr.bf16.mxu0 %v9472
  %9666 = vmatpush1.bf16.msra.mxu0 %v9471
  %9667 = vmatprep.subr.bf16.mxu0 %v9464
  %9668 = vmatpush1.bf16.msra.mxu0 %v9463
  %9669 = vmatprep.subr.bf16.mxu0 %v9456
  %9670 = vmatpush1.bf16.msra.mxu0 %v9455
  %9671 = vmatprep.subr.bf16.mxu0 %v9448
  %9672 = vmatpush1.bf16.msra.mxu0 %v9447
  %9673 = vmatprep.subr.bf16.mxu0 0
  %9674 = vmatpush2.bf16.msra.mxu0 0
  %9675 = vmatprep.subr.bf16.mxu0 0
  %9676 = vmatpush2.bf16.msra.mxu0 0
  %9677 = vmatprep.subr.bf16.mxu0 0
  %9678 = vmatpush2.bf16.msra.mxu0 0
  %9679 = vmatprep.subr.bf16.mxu0 0
  %9680 = vmatpush2.bf16.msra.mxu0 0
  %9681 = vmatprep.subr.bf16.mxu0 0
  %9682 = vmatpush2.bf16.msra.mxu0 0
  %9683 = vmatprep.subr.bf16.mxu0 0
  %9684 = vmatpush2.bf16.msra.mxu0 0
  %9685 = vmatprep.subr.bf16.mxu0 0
  %9686 = vmatpush2.bf16.msra.mxu0 0
  %9687 = vmatprep.subr.bf16.mxu0 0
  %9688 = vmatpush2.bf16.msra.mxu0 0
  %9689 = vmatprep.mubr.bf16.mxu0 0
  %9690 = vmatmul.mubr.bf16.gmra.mxu0 %v9249
  %v9691 = vpop.f32.mrf.mxu0
  %v9692 = vadd.f32 0.0, %v9691
  %v9693 = vpop.f32.mrf.mxu0
  %v9694 = vadd.f32 0.0, %v9693
  %v9695 = vpop.f32.mrf.mxu0
  %v9696 = vadd.f32 0.0, %v9695
  %v9697 = vpop.f32.mrf.mxu0
  %v9698 = vadd.f32 0.0, %v9697
  %9699 = vdwg.mxu0
  %9700 = vmatprep.subr.bf16.mxu0 %v9506
  %9701 = vmatpush1.bf16.msra.mxu0 %v9505
  %9702 = vmatprep.subr.bf16.mxu0 %v9498
  %9703 = vmatpush1.bf16.msra.mxu0 %v9497
  %9704 = vmatprep.subr.bf16.mxu0 %v9490
  %9705 = vmatpush1.bf16.msra.mxu0 %v9489
  %9706 = vmatprep.subr.bf16.mxu0 %v9482
  %9707 = vmatpush1.bf16.msra.mxu0 %v9481
  %9708 = vmatprep.subr.bf16.mxu0 %v9474
  %9709 = vmatpush1.bf16.msra.mxu0 %v9473
  %9710 = vmatprep.subr.bf16.mxu0 %v9466
  %9711 = vmatpush1.bf16.msra.mxu0 %v9465
  %9712 = vmatprep.subr.bf16.mxu0 %v9458
  %9713 = vmatpush1.bf16.msra.mxu0 %v9457
  %9714 = vmatprep.subr.bf16.mxu0 %v9450
  %9715 = vmatpush1.bf16.msra.mxu0 %v9449
  %9716 = vmatprep.subr.bf16.mxu0 0
  %9717 = vmatpush2.bf16.msra.mxu0 0
  %9718 = vmatprep.subr.bf16.mxu0 0
  %9719 = vmatpush2.bf16.msra.mxu0 0
  %9720 = vmatprep.subr.bf16.mxu0 0
  %9721 = vmatpush2.bf16.msra.mxu0 0
  %9722 = vmatprep.subr.bf16.mxu0 0
  %9723 = vmatpush2.bf16.msra.mxu0 0
  %9724 = vmatprep.subr.bf16.mxu0 0
  %9725 = vmatpush2.bf16.msra.mxu0 0
  %9726 = vmatprep.subr.bf16.mxu0 0
  %9727 = vmatpush2.bf16.msra.mxu0 0
  %9728 = vmatprep.subr.bf16.mxu0 0
  %9729 = vmatpush2.bf16.msra.mxu0 0
  %9730 = vmatprep.subr.bf16.mxu0 0
  %9731 = vmatpush2.bf16.msra.mxu0 0
  %9732 = vmatprep.mubr.bf16.mxu0 0
  %9733 = vmatmul.mubr.bf16.gmra.mxu0 %v9249
  %v9734 = vpop.f32.mrf.mxu0
  %v9735 = vadd.f32 0.0, %v9734
  %v9736 = vpop.f32.mrf.mxu0
  %v9737 = vadd.f32 0.0, %v9736
  %v9738 = vpop.f32.mrf.mxu0
  %v9739 = vadd.f32 0.0, %v9738
  %v9740 = vpop.f32.mrf.mxu0
  %v9741 = vadd.f32 0.0, %v9740
  %9742 = vdwg.mxu0
  %v9743 = vadd.f32 %v9163, %v9606
  %v9744 = vadd.f32 %v9164, %v9608
  %v9745 = vadd.f32 %v9165, %v9649
  %v9746 = vadd.f32 %v9166, %v9651
  %v9747 = vadd.f32 %v9167, %v9692
  %v9748 = vadd.f32 %v9168, %v9694
  %v9749 = vadd.f32 %v9169, %v9735
  %v9750 = vadd.f32 %v9170, %v9737
  %v9751 = vadd.f32 %v9171, %v9610
  %v9752 = vadd.f32 %v9172, %v9612
  %v9753 = vadd.f32 %v9173, %v9653
  %v9754 = vadd.f32 %v9174, %v9655
  %v9755 = vadd.f32 %v9175, %v9696
  %v9756 = vadd.f32 %v9176, %v9698
  %v9757 = vadd.f32 %v9177, %v9739
  %v9758 = vadd.f32 %v9178, %v9741
  %9759 = vst [vmem:[#allocation3] sm:$0xff] %v9743
  %9760 = vst [vmem:[#allocation3 + $0x8] sm:$0xff] %v9744
  %9761 = vst [vmem:[#allocation3 + $0x10] sm:$0xff] %v9745
  %9762 = vst [vmem:[#allocation3 + $0x18] sm:$0xff] %v9746
  %9763 = vst [vmem:[#allocation3 + $0x20] sm:$0xff] %v9747
  %9764 = vst [vmem:[#allocation3 + $0x28] sm:$0xff] %v9748
  %9765 = vst [vmem:[#allocation3 + $0x30] sm:$0xff] %v9749
  %9766 = vst [vmem:[#allocation3 + $0x38] sm:$0xff] %v9750
  %9767 = vst [vmem:[#allocation3 + $0x40] sm:$0xff] %v9751
  %9768 = vst [vmem:[#allocation3 + $0x48] sm:$0xff] %v9752
  %9769 = vst [vmem:[#allocation3 + $0x50] sm:$0xff] %v9753
  %9770 = vst [vmem:[#allocation3 + $0x58] sm:$0xff] %v9754
  %9771 = vst [vmem:[#allocation3 + $0x60] sm:$0xff] %v9755
  %9772 = vst [vmem:[#allocation3 + $0x68] sm:$0xff] %v9756
  %9773 = vst [vmem:[#allocation3 + $0x70] sm:$0xff] %v9757
  %9774 = vst [vmem:[#allocation3 + $0x78] sm:$0xff] %v9758
  %v9775 = vld [vmem:[#allocation3] sm:$0xff]
  %v9776 = vld [vmem:[#allocation3 + $0x8] sm:$0xff]
  %v9777 = vld [vmem:[#allocation3 + $0x10] sm:$0xff]
  %v9778 = vld [vmem:[#allocation3 + $0x18] sm:$0xff]
  %v9779 = vld [vmem:[#allocation3 + $0x20] sm:$0xff]
  %v9780 = vld [vmem:[#allocation3 + $0x28] sm:$0xff]
  %v9781 = vld [vmem:[#allocation3 + $0x30] sm:$0xff]
  %v9782 = vld [vmem:[#allocation3 + $0x38] sm:$0xff]
  %v9783 = vld [vmem:[#allocation3 + $0x40] sm:$0xff]
  %v9784 = vld [vmem:[#allocation3 + $0x48] sm:$0xff]
  %v9785 = vld [vmem:[#allocation3 + $0x50] sm:$0xff]
  %v9786 = vld [vmem:[#allocation3 + $0x58] sm:$0xff]
  %v9787 = vld [vmem:[#allocation3 + $0x60] sm:$0xff]
  %v9788 = vld [vmem:[#allocation3 + $0x68] sm:$0xff]
  %v9789 = vld [vmem:[#allocation3 + $0x70] sm:$0xff]
  %v9790 = vld [vmem:[#allocation3 + $0x78] sm:$0xff]
  %v9791 = vld [vmem:[#allocation2 + $0x78] sm:$0xf]
  %v9792 = vld [vmem:[#allocation2 + $0x7c] sm:$0xf]
  %v9793 = vld [vmem:[%s3 + $0x1e00] sm:$0xff]
  %v9794 = vld [vmem:[%s3 + $0x1e08] sm:$0xff]
  %v9795 = vld [vmem:[%s3 + $0x1e10] sm:$0xff]
  %v9796 = vld [vmem:[%s3 + $0x1e18] sm:$0xff]
  %v9797 = vld [vmem:[%s3 + $0x1e20] sm:$0xff]
  %v9798 = vld [vmem:[%s3 + $0x1e28] sm:$0xff]
  %v9799 = vld [vmem:[%s3 + $0x1e30] sm:$0xff]
  %v9800 = vld [vmem:[%s3 + $0x1e38] sm:$0xff]
  %v9801 = vld [vmem:[%s3 + $0x1e40] sm:$0xff]
  %v9802 = vld [vmem:[%s3 + $0x1e48] sm:$0xff]
  %v9803 = vld [vmem:[%s3 + $0x1e50] sm:$0xff]
  %v9804 = vld [vmem:[%s3 + $0x1e58] sm:$0xff]
  %v9805 = vld [vmem:[%s3 + $0x1e60] sm:$0xff]
  %v9806 = vld [vmem:[%s3 + $0x1e68] sm:$0xff]
  %v9807 = vld [vmem:[%s3 + $0x1e70] sm:$0xff]
  %v9808 = vld [vmem:[%s3 + $0x1e78] sm:$0xff]
  %v9809 = vld [vmem:[%s3 + $0x1e80] sm:$0xff]
  %v9810 = vld [vmem:[%s3 + $0x1e88] sm:$0xff]
  %v9811 = vld [vmem:[%s3 + $0x1e90] sm:$0xff]
  %v9812 = vld [vmem:[%s3 + $0x1e98] sm:$0xff]
  %v9813 = vld [vmem:[%s3 + $0x1ea0] sm:$0xff]
  %v9814 = vld [vmem:[%s3 + $0x1ea8] sm:$0xff]
  %v9815 = vld [vmem:[%s3 + $0x1eb0] sm:$0xff]
  %v9816 = vld [vmem:[%s3 + $0x1eb8] sm:$0xff]
  %v9817 = vld [vmem:[%s3 + $0x1ec0] sm:$0xff]
  %v9818 = vld [vmem:[%s3 + $0x1ec8] sm:$0xff]
  %v9819 = vld [vmem:[%s3 + $0x1ed0] sm:$0xff]
  %v9820 = vld [vmem:[%s3 + $0x1ed8] sm:$0xff]
  %v9821 = vld [vmem:[%s3 + $0x1ee0] sm:$0xff]
  %v9822 = vld [vmem:[%s3 + $0x1ee8] sm:$0xff]
  %v9823 = vld [vmem:[%s3 + $0x1ef0] sm:$0xff]
  %v9824 = vld [vmem:[%s3 + $0x1ef8] sm:$0xff]
  %v9825 = vld [vmem:[%s3 + $0x1f00] sm:$0xff]
  %v9826 = vld [vmem:[%s3 + $0x1f08] sm:$0xff]
  %v9827 = vld [vmem:[%s3 + $0x1f10] sm:$0xff]
  %v9828 = vld [vmem:[%s3 + $0x1f18] sm:$0xff]
  %v9829 = vld [vmem:[%s3 + $0x1f20] sm:$0xff]
  %v9830 = vld [vmem:[%s3 + $0x1f28] sm:$0xff]
  %v9831 = vld [vmem:[%s3 + $0x1f30] sm:$0xff]
  %v9832 = vld [vmem:[%s3 + $0x1f38] sm:$0xff]
  %v9833 = vld [vmem:[%s3 + $0x1f40] sm:$0xff]
  %v9834 = vld [vmem:[%s3 + $0x1f48] sm:$0xff]
  %v9835 = vld [vmem:[%s3 + $0x1f50] sm:$0xff]
  %v9836 = vld [vmem:[%s3 + $0x1f58] sm:$0xff]
  %v9837 = vld [vmem:[%s3 + $0x1f60] sm:$0xff]
  %v9838 = vld [vmem:[%s3 + $0x1f68] sm:$0xff]
  %v9839 = vld [vmem:[%s3 + $0x1f70] sm:$0xff]
  %v9840 = vld [vmem:[%s3 + $0x1f78] sm:$0xff]
  %v9841 = vld [vmem:[%s3 + $0x1f80] sm:$0xff]
  %v9842 = vld [vmem:[%s3 + $0x1f88] sm:$0xff]
  %v9843 = vld [vmem:[%s3 + $0x1f90] sm:$0xff]
  %v9844 = vld [vmem:[%s3 + $0x1f98] sm:$0xff]
  %v9845 = vld [vmem:[%s3 + $0x1fa0] sm:$0xff]
  %v9846 = vld [vmem:[%s3 + $0x1fa8] sm:$0xff]
  %v9847 = vld [vmem:[%s3 + $0x1fb0] sm:$0xff]
  %v9848 = vld [vmem:[%s3 + $0x1fb8] sm:$0xff]
  %v9849 = vld [vmem:[%s3 + $0x1fc0] sm:$0xff]
  %v9850 = vld [vmem:[%s3 + $0x1fc8] sm:$0xff]
  %v9851 = vld [vmem:[%s3 + $0x1fd0] sm:$0xff]
  %v9852 = vld [vmem:[%s3 + $0x1fd8] sm:$0xff]
  %v9853 = vld [vmem:[%s3 + $0x1fe0] sm:$0xff]
  %v9854 = vld [vmem:[%s3 + $0x1fe8] sm:$0xff]
  %v9855 = vld [vmem:[%s3 + $0x1ff0] sm:$0xff]
  %v9856 = vld [vmem:[%s3 + $0x1ff8] sm:$0xff]
  %v9859 = vunpack.c.l.b16 %v9791
  %v9860 = vunpack.c.l.b16 %v9792
  %v9861 = vpack.c.b16 %v9860, %v9859
  %v9927 = vunpack.c.l.b16 %v9793
  %v9928 = vunpack.c.h.b16 %v9793
  %v9929 = vunpack.c.l.b16 %v9794
  %v9930 = vunpack.c.h.b16 %v9794
  %v9931 = vunpack.c.l.b16 %v9795
  %v9932 = vunpack.c.h.b16 %v9795
  %v9933 = vunpack.c.l.b16 %v9796
  %v9934 = vunpack.c.h.b16 %v9796
  %v9935 = vunpack.c.l.b16 %v9797
  %v9936 = vunpack.c.h.b16 %v9797
  %v9937 = vunpack.c.l.b16 %v9798
  %v9938 = vunpack.c.h.b16 %v9798
  %v9939 = vunpack.c.l.b16 %v9799
  %v9940 = vunpack.c.h.b16 %v9799
  %v9941 = vunpack.c.l.b16 %v9800
  %v9942 = vunpack.c.h.b16 %v9800
  %v9943 = vunpack.c.l.b16 %v9801
  %v9944 = vunpack.c.h.b16 %v9801
  %v9945 = vunpack.c.l.b16 %v9802
  %v9946 = vunpack.c.h.b16 %v9802
  %v9947 = vunpack.c.l.b16 %v9803
  %v9948 = vunpack.c.h.b16 %v9803
  %v9949 = vunpack.c.l.b16 %v9804
  %v9950 = vunpack.c.h.b16 %v9804
  %v9951 = vunpack.c.l.b16 %v9805
  %v9952 = vunpack.c.h.b16 %v9805
  %v9953 = vunpack.c.l.b16 %v9806
  %v9954 = vunpack.c.h.b16 %v9806
  %v9955 = vunpack.c.l.b16 %v9807
  %v9956 = vunpack.c.h.b16 %v9807
  %v9957 = vunpack.c.l.b16 %v9808
  %v9958 = vunpack.c.h.b16 %v9808
  %v9959 = vunpack.c.l.b16 %v9809
  %v9960 = vunpack.c.h.b16 %v9809
  %v9961 = vunpack.c.l.b16 %v9810
  %v9962 = vunpack.c.h.b16 %v9810
  %v9963 = vunpack.c.l.b16 %v9811
  %v9964 = vunpack.c.h.b16 %v9811
  %v9965 = vunpack.c.l.b16 %v9812
  %v9966 = vunpack.c.h.b16 %v9812
  %v9967 = vunpack.c.l.b16 %v9813
  %v9968 = vunpack.c.h.b16 %v9813
  %v9969 = vunpack.c.l.b16 %v9814
  %v9970 = vunpack.c.h.b16 %v9814
  %v9971 = vunpack.c.l.b16 %v9815
  %v9972 = vunpack.c.h.b16 %v9815
  %v9973 = vunpack.c.l.b16 %v9816
  %v9974 = vunpack.c.h.b16 %v9816
  %v9975 = vunpack.c.l.b16 %v9817
  %v9976 = vunpack.c.h.b16 %v9817
  %v9977 = vunpack.c.l.b16 %v9818
  %v9978 = vunpack.c.h.b16 %v9818
  %v9979 = vunpack.c.l.b16 %v9819
  %v9980 = vunpack.c.h.b16 %v9819
  %v9981 = vunpack.c.l.b16 %v9820
  %v9982 = vunpack.c.h.b16 %v9820
  %v9983 = vunpack.c.l.b16 %v9821
  %v9984 = vunpack.c.h.b16 %v9821
  %v9985 = vunpack.c.l.b16 %v9822
  %v9986 = vunpack.c.h.b16 %v9822
  %v9987 = vunpack.c.l.b16 %v9823
  %v9988 = vunpack.c.h.b16 %v9823
  %v9989 = vunpack.c.l.b16 %v9824
  %v9990 = vunpack.c.h.b16 %v9824
  %v9991 = vunpack.c.l.b16 %v9825
  %v9992 = vunpack.c.h.b16 %v9825
  %v9993 = vunpack.c.l.b16 %v9826
  %v9994 = vunpack.c.h.b16 %v9826
  %v9995 = vunpack.c.l.b16 %v9827
  %v9996 = vunpack.c.h.b16 %v9827
  %v9997 = vunpack.c.l.b16 %v9828
  %v9998 = vunpack.c.h.b16 %v9828
  %v9999 = vunpack.c.l.b16 %v9829
  %v10000 = vunpack.c.h.b16 %v9829
  %v10001 = vunpack.c.l.b16 %v9830
  %v10002 = vunpack.c.h.b16 %v9830
  %v10003 = vunpack.c.l.b16 %v9831
  %v10004 = vunpack.c.h.b16 %v9831
  %v10005 = vunpack.c.l.b16 %v9832
  %v10006 = vunpack.c.h.b16 %v9832
  %v10007 = vunpack.c.l.b16 %v9833
  %v10008 = vunpack.c.h.b16 %v9833
  %v10009 = vunpack.c.l.b16 %v9834
  %v10010 = vunpack.c.h.b16 %v9834
  %v10011 = vunpack.c.l.b16 %v9835
  %v10012 = vunpack.c.h.b16 %v9835
  %v10013 = vunpack.c.l.b16 %v9836
  %v10014 = vunpack.c.h.b16 %v9836
  %v10015 = vunpack.c.l.b16 %v9837
  %v10016 = vunpack.c.h.b16 %v9837
  %v10017 = vunpack.c.l.b16 %v9838
  %v10018 = vunpack.c.h.b16 %v9838
  %v10019 = vunpack.c.l.b16 %v9839
  %v10020 = vunpack.c.h.b16 %v9839
  %v10021 = vunpack.c.l.b16 %v9840
  %v10022 = vunpack.c.h.b16 %v9840
  %v10023 = vunpack.c.l.b16 %v9841
  %v10024 = vunpack.c.h.b16 %v9841
  %v10025 = vunpack.c.l.b16 %v9842
  %v10026 = vunpack.c.h.b16 %v9842
  %v10027 = vunpack.c.l.b16 %v9843
  %v10028 = vunpack.c.h.b16 %v9843
  %v10029 = vunpack.c.l.b16 %v9844
  %v10030 = vunpack.c.h.b16 %v9844
  %v10031 = vunpack.c.l.b16 %v9845
  %v10032 = vunpack.c.h.b16 %v9845
  %v10033 = vunpack.c.l.b16 %v9846
  %v10034 = vunpack.c.h.b16 %v9846
  %v10035 = vunpack.c.l.b16 %v9847
  %v10036 = vunpack.c.h.b16 %v9847
  %v10037 = vunpack.c.l.b16 %v9848
  %v10038 = vunpack.c.h.b16 %v9848
  %v10039 = vunpack.c.l.b16 %v9849
  %v10040 = vunpack.c.h.b16 %v9849
  %v10041 = vunpack.c.l.b16 %v9850
  %v10042 = vunpack.c.h.b16 %v9850
  %v10043 = vunpack.c.l.b16 %v9851
  %v10044 = vunpack.c.h.b16 %v9851
  %v10045 = vunpack.c.l.b16 %v9852
  %v10046 = vunpack.c.h.b16 %v9852
  %v10047 = vunpack.c.l.b16 %v9853
  %v10048 = vunpack.c.h.b16 %v9853
  %v10049 = vunpack.c.l.b16 %v9854
  %v10050 = vunpack.c.h.b16 %v9854
  %v10051 = vunpack.c.l.b16 %v9855
  %v10052 = vunpack.c.h.b16 %v9855
  %v10053 = vunpack.c.l.b16 %v9856
  %v10054 = vunpack.c.h.b16 %v9856
  %v10055 = vpack.c.b16 %v9935, %v9927
  %v10056 = vpack.c.b16 %v9936, %v9928
  %v10057 = vpack.c.b16 %v9937, %v9929
  %v10058 = vpack.c.b16 %v9938, %v9930
  %v10059 = vpack.c.b16 %v9939, %v9931
  %v10060 = vpack.c.b16 %v9940, %v9932
  %v10061 = vpack.c.b16 %v9941, %v9933
  %v10062 = vpack.c.b16 %v9942, %v9934
  %v10063 = vpack.c.b16 %v9951, %v9943
  %v10064 = vpack.c.b16 %v9952, %v9944
  %v10065 = vpack.c.b16 %v9953, %v9945
  %v10066 = vpack.c.b16 %v9954, %v9946
  %v10067 = vpack.c.b16 %v9955, %v9947
  %v10068 = vpack.c.b16 %v9956, %v9948
  %v10069 = vpack.c.b16 %v9957, %v9949
  %v10070 = vpack.c.b16 %v9958, %v9950
  %v10071 = vpack.c.b16 %v9967, %v9959
  %v10072 = vpack.c.b16 %v9968, %v9960
  %v10073 = vpack.c.b16 %v9969, %v9961
  %v10074 = vpack.c.b16 %v9970, %v9962
  %v10075 = vpack.c.b16 %v9971, %v9963
  %v10076 = vpack.c.b16 %v9972, %v9964
  %v10077 = vpack.c.b16 %v9973, %v9965
  %v10078 = vpack.c.b16 %v9974, %v9966
  %v10079 = vpack.c.b16 %v9983, %v9975
  %v10080 = vpack.c.b16 %v9984, %v9976
  %v10081 = vpack.c.b16 %v9985, %v9977
  %v10082 = vpack.c.b16 %v9986, %v9978
  %v10083 = vpack.c.b16 %v9987, %v9979
  %v10084 = vpack.c.b16 %v9988, %v9980
  %v10085 = vpack.c.b16 %v9989, %v9981
  %v10086 = vpack.c.b16 %v9990, %v9982
  %v10087 = vpack.c.b16 %v9999, %v9991
  %v10088 = vpack.c.b16 %v10000, %v9992
  %v10089 = vpack.c.b16 %v10001, %v9993
  %v10090 = vpack.c.b16 %v10002, %v9994
  %v10091 = vpack.c.b16 %v10003, %v9995
  %v10092 = vpack.c.b16 %v10004, %v9996
  %v10093 = vpack.c.b16 %v10005, %v9997
  %v10094 = vpack.c.b16 %v10006, %v9998
  %v10095 = vpack.c.b16 %v10015, %v10007
  %v10096 = vpack.c.b16 %v10016, %v10008
  %v10097 = vpack.c.b16 %v10017, %v10009
  %v10098 = vpack.c.b16 %v10018, %v10010
  %v10099 = vpack.c.b16 %v10019, %v10011
  %v10100 = vpack.c.b16 %v10020, %v10012
  %v10101 = vpack.c.b16 %v10021, %v10013
  %v10102 = vpack.c.b16 %v10022, %v10014
  %v10103 = vpack.c.b16 %v10031, %v10023
  %v10104 = vpack.c.b16 %v10032, %v10024
  %v10105 = vpack.c.b16 %v10033, %v10025
  %v10106 = vpack.c.b16 %v10034, %v10026
  %v10107 = vpack.c.b16 %v10035, %v10027
  %v10108 = vpack.c.b16 %v10036, %v10028
  %v10109 = vpack.c.b16 %v10037, %v10029
  %v10110 = vpack.c.b16 %v10038, %v10030
  %v10111 = vpack.c.b16 %v10047, %v10039
  %v10112 = vpack.c.b16 %v10048, %v10040
  %v10113 = vpack.c.b16 %v10049, %v10041
  %v10114 = vpack.c.b16 %v10050, %v10042
  %v10115 = vpack.c.b16 %v10051, %v10043
  %v10116 = vpack.c.b16 %v10052, %v10044
  %v10117 = vpack.c.b16 %v10053, %v10045
  %v10118 = vpack.c.b16 %v10054, %v10046
  %10183 = vmatprep.subr.bf16.mxu0 %v10112
  %10184 = vmatpush1.bf16.msra.mxu0 %v10111
  %10185 = vmatprep.subr.bf16.mxu0 %v10104
  %10186 = vmatpush1.bf16.msra.mxu0 %v10103
  %10187 = vmatprep.subr.bf16.mxu0 %v10096
  %10188 = vmatpush1.bf16.msra.mxu0 %v10095
  %10189 = vmatprep.subr.bf16.mxu0 %v10088
  %10190 = vmatpush1.bf16.msra.mxu0 %v10087
  %10191 = vmatprep.subr.bf16.mxu0 %v10080
  %10192 = vmatpush1.bf16.msra.mxu0 %v10079
  %10193 = vmatprep.subr.bf16.mxu0 %v10072
  %10194 = vmatpush1.bf16.msra.mxu0 %v10071
  %10195 = vmatprep.subr.bf16.mxu0 %v10064
  %10196 = vmatpush1.bf16.msra.mxu0 %v10063
  %10197 = vmatprep.subr.bf16.mxu0 %v10056
  %10198 = vmatpush1.bf16.msra.mxu0 %v10055
  %10199 = vmatprep.subr.bf16.mxu0 0
  %10200 = vmatpush2.bf16.msra.mxu0 0
  %10201 = vmatprep.subr.bf16.mxu0 0
  %10202 = vmatpush2.bf16.msra.mxu0 0
  %10203 = vmatprep.subr.bf16.mxu0 0
  %10204 = vmatpush2.bf16.msra.mxu0 0
  %10205 = vmatprep.subr.bf16.mxu0 0
  %10206 = vmatpush2.bf16.msra.mxu0 0
  %10207 = vmatprep.subr.bf16.mxu0 0
  %10208 = vmatpush2.bf16.msra.mxu0 0
  %10209 = vmatprep.subr.bf16.mxu0 0
  %10210 = vmatpush2.bf16.msra.mxu0 0
  %10211 = vmatprep.subr.bf16.mxu0 0
  %10212 = vmatpush2.bf16.msra.mxu0 0
  %10213 = vmatprep.subr.bf16.mxu0 0
  %10214 = vmatpush2.bf16.msra.mxu0 0
  %10215 = vmatprep.mubr.bf16.mxu0 0
  %10216 = vmatmul.mubr.bf16.gmra.mxu0 %v9861
  %v10217 = vpop.f32.mrf.mxu0
  %v10218 = vadd.f32 0.0, %v10217
  %v10219 = vpop.f32.mrf.mxu0
  %v10220 = vadd.f32 0.0, %v10219
  %v10221 = vpop.f32.mrf.mxu0
  %v10222 = vadd.f32 0.0, %v10221
  %v10223 = vpop.f32.mrf.mxu0
  %v10224 = vadd.f32 0.0, %v10223
  %10225 = vdwg.mxu0
  %10226 = vmatprep.subr.bf16.mxu0 %v10114
  %10227 = vmatpush1.bf16.msra.mxu0 %v10113
  %10228 = vmatprep.subr.bf16.mxu0 %v10106
  %10229 = vmatpush1.bf16.msra.mxu0 %v10105
  %10230 = vmatprep.subr.bf16.mxu0 %v10098
  %10231 = vmatpush1.bf16.msra.mxu0 %v10097
  %10232 = vmatprep.subr.bf16.mxu0 %v10090
  %10233 = vmatpush1.bf16.msra.mxu0 %v10089
  %10234 = vmatprep.subr.bf16.mxu0 %v10082
  %10235 = vmatpush1.bf16.msra.mxu0 %v10081
  %10236 = vmatprep.subr.bf16.mxu0 %v10074
  %10237 = vmatpush1.bf16.msra.mxu0 %v10073
  %10238 = vmatprep.subr.bf16.mxu0 %v10066
  %10239 = vmatpush1.bf16.msra.mxu0 %v10065
  %10240 = vmatprep.subr.bf16.mxu0 %v10058
  %10241 = vmatpush1.bf16.msra.mxu0 %v10057
  %10242 = vmatprep.subr.bf16.mxu0 0
  %10243 = vmatpush2.bf16.msra.mxu0 0
  %10244 = vmatprep.subr.bf16.mxu0 0
  %10245 = vmatpush2.bf16.msra.mxu0 0
  %10246 = vmatprep.subr.bf16.mxu0 0
  %10247 = vmatpush2.bf16.msra.mxu0 0
  %10248 = vmatprep.subr.bf16.mxu0 0
  %10249 = vmatpush2.bf16.msra.mxu0 0
  %10250 = vmatprep.subr.bf16.mxu0 0
  %10251 = vmatpush2.bf16.msra.mxu0 0
  %10252 = vmatprep.subr.bf16.mxu0 0
  %10253 = vmatpush2.bf16.msra.mxu0 0
  %10254 = vmatprep.subr.bf16.mxu0 0
  %10255 = vmatpush2.bf16.msra.mxu0 0
  %10256 = vmatprep.subr.bf16.mxu0 0
  %10257 = vmatpush2.bf16.msra.mxu0 0
  %10258 = vmatprep.mubr.bf16.mxu0 0
  %10259 = vmatmul.mubr.bf16.gmra.mxu0 %v9861
  %v10260 = vpop.f32.mrf.mxu0
  %v10261 = vadd.f32 0.0, %v10260
  %v10262 = vpop.f32.mrf.mxu0
  %v10263 = vadd.f32 0.0, %v10262
  %v10264 = vpop.f32.mrf.mxu0
  %v10265 = vadd.f32 0.0, %v10264
  %v10266 = vpop.f32.mrf.mxu0
  %v10267 = vadd.f32 0.0, %v10266
  %10268 = vdwg.mxu0
  %10269 = vmatprep.subr.bf16.mxu0 %v10116
  %10270 = vmatpush1.bf16.msra.mxu0 %v10115
  %10271 = vmatprep.subr.bf16.mxu0 %v10108
  %10272 = vmatpush1.bf16.msra.mxu0 %v10107
  %10273 = vmatprep.subr.bf16.mxu0 %v10100
  %10274 = vmatpush1.bf16.msra.mxu0 %v10099
  %10275 = vmatprep.subr.bf16.mxu0 %v10092
  %10276 = vmatpush1.bf16.msra.mxu0 %v10091
  %10277 = vmatprep.subr.bf16.mxu0 %v10084
  %10278 = vmatpush1.bf16.msra.mxu0 %v10083
  %10279 = vmatprep.subr.bf16.mxu0 %v10076
  %10280 = vmatpush1.bf16.msra.mxu0 %v10075
  %10281 = vmatprep.subr.bf16.mxu0 %v10068
  %10282 = vmatpush1.bf16.msra.mxu0 %v10067
  %10283 = vmatprep.subr.bf16.mxu0 %v10060
  %10284 = vmatpush1.bf16.msra.mxu0 %v10059
  %10285 = vmatprep.subr.bf16.mxu0 0
  %10286 = vmatpush2.bf16.msra.mxu0 0
  %10287 = vmatprep.subr.bf16.mxu0 0
  %10288 = vmatpush2.bf16.msra.mxu0 0
  %10289 = vmatprep.subr.bf16.mxu0 0
  %10290 = vmatpush2.bf16.msra.mxu0 0
  %10291 = vmatprep.subr.bf16.mxu0 0
  %10292 = vmatpush2.bf16.msra.mxu0 0
  %10293 = vmatprep.subr.bf16.mxu0 0
  %10294 = vmatpush2.bf16.msra.mxu0 0
  %10295 = vmatprep.subr.bf16.mxu0 0
  %10296 = vmatpush2.bf16.msra.mxu0 0
  %10297 = vmatprep.subr.bf16.mxu0 0
  %10298 = vmatpush2.bf16.msra.mxu0 0
  %10299 = vmatprep.subr.bf16.mxu0 0
  %10300 = vmatpush2.bf16.msra.mxu0 0
  %10301 = vmatprep.mubr.bf16.mxu0 0
  %10302 = vmatmul.mubr.bf16.gmra.mxu0 %v9861
  %v10303 = vpop.f32.mrf.mxu0
  %v10304 = vadd.f32 0.0, %v10303
  %v10305 = vpop.f32.mrf.mxu0
  %v10306 = vadd.f32 0.0, %v10305
  %v10307 = vpop.f32.mrf.mxu0
  %v10308 = vadd.f32 0.0, %v10307
  %v10309 = vpop.f32.mrf.mxu0
  %v10310 = vadd.f32 0.0, %v10309
  %10311 = vdwg.mxu0
  %10312 = vmatprep.subr.bf16.mxu0 %v10118
  %10313 = vmatpush1.bf16.msra.mxu0 %v10117
  %10314 = vmatprep.subr.bf16.mxu0 %v10110
  %10315 = vmatpush1.bf16.msra.mxu0 %v10109
  %10316 = vmatprep.subr.bf16.mxu0 %v10102
  %10317 = vmatpush1.bf16.msra.mxu0 %v10101
  %10318 = vmatprep.subr.bf16.mxu0 %v10094
  %10319 = vmatpush1.bf16.msra.mxu0 %v10093
  %10320 = vmatprep.subr.bf16.mxu0 %v10086
  %10321 = vmatpush1.bf16.msra.mxu0 %v10085
  %10322 = vmatprep.subr.bf16.mxu0 %v10078
  %10323 = vmatpush1.bf16.msra.mxu0 %v10077
  %10324 = vmatprep.subr.bf16.mxu0 %v10070
  %10325 = vmatpush1.bf16.msra.mxu0 %v10069
  %10326 = vmatprep.subr.bf16.mxu0 %v10062
  %10327 = vmatpush1.bf16.msra.mxu0 %v10061
  %10328 = vmatprep.subr.bf16.mxu0 0
  %10329 = vmatpush2.bf16.msra.mxu0 0
  %10330 = vmatprep.subr.bf16.mxu0 0
  %10331 = vmatpush2.bf16.msra.mxu0 0
  %10332 = vmatprep.subr.bf16.mxu0 0
  %10333 = vmatpush2.bf16.msra.mxu0 0
  %10334 = vmatprep.subr.bf16.mxu0 0
  %10335 = vmatpush2.bf16.msra.mxu0 0
  %10336 = vmatprep.subr.bf16.mxu0 0
  %10337 = vmatpush2.bf16.msra.mxu0 0
  %10338 = vmatprep.subr.bf16.mxu0 0
  %10339 = vmatpush2.bf16.msra.mxu0 0
  %10340 = vmatprep.subr.bf16.mxu0 0
  %10341 = vmatpush2.bf16.msra.mxu0 0
  %10342 = vmatprep.subr.bf16.mxu0 0
  %10343 = vmatpush2.bf16.msra.mxu0 0
  %10344 = vmatprep.mubr.bf16.mxu0 0
  %10345 = vmatmul.mubr.bf16.gmra.mxu0 %v9861
  %v10346 = vpop.f32.mrf.mxu0
  %v10347 = vadd.f32 0.0, %v10346
  %v10348 = vpop.f32.mrf.mxu0
  %v10349 = vadd.f32 0.0, %v10348
  %v10350 = vpop.f32.mrf.mxu0
  %v10351 = vadd.f32 0.0, %v10350
  %v10352 = vpop.f32.mrf.mxu0
  %v10353 = vadd.f32 0.0, %v10352
  %10354 = vdwg.mxu0
  %v10355 = vadd.f32 %v9775, %v10218
  %v10356 = vadd.f32 %v9776, %v10220
  %v10357 = vadd.f32 %v9777, %v10261
  %v10358 = vadd.f32 %v9778, %v10263
  %v10359 = vadd.f32 %v9779, %v10304
  %v10360 = vadd.f32 %v9780, %v10306
  %v10361 = vadd.f32 %v9781, %v10347
  %v10362 = vadd.f32 %v9782, %v10349
  %v10363 = vadd.f32 %v9783, %v10222
  %v10364 = vadd.f32 %v9784, %v10224
  %v10365 = vadd.f32 %v9785, %v10265
  %v10366 = vadd.f32 %v9786, %v10267
  %v10367 = vadd.f32 %v9787, %v10308
  %v10368 = vadd.f32 %v9788, %v10310
  %v10369 = vadd.f32 %v9789, %v10351
  %v10370 = vadd.f32 %v9790, %v10353
  %10371 = vst [vmem:[#allocation3] sm:$0xff] %v10355
  %10372 = vst [vmem:[#allocation3 + $0x8] sm:$0xff] %v10356
  %10373 = vst [vmem:[#allocation3 + $0x10] sm:$0xff] %v10357
  %10374 = vst [vmem:[#allocation3 + $0x18] sm:$0xff] %v10358
  %10375 = vst [vmem:[#allocation3 + $0x20] sm:$0xff] %v10359
  %10376 = vst [vmem:[#allocation3 + $0x28] sm:$0xff] %v10360
  %10377 = vst [vmem:[#allocation3 + $0x30] sm:$0xff] %v10361
  %10378 = vst [vmem:[#allocation3 + $0x38] sm:$0xff] %v10362
  %10379 = vst [vmem:[#allocation3 + $0x40] sm:$0xff] %v10363
  %10380 = vst [vmem:[#allocation3 + $0x48] sm:$0xff] %v10364
  %10381 = vst [vmem:[#allocation3 + $0x50] sm:$0xff] %v10365
  %10382 = vst [vmem:[#allocation3 + $0x58] sm:$0xff] %v10366
  %10383 = vst [vmem:[#allocation3 + $0x60] sm:$0xff] %v10367
  %10384 = vst [vmem:[#allocation3 + $0x68] sm:$0xff] %v10368
  %10385 = vst [vmem:[#allocation3 + $0x70] sm:$0xff] %v10369
  %10386 = vst [vmem:[#allocation3 + $0x78] sm:$0xff] %v10370
  %v10387 = vld [vmem:[#allocation3] sm:$0xff]
  %v10388 = vld [vmem:[#allocation3 + $0x8] sm:$0xff]
  %v10389 = vld [vmem:[#allocation3 + $0x10] sm:$0xff]
  %v10390 = vld [vmem:[#allocation3 + $0x18] sm:$0xff]
  %v10391 = vld [vmem:[#allocation3 + $0x20] sm:$0xff]
  %v10392 = vld [vmem:[#allocation3 + $0x28] sm:$0xff]
  %v10393 = vld [vmem:[#allocation3 + $0x30] sm:$0xff]
  %v10394 = vld [vmem:[#allocation3 + $0x38] sm:$0xff]
  %v10395 = vld [vmem:[#allocation3 + $0x40] sm:$0xff]
  %v10396 = vld [vmem:[#allocation3 + $0x48] sm:$0xff]
  %v10397 = vld [vmem:[#allocation3 + $0x50] sm:$0xff]
  %v10398 = vld [vmem:[#allocation3 + $0x58] sm:$0xff]
  %v10399 = vld [vmem:[#allocation3 + $0x60] sm:$0xff]
  %v10400 = vld [vmem:[#allocation3 + $0x68] sm:$0xff]
  %v10401 = vld [vmem:[#allocation3 + $0x70] sm:$0xff]
  %v10402 = vld [vmem:[#allocation3 + $0x78] sm:$0xff]
  %v10403 = vld [vmem:[%s4] sm:$0xff]
  %v10405 = vlaneseq
  %v10406 = vshrl.u32 %v10405, 7
  %v10407 = vsub.s32 0, %v10406
  %v10408 = vrot.slane %v10403, %v10407
  %v10409 = vlaneseq
  %v10410 = vshrl.u32 %v10409, 7
  %v10411 = vsub.s32 1, %v10410
  %v10412 = vrot.slane %v10403, %v10411
  %v10413 = vlaneseq
  %v10414 = vshrl.u32 %v10413, 7
  %v10415 = vsub.s32 2, %v10414
  %v10416 = vrot.slane %v10403, %v10415
  %v10417 = vlaneseq
  %v10418 = vshrl.u32 %v10417, 7
  %v10419 = vsub.s32 3, %v10418
  %v10420 = vrot.slane %v10403, %v10419
  %v10421 = vlaneseq
  %v10422 = vshrl.u32 %v10421, 7
  %v10423 = vsub.s32 4, %v10422
  %v10424 = vrot.slane %v10403, %v10423
  %v10425 = vlaneseq
  %v10426 = vshrl.u32 %v10425, 7
  %v10427 = vsub.s32 5, %v10426
  %v10428 = vrot.slane %v10403, %v10427
  %v10429 = vlaneseq
  %v10430 = vshrl.u32 %v10429, 7
  %v10431 = vsub.s32 6, %v10430
  %v10432 = vrot.slane %v10403, %v10431
  %v10433 = vlaneseq
  %v10434 = vshrl.u32 %v10433, 7
  %v10435 = vsub.s32 7, %v10434
  %v10436 = vrot.slane %v10403, %v10435
  %v10445 = vadd.f32 %v10387, %v10408
  %v10446 = vadd.f32 %v10388, %v10412
  %v10447 = vadd.f32 %v10389, %v10416
  %v10448 = vadd.f32 %v10390, %v10420
  %v10449 = vadd.f32 %v10391, %v10424
  %v10450 = vadd.f32 %v10392, %v10428
  %v10451 = vadd.f32 %v10393, %v10432
  %v10452 = vadd.f32 %v10394, %v10436
  %v10453 = vadd.f32 %v10395, %v10408
  %v10454 = vadd.f32 %v10396, %v10412
  %v10455 = vadd.f32 %v10397, %v10416
  %v10456 = vadd.f32 %v10398, %v10420
  %v10457 = vadd.f32 %v10399, %v10424
  %v10458 = vadd.f32 %v10400, %v10428
  %v10459 = vadd.f32 %v10401, %v10432
  %v10460 = vadd.f32 %v10402, %v10436
  %v10461 = vmax.f32 %v10445, 0.0
  %v10462 = vmax.f32 %v10446, 0.0
  %v10463 = vmax.f32 %v10447, 0.0
  %v10464 = vmax.f32 %v10448, 0.0
  %v10465 = vmax.f32 %v10449, 0.0
  %v10466 = vmax.f32 %v10450, 0.0
  %v10467 = vmax.f32 %v10451, 0.0
  %v10468 = vmax.f32 %v10452, 0.0
  %v10469 = vmax.f32 %v10453, 0.0
  %v10470 = vmax.f32 %v10454, 0.0
  %v10471 = vmax.f32 %v10455, 0.0
  %v10472 = vmax.f32 %v10456, 0.0
  %v10473 = vmax.f32 %v10457, 0.0
  %v10474 = vmax.f32 %v10458, 0.0
  %v10475 = vmax.f32 %v10459, 0.0
  %v10476 = vmax.f32 %v10460, 0.0
  %v10477 = vpack.c.bf16 %v10469, %v10461
  %v10478 = vpack.c.bf16 %v10470, %v10462
  %v10479 = vpack.c.bf16 %v10471, %v10463
  %v10480 = vpack.c.bf16 %v10472, %v10464
  %v10481 = vpack.c.bf16 %v10473, %v10465
  %v10482 = vpack.c.bf16 %v10474, %v10466
  %v10483 = vpack.c.bf16 %v10475, %v10467
  %v10484 = vpack.c.bf16 %v10476, %v10468
  %v10485 = vld [vmem:[%s5] sm:$0xf]
  %v10486 = vld [vmem:[%s5 + $0x4] sm:$0xf]
  %v10487 = vld [vmem:[%s5 + $0x8] sm:$0xf]
  %v10488 = vld [vmem:[%s5 + $0xc] sm:$0xf]
  %v10489 = vld [vmem:[%s5 + $0x10] sm:$0xf]
  %v10490 = vld [vmem:[%s5 + $0x14] sm:$0xf]
  %v10491 = vld [vmem:[%s5 + $0x18] sm:$0xf]
  %v10492 = vld [vmem:[%s5 + $0x1c] sm:$0xf]
  %v10493 = vld [vmem:[%s5 + $0x20] sm:$0xf]
  %v10494 = vld [vmem:[%s5 + $0x24] sm:$0xf]
  %v10495 = vld [vmem:[%s5 + $0x28] sm:$0xf]
  %v10496 = vld [vmem:[%s5 + $0x2c] sm:$0xf]
  %v10497 = vld [vmem:[%s5 + $0x30] sm:$0xf]
  %v10498 = vld [vmem:[%s5 + $0x34] sm:$0xf]
  %v10499 = vld [vmem:[%s5 + $0x38] sm:$0xf]
  %v10500 = vld [vmem:[%s5 + $0x3c] sm:$0xf]
  %v10501 = vld [vmem:[%s5 + $0x40] sm:$0xf]
  %v10502 = vld [vmem:[%s5 + $0x44] sm:$0xf]
  %v10503 = vld [vmem:[%s5 + $0x48] sm:$0xf]
  %v10504 = vld [vmem:[%s5 + $0x4c] sm:$0xf]
  %v10505 = vld [vmem:[%s5 + $0x50] sm:$0xf]
  %v10506 = vld [vmem:[%s5 + $0x54] sm:$0xf]
  %v10507 = vld [vmem:[%s5 + $0x58] sm:$0xf]
  %v10508 = vld [vmem:[%s5 + $0x5c] sm:$0xf]
  %v10509 = vld [vmem:[%s5 + $0x60] sm:$0xf]
  %v10510 = vld [vmem:[%s5 + $0x64] sm:$0xf]
  %v10511 = vld [vmem:[%s5 + $0x68] sm:$0xf]
  %v10512 = vld [vmem:[%s5 + $0x6c] sm:$0xf]
  %v10513 = vld [vmem:[%s5 + $0x70] sm:$0xf]
  %v10514 = vld [vmem:[%s5 + $0x74] sm:$0xf]
  %v10515 = vld [vmem:[%s5 + $0x78] sm:$0xf]
  %v10516 = vld [vmem:[%s5 + $0x7c] sm:$0xf]
  %v10517 = vld [vmem:[%s5 + $0x80] sm:$0xf]
  %v10518 = vld [vmem:[%s5 + $0x84] sm:$0xf]
  %v10519 = vld [vmem:[%s5 + $0x88] sm:$0xf]
  %v10520 = vld [vmem:[%s5 + $0x8c] sm:$0xf]
  %v10521 = vld [vmem:[%s5 + $0x90] sm:$0xf]
  %v10522 = vld [vmem:[%s5 + $0x94] sm:$0xf]
  %v10523 = vld [vmem:[%s5 + $0x98] sm:$0xf]
  %v10524 = vld [vmem:[%s5 + $0x9c] sm:$0xf]
  %v10525 = vld [vmem:[%s5 + $0xa0] sm:$0xf]
  %v10526 = vld [vmem:[%s5 + $0xa4] sm:$0xf]
  %v10527 = vld [vmem:[%s5 + $0xa8] sm:$0xf]
  %v10528 = vld [vmem:[%s5 + $0xac] sm:$0xf]
  %v10529 = vld [vmem:[%s5 + $0xb0] sm:$0xf]
  %v10530 = vld [vmem:[%s5 + $0xb4] sm:$0xf]
  %v10531 = vld [vmem:[%s5 + $0xb8] sm:$0xf]
  %v10532 = vld [vmem:[%s5 + $0xbc] sm:$0xf]
  %v10533 = vld [vmem:[%s5 + $0xc0] sm:$0xf]
  %v10534 = vld [vmem:[%s5 + $0xc4] sm:$0xf]
  %v10535 = vld [vmem:[%s5 + $0xc8] sm:$0xf]
  %v10536 = vld [vmem:[%s5 + $0xcc] sm:$0xf]
  %v10537 = vld [vmem:[%s5 + $0xd0] sm:$0xf]
  %v10538 = vld [vmem:[%s5 + $0xd4] sm:$0xf]
  %v10539 = vld [vmem:[%s5 + $0xd8] sm:$0xf]
  %v10540 = vld [vmem:[%s5 + $0xdc] sm:$0xf]
  %v10541 = vld [vmem:[%s5 + $0xe0] sm:$0xf]
  %v10542 = vld [vmem:[%s5 + $0xe4] sm:$0xf]
  %v10543 = vld [vmem:[%s5 + $0xe8] sm:$0xf]
  %v10544 = vld [vmem:[%s5 + $0xec] sm:$0xf]
  %v10545 = vld [vmem:[%s5 + $0xf0] sm:$0xf]
  %v10546 = vld [vmem:[%s5 + $0xf4] sm:$0xf]
  %v10547 = vld [vmem:[%s5 + $0xf8] sm:$0xf]
  %v10548 = vld [vmem:[%s5 + $0xfc] sm:$0xf]
  %v10549 = vld [vmem:[%s5 + $0x100] sm:$0xf]
  %v10550 = vld [vmem:[%s5 + $0x104] sm:$0xf]
  %v10551 = vld [vmem:[%s5 + $0x108] sm:$0xf]
  %v10552 = vld [vmem:[%s5 + $0x10c] sm:$0xf]
  %v10553 = vld [vmem:[%s5 + $0x110] sm:$0xf]
  %v10554 = vld [vmem:[%s5 + $0x114] sm:$0xf]
  %v10555 = vld [vmem:[%s5 + $0x118] sm:$0xf]
  %v10556 = vld [vmem:[%s5 + $0x11c] sm:$0xf]
  %v10557 = vld [vmem:[%s5 + $0x120] sm:$0xf]
  %v10558 = vld [vmem:[%s5 + $0x124] sm:$0xf]
  %v10559 = vld [vmem:[%s5 + $0x128] sm:$0xf]
  %v10560 = vld [vmem:[%s5 + $0x12c] sm:$0xf]
  %v10561 = vld [vmem:[%s5 + $0x130] sm:$0xf]
  %v10562 = vld [vmem:[%s5 + $0x134] sm:$0xf]
  %v10563 = vld [vmem:[%s5 + $0x138] sm:$0xf]
  %v10564 = vld [vmem:[%s5 + $0x13c] sm:$0xf]
  %v10565 = vld [vmem:[%s5 + $0x140] sm:$0xf]
  %v10566 = vld [vmem:[%s5 + $0x144] sm:$0xf]
  %v10567 = vld [vmem:[%s5 + $0x148] sm:$0xf]
  %v10568 = vld [vmem:[%s5 + $0x14c] sm:$0xf]
  %v10569 = vld [vmem:[%s5 + $0x150] sm:$0xf]
  %v10570 = vld [vmem:[%s5 + $0x154] sm:$0xf]
  %v10571 = vld [vmem:[%s5 + $0x158] sm:$0xf]
  %v10572 = vld [vmem:[%s5 + $0x15c] sm:$0xf]
  %v10573 = vld [vmem:[%s5 + $0x160] sm:$0xf]
  %v10574 = vld [vmem:[%s5 + $0x164] sm:$0xf]
  %v10575 = vld [vmem:[%s5 + $0x168] sm:$0xf]
  %v10576 = vld [vmem:[%s5 + $0x16c] sm:$0xf]
  %v10577 = vld [vmem:[%s5 + $0x170] sm:$0xf]
  %v10578 = vld [vmem:[%s5 + $0x174] sm:$0xf]
  %v10579 = vld [vmem:[%s5 + $0x178] sm:$0xf]
  %v10580 = vld [vmem:[%s5 + $0x17c] sm:$0xf]
  %v10581 = vld [vmem:[%s5 + $0x180] sm:$0xf]
  %v10582 = vld [vmem:[%s5 + $0x184] sm:$0xf]
  %v10583 = vld [vmem:[%s5 + $0x188] sm:$0xf]
  %v10584 = vld [vmem:[%s5 + $0x18c] sm:$0xf]
  %v10585 = vld [vmem:[%s5 + $0x190] sm:$0xf]
  %v10586 = vld [vmem:[%s5 + $0x194] sm:$0xf]
  %v10587 = vld [vmem:[%s5 + $0x198] sm:$0xf]
  %v10588 = vld [vmem:[%s5 + $0x19c] sm:$0xf]
  %v10589 = vld [vmem:[%s5 + $0x1a0] sm:$0xf]
  %v10590 = vld [vmem:[%s5 + $0x1a4] sm:$0xf]
  %v10591 = vld [vmem:[%s5 + $0x1a8] sm:$0xf]
  %v10592 = vld [vmem:[%s5 + $0x1ac] sm:$0xf]
  %v10593 = vld [vmem:[%s5 + $0x1b0] sm:$0xf]
  %v10594 = vld [vmem:[%s5 + $0x1b4] sm:$0xf]
  %v10595 = vld [vmem:[%s5 + $0x1b8] sm:$0xf]
  %v10596 = vld [vmem:[%s5 + $0x1bc] sm:$0xf]
  %v10597 = vld [vmem:[%s5 + $0x1c0] sm:$0xf]
  %v10598 = vld [vmem:[%s5 + $0x1c4] sm:$0xf]
  %v10599 = vld [vmem:[%s5 + $0x1c8] sm:$0xf]
  %v10600 = vld [vmem:[%s5 + $0x1cc] sm:$0xf]
  %v10601 = vld [vmem:[%s5 + $0x1d0] sm:$0xf]
  %v10602 = vld [vmem:[%s5 + $0x1d4] sm:$0xf]
  %v10603 = vld [vmem:[%s5 + $0x1d8] sm:$0xf]
  %v10604 = vld [vmem:[%s5 + $0x1dc] sm:$0xf]
  %v10605 = vld [vmem:[%s5 + $0x1e0] sm:$0xf]
  %v10606 = vld [vmem:[%s5 + $0x1e4] sm:$0xf]
  %v10607 = vld [vmem:[%s5 + $0x1e8] sm:$0xf]
  %v10608 = vld [vmem:[%s5 + $0x1ec] sm:$0xf]
  %v10609 = vld [vmem:[%s5 + $0x1f0] sm:$0xf]
  %v10610 = vld [vmem:[%s5 + $0x1f4] sm:$0xf]
  %v10611 = vld [vmem:[%s5 + $0x1f8] sm:$0xf]
  %v10612 = vld [vmem:[%s5 + $0x1fc] sm:$0xf]
  %v10613 = vld [vmem:[%s6] sm:$0x1]
  %v10615 = vlaneseq
  %v10616 = vshrl.u32 %v10615, 7
  %v10617 = vsub.s32 0, %v10616
  %v10618 = vrot.slane %v10613, %v10617
  %v10748 = vunpack.c.l.b16 %v10485
  %v10749 = vunpack.c.l.b16 %v10486
  %v10750 = vunpack.c.l.b16 %v10487
  %v10751 = vunpack.c.l.b16 %v10488
  %v10752 = vunpack.c.l.b16 %v10489
  %v10753 = vunpack.c.l.b16 %v10490
  %v10754 = vunpack.c.l.b16 %v10491
  %v10755 = vunpack.c.l.b16 %v10492
  %v10756 = vunpack.c.l.b16 %v10493
  %v10757 = vunpack.c.l.b16 %v10494
  %v10758 = vunpack.c.l.b16 %v10495
  %v10759 = vunpack.c.l.b16 %v10496
  %v10760 = vunpack.c.l.b16 %v10497
  %v10761 = vunpack.c.l.b16 %v10498
  %v10762 = vunpack.c.l.b16 %v10499
  %v10763 = vunpack.c.l.b16 %v10500
  %v10764 = vunpack.c.l.b16 %v10501
  %v10765 = vunpack.c.l.b16 %v10502
  %v10766 = vunpack.c.l.b16 %v10503
  %v10767 = vunpack.c.l.b16 %v10504
  %v10768 = vunpack.c.l.b16 %v10505
  %v10769 = vunpack.c.l.b16 %v10506
  %v10770 = vunpack.c.l.b16 %v10507
  %v10771 = vunpack.c.l.b16 %v10508
  %v10772 = vunpack.c.l.b16 %v10509
  %v10773 = vunpack.c.l.b16 %v10510
  %v10774 = vunpack.c.l.b16 %v10511
  %v10775 = vunpack.c.l.b16 %v10512
  %v10776 = vunpack.c.l.b16 %v10513
  %v10777 = vunpack.c.l.b16 %v10514
  %v10778 = vunpack.c.l.b16 %v10515
  %v10779 = vunpack.c.l.b16 %v10516
  %v10780 = vunpack.c.l.b16 %v10517
  %v10781 = vunpack.c.l.b16 %v10518
  %v10782 = vunpack.c.l.b16 %v10519
  %v10783 = vunpack.c.l.b16 %v10520
  %v10784 = vunpack.c.l.b16 %v10521
  %v10785 = vunpack.c.l.b16 %v10522
  %v10786 = vunpack.c.l.b16 %v10523
  %v10787 = vunpack.c.l.b16 %v10524
  %v10788 = vunpack.c.l.b16 %v10525
  %v10789 = vunpack.c.l.b16 %v10526
  %v10790 = vunpack.c.l.b16 %v10527
  %v10791 = vunpack.c.l.b16 %v10528
  %v10792 = vunpack.c.l.b16 %v10529
  %v10793 = vunpack.c.l.b16 %v10530
  %v10794 = vunpack.c.l.b16 %v10531
  %v10795 = vunpack.c.l.b16 %v10532
  %v10796 = vunpack.c.l.b16 %v10533
  %v10797 = vunpack.c.l.b16 %v10534
  %v10798 = vunpack.c.l.b16 %v10535
  %v10799 = vunpack.c.l.b16 %v10536
  %v10800 = vunpack.c.l.b16 %v10537
  %v10801 = vunpack.c.l.b16 %v10538
  %v10802 = vunpack.c.l.b16 %v10539
  %v10803 = vunpack.c.l.b16 %v10540
  %v10804 = vunpack.c.l.b16 %v10541
  %v10805 = vunpack.c.l.b16 %v10542
  %v10806 = vunpack.c.l.b16 %v10543
  %v10807 = vunpack.c.l.b16 %v10544
  %v10808 = vunpack.c.l.b16 %v10545
  %v10809 = vunpack.c.l.b16 %v10546
  %v10810 = vunpack.c.l.b16 %v10547
  %v10811 = vunpack.c.l.b16 %v10548
  %v10812 = vunpack.c.l.b16 %v10549
  %v10813 = vunpack.c.l.b16 %v10550
  %v10814 = vunpack.c.l.b16 %v10551
  %v10815 = vunpack.c.l.b16 %v10552
  %v10816 = vunpack.c.l.b16 %v10553
  %v10817 = vunpack.c.l.b16 %v10554
  %v10818 = vunpack.c.l.b16 %v10555
  %v10819 = vunpack.c.l.b16 %v10556
  %v10820 = vunpack.c.l.b16 %v10557
  %v10821 = vunpack.c.l.b16 %v10558
  %v10822 = vunpack.c.l.b16 %v10559
  %v10823 = vunpack.c.l.b16 %v10560
  %v10824 = vunpack.c.l.b16 %v10561
  %v10825 = vunpack.c.l.b16 %v10562
  %v10826 = vunpack.c.l.b16 %v10563
  %v10827 = vunpack.c.l.b16 %v10564
  %v10828 = vunpack.c.l.b16 %v10565
  %v10829 = vunpack.c.l.b16 %v10566
  %v10830 = vunpack.c.l.b16 %v10567
  %v10831 = vunpack.c.l.b16 %v10568
  %v10832 = vunpack.c.l.b16 %v10569
  %v10833 = vunpack.c.l.b16 %v10570
  %v10834 = vunpack.c.l.b16 %v10571
  %v10835 = vunpack.c.l.b16 %v10572
  %v10836 = vunpack.c.l.b16 %v10573
  %v10837 = vunpack.c.l.b16 %v10574
  %v10838 = vunpack.c.l.b16 %v10575
  %v10839 = vunpack.c.l.b16 %v10576
  %v10840 = vunpack.c.l.b16 %v10577
  %v10841 = vunpack.c.l.b16 %v10578
  %v10842 = vunpack.c.l.b16 %v10579
  %v10843 = vunpack.c.l.b16 %v10580
  %v10844 = vunpack.c.l.b16 %v10581
  %v10845 = vunpack.c.l.b16 %v10582
  %v10846 = vunpack.c.l.b16 %v10583
  %v10847 = vunpack.c.l.b16 %v10584
  %v10848 = vunpack.c.l.b16 %v10585
  %v10849 = vunpack.c.l.b16 %v10586
  %v10850 = vunpack.c.l.b16 %v10587
  %v10851 = vunpack.c.l.b16 %v10588
  %v10852 = vunpack.c.l.b16 %v10589
  %v10853 = vunpack.c.l.b16 %v10590
  %v10854 = vunpack.c.l.b16 %v10591
  %v10855 = vunpack.c.l.b16 %v10592
  %v10856 = vunpack.c.l.b16 %v10593
  %v10857 = vunpack.c.l.b16 %v10594
  %v10858 = vunpack.c.l.b16 %v10595
  %v10859 = vunpack.c.l.b16 %v10596
  %v10860 = vunpack.c.l.b16 %v10597
  %v10861 = vunpack.c.l.b16 %v10598
  %v10862 = vunpack.c.l.b16 %v10599
  %v10863 = vunpack.c.l.b16 %v10600
  %v10864 = vunpack.c.l.b16 %v10601
  %v10865 = vunpack.c.l.b16 %v10602
  %v10866 = vunpack.c.l.b16 %v10603
  %v10867 = vunpack.c.l.b16 %v10604
  %v10868 = vunpack.c.l.b16 %v10605
  %v10869 = vunpack.c.l.b16 %v10606
  %v10870 = vunpack.c.l.b16 %v10607
  %v10871 = vunpack.c.l.b16 %v10608
  %v10872 = vunpack.c.l.b16 %v10609
  %v10873 = vunpack.c.l.b16 %v10610
  %v10874 = vunpack.c.l.b16 %v10611
  %v10875 = vunpack.c.l.b16 %v10612
  %v10876 = vpack.c.b16 %v10749, %v10748
  %v10877 = vpack.c.b16 %v10751, %v10750
  %v10878 = vpack.c.b16 %v10753, %v10752
  %v10879 = vpack.c.b16 %v10755, %v10754
  %v10880 = vpack.c.b16 %v10757, %v10756
  %v10881 = vpack.c.b16 %v10759, %v10758
  %v10882 = vpack.c.b16 %v10761, %v10760
  %v10883 = vpack.c.b16 %v10763, %v10762
  %v10884 = vpack.c.b16 %v10765, %v10764
  %v10885 = vpack.c.b16 %v10767, %v10766
  %v10886 = vpack.c.b16 %v10769, %v10768
  %v10887 = vpack.c.b16 %v10771, %v10770
  %v10888 = vpack.c.b16 %v10773, %v10772
  %v10889 = vpack.c.b16 %v10775, %v10774
  %v10890 = vpack.c.b16 %v10777, %v10776
  %v10891 = vpack.c.b16 %v10779, %v10778
  %v10892 = vpack.c.b16 %v10781, %v10780
  %v10893 = vpack.c.b16 %v10783, %v10782
  %v10894 = vpack.c.b16 %v10785, %v10784
  %v10895 = vpack.c.b16 %v10787, %v10786
  %v10896 = vpack.c.b16 %v10789, %v10788
  %v10897 = vpack.c.b16 %v10791, %v10790
  %v10898 = vpack.c.b16 %v10793, %v10792
  %v10899 = vpack.c.b16 %v10795, %v10794
  %v10900 = vpack.c.b16 %v10797, %v10796
  %v10901 = vpack.c.b16 %v10799, %v10798
  %v10902 = vpack.c.b16 %v10801, %v10800
  %v10903 = vpack.c.b16 %v10803, %v10802
  %v10904 = vpack.c.b16 %v10805, %v10804
  %v10905 = vpack.c.b16 %v10807, %v10806
  %v10906 = vpack.c.b16 %v10809, %v10808
  %v10907 = vpack.c.b16 %v10811, %v10810
  %v10908 = vpack.c.b16 %v10813, %v10812
  %v10909 = vpack.c.b16 %v10815, %v10814
  %v10910 = vpack.c.b16 %v10817, %v10816
  %v10911 = vpack.c.b16 %v10819, %v10818
  %v10912 = vpack.c.b16 %v10821, %v10820
  %v10913 = vpack.c.b16 %v10823, %v10822
  %v10914 = vpack.c.b16 %v10825, %v10824
  %v10915 = vpack.c.b16 %v10827, %v10826
  %v10916 = vpack.c.b16 %v10829, %v10828
  %v10917 = vpack.c.b16 %v10831, %v10830
  %v10918 = vpack.c.b16 %v10833, %v10832
  %v10919 = vpack.c.b16 %v10835, %v10834
  %v10920 = vpack.c.b16 %v10837, %v10836
  %v10921 = vpack.c.b16 %v10839, %v10838
  %v10922 = vpack.c.b16 %v10841, %v10840
  %v10923 = vpack.c.b16 %v10843, %v10842
  %v10924 = vpack.c.b16 %v10845, %v10844
  %v10925 = vpack.c.b16 %v10847, %v10846
  %v10926 = vpack.c.b16 %v10849, %v10848
  %v10927 = vpack.c.b16 %v10851, %v10850
  %v10928 = vpack.c.b16 %v10853, %v10852
  %v10929 = vpack.c.b16 %v10855, %v10854
  %v10930 = vpack.c.b16 %v10857, %v10856
  %v10931 = vpack.c.b16 %v10859, %v10858
  %v10932 = vpack.c.b16 %v10861, %v10860
  %v10933 = vpack.c.b16 %v10863, %v10862
  %v10934 = vpack.c.b16 %v10865, %v10864
  %v10935 = vpack.c.b16 %v10867, %v10866
  %v10936 = vpack.c.b16 %v10869, %v10868
  %v10937 = vpack.c.b16 %v10871, %v10870
  %v10938 = vpack.c.b16 %v10873, %v10872
  %v10939 = vpack.c.b16 %v10875, %v10874
  %11004 = vmatprep.subr.bf16.mxu0 0
  %11005 = vmatpush1.bf16.msra.mxu0 %v10883
  %11006 = vmatprep.subr.bf16.mxu0 0
  %11007 = vmatpush1.bf16.msra.mxu0 %v10882
  %11008 = vmatprep.subr.bf16.mxu0 0
  %11009 = vmatpush1.bf16.msra.mxu0 %v10881
  %11010 = vmatprep.subr.bf16.mxu0 0
  %11011 = vmatpush1.bf16.msra.mxu0 %v10880
  %11012 = vmatprep.subr.bf16.mxu0 0
  %11013 = vmatpush1.bf16.msra.mxu0 %v10879
  %11014 = vmatprep.subr.bf16.mxu0 0
  %11015 = vmatpush1.bf16.msra.mxu0 %v10878
  %11016 = vmatprep.subr.bf16.mxu0 0
  %11017 = vmatpush1.bf16.msra.mxu0 %v10877
  %11018 = vmatprep.subr.bf16.mxu0 0
  %11019 = vmatpush1.bf16.msra.mxu0 %v10876
  %11020 = vmatprep.subr.bf16.mxu0 0
  %11021 = vmatpush2.bf16.msra.mxu0 %v10891
  %11022 = vmatprep.subr.bf16.mxu0 0
  %11023 = vmatpush2.bf16.msra.mxu0 %v10890
  %11024 = vmatprep.subr.bf16.mxu0 0
  %11025 = vmatpush2.bf16.msra.mxu0 %v10889
  %11026 = vmatprep.subr.bf16.mxu0 0
  %11027 = vmatpush2.bf16.msra.mxu0 %v10888
  %11028 = vmatprep.subr.bf16.mxu0 0
  %11029 = vmatpush2.bf16.msra.mxu0 %v10887
  %11030 = vmatprep.subr.bf16.mxu0 0
  %11031 = vmatpush2.bf16.msra.mxu0 %v10886
  %11032 = vmatprep.subr.bf16.mxu0 0
  %11033 = vmatpush2.bf16.msra.mxu0 %v10885
  %11034 = vmatprep.subr.bf16.mxu0 0
  %11035 = vmatpush2.bf16.msra.mxu0 %v10884
  %11036 = vmatprep.mubr.bf16.mxu0 %v10478
  %11037 = vmatmul.mubr.bf16.gmra.mxu0 %v10477
  %v11038 = vpop.f32.mrf.mxu0
  %v11039 = vadd.f32 %v10618, %v11038
  %v11040 = vpop.f32.mrf.mxu0
  %v11041 = vpop.f32.mrf.mxu0
  %v11042 = vadd.f32 %v10618, %v11041
  %v11043 = vpop.f32.mrf.mxu0
  %11044 = vdwg.mxu0
  %11045 = vmatprep.subr.bf16.mxu0 0
  %11046 = vmatpush1.bf16.msra.mxu0 %v10899
  %11047 = vmatprep.subr.bf16.mxu0 0
  %11048 = vmatpush1.bf16.msra.mxu0 %v10898
  %11049 = vmatprep.subr.bf16.mxu0 0
  %11050 = vmatpush1.bf16.msra.mxu0 %v10897
  %11051 = vmatprep.subr.bf16.mxu0 0
  %11052 = vmatpush1.bf16.msra.mxu0 %v10896
  %11053 = vmatprep.subr.bf16.mxu0 0
  %11054 = vmatpush1.bf16.msra.mxu0 %v10895
  %11055 = vmatprep.subr.bf16.mxu0 0
  %11056 = vmatpush1.bf16.msra.mxu0 %v10894
  %11057 = vmatprep.subr.bf16.mxu0 0
  %11058 = vmatpush1.bf16.msra.mxu0 %v10893
  %11059 = vmatprep.subr.bf16.mxu0 0
  %11060 = vmatpush1.bf16.msra.mxu0 %v10892
  %11061 = vmatprep.subr.bf16.mxu0 0
  %11062 = vmatpush2.bf16.msra.mxu0 %v10907
  %11063 = vmatprep.subr.bf16.mxu0 0
  %11064 = vmatpush2.bf16.msra.mxu0 %v10906
  %11065 = vmatprep.subr.bf16.mxu0 0
  %11066 = vmatpush2.bf16.msra.mxu0 %v10905
  %11067 = vmatprep.subr.bf16.mxu0 0
  %11068 = vmatpush2.bf16.msra.mxu0 %v10904
  %11069 = vmatprep.subr.bf16.mxu0 0
  %11070 = vmatpush2.bf16.msra.mxu0 %v10903
  %11071 = vmatprep.subr.bf16.mxu0 0
  %11072 = vmatpush2.bf16.msra.mxu0 %v10902
  %11073 = vmatprep.subr.bf16.mxu0 0
  %11074 = vmatpush2.bf16.msra.mxu0 %v10901
  %11075 = vmatprep.subr.bf16.mxu0 0
  %11076 = vmatpush2.bf16.msra.mxu0 %v10900
  %11077 = vmatprep.mubr.bf16.mxu0 %v10480
  %11078 = vmatmul.mubr.bf16.gmra.mxu0 %v10479
  %v11079 = vpop.f32.mrf.mxu0
  %v11080 = vadd.f32 %v11039, %v11079
  %v11081 = vpop.f32.mrf.mxu0
  %v11082 = vpop.f32.mrf.mxu0
  %v11083 = vadd.f32 %v11042, %v11082
  %v11084 = vpop.f32.mrf.mxu0
  %11085 = vdwg.mxu0
  %11086 = vmatprep.subr.bf16.mxu0 0
  %11087 = vmatpush1.bf16.msra.mxu0 %v10915
  %11088 = vmatprep.subr.bf16.mxu0 0
  %11089 = vmatpush1.bf16.msra.mxu0 %v10914
  %11090 = vmatprep.subr.bf16.mxu0 0
  %11091 = vmatpush1.bf16.msra.mxu0 %v10913
  %11092 = vmatprep.subr.bf16.mxu0 0
  %11093 = vmatpush1.bf16.msra.mxu0 %v10912
  %11094 = vmatprep.subr.bf16.mxu0 0
  %11095 = vmatpush1.bf16.msra.mxu0 %v10911
  %11096 = vmatprep.subr.bf16.mxu0 0
  %11097 = vmatpush1.bf16.msra.mxu0 %v10910
  %11098 = vmatprep.subr.bf16.mxu0 0
  %11099 = vmatpush1.bf16.msra.mxu0 %v10909
  %11100 = vmatprep.subr.bf16.mxu0 0
  %11101 = vmatpush1.bf16.msra.mxu0 %v10908
  %11102 = vmatprep.subr.bf16.mxu0 0
  %11103 = vmatpush2.bf16.msra.mxu0 %v10923
  %11104 = vmatprep.subr.bf16.mxu0 0
  %11105 = vmatpush2.bf16.msra.mxu0 %v10922
  %11106 = vmatprep.subr.bf16.mxu0 0
  %11107 = vmatpush2.bf16.msra.mxu0 %v10921
  %11108 = vmatprep.subr.bf16.mxu0 0
  %11109 = vmatpush2.bf16.msra.mxu0 %v10920
  %11110 = vmatprep.subr.bf16.mxu0 0
  %11111 = vmatpush2.bf16.msra.mxu0 %v10919
  %11112 = vmatprep.subr.bf16.mxu0 0
  %11113 = vmatpush2.bf16.msra.mxu0 %v10918
  %11114 = vmatprep.subr.bf16.mxu0 0
  %11115 = vmatpush2.bf16.msra.mxu0 %v10917
  %11116 = vmatprep.subr.bf16.mxu0 0
  %11117 = vmatpush2.bf16.msra.mxu0 %v10916
  %11118 = vmatprep.mubr.bf16.mxu0 %v10482
  %11119 = vmatmul.mubr.bf16.gmra.mxu0 %v10481
  %v11120 = vpop.f32.mrf.mxu0
  %v11121 = vadd.f32 %v11080, %v11120
  %v11122 = vpop.f32.mrf.mxu0
  %v11123 = vpop.f32.mrf.mxu0
  %v11124 = vadd.f32 %v11083, %v11123
  %v11125 = vpop.f32.mrf.mxu0
  %11126 = vdwg.mxu0
  %11127 = vmatprep.subr.bf16.mxu0 0
  %11128 = vmatpush1.bf16.msra.mxu0 %v10931
  %11129 = vmatprep.subr.bf16.mxu0 0
  %11130 = vmatpush1.bf16.msra.mxu0 %v10930
  %11131 = vmatprep.subr.bf16.mxu0 0
  %11132 = vmatpush1.bf16.msra.mxu0 %v10929
  %11133 = vmatprep.subr.bf16.mxu0 0
  %11134 = vmatpush1.bf16.msra.mxu0 %v10928
  %11135 = vmatprep.subr.bf16.mxu0 0
  %11136 = vmatpush1.bf16.msra.mxu0 %v10927
  %11137 = vmatprep.subr.bf16.mxu0 0
  %11138 = vmatpush1.bf16.msra.mxu0 %v10926
  %11139 = vmatprep.subr.bf16.mxu0 0
  %11140 = vmatpush1.bf16.msra.mxu0 %v10925
  %11141 = vmatprep.subr.bf16.mxu0 0
  %11142 = vmatpush1.bf16.msra.mxu0 %v10924
  %11143 = vmatprep.subr.bf16.mxu0 0
  %11144 = vmatpush2.bf16.msra.mxu0 %v10939
  %11145 = vmatprep.subr.bf16.mxu0 0
  %11146 = vmatpush2.bf16.msra.mxu0 %v10938
  %11147 = vmatprep.subr.bf16.mxu0 0
  %11148 = vmatpush2.bf16.msra.mxu0 %v10937
  %11149 = vmatprep.subr.bf16.mxu0 0
  %11150 = vmatpush2.bf16.msra.mxu0 %v10936
  %11151 = vmatprep.subr.bf16.mxu0 0
  %11152 = vmatpush2.bf16.msra.mxu0 %v10935
  %11153 = vmatprep.subr.bf16.mxu0 0
  %11154 = vmatpush2.bf16.msra.mxu0 %v10934
  %11155 = vmatprep.subr.bf16.mxu0 0
  %11156 = vmatpush2.bf16.msra.mxu0 %v10933
  %11157 = vmatprep.subr.bf16.mxu0 0
  %11158 = vmatpush2.bf16.msra.mxu0 %v10932
  %11159 = vmatprep.mubr.bf16.mxu0 %v10484
  %11160 = vmatmul.mubr.bf16.gmra.mxu0 %v10483
  %v11161 = vpop.f32.mrf.mxu0
  %v11162 = vadd.f32 %v11121, %v11161
  %v11163 = vpop.f32.mrf.mxu0
  %v11164 = vpop.f32.mrf.mxu0
  %v11165 = vadd.f32 %v11124, %v11164
  %v11166 = vpop.f32.mrf.mxu0
  %11167 = vdwg.mxu0
  %11168 = vst [vmem:[%s7] sm:$0xff] %v11162
  %11169 = vst [vmem:[%s7 + $0x8] sm:$0xff] %v11165
  // Predicated region
  $region30: #{inception_aux_forward.1} parent=0 // pred_check
    _
  $region31: #{inception_aux_forward.1} parent=0 // pred_check_branch
    %11171 = sbr.rel (0) target = $region33
  $region32: #{inception_aux_forward.1} parent=0 // pred_region
    _
  $region33: #{inception_aux_forward.1} parent=0 // pred_fallthru
    _
  // Predicated region
  $region34: #{inception_aux_forward.1} parent=0 // pred_check
    _
  $region35: #{inception_aux_forward.1} parent=0 // pred_check_branch
    %11173 = sbr.rel (0) target = $region37
  $region36: #{inception_aux_forward.1} parent=0 // pred_region
    _
  $region37: #{inception_aux_forward.1} parent=0 // pred_fallthru
    _

</llo_original>
